<compile_context>
chip_gen: v6e
topology: v6e:2x2x1
jax: 0.10.0
libtpu: 0.0.40
codegen_flags: <defaults>
</compile_context>

<pallas_src>
import numpy as np

import jax
import jax.numpy as jnp
from jax.experimental import pallas as pl
from jax.experimental.pallas import tpu as pltpu


C1 = 32          # conv1 output channels
C2 = 64          # conv2 output channels
TB = 8           # batch tile per grid step (8 => every row slice is sublane aligned)
P1 = 14 * 14     # conv1 output positions per image


# ---------------------------------------------------------------------------
# Host-side index bookkeeping (built once at trace time)
# ---------------------------------------------------------------------------
def _conv1_patch_perm(n_batch, tb):
    """Permutation taking conv1 im2col rows from natural (n, oy, ox) raster order
    to the kernel's order: per batch tile -> pool1 phase (dy,dx) major ->
    pool1 parity group (py%2, px%2) -> (u, v, n_local), where
    py = 2u+rp, px = 2v+cp, oy = 2*py+dy, ox = 2*px+dx."""
    perm = []
    for t in range(n_batch // tb):
        for dy in range(2):
            for dx in range(2):
                for rp in range(2):
                    for cp in range(2):
                        nu = 4 if rp == 0 else 3
                        nv = 4 if cp == 0 else 3
                        for u in range(nu):
                            for v in range(nv):
                                for nl in range(tb):
                                    n = t * tb + nl
                                    oy = 2 * (2 * u + rp) + dy
                                    ox = 2 * (2 * v + cp) + dx
                                    perm.append(n * P1 + oy * 14 + ox)
    return np.asarray(perm, dtype=np.int32)


# fc1 consumes pool2 spatial-position-major; PyTorch flattens NCHW (c, qy, qx).
# Permute fc1's 256 input rows once: kernel row s*64+c  <-  torch row c*4+s.
_FC1_PERM = np.asarray([c * 4 + s for s in range(4) for c in range(C2)],
                       dtype=np.int32)


def _tpu_compiler_params():
    cls = getattr(pltpu, "CompilerParams", None) or getattr(pltpu, "TPUCompilerParams", None)
    if cls is None:
        return None
    try:
        return cls(dimension_semantics=("parallel",))
    except Exception:
        return None


def _cost_estimate(n):
    if not hasattr(pl, "CostEstimate"):
        return None
    flops = 2 * n * (P1 * 9 * C1 + 16 * 25 * C1 * C2 + 4 * C2 * 32 + 32 * 16 + 16 * 10)
    bytes_accessed = 4 * (n * P1 * 9 + 25 * C1 * C2 + 4 * C2 * 32
                          + 32 * 16 + 16 * 10 + C1 + C2 + 58 + n * 10)
    return pl.CostEstimate(flops=flops, transcendentals=0,
                           bytes_accessed=bytes_accessed)


# ---------------------------------------------------------------------------
# The fused Pallas kernel (one batch tile of TB images per grid step)
# ---------------------------------------------------------------------------
def _convnet_kernel(p1_ref, w1_ref, b1_ref, w2_ref, b2_ref,
                    fc1w_ref, fc1b_ref, fc2w_ref, fc2b_ref, fc3w_ref, fc3b_ref,
                    out_ref,
                    s_ee, s_eo, s_oe, s_oo):
    f32 = jnp.float32
    tb = out_ref.shape[0]

    # ---- conv1 as one GEMM over pre-gathered patches, + bias + ReLU --------
    y1 = jnp.dot(p1_ref[...], w1_ref[...], preferred_element_type=f32)
    y1 = jnp.maximum(y1 + b1_ref[...], 0.0)                 # (4*49*tb, C1)

    # ---- pool1: elementwise max over the 4 pool-phase row blocks -----------
    q = 49 * tb
    pool1 = jnp.maximum(jnp.maximum(y1[0:q], y1[q:2 * q]),
                        jnp.maximum(y1[2 * q:3 * q], y1[3 * q:4 * q]))  # (49*tb, C1)

    # ---- scatter pool1 into zero-padded parity-phase scratch (conv2 input) -
    s_ee[...] = jnp.zeros_like(s_ee)
    s_eo[...] = jnp.zeros_like(s_eo)
    s_oe[...] = jnp.zeros_like(s_oe)
    s_oo[...] = jnp.zeros_like(s_oo)
    o1, o2, o3, o4 = 16 * tb, 28 * tb, 40 * tb, 49 * tb
    s_ee[1:5, 1:5, :, :] = pool1[0:o1].reshape(4, 4, tb, C1)   # (py even, px even)
    s_eo[1:5, 1:4, :, :] = pool1[o1:o2].reshape(4, 3, tb, C1)  # (py even, px odd)
    s_oe[1:4, 1:5, :, :] = pool1[o2:o3].reshape(3, 4, tb, C1)  # (py odd,  px even)
    s_oo[1:4, 1:4, :, :] = pool1[o3:o4].reshape(3, 3, tb, C1)  # (py odd,  px odd)

    # ---- conv2: 25 per-tap GEMMs over contiguous phase-scratch slices ------
    phases = ((s_ee, s_eo), (s_oe, s_oo))
    acc2 = jnp.zeros((16 * tb, C2), f32)
    for ki in range(5):
        for kj in range(5):
            src = phases[ki % 2][kj % 2]
            a, b = ki // 2, kj // 2
            lhs = src[a:a + 4, b:b + 4, :, :].reshape(16 * tb, C1)
            t = ki * 5 + kj
            acc2 = acc2 + jnp.dot(lhs, w2_ref[t * C1:(t + 1) * C1, :],
                                  preferred_element_type=f32)
    y2 = jnp.maximum(acc2 + b2_ref[...], 0.0)               # rows = (oy, ox, n)

    # ---- pool2 fused with fc1 (per spatial position: max of 4 row blocks) --
    z1 = jnp.zeros((tb, 32), f32)
    for qy in range(2):
        for qx in range(2):
            def blk(bb, dd):
                r = ((2 * qy + bb) * 4 + (2 * qx + dd)) * tb
                return y2[r:r + tb]
            m = jnp.maximum(jnp.maximum(blk(0, 0), blk(0, 1)),
                            jnp.maximum(blk(1, 0), blk(1, 1)))  # (tb, C2)
            s = qy * 2 + qx
            z1 = z1 + jnp.dot(m, fc1w_ref[s * C2:(s + 1) * C2, :],
                              preferred_element_type=f32)
    z1 = jnp.maximum(z1 + fc1b_ref[...], 0.0)

    # ---- fc2 / fc3 on VMEM-resident activations -----------------------------
    z2 = jnp.maximum(jnp.dot(z1, fc2w_ref[...], preferred_element_type=f32)
                     + fc2b_ref[...], 0.0)
    z3 = jnp.dot(z2, fc3w_ref[...], preferred_element_type=f32) + fc3b_ref[...]
    out_ref[...] = z3.astype(out_ref.dtype)


# ---------------------------------------------------------------------------
# Wrapper: plain-JAX prep (input-only im2col + one-time weight relayout) + call
# ---------------------------------------------------------------------------
def convnet_forward(x_nchw, params, *, tb=TB):
    n = x_nchw.shape[0]
    assert x_nchw.shape[1:] == (1, 28, 28), x_nchw.shape
    assert n % tb == 0, (n, tb)

    # conv1 im2col on the raw input only (tiny), in the kernel's row order.
    xpad = jnp.pad(x_nchw[:, 0], ((0, 0), (1, 1), (1, 1)))          # (N, 30, 30)
    cols = [xpad[:, ki:ki + 28:2, kj:kj + 28:2]
            for ki in range(3) for kj in range(3)]                   # 9 x (N,14,14)
    patches = jnp.stack(cols, axis=-1).reshape(n * P1, 9)
    patches = patches[jnp.asarray(_conv1_patch_perm(n, tb))]         # (N*196, 9)

    # One-time weight relayout (cheap, constant-folded under jit).
    w1 = params["w1"].reshape(9, C1)
    b1 = params["b1"].reshape(1, C1)
    w2 = params["w2"].reshape(25 * C1, C2)
    b2 = params["b2"].reshape(1, C2)
    fc1w = params["fc1_w"][jnp.asarray(_FC1_PERM)]                   # (256, 32)
    fc1b = params["fc1_b"].reshape(1, 32)
    fc2w = params["fc2_w"]
    fc2b = params["fc2_b"].reshape(1, 16)
    fc3w = params["fc3_w"]
    fc3b = params["fc3_b"].reshape(1, 10)

    return pl.pallas_call(
        _convnet_kernel,
        out_shape=jax.ShapeDtypeStruct((n, 10), jnp.float32),
        grid=(n // tb,),
        in_specs=[
            pl.BlockSpec((tb * P1, 9), lambda i: (i, 0)),        # conv1 patches
            pl.BlockSpec((9, C1), lambda i: (0, 0)),             # w1
            pl.BlockSpec((1, C1), lambda i: (0, 0)),             # b1
            pl.BlockSpec((25 * C1, C2), lambda i: (0, 0)),       # w2
            pl.BlockSpec((1, C2), lambda i: (0, 0)),             # b2
            pl.BlockSpec((4 * C2, 32), lambda i: (0, 0)),        # fc1_w (permuted)
            pl.BlockSpec((1, 32), lambda i: (0, 0)),             # fc1_b
            pl.BlockSpec((32, 16), lambda i: (0, 0)),            # fc2_w
            pl.BlockSpec((1, 16), lambda i: (0, 0)),             # fc2_b
            pl.BlockSpec((16, 10), lambda i: (0, 0)),            # fc3_w
            pl.BlockSpec((1, 10), lambda i: (0, 0)),             # fc3_b
        ],
        out_specs=pl.BlockSpec((tb, 10), lambda i: (i, 0)),
        scratch_shapes=[
            pltpu.VMEM((6, 6, tb, C1), jnp.float32),             # even rows / even cols
            pltpu.VMEM((6, 5, tb, C1), jnp.float32),             # even rows / odd cols
            pltpu.VMEM((5, 6, tb, C1), jnp.float32),             # odd rows / even cols
            pltpu.VMEM((5, 5, tb, C1), jnp.float32),             # odd rows / odd cols
        ],
        compiler_params=_tpu_compiler_params(),
        cost_estimate=_cost_estimate(n),
    )(patches, w1, b1, w2, b2, fc1w, fc1b, fc2w, fc2b, fc3w, fc3b)


# ---------------------------------------------------------------------------
# Parameters (deterministic synthetic init, PyTorch-equivalent layouts)
# ---------------------------------------------------------------------------
def init_params(key):
    ks = jax.random.split(key, 10)

    def w(k, shape, fan_in):
        return jax.random.normal(k, shape, jnp.float32) / jnp.sqrt(fan_in)

    def b(k, shape):
        return 0.1 * jax.random.normal(k, shape, jnp.float32)

    return {
        # conv1: Conv2d(1, 32, 3, stride=2, pad=1); weight stored HWIO
        "w1": w(ks[0], (3, 3, 1, C1), 3 * 3 * 1),
        "b1": b(ks[1], (C1,)),
        # conv2: Conv2d(32, 64, 5, stride=2, pad=2)
        "w2": w(ks[2], (5, 5, C1, C2), 5 * 5 * C1),
        "b2": b(ks[3], (C2,)),
        # fc1: Linear(256, 32); (in, out) layout, inputs in NCHW-flatten order
        "fc1_w": w(ks[4], (256, 32), 256),
        "fc1_b": b(ks[5], (32,)),
        "fc2_w": w(ks[6], (32, 16), 32),
        "fc2_b": b(ks[7], (16,)),
        "fc3_w": w(ks[8], (16, 10), 16),
        "fc3_b": b(ks[9], (10,)),
    }


# ---------------------------------------------------------------------------
# Pure-JAX reference (mirrors the PyTorch module) for a correctness check
# ---------------------------------------------------------------------------
def convnet_reference(x_nchw, params):
    n = x_nchw.shape[0]
    x = jnp.transpose(x_nchw, (0, 2, 3, 1))                         # NHWC
    dn = ("NHWC", "HWIO", "NHWC")
    y = jax.lax.conv_general_dilated(x, params["w1"], (2, 2), ((1, 1), (1, 1)),
                                     dimension_numbers=dn)
    y = jax.nn.relu(y + params["b1"])
    y = jax.lax.reduce_window(y, -jnp.inf, jax.lax.max,
                              (1, 2, 2, 1), (1, 2, 2, 1), "VALID")
    y = jax.lax.conv_general_dilated(y, params["w2"], (2, 2), ((2, 2), (2, 2)),
                                     dimension_numbers=dn)
    y = jax.nn.relu(y + params["b2"])
    y = jax.lax.reduce_window(y, -jnp.inf, jax.lax.max,
                              (1, 2, 2, 1), (1, 2, 2, 1), "VALID")
    y = jnp.transpose(y, (0, 3, 1, 2)).reshape(n, 256)              # NCHW flatten
    y = jax.nn.relu(y @ params["fc1_w"] + params["fc1_b"])
    y = jax.nn.relu(y @ params["fc2_w"] + params["fc2_b"])
    return y @ params["fc3_w"] + params["fc3_b"]


# ---------------------------------------------------------------------------
if __name__ == "__main__":
    key = jax.random.PRNGKey(0)
    k_x, k_p = jax.random.split(key)

    batch = 16                        # 2 grid steps of TB=8 images each
    x = jax.random.normal(k_x, (batch, 1, 28, 28), jnp.float32)
    params = init_params(k_p)

    fwd = jax.jit(convnet_forward)
    logits = fwd(x, params)
    jax.block_until_ready(logits)
    assert logits.shape == (batch, 10), logits.shape

    ref = jax.jit(convnet_reference)(x, params)
    np.testing.assert_allclose(np.asarray(logits), np.asarray(ref),
                               rtol=2e-2, atol=2e-2)

    print("KERNEL_OK")
</pallas_src>

<mosaic_0001>
module attributes {stable_mosaic.version = 11 : i64} {
  func.func @_convnet_kernel(%arg0: i32, %arg1: memref<1568x9xf32, #tpu.memory_space<vmem>>, %arg2: memref<9x32xf32, #tpu.memory_space<vmem>>, %arg3: memref<1x32xf32, #tpu.memory_space<vmem>>, %arg4: memref<800x64xf32, #tpu.memory_space<vmem>>, %arg5: memref<1x64xf32, #tpu.memory_space<vmem>>, %arg6: memref<256x32xf32, #tpu.memory_space<vmem>>, %arg7: memref<1x32xf32, #tpu.memory_space<vmem>>, %arg8: memref<32x16xf32, #tpu.memory_space<vmem>>, %arg9: memref<1x16xf32, #tpu.memory_space<vmem>>, %arg10: memref<16x10xf32, #tpu.memory_space<vmem>>, %arg11: memref<1x10xf32, #tpu.memory_space<vmem>>, %arg12: memref<8x10xf32, #tpu.memory_space<vmem>>, %arg13: memref<6x6x8x32xf32, #tpu.memory_space<vmem>>, %arg14: memref<6x5x8x32xf32, #tpu.memory_space<vmem>>, %arg15: memref<5x6x8x32xf32, #tpu.memory_space<vmem>>, %arg16: memref<5x5x8x32xf32, #tpu.memory_space<vmem>>) attributes {dimension_semantics = [#tpu.dimension_semantics<parallel>], iteration_bounds = array<i64: 2>, scalar_prefetch = 0 : i64, scratch_operands = 4 : i64, tpu.core_type = #tpu.core_type<tc>, window_params = [{transform_indices = @transform_0, window_bounds = array<i64: 1568, 9>}, {pipeline_mode = #tpu.pipeline_mode<synchronous>, transform_indices = @transform_1, window_bounds = array<i64: 9, 32>}, {pipeline_mode = #tpu.pipeline_mode<synchronous>, transform_indices = @transform_2, window_bounds = array<i64: 1, 32>}, {pipeline_mode = #tpu.pipeline_mode<synchronous>, transform_indices = @transform_3, window_bounds = array<i64: 800, 64>}, {pipeline_mode = #tpu.pipeline_mode<synchronous>, transform_indices = @transform_4, window_bounds = array<i64: 1, 64>}, {pipeline_mode = #tpu.pipeline_mode<synchronous>, transform_indices = @transform_5, window_bounds = array<i64: 256, 32>}, {pipeline_mode = #tpu.pipeline_mode<synchronous>, transform_indices = @transform_6, window_bounds = array<i64: 1, 32>}, {pipeline_mode = #tpu.pipeline_mode<synchronous>, transform_indices = @transform_7, window_bounds = array<i64: 32, 16>}, {pipeline_mode = #tpu.pipeline_mode<synchronous>, transform_indices = @transform_8, window_bounds = array<i64: 1, 16>}, {pipeline_mode = #tpu.pipeline_mode<synchronous>, transform_indices = @transform_9, window_bounds = array<i64: 16, 10>}, {pipeline_mode = #tpu.pipeline_mode<synchronous>, transform_indices = @transform_10, window_bounds = array<i64: 1, 10>}, {transform_indices = @transform_11, window_bounds = array<i64: 8, 10>}]} {
    %c0 = arith.constant 0 : index
    %c0_0 = arith.constant 0 : index
    %0 = vector.load %arg1[%c0, %c0_0] : memref<1568x9xf32, #tpu.memory_space<vmem>>, vector<1568x9xf32>
    %c0_1 = arith.constant 0 : index
    %c0_2 = arith.constant 0 : index
    %1 = vector.load %arg2[%c0_1, %c0_2] : memref<9x32xf32, #tpu.memory_space<vmem>>, vector<9x32xf32>
    %cst = arith.constant dense<0.000000e+00> : vector<1568x32xf32>
    %2 = tpu.matmul %0, %1, %cst {dimension_numbers = #tpu.dot_dimension_numbers<[1], [0], [0], [1], [0, 0, 1, 1], [], []>} : vector<1568x9xf32>, vector<9x32xf32>, vector<1568x32xf32> -> vector<1568x32xf32>
    %c0_3 = arith.constant 0 : index
    %c0_4 = arith.constant 0 : index
    %3 = vector.load %arg3[%c0_3, %c0_4] : memref<1x32xf32, #tpu.memory_space<vmem>>, vector<1x32xf32>
    %4 = vector.broadcast %3 : vector<1x32xf32> to vector<1568x32xf32>
    %5 = arith.addf %2, %4 : vector<1568x32xf32>
    %cst_5 = arith.constant 0.000000e+00 : f32
    %6 = vector.broadcast %cst_5 : f32 to vector<1568x32xf32>
    %7 = arith.maximumf %5, %6 : vector<1568x32xf32>
    %8 = vector.extract_strided_slice %7 {offsets = [0, 0], sizes = [392, 32], strides = [1, 1]} : vector<1568x32xf32> to vector<392x32xf32>
    %9 = vector.extract_strided_slice %7 {offsets = [392, 0], sizes = [392, 32], strides = [1, 1]} : vector<1568x32xf32> to vector<392x32xf32>
    %10 = arith.maximumf %8, %9 : vector<392x32xf32>
    %11 = vector.extract_strided_slice %7 {offsets = [784, 0], sizes = [392, 32], strides = [1, 1]} : vector<1568x32xf32> to vector<392x32xf32>
    %12 = vector.extract_strided_slice %7 {offsets = [1176, 0], sizes = [392, 32], strides = [1, 1]} : vector<1568x32xf32> to vector<392x32xf32>
    %13 = arith.maximumf %11, %12 : vector<392x32xf32>
    %14 = arith.maximumf %10, %13 : vector<392x32xf32>
    %cst_6 = arith.constant 0.000000e+00 : f32
    %15 = vector.broadcast %cst_6 : f32 to vector<6x6x8x32xf32>
    %c0_7 = arith.constant 0 : index
    %c0_8 = arith.constant 0 : index
    %c0_9 = arith.constant 0 : index
    %c0_10 = arith.constant 0 : index
    %16 = vector.load %arg13[%c0_7, %c0_8, %c0_9, %c0_10] : memref<6x6x8x32xf32, #tpu.memory_space<vmem>>, vector<6x6x8x32xf32>
    tpu.vector_store %arg13[%c0_7, %c0_8, %c0_9, %c0_10], %15 {strides = array<i32>} : memref<6x6x8x32xf32, #tpu.memory_space<vmem>>, vector<6x6x8x32xf32>,
    %cst_11 = arith.constant 0.000000e+00 : f32
    %17 = vector.broadcast %cst_11 : f32 to vector<6x5x8x32xf32>
    %c0_12 = arith.constant 0 : index
    %c0_13 = arith.constant 0 : index
    %c0_14 = arith.constant 0 : index
    %c0_15 = arith.constant 0 : index
    %18 = vector.load %arg14[%c0_12, %c0_13, %c0_14, %c0_15] : memref<6x5x8x32xf32, #tpu.memory_space<vmem>>, vector<6x5x8x32xf32>
    tpu.vector_store %arg14[%c0_12, %c0_13, %c0_14, %c0_15], %17 {strides = array<i32>} : memref<6x5x8x32xf32, #tpu.memory_space<vmem>>, vector<6x5x8x32xf32>,
    %cst_16 = arith.constant 0.000000e+00 : f32
    %19 = vector.broadcast %cst_16 : f32 to vector<5x6x8x32xf32>
    %c0_17 = arith.constant 0 : index
    %c0_18 = arith.constant 0 : index
    %c0_19 = arith.constant 0 : index
    %c0_20 = arith.constant 0 : index
    %20 = vector.load %arg15[%c0_17, %c0_18, %c0_19, %c0_20] : memref<5x6x8x32xf32, #tpu.memory_space<vmem>>, vector<5x6x8x32xf32>
    tpu.vector_store %arg15[%c0_17, %c0_18, %c0_19, %c0_20], %19 {strides = array<i32>} : memref<5x6x8x32xf32, #tpu.memory_space<vmem>>, vector<5x6x8x32xf32>,
    %cst_21 = arith.constant 0.000000e+00 : f32
    %21 = vector.broadcast %cst_21 : f32 to vector<5x5x8x32xf32>
    %c0_22 = arith.constant 0 : index
    %c0_23 = arith.constant 0 : index
    %c0_24 = arith.constant 0 : index
    %c0_25 = arith.constant 0 : index
    %22 = vector.load %arg16[%c0_22, %c0_23, %c0_24, %c0_25] : memref<5x5x8x32xf32, #tpu.memory_space<vmem>>, vector<5x5x8x32xf32>
    tpu.vector_store %arg16[%c0_22, %c0_23, %c0_24, %c0_25], %21 {strides = array<i32>} : memref<5x5x8x32xf32, #tpu.memory_space<vmem>>, vector<5x5x8x32xf32>,
    %23 = vector.extract_strided_slice %14 {offsets = [0, 0], sizes = [128, 32], strides = [1, 1]} : vector<392x32xf32> to vector<128x32xf32>
    %24 = vector.shape_cast %23 : vector<128x32xf32> to vector<4x4x8x32xf32>
    %c1 = arith.constant 1 : index
    %c1_26 = arith.constant 1 : index
    %c0_27 = arith.constant 0 : index
    %c0_28 = arith.constant 0 : index
    %25 = vector.load %arg13[%c1, %c1_26, %c0_27, %c0_28] : memref<6x6x8x32xf32, #tpu.memory_space<vmem>>, vector<4x4x8x32xf32>
    tpu.vector_store %arg13[%c1, %c1_26, %c0_27, %c0_28], %24 {strides = array<i32>} : memref<6x6x8x32xf32, #tpu.memory_space<vmem>>, vector<4x4x8x32xf32>,
    %26 = vector.extract_strided_slice %14 {offsets = [128, 0], sizes = [96, 32], strides = [1, 1]} : vector<392x32xf32> to vector<96x32xf32>
    %27 = vector.shape_cast %26 : vector<96x32xf32> to vector<4x3x8x32xf32>
    %c1_29 = arith.constant 1 : index
    %c1_30 = arith.constant 1 : index
    %c0_31 = arith.constant 0 : index
    %c0_32 = arith.constant 0 : index
    %28 = vector.load %arg14[%c1_29, %c1_30, %c0_31, %c0_32] : memref<6x5x8x32xf32, #tpu.memory_space<vmem>>, vector<4x3x8x32xf32>
    tpu.vector_store %arg14[%c1_29, %c1_30, %c0_31, %c0_32], %27 {strides = array<i32>} : memref<6x5x8x32xf32, #tpu.memory_space<vmem>>, vector<4x3x8x32xf32>,
    %29 = vector.extract_strided_slice %14 {offsets = [224, 0], sizes = [96, 32], strides = [1, 1]} : vector<392x32xf32> to vector<96x32xf32>
    %30 = vector.shape_cast %29 : vector<96x32xf32> to vector<3x4x8x32xf32>
    %c1_33 = arith.constant 1 : index
    %c1_34 = arith.constant 1 : index
    %c0_35 = arith.constant 0 : index
    %c0_36 = arith.constant 0 : index
    %31 = vector.load %arg15[%c1_33, %c1_34, %c0_35, %c0_36] : memref<5x6x8x32xf32, #tpu.memory_space<vmem>>, vector<3x4x8x32xf32>
    tpu.vector_store %arg15[%c1_33, %c1_34, %c0_35, %c0_36], %30 {strides = array<i32>} : memref<5x6x8x32xf32, #tpu.memory_space<vmem>>, vector<3x4x8x32xf32>,
    %32 = vector.extract_strided_slice %14 {offsets = [320, 0], sizes = [72, 32], strides = [1, 1]} : vector<392x32xf32> to vector<72x32xf32>
    %33 = vector.shape_cast %32 : vector<72x32xf32> to vector<3x3x8x32xf32>
    %c1_37 = arith.constant 1 : index
    %c1_38 = arith.constant 1 : index
    %c0_39 = arith.constant 0 : index
    %c0_40 = arith.constant 0 : index
    %34 = vector.load %arg16[%c1_37, %c1_38, %c0_39, %c0_40] : memref<5x5x8x32xf32, #tpu.memory_space<vmem>>, vector<3x3x8x32xf32>
    tpu.vector_store %arg16[%c1_37, %c1_38, %c0_39, %c0_40], %33 {strides = array<i32>} : memref<5x5x8x32xf32, #tpu.memory_space<vmem>>, vector<3x3x8x32xf32>,
    %cst_41 = arith.constant 0.000000e+00 : f32
    %35 = vector.broadcast %cst_41 : f32 to vector<128x64xf32>
    %c0_42 = arith.constant 0 : index
    %c0_43 = arith.constant 0 : index
    %c0_44 = arith.constant 0 : index
    %c0_45 = arith.constant 0 : index
    %36 = vector.load %arg13[%c0_42, %c0_43, %c0_44, %c0_45] : memref<6x6x8x32xf32, #tpu.memory_space<vmem>>, vector<4x4x8x32xf32>
    %37 = vector.shape_cast %36 : vector<4x4x8x32xf32> to vector<128x32xf32>
    %c0_46 = arith.constant 0 : index
    %c0_47 = arith.constant 0 : index
    %38 = vector.load %arg4[%c0_46, %c0_47] : memref<800x64xf32, #tpu.memory_space<vmem>>, vector<32x64xf32>
    %cst_48 = arith.constant dense<0.000000e+00> : vector<128x64xf32>
    %39 = tpu.matmul %37, %38, %cst_48 {dimension_numbers = #tpu.dot_dimension_numbers<[1], [0], [0], [1], [0, 0, 1, 1], [], []>} : vector<128x32xf32>, vector<32x64xf32>, vector<128x64xf32> -> vector<128x64xf32>
    %40 = arith.addf %35, %39 : vector<128x64xf32>
    %c0_49 = arith.constant 0 : index
    %c0_50 = arith.constant 0 : index
    %c0_51 = arith.constant 0 : index
    %c0_52 = arith.constant 0 : index
    %41 = vector.load %arg14[%c0_49, %c0_50, %c0_51, %c0_52] : memref<6x5x8x32xf32, #tpu.memory_space<vmem>>, vector<4x4x8x32xf32>
    %42 = vector.shape_cast %41 : vector<4x4x8x32xf32> to vector<128x32xf32>
    %c32 = arith.constant 32 : index
    %c0_53 = arith.constant 0 : index
    %43 = vector.load %arg4[%c32, %c0_53] : memref<800x64xf32, #tpu.memory_space<vmem>>, vector<32x64xf32>
    %cst_54 = arith.constant dense<0.000000e+00> : vector<128x64xf32>
    %44 = tpu.matmul %42, %43, %cst_54 {dimension_numbers = #tpu.dot_dimension_numbers<[1], [0], [0], [1], [0, 0, 1, 1], [], []>} : vector<128x32xf32>, vector<32x64xf32>, vector<128x64xf32> -> vector<128x64xf32>
    %45 = arith.addf %40, %44 : vector<128x64xf32>
    %c0_55 = arith.constant 0 : index
    %c1_56 = arith.constant 1 : index
    %c0_57 = arith.constant 0 : index
    %c0_58 = arith.constant 0 : index
    %46 = vector.load %arg13[%c0_55, %c1_56, %c0_57, %c0_58] : memref<6x6x8x32xf32, #tpu.memory_space<vmem>>, vector<4x4x8x32xf32>
    %47 = vector.shape_cast %46 : vector<4x4x8x32xf32> to vector<128x32xf32>
    %c64 = arith.constant 64 : index
    %c0_59 = arith.constant 0 : index
    %48 = vector.load %arg4[%c64, %c0_59] : memref<800x64xf32, #tpu.memory_space<vmem>>, vector<32x64xf32>
    %cst_60 = arith.constant dense<0.000000e+00> : vector<128x64xf32>
    %49 = tpu.matmul %47, %48, %cst_60 {dimension_numbers = #tpu.dot_dimension_numbers<[1], [0], [0], [1], [0, 0, 1, 1], [], []>} : vector<128x32xf32>, vector<32x64xf32>, vector<128x64xf32> -> vector<128x64xf32>
    %50 = arith.addf %45, %49 : vector<128x64xf32>
    %c0_61 = arith.constant 0 : index
    %c1_62 = arith.constant 1 : index
    %c0_63 = arith.constant 0 : index
    %c0_64 = arith.constant 0 : index
    %51 = vector.load %arg14[%c0_61, %c1_62, %c0_63, %c0_64] : memref<6x5x8x32xf32, #tpu.memory_space<vmem>>, vector<4x4x8x32xf32>
    %52 = vector.shape_cast %51 : vector<4x4x8x32xf32> to vector<128x32xf32>
    %c96 = arith.constant 96 : index
    %c0_65 = arith.constant 0 : index
    %53 = vector.load %arg4[%c96, %c0_65] : memref<800x64xf32, #tpu.memory_space<vmem>>, vector<32x64xf32>
    %cst_66 = arith.constant dense<0.000000e+00> : vector<128x64xf32>
    %54 = tpu.matmul %52, %53, %cst_66 {dimension_numbers = #tpu.dot_dimension_numbers<[1], [0], [0], [1], [0, 0, 1, 1], [], []>} : vector<128x32xf32>, vector<32x64xf32>, vector<128x64xf32> -> vector<128x64xf32>
    %55 = arith.addf %50, %54 : vector<128x64xf32>
    %c0_67 = arith.constant 0 : index
    %c2 = arith.constant 2 : index
    %c0_68 = arith.constant 0 : index
    %c0_69 = arith.constant 0 : index
    %56 = vector.load %arg13[%c0_67, %c2, %c0_68, %c0_69] : memref<6x6x8x32xf32, #tpu.memory_space<vmem>>, vector<4x4x8x32xf32>
    %57 = vector.shape_cast %56 : vector<4x4x8x32xf32> to vector<128x32xf32>
    %c128 = arith.constant 128 : index
    %c0_70 = arith.constant 0 : index
    %58 = vector.load %arg4[%c128, %c0_70] : memref<800x64xf32, #tpu.memory_space<vmem>>, vector<32x64xf32>
    %cst_71 = arith.constant dense<0.000000e+00> : vector<128x64xf32>
    %59 = tpu.matmul %57, %58, %cst_71 {dimension_numbers = #tpu.dot_dimension_numbers<[1], [0], [0], [1], [0, 0, 1, 1], [], []>} : vector<128x32xf32>, vector<32x64xf32>, vector<128x64xf32> -> vector<128x64xf32>
    %60 = arith.addf %55, %59 : vector<128x64xf32>
    %c0_72 = arith.constant 0 : index
    %c0_73 = arith.constant 0 : index
    %c0_74 = arith.constant 0 : index
    %c0_75 = arith.constant 0 : index
    %61 = vector.load %arg15[%c0_72, %c0_73, %c0_74, %c0_75] : memref<5x6x8x32xf32, #tpu.memory_space<vmem>>, vector<4x4x8x32xf32>
    %62 = vector.shape_cast %61 : vector<4x4x8x32xf32> to vector<128x32xf32>
    %c160 = arith.constant 160 : index
    %c0_76 = arith.constant 0 : index
    %63 = vector.load %arg4[%c160, %c0_76] : memref<800x64xf32, #tpu.memory_space<vmem>>, vector<32x64xf32>
    %cst_77 = arith.constant dense<0.000000e+00> : vector<128x64xf32>
    %64 = tpu.matmul %62, %63, %cst_77 {dimension_numbers = #tpu.dot_dimension_numbers<[1], [0], [0], [1], [0, 0, 1, 1], [], []>} : vector<128x32xf32>, vector<32x64xf32>, vector<128x64xf32> -> vector<128x64xf32>
    %65 = arith.addf %60, %64 : vector<128x64xf32>
    %c0_78 = arith.constant 0 : index
    %c0_79 = arith.constant 0 : index
    %c0_80 = arith.constant 0 : index
    %c0_81 = arith.constant 0 : index
    %66 = vector.load %arg16[%c0_78, %c0_79, %c0_80, %c0_81] : memref<5x5x8x32xf32, #tpu.memory_space<vmem>>, vector<4x4x8x32xf32>
    %67 = vector.shape_cast %66 : vector<4x4x8x32xf32> to vector<128x32xf32>
    %c192 = arith.constant 192 : index
    %c0_82 = arith.constant 0 : index
    %68 = vector.load %arg4[%c192, %c0_82] : memref<800x64xf32, #tpu.memory_space<vmem>>, vector<32x64xf32>
    %cst_83 = arith.constant dense<0.000000e+00> : vector<128x64xf32>
    %69 = tpu.matmul %67, %68, %cst_83 {dimension_numbers = #tpu.dot_dimension_numbers<[1], [0], [0], [1], [0, 0, 1, 1], [], []>} : vector<128x32xf32>, vector<32x64xf32>, vector<128x64xf32> -> vector<128x64xf32>
    %70 = arith.addf %65, %69 : vector<128x64xf32>
    %c0_84 = arith.constant 0 : index
    %c1_85 = arith.constant 1 : index
    %c0_86 = arith.constant 0 : index
    %c0_87 = arith.constant 0 : index
    %71 = vector.load %arg15[%c0_84, %c1_85, %c0_86, %c0_87] : memref<5x6x8x32xf32, #tpu.memory_space<vmem>>, vector<4x4x8x32xf32>
    %72 = vector.shape_cast %71 : vector<4x4x8x32xf32> to vector<128x32xf32>
    %c224 = arith.constant 224 : index
    %c0_88 = arith.constant 0 : index
    %73 = vector.load %arg4[%c224, %c0_88] : memref<800x64xf32, #tpu.memory_space<vmem>>, vector<32x64xf32>
    %cst_89 = arith.constant dense<0.000000e+00> : vector<128x64xf32>
    %74 = tpu.matmul %72, %73, %cst_89 {dimension_numbers = #tpu.dot_dimension_numbers<[1], [0], [0], [1], [0, 0, 1, 1], [], []>} : vector<128x32xf32>, vector<32x64xf32>, vector<128x64xf32> -> vector<128x64xf32>
    %75 = arith.addf %70, %74 : vector<128x64xf32>
    %c0_90 = arith.constant 0 : index
    %c1_91 = arith.constant 1 : index
    %c0_92 = arith.constant 0 : index
    %c0_93 = arith.constant 0 : index
    %76 = vector.load %arg16[%c0_90, %c1_91, %c0_92, %c0_93] : memref<5x5x8x32xf32, #tpu.memory_space<vmem>>, vector<4x4x8x32xf32>
    %77 = vector.shape_cast %76 : vector<4x4x8x32xf32> to vector<128x32xf32>
    %c256 = arith.constant 256 : index
    %c0_94 = arith.constant 0 : index
    %78 = vector.load %arg4[%c256, %c0_94] : memref<800x64xf32, #tpu.memory_space<vmem>>, vector<32x64xf32>
    %cst_95 = arith.constant dense<0.000000e+00> : vector<128x64xf32>
    %79 = tpu.matmul %77, %78, %cst_95 {dimension_numbers = #tpu.dot_dimension_numbers<[1], [0], [0], [1], [0, 0, 1, 1], [], []>} : vector<128x32xf32>, vector<32x64xf32>, vector<128x64xf32> -> vector<128x64xf32>
    %80 = arith.addf %75, %79 : vector<128x64xf32>
    %c0_96 = arith.constant 0 : index
    %c2_97 = arith.constant 2 : index
    %c0_98 = arith.constant 0 : index
    %c0_99 = arith.constant 0 : index
    %81 = vector.load %arg15[%c0_96, %c2_97, %c0_98, %c0_99] : memref<5x6x8x32xf32, #tpu.memory_space<vmem>>, vector<4x4x8x32xf32>
    %82 = vector.shape_cast %81 : vector<4x4x8x32xf32> to vector<128x32xf32>
    %c288 = arith.constant 288 : index
    %c0_100 = arith.constant 0 : index
    %83 = vector.load %arg4[%c288, %c0_100] : memref<800x64xf32, #tpu.memory_space<vmem>>, vector<32x64xf32>
    %cst_101 = arith.constant dense<0.000000e+00> : vector<128x64xf32>
    %84 = tpu.matmul %82, %83, %cst_101 {dimension_numbers = #tpu.dot_dimension_numbers<[1], [0], [0], [1], [0, 0, 1, 1], [], []>} : vector<128x32xf32>, vector<32x64xf32>, vector<128x64xf32> -> vector<128x64xf32>
    %85 = arith.addf %80, %84 : vector<128x64xf32>
    %c1_102 = arith.constant 1 : index
    %c0_103 = arith.constant 0 : index
    %c0_104 = arith.constant 0 : index
    %c0_105 = arith.constant 0 : index
    %86 = vector.load %arg13[%c1_102, %c0_103, %c0_104, %c0_105] : memref<6x6x8x32xf32, #tpu.memory_space<vmem>>, vector<4x4x8x32xf32>
    %87 = vector.shape_cast %86 : vector<4x4x8x32xf32> to vector<128x32xf32>
    %c320 = arith.constant 320 : index
    %c0_106 = arith.constant 0 : index
    %88 = vector.load %arg4[%c320, %c0_106] : memref<800x64xf32, #tpu.memory_space<vmem>>, vector<32x64xf32>
    %cst_107 = arith.constant dense<0.000000e+00> : vector<128x64xf32>
    %89 = tpu.matmul %87, %88, %cst_107 {dimension_numbers = #tpu.dot_dimension_numbers<[1], [0], [0], [1], [0, 0, 1, 1], [], []>} : vector<128x32xf32>, vector<32x64xf32>, vector<128x64xf32> -> vector<128x64xf32>
    %90 = arith.addf %85, %89 : vector<128x64xf32>
    %c1_108 = arith.constant 1 : index
    %c0_109 = arith.constant 0 : index
    %c0_110 = arith.constant 0 : index
    %c0_111 = arith.constant 0 : index
    %91 = vector.load %arg14[%c1_108, %c0_109, %c0_110, %c0_111] : memref<6x5x8x32xf32, #tpu.memory_space<vmem>>, vector<4x4x8x32xf32>
    %92 = vector.shape_cast %91 : vector<4x4x8x32xf32> to vector<128x32xf32>
    %c352 = arith.constant 352 : index
    %c0_112 = arith.constant 0 : index
    %93 = vector.load %arg4[%c352, %c0_112] : memref<800x64xf32, #tpu.memory_space<vmem>>, vector<32x64xf32>
    %cst_113 = arith.constant dense<0.000000e+00> : vector<128x64xf32>
    %94 = tpu.matmul %92, %93, %cst_113 {dimension_numbers = #tpu.dot_dimension_numbers<[1], [0], [0], [1], [0, 0, 1, 1], [], []>} : vector<128x32xf32>, vector<32x64xf32>, vector<128x64xf32> -> vector<128x64xf32>
    %95 = arith.addf %90, %94 : vector<128x64xf32>
    %c1_114 = arith.constant 1 : index
    %c1_115 = arith.constant 1 : index
    %c0_116 = arith.constant 0 : index
    %c0_117 = arith.constant 0 : index
    %96 = vector.load %arg13[%c1_114, %c1_115, %c0_116, %c0_117] : memref<6x6x8x32xf32, #tpu.memory_space<vmem>>, vector<4x4x8x32xf32>
    %97 = vector.shape_cast %96 : vector<4x4x8x32xf32> to vector<128x32xf32>
    %c384 = arith.constant 384 : index
    %c0_118 = arith.constant 0 : index
    %98 = vector.load %arg4[%c384, %c0_118] : memref<800x64xf32, #tpu.memory_space<vmem>>, vector<32x64xf32>
    %cst_119 = arith.constant dense<0.000000e+00> : vector<128x64xf32>
    %99 = tpu.matmul %97, %98, %cst_119 {dimension_numbers = #tpu.dot_dimension_numbers<[1], [0], [0], [1], [0, 0, 1, 1], [], []>} : vector<128x32xf32>, vector<32x64xf32>, vector<128x64xf32> -> vector<128x64xf32>
    %100 = arith.addf %95, %99 : vector<128x64xf32>
    %c1_120 = arith.constant 1 : index
    %c1_121 = arith.constant 1 : index
    %c0_122 = arith.constant 0 : index
    %c0_123 = arith.constant 0 : index
    %101 = vector.load %arg14[%c1_120, %c1_121, %c0_122, %c0_123] : memref<6x5x8x32xf32, #tpu.memory_space<vmem>>, vector<4x4x8x32xf32>
    %102 = vector.shape_cast %101 : vector<4x4x8x32xf32> to vector<128x32xf32>
    %c416 = arith.constant 416 : index
    %c0_124 = arith.constant 0 : index
    %103 = vector.load %arg4[%c416, %c0_124] : memref<800x64xf32, #tpu.memory_space<vmem>>, vector<32x64xf32>
    %cst_125 = arith.constant dense<0.000000e+00> : vector<128x64xf32>
    %104 = tpu.matmul %102, %103, %cst_125 {dimension_numbers = #tpu.dot_dimension_numbers<[1], [0], [0], [1], [0, 0, 1, 1], [], []>} : vector<128x32xf32>, vector<32x64xf32>, vector<128x64xf32> -> vector<128x64xf32>
    %105 = arith.addf %100, %104 : vector<128x64xf32>
    %c1_126 = arith.constant 1 : index
    %c2_127 = arith.constant 2 : index
    %c0_128 = arith.constant 0 : index
    %c0_129 = arith.constant 0 : index
    %106 = vector.load %arg13[%c1_126, %c2_127, %c0_128, %c0_129] : memref<6x6x8x32xf32, #tpu.memory_space<vmem>>, vector<4x4x8x32xf32>
    %107 = vector.shape_cast %106 : vector<4x4x8x32xf32> to vector<128x32xf32>
    %c448 = arith.constant 448 : index
    %c0_130 = arith.constant 0 : index
    %108 = vector.load %arg4[%c448, %c0_130] : memref<800x64xf32, #tpu.memory_space<vmem>>, vector<32x64xf32>
    %cst_131 = arith.constant dense<0.000000e+00> : vector<128x64xf32>
    %109 = tpu.matmul %107, %108, %cst_131 {dimension_numbers = #tpu.dot_dimension_numbers<[1], [0], [0], [1], [0, 0, 1, 1], [], []>} : vector<128x32xf32>, vector<32x64xf32>, vector<128x64xf32> -> vector<128x64xf32>
    %110 = arith.addf %105, %109 : vector<128x64xf32>
    %c1_132 = arith.constant 1 : index
    %c0_133 = arith.constant 0 : index
    %c0_134 = arith.constant 0 : index
    %c0_135 = arith.constant 0 : index
    %111 = vector.load %arg15[%c1_132, %c0_133, %c0_134, %c0_135] : memref<5x6x8x32xf32, #tpu.memory_space<vmem>>, vector<4x4x8x32xf32>
    %112 = vector.shape_cast %111 : vector<4x4x8x32xf32> to vector<128x32xf32>
    %c480 = arith.constant 480 : index
    %c0_136 = arith.constant 0 : index
    %113 = vector.load %arg4[%c480, %c0_136] : memref<800x64xf32, #tpu.memory_space<vmem>>, vector<32x64xf32>
    %cst_137 = arith.constant dense<0.000000e+00> : vector<128x64xf32>
    %114 = tpu.matmul %112, %113, %cst_137 {dimension_numbers = #tpu.dot_dimension_numbers<[1], [0], [0], [1], [0, 0, 1, 1], [], []>} : vector<128x32xf32>, vector<32x64xf32>, vector<128x64xf32> -> vector<128x64xf32>
    %115 = arith.addf %110, %114 : vector<128x64xf32>
    %c1_138 = arith.constant 1 : index
    %c0_139 = arith.constant 0 : index
    %c0_140 = arith.constant 0 : index
    %c0_141 = arith.constant 0 : index
    %116 = vector.load %arg16[%c1_138, %c0_139, %c0_140, %c0_141] : memref<5x5x8x32xf32, #tpu.memory_space<vmem>>, vector<4x4x8x32xf32>
    %117 = vector.shape_cast %116 : vector<4x4x8x32xf32> to vector<128x32xf32>
    %c512 = arith.constant 512 : index
    %c0_142 = arith.constant 0 : index
    %118 = vector.load %arg4[%c512, %c0_142] : memref<800x64xf32, #tpu.memory_space<vmem>>, vector<32x64xf32>
    %cst_143 = arith.constant dense<0.000000e+00> : vector<128x64xf32>
    %119 = tpu.matmul %117, %118, %cst_143 {dimension_numbers = #tpu.dot_dimension_numbers<[1], [0], [0], [1], [0, 0, 1, 1], [], []>} : vector<128x32xf32>, vector<32x64xf32>, vector<128x64xf32> -> vector<128x64xf32>
    %120 = arith.addf %115, %119 : vector<128x64xf32>
    %c1_144 = arith.constant 1 : index
    %c1_145 = arith.constant 1 : index
    %c0_146 = arith.constant 0 : index
    %c0_147 = arith.constant 0 : index
    %121 = vector.load %arg15[%c1_144, %c1_145, %c0_146, %c0_147] : memref<5x6x8x32xf32, #tpu.memory_space<vmem>>, vector<4x4x8x32xf32>
    %122 = vector.shape_cast %121 : vector<4x4x8x32xf32> to vector<128x32xf32>
    %c544 = arith.constant 544 : index
    %c0_148 = arith.constant 0 : index
    %123 = vector.load %arg4[%c544, %c0_148] : memref<800x64xf32, #tpu.memory_space<vmem>>, vector<32x64xf32>
    %cst_149 = arith.constant dense<0.000000e+00> : vector<128x64xf32>
    %124 = tpu.matmul %122, %123, %cst_149 {dimension_numbers = #tpu.dot_dimension_numbers<[1], [0], [0], [1], [0, 0, 1, 1], [], []>} : vector<128x32xf32>, vector<32x64xf32>, vector<128x64xf32> -> vector<128x64xf32>
    %125 = arith.addf %120, %124 : vector<128x64xf32>
    %c1_150 = arith.constant 1 : index
    %c1_151 = arith.constant 1 : index
    %c0_152 = arith.constant 0 : index
    %c0_153 = arith.constant 0 : index
    %126 = vector.load %arg16[%c1_150, %c1_151, %c0_152, %c0_153] : memref<5x5x8x32xf32, #tpu.memory_space<vmem>>, vector<4x4x8x32xf32>
    %127 = vector.shape_cast %126 : vector<4x4x8x32xf32> to vector<128x32xf32>
    %c576 = arith.constant 576 : index
    %c0_154 = arith.constant 0 : index
    %128 = vector.load %arg4[%c576, %c0_154] : memref<800x64xf32, #tpu.memory_space<vmem>>, vector<32x64xf32>
    %cst_155 = arith.constant dense<0.000000e+00> : vector<128x64xf32>
    %129 = tpu.matmul %127, %128, %cst_155 {dimension_numbers = #tpu.dot_dimension_numbers<[1], [0], [0], [1], [0, 0, 1, 1], [], []>} : vector<128x32xf32>, vector<32x64xf32>, vector<128x64xf32> -> vector<128x64xf32>
    %130 = arith.addf %125, %129 : vector<128x64xf32>
    %c1_156 = arith.constant 1 : index
    %c2_157 = arith.constant 2 : index
    %c0_158 = arith.constant 0 : index
    %c0_159 = arith.constant 0 : index
    %131 = vector.load %arg15[%c1_156, %c2_157, %c0_158, %c0_159] : memref<5x6x8x32xf32, #tpu.memory_space<vmem>>, vector<4x4x8x32xf32>
    %132 = vector.shape_cast %131 : vector<4x4x8x32xf32> to vector<128x32xf32>
    %c608 = arith.constant 608 : index
    %c0_160 = arith.constant 0 : index
    %133 = vector.load %arg4[%c608, %c0_160] : memref<800x64xf32, #tpu.memory_space<vmem>>, vector<32x64xf32>
    %cst_161 = arith.constant dense<0.000000e+00> : vector<128x64xf32>
    %134 = tpu.matmul %132, %133, %cst_161 {dimension_numbers = #tpu.dot_dimension_numbers<[1], [0], [0], [1], [0, 0, 1, 1], [], []>} : vector<128x32xf32>, vector<32x64xf32>, vector<128x64xf32> -> vector<128x64xf32>
    %135 = arith.addf %130, %134 : vector<128x64xf32>
    %c2_162 = arith.constant 2 : index
    %c0_163 = arith.constant 0 : index
    %c0_164 = arith.constant 0 : index
    %c0_165 = arith.constant 0 : index
    %136 = vector.load %arg13[%c2_162, %c0_163, %c0_164, %c0_165] : memref<6x6x8x32xf32, #tpu.memory_space<vmem>>, vector<4x4x8x32xf32>
    %137 = vector.shape_cast %136 : vector<4x4x8x32xf32> to vector<128x32xf32>
    %c640 = arith.constant 640 : index
    %c0_166 = arith.constant 0 : index
    %138 = vector.load %arg4[%c640, %c0_166] : memref<800x64xf32, #tpu.memory_space<vmem>>, vector<32x64xf32>
    %cst_167 = arith.constant dense<0.000000e+00> : vector<128x64xf32>
    %139 = tpu.matmul %137, %138, %cst_167 {dimension_numbers = #tpu.dot_dimension_numbers<[1], [0], [0], [1], [0, 0, 1, 1], [], []>} : vector<128x32xf32>, vector<32x64xf32>, vector<128x64xf32> -> vector<128x64xf32>
    %140 = arith.addf %135, %139 : vector<128x64xf32>
    %c2_168 = arith.constant 2 : index
    %c0_169 = arith.constant 0 : index
    %c0_170 = arith.constant 0 : index
    %c0_171 = arith.constant 0 : index
    %141 = vector.load %arg14[%c2_168, %c0_169, %c0_170, %c0_171] : memref<6x5x8x32xf32, #tpu.memory_space<vmem>>, vector<4x4x8x32xf32>
    %142 = vector.shape_cast %141 : vector<4x4x8x32xf32> to vector<128x32xf32>
    %c672 = arith.constant 672 : index
    %c0_172 = arith.constant 0 : index
    %143 = vector.load %arg4[%c672, %c0_172] : memref<800x64xf32, #tpu.memory_space<vmem>>, vector<32x64xf32>
    %cst_173 = arith.constant dense<0.000000e+00> : vector<128x64xf32>
    %144 = tpu.matmul %142, %143, %cst_173 {dimension_numbers = #tpu.dot_dimension_numbers<[1], [0], [0], [1], [0, 0, 1, 1], [], []>} : vector<128x32xf32>, vector<32x64xf32>, vector<128x64xf32> -> vector<128x64xf32>
    %145 = arith.addf %140, %144 : vector<128x64xf32>
    %c2_174 = arith.constant 2 : index
    %c1_175 = arith.constant 1 : index
    %c0_176 = arith.constant 0 : index
    %c0_177 = arith.constant 0 : index
    %146 = vector.load %arg13[%c2_174, %c1_175, %c0_176, %c0_177] : memref<6x6x8x32xf32, #tpu.memory_space<vmem>>, vector<4x4x8x32xf32>
    %147 = vector.shape_cast %146 : vector<4x4x8x32xf32> to vector<128x32xf32>
    %c704 = arith.constant 704 : index
    %c0_178 = arith.constant 0 : index
    %148 = vector.load %arg4[%c704, %c0_178] : memref<800x64xf32, #tpu.memory_space<vmem>>, vector<32x64xf32>
    %cst_179 = arith.constant dense<0.000000e+00> : vector<128x64xf32>
    %149 = tpu.matmul %147, %148, %cst_179 {dimension_numbers = #tpu.dot_dimension_numbers<[1], [0], [0], [1], [0, 0, 1, 1], [], []>} : vector<128x32xf32>, vector<32x64xf32>, vector<128x64xf32> -> vector<128x64xf32>
    %150 = arith.addf %145, %149 : vector<128x64xf32>
    %c2_180 = arith.constant 2 : index
    %c1_181 = arith.constant 1 : index
    %c0_182 = arith.constant 0 : index
    %c0_183 = arith.constant 0 : index
    %151 = vector.load %arg14[%c2_180, %c1_181, %c0_182, %c0_183] : memref<6x5x8x32xf32, #tpu.memory_space<vmem>>, vector<4x4x8x32xf32>
    %152 = vector.shape_cast %151 : vector<4x4x8x32xf32> to vector<128x32xf32>
    %c736 = arith.constant 736 : index
    %c0_184 = arith.constant 0 : index
    %153 = vector.load %arg4[%c736, %c0_184] : memref<800x64xf32, #tpu.memory_space<vmem>>, vector<32x64xf32>
    %cst_185 = arith.constant dense<0.000000e+00> : vector<128x64xf32>
    %154 = tpu.matmul %152, %153, %cst_185 {dimension_numbers = #tpu.dot_dimension_numbers<[1], [0], [0], [1], [0, 0, 1, 1], [], []>} : vector<128x32xf32>, vector<32x64xf32>, vector<128x64xf32> -> vector<128x64xf32>
    %155 = arith.addf %150, %154 : vector<128x64xf32>
    %c2_186 = arith.constant 2 : index
    %c2_187 = arith.constant 2 : index
    %c0_188 = arith.constant 0 : index
    %c0_189 = arith.constant 0 : index
    %156 = vector.load %arg13[%c2_186, %c2_187, %c0_188, %c0_189] : memref<6x6x8x32xf32, #tpu.memory_space<vmem>>, vector<4x4x8x32xf32>
    %157 = vector.shape_cast %156 : vector<4x4x8x32xf32> to vector<128x32xf32>
    %c768 = arith.constant 768 : index
    %c0_190 = arith.constant 0 : index
    %158 = vector.load %arg4[%c768, %c0_190] : memref<800x64xf32, #tpu.memory_space<vmem>>, vector<32x64xf32>
    %cst_191 = arith.constant dense<0.000000e+00> : vector<128x64xf32>
    %159 = tpu.matmul %157, %158, %cst_191 {dimension_numbers = #tpu.dot_dimension_numbers<[1], [0], [0], [1], [0, 0, 1, 1], [], []>} : vector<128x32xf32>, vector<32x64xf32>, vector<128x64xf32> -> vector<128x64xf32>
    %160 = arith.addf %155, %159 : vector<128x64xf32>
    %c0_192 = arith.constant 0 : index
    %c0_193 = arith.constant 0 : index
    %161 = vector.load %arg5[%c0_192, %c0_193] : memref<1x64xf32, #tpu.memory_space<vmem>>, vector<1x64xf32>
    %162 = vector.broadcast %161 : vector<1x64xf32> to vector<128x64xf32>
    %163 = arith.addf %160, %162 : vector<128x64xf32>
    %cst_194 = arith.constant 0.000000e+00 : f32
    %164 = vector.broadcast %cst_194 : f32 to vector<128x64xf32>
    %165 = arith.maximumf %163, %164 : vector<128x64xf32>
    %cst_195 = arith.constant 0.000000e+00 : f32
    %166 = vector.broadcast %cst_195 : f32 to vector<8x32xf32>
    %167 = vector.extract_strided_slice %165 {offsets = [0, 0], sizes = [8, 64], strides = [1, 1]} : vector<128x64xf32> to vector<8x64xf32>
    %168 = vector.extract_strided_slice %165 {offsets = [8, 0], sizes = [8, 64], strides = [1, 1]} : vector<128x64xf32> to vector<8x64xf32>
    %169 = arith.maximumf %167, %168 : vector<8x64xf32>
    %170 = vector.extract_strided_slice %165 {offsets = [32, 0], sizes = [8, 64], strides = [1, 1]} : vector<128x64xf32> to vector<8x64xf32>
    %171 = vector.extract_strided_slice %165 {offsets = [40, 0], sizes = [8, 64], strides = [1, 1]} : vector<128x64xf32> to vector<8x64xf32>
    %172 = arith.maximumf %170, %171 : vector<8x64xf32>
    %173 = arith.maximumf %169, %172 : vector<8x64xf32>
    %c0_196 = arith.constant 0 : index
    %c0_197 = arith.constant 0 : index
    %174 = vector.load %arg6[%c0_196, %c0_197] : memref<256x32xf32, #tpu.memory_space<vmem>>, vector<64x32xf32>
    %cst_198 = arith.constant dense<0.000000e+00> : vector<8x32xf32>
    %175 = tpu.matmul %173, %174, %cst_198 {dimension_numbers = #tpu.dot_dimension_numbers<[1], [0], [0], [1], [0, 0, 1, 1], [], []>} : vector<8x64xf32>, vector<64x32xf32>, vector<8x32xf32> -> vector<8x32xf32>
    %176 = arith.addf %166, %175 : vector<8x32xf32>
    %177 = vector.extract_strided_slice %165 {offsets = [16, 0], sizes = [8, 64], strides = [1, 1]} : vector<128x64xf32> to vector<8x64xf32>
    %178 = vector.extract_strided_slice %165 {offsets = [24, 0], sizes = [8, 64], strides = [1, 1]} : vector<128x64xf32> to vector<8x64xf32>
    %179 = arith.maximumf %177, %178 : vector<8x64xf32>
    %180 = vector.extract_strided_slice %165 {offsets = [48, 0], sizes = [8, 64], strides = [1, 1]} : vector<128x64xf32> to vector<8x64xf32>
    %181 = vector.extract_strided_slice %165 {offsets = [56, 0], sizes = [8, 64], strides = [1, 1]} : vector<128x64xf32> to vector<8x64xf32>
    %182 = arith.maximumf %180, %181 : vector<8x64xf32>
    %183 = arith.maximumf %179, %182 : vector<8x64xf32>
    %c64_199 = arith.constant 64 : index
    %c0_200 = arith.constant 0 : index
    %184 = vector.load %arg6[%c64_199, %c0_200] : memref<256x32xf32, #tpu.memory_space<vmem>>, vector<64x32xf32>
    %cst_201 = arith.constant dense<0.000000e+00> : vector<8x32xf32>
    %185 = tpu.matmul %183, %184, %cst_201 {dimension_numbers = #tpu.dot_dimension_numbers<[1], [0], [0], [1], [0, 0, 1, 1], [], []>} : vector<8x64xf32>, vector<64x32xf32>, vector<8x32xf32> -> vector<8x32xf32>
    %186 = arith.addf %176, %185 : vector<8x32xf32>
    %187 = vector.extract_strided_slice %165 {offsets = [64, 0], sizes = [8, 64], strides = [1, 1]} : vector<128x64xf32> to vector<8x64xf32>
    %188 = vector.extract_strided_slice %165 {offsets = [72, 0], sizes = [8, 64], strides = [1, 1]} : vector<128x64xf32> to vector<8x64xf32>
    %189 = arith.maximumf %187, %188 : vector<8x64xf32>
    %190 = vector.extract_strided_slice %165 {offsets = [96, 0], sizes = [8, 64], strides = [1, 1]} : vector<128x64xf32> to vector<8x64xf32>
    %191 = vector.extract_strided_slice %165 {offsets = [104, 0], sizes = [8, 64], strides = [1, 1]} : vector<128x64xf32> to vector<8x64xf32>
    %192 = arith.maximumf %190, %191 : vector<8x64xf32>
    %193 = arith.maximumf %189, %192 : vector<8x64xf32>
    %c128_202 = arith.constant 128 : index
    %c0_203 = arith.constant 0 : index
    %194 = vector.load %arg6[%c128_202, %c0_203] : memref<256x32xf32, #tpu.memory_space<vmem>>, vector<64x32xf32>
    %cst_204 = arith.constant dense<0.000000e+00> : vector<8x32xf32>
    %195 = tpu.matmul %193, %194, %cst_204 {dimension_numbers = #tpu.dot_dimension_numbers<[1], [0], [0], [1], [0, 0, 1, 1], [], []>} : vector<8x64xf32>, vector<64x32xf32>, vector<8x32xf32> -> vector<8x32xf32>
    %196 = arith.addf %186, %195 : vector<8x32xf32>
    %197 = vector.extract_strided_slice %165 {offsets = [80, 0], sizes = [8, 64], strides = [1, 1]} : vector<128x64xf32> to vector<8x64xf32>
    %198 = vector.extract_strided_slice %165 {offsets = [88, 0], sizes = [8, 64], strides = [1, 1]} : vector<128x64xf32> to vector<8x64xf32>
    %199 = arith.maximumf %197, %198 : vector<8x64xf32>
    %200 = vector.extract_strided_slice %165 {offsets = [112, 0], sizes = [8, 64], strides = [1, 1]} : vector<128x64xf32> to vector<8x64xf32>
    %201 = vector.extract_strided_slice %165 {offsets = [120, 0], sizes = [8, 64], strides = [1, 1]} : vector<128x64xf32> to vector<8x64xf32>
    %202 = arith.maximumf %200, %201 : vector<8x64xf32>
    %203 = arith.maximumf %199, %202 : vector<8x64xf32>
    %c192_205 = arith.constant 192 : index
    %c0_206 = arith.constant 0 : index
    %204 = vector.load %arg6[%c192_205, %c0_206] : memref<256x32xf32, #tpu.memory_space<vmem>>, vector<64x32xf32>
    %cst_207 = arith.constant dense<0.000000e+00> : vector<8x32xf32>
    %205 = tpu.matmul %203, %204, %cst_207 {dimension_numbers = #tpu.dot_dimension_numbers<[1], [0], [0], [1], [0, 0, 1, 1], [], []>} : vector<8x64xf32>, vector<64x32xf32>, vector<8x32xf32> -> vector<8x32xf32>
    %206 = arith.addf %196, %205 : vector<8x32xf32>
    %c0_208 = arith.constant 0 : index
    %c0_209 = arith.constant 0 : index
    %207 = vector.load %arg7[%c0_208, %c0_209] : memref<1x32xf32, #tpu.memory_space<vmem>>, vector<1x32xf32>
    %208 = vector.broadcast %207 : vector<1x32xf32> to vector<8x32xf32>
    %209 = arith.addf %206, %208 : vector<8x32xf32>
    %cst_210 = arith.constant 0.000000e+00 : f32
    %210 = vector.broadcast %cst_210 : f32 to vector<8x32xf32>
    %211 = arith.maximumf %209, %210 : vector<8x32xf32>
    %c0_211 = arith.constant 0 : index
    %c0_212 = arith.constant 0 : index
    %212 = vector.load %arg8[%c0_211, %c0_212] : memref<32x16xf32, #tpu.memory_space<vmem>>, vector<32x16xf32>
    %cst_213 = arith.constant dense<0.000000e+00> : vector<8x16xf32>
    %213 = tpu.matmul %211, %212, %cst_213 {dimension_numbers = #tpu.dot_dimension_numbers<[1], [0], [0], [1], [0, 0, 1, 1], [], []>} : vector<8x32xf32>, vector<32x16xf32>, vector<8x16xf32> -> vector<8x16xf32>
    %c0_214 = arith.constant 0 : index
    %c0_215 = arith.constant 0 : index
    %214 = vector.load %arg9[%c0_214, %c0_215] : memref<1x16xf32, #tpu.memory_space<vmem>>, vector<1x16xf32>
    %215 = vector.broadcast %214 : vector<1x16xf32> to vector<8x16xf32>
    %216 = arith.addf %213, %215 : vector<8x16xf32>
    %cst_216 = arith.constant 0.000000e+00 : f32
    %217 = vector.broadcast %cst_216 : f32 to vector<8x16xf32>
    %218 = arith.maximumf %216, %217 : vector<8x16xf32>
    %c0_217 = arith.constant 0 : index
    %c0_218 = arith.constant 0 : index
    %219 = vector.load %arg10[%c0_217, %c0_218] : memref<16x10xf32, #tpu.memory_space<vmem>>, vector<16x10xf32>
    %cst_219 = arith.constant dense<0.000000e+00> : vector<8x10xf32>
    %220 = tpu.matmul %218, %219, %cst_219 {dimension_numbers = #tpu.dot_dimension_numbers<[1], [0], [0], [1], [0, 0, 1, 1], [], []>} : vector<8x16xf32>, vector<16x10xf32>, vector<8x10xf32> -> vector<8x10xf32>
    %c0_220 = arith.constant 0 : index
    %c0_221 = arith.constant 0 : index
    %221 = vector.load %arg11[%c0_220, %c0_221] : memref<1x10xf32, #tpu.memory_space<vmem>>, vector<1x10xf32>
    %222 = vector.broadcast %221 : vector<1x10xf32> to vector<8x10xf32>
    %223 = arith.addf %220, %222 : vector<8x10xf32>
    %c0_222 = arith.constant 0 : index
    %c0_223 = arith.constant 0 : index
    %224 = vector.load %arg12[%c0_222, %c0_223] : memref<8x10xf32, #tpu.memory_space<vmem>>, vector<8x10xf32>
    tpu.vector_store %arg12[%c0_222, %c0_223], %223 {strides = array<i32>} : memref<8x10xf32, #tpu.memory_space<vmem>>, vector<8x10xf32>,
    return
  }
  func.func @transform_0(%arg0: i32) -> (i32, i32) {
    %c0_i32 = arith.constant 0 : i32
    %c0_i32_0 = arith.constant 0 : i32
    return %arg0, %c0_i32 : i32, i32
  }
  func.func @transform_1(%arg0: i32) -> (i32, i32) {
    %c0_i32 = arith.constant 0 : i32
    %c0_i32_0 = arith.constant 0 : i32
    %c0_i32_1 = arith.constant 0 : i32
    return %c0_i32, %c0_i32_0 : i32, i32
  }
  func.func @transform_2(%arg0: i32) -> (i32, i32) {
    %c0_i32 = arith.constant 0 : i32
    %c0_i32_0 = arith.constant 0 : i32
    %c0_i32_1 = arith.constant 0 : i32
    return %c0_i32, %c0_i32_0 : i32, i32
  }
  func.func @transform_3(%arg0: i32) -> (i32, i32) {
    %c0_i32 = arith.constant 0 : i32
    %c0_i32_0 = arith.constant 0 : i32
    %c0_i32_1 = arith.constant 0 : i32
    return %c0_i32, %c0_i32_0 : i32, i32
  }
  func.func @transform_4(%arg0: i32) -> (i32, i32) {
    %c0_i32 = arith.constant 0 : i32
    %c0_i32_0 = arith.constant 0 : i32
    %c0_i32_1 = arith.constant 0 : i32
    return %c0_i32, %c0_i32_0 : i32, i32
  }
  func.func @transform_5(%arg0: i32) -> (i32, i32) {
    %c0_i32 = arith.constant 0 : i32
    %c0_i32_0 = arith.constant 0 : i32
    %c0_i32_1 = arith.constant 0 : i32
    return %c0_i32, %c0_i32_0 : i32, i32
  }
  func.func @transform_6(%arg0: i32) -> (i32, i32) {
    %c0_i32 = arith.constant 0 : i32
    %c0_i32_0 = arith.constant 0 : i32
    %c0_i32_1 = arith.constant 0 : i32
    return %c0_i32, %c0_i32_0 : i32, i32
  }
  func.func @transform_7(%arg0: i32) -> (i32, i32) {
    %c0_i32 = arith.constant 0 : i32
    %c0_i32_0 = arith.constant 0 : i32
    %c0_i32_1 = arith.constant 0 : i32
    return %c0_i32, %c0_i32_0 : i32, i32
  }
  func.func @transform_8(%arg0: i32) -> (i32, i32) {
    %c0_i32 = arith.constant 0 : i32
    %c0_i32_0 = arith.constant 0 : i32
    %c0_i32_1 = arith.constant 0 : i32
    return %c0_i32, %c0_i32_0 : i32, i32
  }
  func.func @transform_9(%arg0: i32) -> (i32, i32) {
    %c0_i32 = arith.constant 0 : i32
    %c0_i32_0 = arith.constant 0 : i32
    %c0_i32_1 = arith.constant 0 : i32
    return %c0_i32, %c0_i32_0 : i32, i32
  }
  func.func @transform_10(%arg0: i32) -> (i32, i32) {
    %c0_i32 = arith.constant 0 : i32
    %c0_i32_0 = arith.constant 0 : i32
    %c0_i32_1 = arith.constant 0 : i32
    return %c0_i32, %c0_i32_0 : i32, i32
  }
  func.func @transform_11(%arg0: i32) -> (i32, i32) {
    %c0_i32 = arith.constant 0 : i32
    %c0_i32_0 = arith.constant 0 : i32
    return %arg0, %c0_i32 : i32, i32
  }
}

</mosaic_0001>

<llo_original>
// kernel: convnet_forward.1
$region0: #{convnet_forward.1}
  #allocation0 [shape = 'u32[]', space=smem, size = 0x4, offset = 0x4, fixed_abs, tag = 'smem constant byte address 0x4 - core index']
  #allocation1 [shape = 'u32[144,128]{1,0:T(1,128)}', space=vmem, size = 0x12000, scoped, tag = 'internal scratch']
  #allocation2 [shape = 'f32[6,6,8,32]{3,2,1,0:T(8,128)}', space=vmem, size = 0x24000, scoped, tag = 'scratch operand']
  #allocation3 [shape = 'f32[6,5,8,32]{3,2,1,0:T(8,128)}', space=vmem, size = 0x1e000, scoped, tag = 'scratch operand']
  #allocation4 [shape = 'f32[5,6,8,32]{3,2,1,0:T(8,128)}', space=vmem, size = 0x1e000, scoped, tag = 'scratch operand']
  #allocation5 [shape = 'f32[5,5,8,32]{3,2,1,0:T(8,128)}', space=vmem, size = 0x19000, scoped, tag = 'scratch operand']
  %s0 = inlined_call_operand.vmem [shape: f32[3136,9], index: 0, kind: input, shape index: {}]
  %s1 = inlined_call_operand.vmem [shape: f32[9,32], index: 1, kind: input, shape index: {}]
  %s2 = inlined_call_operand.vmem [shape: f32[1,32], index: 2, kind: input, shape index: {}]
  %s3 = inlined_call_operand.vmem [shape: f32[800,64], index: 3, kind: input, shape index: {}]
  %s4 = inlined_call_operand.vmem [shape: f32[1,64], index: 4, kind: input, shape index: {}]
  %s5 = inlined_call_operand.vmem [shape: f32[256,32], index: 5, kind: input, shape index: {}]
  %s6 = inlined_call_operand.vmem [shape: f32[1,32], index: 6, kind: input, shape index: {}]
  %s7 = inlined_call_operand.vmem [shape: f32[32,16], index: 7, kind: input, shape index: {}]
  %s8 = inlined_call_operand.vmem [shape: f32[1,16], index: 8, kind: input, shape index: {}]
  %s9 = inlined_call_operand.vmem [shape: f32[16,10], index: 9, kind: input, shape index: {}]
  %s10 = inlined_call_operand.vmem [shape: f32[1,10], index: 10, kind: input, shape index: {}]
  %s11 = inlined_call_operand.hbm [shape: f32[16,10], index: 11, kind: output, shape index: {}]
  %s12 = sld [smem:[#allocation0]]
  $region77: #{convnet_forward.1} parent=0
    _
  %s14 = ssub.s32 1, %s12
  %s15 = scalar_select 0, %s14, %s12
  $region1: #{convnet_forward.1} parent=0
    #allocation6 [shape = 'u8[8192]{0}', space=vmem, size = 0x2000, scoped, tag = 'output window, operand 0']
    #allocation7 [shape = 's32[2]{0}', space=sflag, size = 0x8, scoped, tag = 'scoped memory for convnet_forward.1']
    %16 = vsyncpa [#allocation7], 0
    %s17 = scalar_lea.sflag [#allocation7], 1
    %18 = vsyncpa %s17, 0
    loop: start=0, step=1, limit=4
    $region2: #{convnet_forward.1} parent=1 // loop_pre_header
      _
    $region3: #{convnet_forward.1} parent=1 // loop_header
      %s20 = sphi 0, %s24
      %p21 = scmp.ge.s32.totalorder %s20, 4
      %s30 = sphi 0, %s32
      %s33 = sphi 0, %s30
      %s34 = sphi 0, %s33
      %s50 = sphi 0, %s34
      %s54 = sphi 0, %s54
      %s56 = sphi 0, %s54
      %s57 = sphi 0, %s56
      %s71 = sphi 0, %s57
      %s75 = sphi 0, %s75
      %s77 = sphi 0, %s75
      %s78 = sphi 0, %s77
      %s92 = sphi 0, %s78
      %s96 = sphi 0, %s96
      %s98 = sphi 0, %s96
      %s99 = sphi 0, %s98
      %s113 = sphi 0, %s99
      %s117 = sphi 0, %s117
      %s119 = sphi 0, %s117
      %s120 = sphi 0, %s119
      %s134 = sphi 0, %s120
      %s138 = sphi 0, %s138
      %s140 = sphi 0, %s138
      %s141 = sphi 0, %s140
      %s155 = sphi 0, %s141
      %s159 = sphi 0, %s159
      %s161 = sphi 0, %s159
      %s162 = sphi 0, %s161
      %s176 = sphi 0, %s162
      %s180 = sphi 0, %s180
      %s182 = sphi 0, %s180
      %s183 = sphi 0, %s182
      %s197 = sphi 0, %s183
      %s201 = sphi 0, %s201
      %s203 = sphi 0, %s201
      %s204 = sphi 0, %s203
      %s218 = sphi 0, %s204
      %s222 = sphi 0, %s222
      %s224 = sphi 0, %s222
      %s225 = sphi 0, %s224
      %s239 = sphi 0, %s225
      %s243 = sphi 0, %s243
      %s245 = sphi 0, %s243
      %s246 = sphi 0, %s245
      %s260 = sphi 0, %s246
      %s266 = sphi 0, %s268
      %s269 = sphi 0, %s266
      %s270 = sphi 0, %s269
      %s286 = sphi 0, %s270
    $region4: #{convnet_forward.1} parent=1 // loop_header_branch
      %23 = sbr.rel (%p21) target = $region8
    $region5: #{convnet_forward.1} parent=1 // loop_body
      %s25 = ssub.s32 %s20, 1
      %s26 = ssub.s32 %s20, 2
      %s27 = sadd.s32 %s20, 1
      %s28 = ssub.s32 %s20, %s27
      %p29 = scmp.eq.s32.totalorder %s28, 0
      %s31 = sadd.s32 %s30, 1
      %s32 = scalar_select %p29, %s30, %s31
      %p35 = pneg %p29
      %p36 = scmp.eq.s32.totalorder %s20, 1
      %p37 = por %p35, %p36
      %p38 = scmp.ne.s32.totalorder %s30, %s33
      %p39 = scmp.eq.s32.totalorder %s20, 0
      %p40 = por %p38, %p39
      %p41 = scmp.ne.s32.totalorder %s30, %s33
      %p42 = scmp.eq.s32.totalorder %s25, 1
      %p43 = por %p41, %p42
      %p44 = scmp.ne.s32.totalorder %s33, %s34
      %p45 = scmp.eq.s32.totalorder %s25, 0
      %p46 = por %p44, %p45
      %p47 = scmp.ne.s32.totalorder %s33, %s34
      %p48 = scmp.eq.s32.totalorder %s26, 1
      %p49 = por %p47, %p48
      %p51 = scmp.ne.s32.totalorder %s34, %s50
      %p52 = scmp.eq.s32.totalorder %s26, 0
      %p53 = por %p51, %p52
      %s55 = sadd.s32 %s54, 1
      %p58 = scmp.eq.s32.totalorder %s20, 1
      %p59 = scmp.ne.s32.totalorder %s54, %s56
      %p60 = scmp.eq.s32.totalorder %s20, 0
      %p61 = por %p59, %p60
      %p62 = scmp.ne.s32.totalorder %s54, %s56
      %p63 = scmp.eq.s32.totalorder %s25, 1
      %p64 = por %p62, %p63
      %p65 = scmp.ne.s32.totalorder %s56, %s57
      %p66 = scmp.eq.s32.totalorder %s25, 0
      %p67 = por %p65, %p66
      %p68 = scmp.ne.s32.totalorder %s56, %s57
      %p69 = scmp.eq.s32.totalorder %s26, 1
      %p70 = por %p68, %p69
      %p72 = scmp.ne.s32.totalorder %s57, %s71
      %p73 = scmp.eq.s32.totalorder %s26, 0
      %p74 = por %p72, %p73
      %s76 = sadd.s32 %s75, 1
      %p79 = scmp.eq.s32.totalorder %s20, 1
      %p80 = scmp.ne.s32.totalorder %s75, %s77
      %p81 = scmp.eq.s32.totalorder %s20, 0
      %p82 = por %p80, %p81
      %p83 = scmp.ne.s32.totalorder %s75, %s77
      %p84 = scmp.eq.s32.totalorder %s25, 1
      %p85 = por %p83, %p84
      %p86 = scmp.ne.s32.totalorder %s77, %s78
      %p87 = scmp.eq.s32.totalorder %s25, 0
      %p88 = por %p86, %p87
      %p89 = scmp.ne.s32.totalorder %s77, %s78
      %p90 = scmp.eq.s32.totalorder %s26, 1
      %p91 = por %p89, %p90
      %p93 = scmp.ne.s32.totalorder %s78, %s92
      %p94 = scmp.eq.s32.totalorder %s26, 0
      %p95 = por %p93, %p94
      %s97 = sadd.s32 %s96, 1
      %p100 = scmp.eq.s32.totalorder %s20, 1
      %p101 = scmp.ne.s32.totalorder %s96, %s98
      %p102 = scmp.eq.s32.totalorder %s20, 0
      %p103 = por %p101, %p102
      %p104 = scmp.ne.s32.totalorder %s96, %s98
      %p105 = scmp.eq.s32.totalorder %s25, 1
      %p106 = por %p104, %p105
      %p107 = scmp.ne.s32.totalorder %s98, %s99
      %p108 = scmp.eq.s32.totalorder %s25, 0
      %p109 = por %p107, %p108
      %p110 = scmp.ne.s32.totalorder %s98, %s99
      %p111 = scmp.eq.s32.totalorder %s26, 1
      %p112 = por %p110, %p111
      %p114 = scmp.ne.s32.totalorder %s99, %s113
      %p115 = scmp.eq.s32.totalorder %s26, 0
      %p116 = por %p114, %p115
      %s118 = sadd.s32 %s117, 1
      %p121 = scmp.eq.s32.totalorder %s20, 1
      %p122 = scmp.ne.s32.totalorder %s117, %s119
      %p123 = scmp.eq.s32.totalorder %s20, 0
      %p124 = por %p122, %p123
      %p125 = scmp.ne.s32.totalorder %s117, %s119
      %p126 = scmp.eq.s32.totalorder %s25, 1
      %p127 = por %p125, %p126
      %p128 = scmp.ne.s32.totalorder %s119, %s120
      %p129 = scmp.eq.s32.totalorder %s25, 0
      %p130 = por %p128, %p129
      %p131 = scmp.ne.s32.totalorder %s119, %s120
      %p132 = scmp.eq.s32.totalorder %s26, 1
      %p133 = por %p131, %p132
      %p135 = scmp.ne.s32.totalorder %s120, %s134
      %p136 = scmp.eq.s32.totalorder %s26, 0
      %p137 = por %p135, %p136
      %s139 = sadd.s32 %s138, 1
      %p142 = scmp.eq.s32.totalorder %s20, 1
      %p143 = scmp.ne.s32.totalorder %s138, %s140
      %p144 = scmp.eq.s32.totalorder %s20, 0
      %p145 = por %p143, %p144
      %p146 = scmp.ne.s32.totalorder %s138, %s140
      %p147 = scmp.eq.s32.totalorder %s25, 1
      %p148 = por %p146, %p147
      %p149 = scmp.ne.s32.totalorder %s140, %s141
      %p150 = scmp.eq.s32.totalorder %s25, 0
      %p151 = por %p149, %p150
      %p152 = scmp.ne.s32.totalorder %s140, %s141
      %p153 = scmp.eq.s32.totalorder %s26, 1
      %p154 = por %p152, %p153
      %p156 = scmp.ne.s32.totalorder %s141, %s155
      %p157 = scmp.eq.s32.totalorder %s26, 0
      %p158 = por %p156, %p157
      %s160 = sadd.s32 %s159, 1
      %p163 = scmp.eq.s32.totalorder %s20, 1
      %p164 = scmp.ne.s32.totalorder %s159, %s161
      %p165 = scmp.eq.s32.totalorder %s20, 0
      %p166 = por %p164, %p165
      %p167 = scmp.ne.s32.totalorder %s159, %s161
      %p168 = scmp.eq.s32.totalorder %s25, 1
      %p169 = por %p167, %p168
      %p170 = scmp.ne.s32.totalorder %s161, %s162
      %p171 = scmp.eq.s32.totalorder %s25, 0
      %p172 = por %p170, %p171
      %p173 = scmp.ne.s32.totalorder %s161, %s162
      %p174 = scmp.eq.s32.totalorder %s26, 1
      %p175 = por %p173, %p174
      %p177 = scmp.ne.s32.totalorder %s162, %s176
      %p178 = scmp.eq.s32.totalorder %s26, 0
      %p179 = por %p177, %p178
      %s181 = sadd.s32 %s180, 1
      %p184 = scmp.eq.s32.totalorder %s20, 1
      %p185 = scmp.ne.s32.totalorder %s180, %s182
      %p186 = scmp.eq.s32.totalorder %s20, 0
      %p187 = por %p185, %p186
      %p188 = scmp.ne.s32.totalorder %s180, %s182
      %p189 = scmp.eq.s32.totalorder %s25, 1
      %p190 = por %p188, %p189
      %p191 = scmp.ne.s32.totalorder %s182, %s183
      %p192 = scmp.eq.s32.totalorder %s25, 0
      %p193 = por %p191, %p192
      %p194 = scmp.ne.s32.totalorder %s182, %s183
      %p195 = scmp.eq.s32.totalorder %s26, 1
      %p196 = por %p194, %p195
      %p198 = scmp.ne.s32.totalorder %s183, %s197
      %p199 = scmp.eq.s32.totalorder %s26, 0
      %p200 = por %p198, %p199
      %s202 = sadd.s32 %s201, 1
      %p205 = scmp.eq.s32.totalorder %s20, 1
      %p206 = scmp.ne.s32.totalorder %s201, %s203
      %p207 = scmp.eq.s32.totalorder %s20, 0
      %p208 = por %p206, %p207
      %p209 = scmp.ne.s32.totalorder %s201, %s203
      %p210 = scmp.eq.s32.totalorder %s25, 1
      %p211 = por %p209, %p210
      %p212 = scmp.ne.s32.totalorder %s203, %s204
      %p213 = scmp.eq.s32.totalorder %s25, 0
      %p214 = por %p212, %p213
      %p215 = scmp.ne.s32.totalorder %s203, %s204
      %p216 = scmp.eq.s32.totalorder %s26, 1
      %p217 = por %p215, %p216
      %p219 = scmp.ne.s32.totalorder %s204, %s218
      %p220 = scmp.eq.s32.totalorder %s26, 0
      %p221 = por %p219, %p220
      %s223 = sadd.s32 %s222, 1
      %p226 = scmp.eq.s32.totalorder %s20, 1
      %p227 = scmp.ne.s32.totalorder %s222, %s224
      %p228 = scmp.eq.s32.totalorder %s20, 0
      %p229 = por %p227, %p228
      %p230 = scmp.ne.s32.totalorder %s222, %s224
      %p231 = scmp.eq.s32.totalorder %s25, 1
      %p232 = por %p230, %p231
      %p233 = scmp.ne.s32.totalorder %s224, %s225
      %p234 = scmp.eq.s32.totalorder %s25, 0
      %p235 = por %p233, %p234
      %p236 = scmp.ne.s32.totalorder %s224, %s225
      %p237 = scmp.eq.s32.totalorder %s26, 1
      %p238 = por %p236, %p237
      %p240 = scmp.ne.s32.totalorder %s225, %s239
      %p241 = scmp.eq.s32.totalorder %s26, 0
      %p242 = por %p240, %p241
      %s244 = sadd.s32 %s243, 1
      %p247 = scmp.eq.s32.totalorder %s20, 1
      %p248 = scmp.ne.s32.totalorder %s243, %s245
      %p249 = scmp.eq.s32.totalorder %s20, 0
      %p250 = por %p248, %p249
      %p251 = scmp.ne.s32.totalorder %s243, %s245
      %p252 = scmp.eq.s32.totalorder %s25, 1
      %p253 = por %p251, %p252
      %p254 = scmp.ne.s32.totalorder %s245, %s246
      %p255 = scmp.eq.s32.totalorder %s25, 0
      %p256 = por %p254, %p255
      %p257 = scmp.ne.s32.totalorder %s245, %s246
      %p258 = scmp.eq.s32.totalorder %s26, 1
      %p259 = por %p257, %p258
      %p261 = scmp.ne.s32.totalorder %s246, %s260
      %p262 = scmp.eq.s32.totalorder %s26, 0
      %p263 = por %p261, %p262
      %s264 = ssub.s32 %s20, %s27
      %p265 = scmp.eq.s32.totalorder %s264, 0
      %s267 = sadd.s32 %s266, 1
      %s268 = scalar_select %p265, %s266, %s267
      %p271 = pneg %p265
      %p272 = scmp.eq.s32.totalorder %s20, 1
      %p273 = por %p271, %p272
      %p274 = scmp.ne.s32.totalorder %s266, %s269
      %p275 = scmp.eq.s32.totalorder %s20, 0
      %p276 = por %p274, %p275
      %p277 = scmp.ne.s32.totalorder %s266, %s269
      %p278 = scmp.eq.s32.totalorder %s25, 1
      %p279 = por %p277, %p278
      %p280 = scmp.ne.s32.totalorder %s269, %s270
      %p281 = scmp.eq.s32.totalorder %s25, 0
      %p282 = por %p280, %p281
      %p283 = scmp.ne.s32.totalorder %s269, %s270
      %p284 = scmp.eq.s32.totalorder %s26, 1
      %p285 = por %p283, %p284
      %p287 = scmp.ne.s32.totalorder %s270, %s286
      %p288 = scmp.eq.s32.totalorder %s26, 0
      %p289 = por %p287, %p288
      %p290 = scmp.le.s32.totalorder 1, %s20
      %p291 = scmp.lt.s32.totalorder %s20, 3
      %p292 = pnand %p290, %p291
      %p293 = pneg %p292
      // Predicated region
      $region9: #{convnet_forward.1} parent=5 // pred_check
        _
      $region10: #{convnet_forward.1} parent=5 // pred_check_branch
        %295 = sbr.rel (%p292) target = $region12
      $region11: #{convnet_forward.1} parent=5 // pred_region
        %s296 = ssub.s32 %s20, 1
        // Predicated region
        $region13: #{convnet_forward.1} parent=11 // pred_check
          %p297 = pneg %p67
        $region14: #{convnet_forward.1} parent=11 // pred_check_branch
          %299 = sbr.rel (%p297) target = $region16
        $region15: #{convnet_forward.1} parent=11 // pred_region
          _
        $region16: #{convnet_forward.1} parent=11 // pred_fallthru
          _
        // Predicated region
        $region17: #{convnet_forward.1} parent=11 // pred_check
          %p300 = pneg %p88
        $region18: #{convnet_forward.1} parent=11 // pred_check_branch
          %302 = sbr.rel (%p300) target = $region20
        $region19: #{convnet_forward.1} parent=11 // pred_region
          _
        $region20: #{convnet_forward.1} parent=11 // pred_fallthru
          _
        // Predicated region
        $region21: #{convnet_forward.1} parent=11 // pred_check
          %p303 = pneg %p109
        $region22: #{convnet_forward.1} parent=11 // pred_check_branch
          %305 = sbr.rel (%p303) target = $region24
        $region23: #{convnet_forward.1} parent=11 // pred_region
          _
        $region24: #{convnet_forward.1} parent=11 // pred_fallthru
          _
        // Predicated region
        $region25: #{convnet_forward.1} parent=11 // pred_check
          %p306 = pneg %p130
        $region26: #{convnet_forward.1} parent=11 // pred_check_branch
          %308 = sbr.rel (%p306) target = $region28
        $region27: #{convnet_forward.1} parent=11 // pred_region
          _
        $region28: #{convnet_forward.1} parent=11 // pred_fallthru
          _
        // Predicated region
        $region29: #{convnet_forward.1} parent=11 // pred_check
          %p309 = pneg %p151
        $region30: #{convnet_forward.1} parent=11 // pred_check_branch
          %311 = sbr.rel (%p309) target = $region32
        $region31: #{convnet_forward.1} parent=11 // pred_region
          _
        $region32: #{convnet_forward.1} parent=11 // pred_fallthru
          _
        // Predicated region
        $region33: #{convnet_forward.1} parent=11 // pred_check
          %p312 = pneg %p172
        $region34: #{convnet_forward.1} parent=11 // pred_check_branch
          %314 = sbr.rel (%p312) target = $region36
        $region35: #{convnet_forward.1} parent=11 // pred_region
          _
        $region36: #{convnet_forward.1} parent=11 // pred_fallthru
          _
        // Predicated region
        $region37: #{convnet_forward.1} parent=11 // pred_check
          %p315 = pneg %p193
        $region38: #{convnet_forward.1} parent=11 // pred_check_branch
          %317 = sbr.rel (%p315) target = $region40
        $region39: #{convnet_forward.1} parent=11 // pred_region
          _
        $region40: #{convnet_forward.1} parent=11 // pred_fallthru
          _
        // Predicated region
        $region41: #{convnet_forward.1} parent=11 // pred_check
          %p318 = pneg %p214
        $region42: #{convnet_forward.1} parent=11 // pred_check_branch
          %320 = sbr.rel (%p318) target = $region44
        $region43: #{convnet_forward.1} parent=11 // pred_region
          _
        $region44: #{convnet_forward.1} parent=11 // pred_fallthru
          _
        // Predicated region
        $region45: #{convnet_forward.1} parent=11 // pred_check
          %p321 = pneg %p235
        $region46: #{convnet_forward.1} parent=11 // pred_check_branch
          %323 = sbr.rel (%p321) target = $region48
        $region47: #{convnet_forward.1} parent=11 // pred_region
          _
        $region48: #{convnet_forward.1} parent=11 // pred_fallthru
          _
        // Predicated region
        $region49: #{convnet_forward.1} parent=11 // pred_check
          %p324 = pneg %p256
        $region50: #{convnet_forward.1} parent=11 // pred_check_branch
          %326 = sbr.rel (%p324) target = $region52
        $region51: #{convnet_forward.1} parent=11 // pred_region
          _
        $region52: #{convnet_forward.1} parent=11 // pred_fallthru
          _
      $region12: #{convnet_forward.1} parent=5 // pred_fallthru
        _
      %p327 = scmp.lt.s32.totalorder %s20, 2
      // Predicated region
      $region53: #{convnet_forward.1} parent=5 // pred_check
        %p328 = pneg %p327
      $region54: #{convnet_forward.1} parent=5 // pred_check_branch
        %330 = sbr.rel (%p328) target = $region56
      $region55: #{convnet_forward.1} parent=5 // pred_region
        // Predicated region
        $region57: #{convnet_forward.1} parent=55 // pred_check
          %p331 = pneg %p40
        $region58: #{convnet_forward.1} parent=55 // pred_check_branch
          %333 = sbr.rel (%p331) target = $region60
        $region59: #{convnet_forward.1} parent=55 // pred_region
          %s334 = smul.u32 196, %s20
          %p335 = scmp.lt.s32.totalorder %s334, 391
          %s336 = scalar_select %p335, %s334, 391
          %s337 = smul.addr %s336, 8
          %s338 = scalar_lea.vmem %s0, %s337
          %s339 = smul.u32 196, %s20
        $region60: #{convnet_forward.1} parent=55 // pred_fallthru
          _
      $region56: #{convnet_forward.1} parent=5 // pred_fallthru
        _
      %p340 = scmp.le.s32.totalorder 1, %s20
      %p341 = scmp.lt.s32.totalorder %s20, 3
      %p342 = pnand %p340, %p341
      %p343 = pneg %p342
      // Predicated region
      $region61: #{convnet_forward.1} parent=5 // pred_check
        _
      $region62: #{convnet_forward.1} parent=5 // pred_check_branch
        %345 = sbr.rel (%p342) target = $region64
      $region63: #{convnet_forward.1} parent=5 // pred_region
        %s346 = ssub.s32 %s20, 1
        %s347 = smul.u32 196, %s25
        %p348 = scmp.lt.s32.totalorder %s347, 391
        %s349 = scalar_select %p348, %s347, 391
        %s350 = smul.addr %s349, 8
        %s351 = scalar_lea.vmem %s0, %s350
        %p352 = pneg %p46
        %p353 = pneg %p43
        %p354 = pneg %p67
        %p355 = pneg %p64
        %p356 = pneg %p88
        %p357 = pneg %p85
        %p358 = pneg %p109
        %p359 = pneg %p106
        %p360 = pneg %p130
        %p361 = pneg %p127
        %p362 = pneg %p151
        %p363 = pneg %p148
        %p364 = pneg %p172
        %p365 = pneg %p169
        %p366 = pneg %p193
        %p367 = pneg %p190
        %p368 = pneg %p214
        %p369 = pneg %p211
        %p370 = pneg %p235
        %p371 = pneg %p232
        %p372 = pneg %p256
        %p373 = pneg %p253
        %p374 = pneg %p282
        %p375 = pneg %p279
        %s376 = sand.u32 %s269, 1
        %s377 = scalar_lea.sflag [#allocation7], %s376
        %s378 = sand.u32 %s269, 1
        %s379 = smul.addr %s378, 8
        %s380 = scalar_lea.vmem [#allocation6], %s379
        %s381 = smul.u32 196, %s25
        %p382 = scmp.lt.s32.totalorder %s381, 391
        %s383 = scalar_select %p382, %s381, 391
        %s384 = smul.addr %s383, 8
        %s385 = scalar_lea.vmem %s0, %s384
        %s386 = smul.u32 196, %s25
        %v387 = vld [vmem:[%s385] sm:$0xff]
        %v388 = vld [vmem:[%s385 + $0x8] sm:$0xff]
        %v389 = vld [vmem:[%s385 + $0x10] sm:$0xff]
        %v390 = vld [vmem:[%s385 + $0x18] sm:$0xff]
        %v391 = vld [vmem:[%s385 + $0x20] sm:$0xff]
        %v392 = vld [vmem:[%s385 + $0x28] sm:$0xff]
        %v393 = vld [vmem:[%s385 + $0x30] sm:$0xff]
        %v394 = vld [vmem:[%s385 + $0x38] sm:$0xff]
        %v395 = vld [vmem:[%s385 + $0x40] sm:$0xff]
        %v396 = vld [vmem:[%s385 + $0x48] sm:$0xff]
        %v397 = vld [vmem:[%s385 + $0x50] sm:$0xff]
        %v398 = vld [vmem:[%s385 + $0x58] sm:$0xff]
        %v399 = vld [vmem:[%s385 + $0x60] sm:$0xff]
        %v400 = vld [vmem:[%s385 + $0x68] sm:$0xff]
        %v401 = vld [vmem:[%s385 + $0x70] sm:$0xff]
        %v402 = vld [vmem:[%s385 + $0x78] sm:$0xff]
        %v403 = vld [vmem:[%s385 + $0x80] sm:$0xff]
        %v404 = vld [vmem:[%s385 + $0x88] sm:$0xff]
        %v405 = vld [vmem:[%s385 + $0x90] sm:$0xff]
        %v406 = vld [vmem:[%s385 + $0x98] sm:$0xff]
        %v407 = vld [vmem:[%s385 + $0xa0] sm:$0xff]
        %v408 = vld [vmem:[%s385 + $0xa8] sm:$0xff]
        %v409 = vld [vmem:[%s385 + $0xb0] sm:$0xff]
        %v410 = vld [vmem:[%s385 + $0xb8] sm:$0xff]
        %v411 = vld [vmem:[%s385 + $0xc0] sm:$0xff]
        %v412 = vld [vmem:[%s385 + $0xc8] sm:$0xff]
        %v413 = vld [vmem:[%s385 + $0xd0] sm:$0xff]
        %v414 = vld [vmem:[%s385 + $0xd8] sm:$0xff]
        %v415 = vld [vmem:[%s385 + $0xe0] sm:$0xff]
        %v416 = vld [vmem:[%s385 + $0xe8] sm:$0xff]
        %v417 = vld [vmem:[%s385 + $0xf0] sm:$0xff]
        %v418 = vld [vmem:[%s385 + $0xf8] sm:$0xff]
        %v419 = vld [vmem:[%s385 + $0x100] sm:$0xff]
        %v420 = vld [vmem:[%s385 + $0x108] sm:$0xff]
        %v421 = vld [vmem:[%s385 + $0x110] sm:$0xff]
        %v422 = vld [vmem:[%s385 + $0x118] sm:$0xff]
        %v423 = vld [vmem:[%s385 + $0x120] sm:$0xff]
        %v424 = vld [vmem:[%s385 + $0x128] sm:$0xff]
        %v425 = vld [vmem:[%s385 + $0x130] sm:$0xff]
        %v426 = vld [vmem:[%s385 + $0x138] sm:$0xff]
        %v427 = vld [vmem:[%s385 + $0x140] sm:$0xff]
        %v428 = vld [vmem:[%s385 + $0x148] sm:$0xff]
        %v429 = vld [vmem:[%s385 + $0x150] sm:$0xff]
        %v430 = vld [vmem:[%s385 + $0x158] sm:$0xff]
        %v431 = vld [vmem:[%s385 + $0x160] sm:$0xff]
        %v432 = vld [vmem:[%s385 + $0x168] sm:$0xff]
        %v433 = vld [vmem:[%s385 + $0x170] sm:$0xff]
        %v434 = vld [vmem:[%s385 + $0x178] sm:$0xff]
        %v435 = vld [vmem:[%s385 + $0x180] sm:$0xff]
        %v436 = vld [vmem:[%s385 + $0x188] sm:$0xff]
        %v437 = vld [vmem:[%s385 + $0x190] sm:$0xff]
        %v438 = vld [vmem:[%s385 + $0x198] sm:$0xff]
        %v439 = vld [vmem:[%s385 + $0x1a0] sm:$0xff]
        %v440 = vld [vmem:[%s385 + $0x1a8] sm:$0xff]
        %v441 = vld [vmem:[%s385 + $0x1b0] sm:$0xff]
        %v442 = vld [vmem:[%s385 + $0x1b8] sm:$0xff]
        %v443 = vld [vmem:[%s385 + $0x1c0] sm:$0xff]
        %v444 = vld [vmem:[%s385 + $0x1c8] sm:$0xff]
        %v445 = vld [vmem:[%s385 + $0x1d0] sm:$0xff]
        %v446 = vld [vmem:[%s385 + $0x1d8] sm:$0xff]
        %v447 = vld [vmem:[%s385 + $0x1e0] sm:$0xff]
        %v448 = vld [vmem:[%s385 + $0x1e8] sm:$0xff]
        %v449 = vld [vmem:[%s385 + $0x1f0] sm:$0xff]
        %v450 = vld [vmem:[%s385 + $0x1f8] sm:$0xff]
        %v451 = vld [vmem:[%s385 + $0x200] sm:$0xff]
        %v452 = vld [vmem:[%s385 + $0x208] sm:$0xff]
        %v453 = vld [vmem:[%s385 + $0x210] sm:$0xff]
        %v454 = vld [vmem:[%s385 + $0x218] sm:$0xff]
        %v455 = vld [vmem:[%s385 + $0x220] sm:$0xff]
        %v456 = vld [vmem:[%s385 + $0x228] sm:$0xff]
        %v457 = vld [vmem:[%s385 + $0x230] sm:$0xff]
        %v458 = vld [vmem:[%s385 + $0x238] sm:$0xff]
        %v459 = vld [vmem:[%s385 + $0x240] sm:$0xff]
        %v460 = vld [vmem:[%s385 + $0x248] sm:$0xff]
        %v461 = vld [vmem:[%s385 + $0x250] sm:$0xff]
        %v462 = vld [vmem:[%s385 + $0x258] sm:$0xff]
        %v463 = vld [vmem:[%s385 + $0x260] sm:$0xff]
        %v464 = vld [vmem:[%s385 + $0x268] sm:$0xff]
        %v465 = vld [vmem:[%s385 + $0x270] sm:$0xff]
        %v466 = vld [vmem:[%s385 + $0x278] sm:$0xff]
        %v467 = vld [vmem:[%s385 + $0x280] sm:$0xff]
        %v468 = vld [vmem:[%s385 + $0x288] sm:$0xff]
        %v469 = vld [vmem:[%s385 + $0x290] sm:$0xff]
        %v470 = vld [vmem:[%s385 + $0x298] sm:$0xff]
        %v471 = vld [vmem:[%s385 + $0x2a0] sm:$0xff]
        %v472 = vld [vmem:[%s385 + $0x2a8] sm:$0xff]
        %v473 = vld [vmem:[%s385 + $0x2b0] sm:$0xff]
        %v474 = vld [vmem:[%s385 + $0x2b8] sm:$0xff]
        %v475 = vld [vmem:[%s385 + $0x2c0] sm:$0xff]
        %v476 = vld [vmem:[%s385 + $0x2c8] sm:$0xff]
        %v477 = vld [vmem:[%s385 + $0x2d0] sm:$0xff]
        %v478 = vld [vmem:[%s385 + $0x2d8] sm:$0xff]
        %v479 = vld [vmem:[%s385 + $0x2e0] sm:$0xff]
        %v480 = vld [vmem:[%s385 + $0x2e8] sm:$0xff]
        %v481 = vld [vmem:[%s385 + $0x2f0] sm:$0xff]
        %v482 = vld [vmem:[%s385 + $0x2f8] sm:$0xff]
        %v483 = vld [vmem:[%s385 + $0x300] sm:$0xff]
        %v484 = vld [vmem:[%s385 + $0x308] sm:$0xff]
        %v485 = vld [vmem:[%s385 + $0x310] sm:$0xff]
        %v486 = vld [vmem:[%s385 + $0x318] sm:$0xff]
        %v487 = vld [vmem:[%s385 + $0x320] sm:$0xff]
        %v488 = vld [vmem:[%s385 + $0x328] sm:$0xff]
        %v489 = vld [vmem:[%s385 + $0x330] sm:$0xff]
        %v490 = vld [vmem:[%s385 + $0x338] sm:$0xff]
        %v491 = vld [vmem:[%s385 + $0x340] sm:$0xff]
        %v492 = vld [vmem:[%s385 + $0x348] sm:$0xff]
        %v493 = vld [vmem:[%s385 + $0x350] sm:$0xff]
        %v494 = vld [vmem:[%s385 + $0x358] sm:$0xff]
        %v495 = vld [vmem:[%s385 + $0x360] sm:$0xff]
        %v496 = vld [vmem:[%s385 + $0x368] sm:$0xff]
        %v497 = vld [vmem:[%s385 + $0x370] sm:$0xff]
        %v498 = vld [vmem:[%s385 + $0x378] sm:$0xff]
        %v499 = vld [vmem:[%s385 + $0x380] sm:$0xff]
        %v500 = vld [vmem:[%s385 + $0x388] sm:$0xff]
        %v501 = vld [vmem:[%s385 + $0x390] sm:$0xff]
        %v502 = vld [vmem:[%s385 + $0x398] sm:$0xff]
        %v503 = vld [vmem:[%s385 + $0x3a0] sm:$0xff]
        %v504 = vld [vmem:[%s385 + $0x3a8] sm:$0xff]
        %v505 = vld [vmem:[%s385 + $0x3b0] sm:$0xff]
        %v506 = vld [vmem:[%s385 + $0x3b8] sm:$0xff]
        %v507 = vld [vmem:[%s385 + $0x3c0] sm:$0xff]
        %v508 = vld [vmem:[%s385 + $0x3c8] sm:$0xff]
        %v509 = vld [vmem:[%s385 + $0x3d0] sm:$0xff]
        %v510 = vld [vmem:[%s385 + $0x3d8] sm:$0xff]
        %v511 = vld [vmem:[%s385 + $0x3e0] sm:$0xff]
        %v512 = vld [vmem:[%s385 + $0x3e8] sm:$0xff]
        %v513 = vld [vmem:[%s385 + $0x3f0] sm:$0xff]
        %v514 = vld [vmem:[%s385 + $0x3f8] sm:$0xff]
        %v515 = vld [vmem:[%s385 + $0x400] sm:$0xff]
        %v516 = vld [vmem:[%s385 + $0x408] sm:$0xff]
        %v517 = vld [vmem:[%s385 + $0x410] sm:$0xff]
        %v518 = vld [vmem:[%s385 + $0x418] sm:$0xff]
        %v519 = vld [vmem:[%s385 + $0x420] sm:$0xff]
        %v520 = vld [vmem:[%s385 + $0x428] sm:$0xff]
        %v521 = vld [vmem:[%s385 + $0x430] sm:$0xff]
        %v522 = vld [vmem:[%s385 + $0x438] sm:$0xff]
        %v523 = vld [vmem:[%s385 + $0x440] sm:$0xff]
        %v524 = vld [vmem:[%s385 + $0x448] sm:$0xff]
        %v525 = vld [vmem:[%s385 + $0x450] sm:$0xff]
        %v526 = vld [vmem:[%s385 + $0x458] sm:$0xff]
        %v527 = vld [vmem:[%s385 + $0x460] sm:$0xff]
        %v528 = vld [vmem:[%s385 + $0x468] sm:$0xff]
        %v529 = vld [vmem:[%s385 + $0x470] sm:$0xff]
        %v530 = vld [vmem:[%s385 + $0x478] sm:$0xff]
        %v531 = vld [vmem:[%s385 + $0x480] sm:$0xff]
        %v532 = vld [vmem:[%s385 + $0x488] sm:$0xff]
        %v533 = vld [vmem:[%s385 + $0x490] sm:$0xff]
        %v534 = vld [vmem:[%s385 + $0x498] sm:$0xff]
        %v535 = vld [vmem:[%s385 + $0x4a0] sm:$0xff]
        %v536 = vld [vmem:[%s385 + $0x4a8] sm:$0xff]
        %v537 = vld [vmem:[%s385 + $0x4b0] sm:$0xff]
        %v538 = vld [vmem:[%s385 + $0x4b8] sm:$0xff]
        %v539 = vld [vmem:[%s385 + $0x4c0] sm:$0xff]
        %v540 = vld [vmem:[%s385 + $0x4c8] sm:$0xff]
        %v541 = vld [vmem:[%s385 + $0x4d0] sm:$0xff]
        %v542 = vld [vmem:[%s385 + $0x4d8] sm:$0xff]
        %v543 = vld [vmem:[%s385 + $0x4e0] sm:$0xff]
        %v544 = vld [vmem:[%s385 + $0x4e8] sm:$0xff]
        %v545 = vld [vmem:[%s385 + $0x4f0] sm:$0xff]
        %v546 = vld [vmem:[%s385 + $0x4f8] sm:$0xff]
        %v547 = vld [vmem:[%s385 + $0x500] sm:$0xff]
        %v548 = vld [vmem:[%s385 + $0x508] sm:$0xff]
        %v549 = vld [vmem:[%s385 + $0x510] sm:$0xff]
        %v550 = vld [vmem:[%s385 + $0x518] sm:$0xff]
        %v551 = vld [vmem:[%s385 + $0x520] sm:$0xff]
        %v552 = vld [vmem:[%s385 + $0x528] sm:$0xff]
        %v553 = vld [vmem:[%s385 + $0x530] sm:$0xff]
        %v554 = vld [vmem:[%s385 + $0x538] sm:$0xff]
        %v555 = vld [vmem:[%s385 + $0x540] sm:$0xff]
        %v556 = vld [vmem:[%s385 + $0x548] sm:$0xff]
        %v557 = vld [vmem:[%s385 + $0x550] sm:$0xff]
        %v558 = vld [vmem:[%s385 + $0x558] sm:$0xff]
        %v559 = vld [vmem:[%s385 + $0x560] sm:$0xff]
        %v560 = vld [vmem:[%s385 + $0x568] sm:$0xff]
        %v561 = vld [vmem:[%s385 + $0x570] sm:$0xff]
        %v562 = vld [vmem:[%s385 + $0x578] sm:$0xff]
        %v563 = vld [vmem:[%s385 + $0x580] sm:$0xff]
        %v564 = vld [vmem:[%s385 + $0x588] sm:$0xff]
        %v565 = vld [vmem:[%s385 + $0x590] sm:$0xff]
        %v566 = vld [vmem:[%s385 + $0x598] sm:$0xff]
        %v567 = vld [vmem:[%s385 + $0x5a0] sm:$0xff]
        %v568 = vld [vmem:[%s385 + $0x5a8] sm:$0xff]
        %v569 = vld [vmem:[%s385 + $0x5b0] sm:$0xff]
        %v570 = vld [vmem:[%s385 + $0x5b8] sm:$0xff]
        %v571 = vld [vmem:[%s385 + $0x5c0] sm:$0xff]
        %v572 = vld [vmem:[%s385 + $0x5c8] sm:$0xff]
        %v573 = vld [vmem:[%s385 + $0x5d0] sm:$0xff]
        %v574 = vld [vmem:[%s385 + $0x5d8] sm:$0xff]
        %v575 = vld [vmem:[%s385 + $0x5e0] sm:$0xff]
        %v576 = vld [vmem:[%s385 + $0x5e8] sm:$0xff]
        %v577 = vld [vmem:[%s385 + $0x5f0] sm:$0xff]
        %v578 = vld [vmem:[%s385 + $0x5f8] sm:$0xff]
        %v579 = vld [vmem:[%s385 + $0x600] sm:$0xff]
        %v580 = vld [vmem:[%s385 + $0x608] sm:$0xff]
        %v581 = vld [vmem:[%s385 + $0x610] sm:$0xff]
        %v582 = vld [vmem:[%s385 + $0x618] sm:$0xff]
        %v583 = vld [vmem:[%s1] sm:$0xff]
        %v584 = vld [vmem:[%s1 + $0x8] sm:$0x1]
        %v585 = vld [vmem:[%s2] sm:$0x1]
        %v587 = vlaneseq
        %v588 = vshrl.u32 %v587, 7
        %v589 = vsub.s32 0, %v588
        %v590 = vrot.slane %v585, %v589
        %vm592 = vcmask 72704
        %v594 = vsel %vm592, %v387, 0
        %v597 = vsel %vm592, %v388, 0
        %v600 = vsel %vm592, %v389, 0
        %v603 = vsel %vm592, %v390, 0
        %v606 = vsel %vm592, %v391, 0
        %v609 = vsel %vm592, %v392, 0
        %v612 = vsel %vm592, %v393, 0
        %v615 = vsel %vm592, %v394, 0
        %v618 = vsel %vm592, %v395, 0
        %v621 = vsel %vm592, %v396, 0
        %v624 = vsel %vm592, %v397, 0
        %v627 = vsel %vm592, %v398, 0
        %v630 = vsel %vm592, %v399, 0
        %v633 = vsel %vm592, %v400, 0
        %v636 = vsel %vm592, %v401, 0
        %v639 = vsel %vm592, %v402, 0
        %v642 = vsel %vm592, %v403, 0
        %v645 = vsel %vm592, %v404, 0
        %v648 = vsel %vm592, %v405, 0
        %v651 = vsel %vm592, %v406, 0
        %v654 = vsel %vm592, %v407, 0
        %v657 = vsel %vm592, %v408, 0
        %v660 = vsel %vm592, %v409, 0
        %v663 = vsel %vm592, %v410, 0
        %v666 = vsel %vm592, %v411, 0
        %v669 = vsel %vm592, %v412, 0
        %v672 = vsel %vm592, %v413, 0
        %v675 = vsel %vm592, %v414, 0
        %v678 = vsel %vm592, %v415, 0
        %v681 = vsel %vm592, %v416, 0
        %v684 = vsel %vm592, %v417, 0
        %v687 = vsel %vm592, %v418, 0
        %v690 = vsel %vm592, %v419, 0
        %v693 = vsel %vm592, %v420, 0
        %v696 = vsel %vm592, %v421, 0
        %v699 = vsel %vm592, %v422, 0
        %v702 = vsel %vm592, %v423, 0
        %v705 = vsel %vm592, %v424, 0
        %v708 = vsel %vm592, %v425, 0
        %v711 = vsel %vm592, %v426, 0
        %v714 = vsel %vm592, %v427, 0
        %v717 = vsel %vm592, %v428, 0
        %v720 = vsel %vm592, %v429, 0
        %v723 = vsel %vm592, %v430, 0
        %v726 = vsel %vm592, %v431, 0
        %v729 = vsel %vm592, %v432, 0
        %v732 = vsel %vm592, %v433, 0
        %v735 = vsel %vm592, %v434, 0
        %v738 = vsel %vm592, %v435, 0
        %v741 = vsel %vm592, %v436, 0
        %v744 = vsel %vm592, %v437, 0
        %v747 = vsel %vm592, %v438, 0
        %v750 = vsel %vm592, %v439, 0
        %v753 = vsel %vm592, %v440, 0
        %v756 = vsel %vm592, %v441, 0
        %v759 = vsel %vm592, %v442, 0
        %v762 = vsel %vm592, %v443, 0
        %v765 = vsel %vm592, %v444, 0
        %v768 = vsel %vm592, %v445, 0
        %v771 = vsel %vm592, %v446, 0
        %v774 = vsel %vm592, %v447, 0
        %v777 = vsel %vm592, %v448, 0
        %v780 = vsel %vm592, %v449, 0
        %v783 = vsel %vm592, %v450, 0
        %v786 = vsel %vm592, %v451, 0
        %v789 = vsel %vm592, %v452, 0
        %v792 = vsel %vm592, %v453, 0
        %v795 = vsel %vm592, %v454, 0
        %v798 = vsel %vm592, %v455, 0
        %v801 = vsel %vm592, %v456, 0
        %v804 = vsel %vm592, %v457, 0
        %v807 = vsel %vm592, %v458, 0
        %v810 = vsel %vm592, %v459, 0
        %v813 = vsel %vm592, %v460, 0
        %v816 = vsel %vm592, %v461, 0
        %v819 = vsel %vm592, %v462, 0
        %v822 = vsel %vm592, %v463, 0
        %v825 = vsel %vm592, %v464, 0
        %v828 = vsel %vm592, %v465, 0
        %v831 = vsel %vm592, %v466, 0
        %v834 = vsel %vm592, %v467, 0
        %v837 = vsel %vm592, %v468, 0
        %v840 = vsel %vm592, %v469, 0
        %v843 = vsel %vm592, %v470, 0
        %v846 = vsel %vm592, %v471, 0
        %v849 = vsel %vm592, %v472, 0
        %v852 = vsel %vm592, %v473, 0
        %v855 = vsel %vm592, %v474, 0
        %v858 = vsel %vm592, %v475, 0
        %v861 = vsel %vm592, %v476, 0
        %v864 = vsel %vm592, %v477, 0
        %v867 = vsel %vm592, %v478, 0
        %v870 = vsel %vm592, %v479, 0
        %v873 = vsel %vm592, %v480, 0
        %v876 = vsel %vm592, %v481, 0
        %v879 = vsel %vm592, %v482, 0
        %v882 = vsel %vm592, %v483, 0
        %v885 = vsel %vm592, %v484, 0
        %v888 = vsel %vm592, %v485, 0
        %v891 = vsel %vm592, %v486, 0
        %v894 = vsel %vm592, %v487, 0
        %v897 = vsel %vm592, %v488, 0
        %v900 = vsel %vm592, %v489, 0
        %v903 = vsel %vm592, %v490, 0
        %v906 = vsel %vm592, %v491, 0
        %v909 = vsel %vm592, %v492, 0
        %v912 = vsel %vm592, %v493, 0
        %v915 = vsel %vm592, %v494, 0
        %v918 = vsel %vm592, %v495, 0
        %v921 = vsel %vm592, %v496, 0
        %v924 = vsel %vm592, %v497, 0
        %v927 = vsel %vm592, %v498, 0
        %v930 = vsel %vm592, %v499, 0
        %v933 = vsel %vm592, %v500, 0
        %v936 = vsel %vm592, %v501, 0
        %v939 = vsel %vm592, %v502, 0
        %v942 = vsel %vm592, %v503, 0
        %v945 = vsel %vm592, %v504, 0
        %v948 = vsel %vm592, %v505, 0
        %v951 = vsel %vm592, %v506, 0
        %v954 = vsel %vm592, %v507, 0
        %v957 = vsel %vm592, %v508, 0
        %v960 = vsel %vm592, %v509, 0
        %v963 = vsel %vm592, %v510, 0
        %v966 = vsel %vm592, %v511, 0
        %v969 = vsel %vm592, %v512, 0
        %v972 = vsel %vm592, %v513, 0
        %v975 = vsel %vm592, %v514, 0
        %v978 = vsel %vm592, %v515, 0
        %v981 = vsel %vm592, %v516, 0
        %v984 = vsel %vm592, %v517, 0
        %v987 = vsel %vm592, %v518, 0
        %v990 = vsel %vm592, %v519, 0
        %v993 = vsel %vm592, %v520, 0
        %v996 = vsel %vm592, %v521, 0
        %v999 = vsel %vm592, %v522, 0
        %v1002 = vsel %vm592, %v523, 0
        %v1005 = vsel %vm592, %v524, 0
        %v1008 = vsel %vm592, %v525, 0
        %v1011 = vsel %vm592, %v526, 0
        %v1014 = vsel %vm592, %v527, 0
        %v1017 = vsel %vm592, %v528, 0
        %v1020 = vsel %vm592, %v529, 0
        %v1023 = vsel %vm592, %v530, 0
        %v1026 = vsel %vm592, %v531, 0
        %v1029 = vsel %vm592, %v532, 0
        %v1032 = vsel %vm592, %v533, 0
        %v1035 = vsel %vm592, %v534, 0
        %v1038 = vsel %vm592, %v535, 0
        %v1041 = vsel %vm592, %v536, 0
        %v1044 = vsel %vm592, %v537, 0
        %v1047 = vsel %vm592, %v538, 0
        %v1050 = vsel %vm592, %v539, 0
        %v1053 = vsel %vm592, %v540, 0
        %v1056 = vsel %vm592, %v541, 0
        %v1059 = vsel %vm592, %v542, 0
        %v1062 = vsel %vm592, %v543, 0
        %v1065 = vsel %vm592, %v544, 0
        %v1068 = vsel %vm592, %v545, 0
        %v1071 = vsel %vm592, %v546, 0
        %v1074 = vsel %vm592, %v547, 0
        %v1077 = vsel %vm592, %v548, 0
        %v1080 = vsel %vm592, %v549, 0
        %v1083 = vsel %vm592, %v550, 0
        %v1086 = vsel %vm592, %v551, 0
        %v1089 = vsel %vm592, %v552, 0
        %v1092 = vsel %vm592, %v553, 0
        %v1095 = vsel %vm592, %v554, 0
        %v1098 = vsel %vm592, %v555, 0
        %v1101 = vsel %vm592, %v556, 0
        %v1104 = vsel %vm592, %v557, 0
        %v1107 = vsel %vm592, %v558, 0
        %v1110 = vsel %vm592, %v559, 0
        %v1113 = vsel %vm592, %v560, 0
        %v1116 = vsel %vm592, %v561, 0
        %v1119 = vsel %vm592, %v562, 0
        %v1122 = vsel %vm592, %v563, 0
        %v1125 = vsel %vm592, %v564, 0
        %v1128 = vsel %vm592, %v565, 0
        %v1131 = vsel %vm592, %v566, 0
        %v1134 = vsel %vm592, %v567, 0
        %v1137 = vsel %vm592, %v568, 0
        %v1140 = vsel %vm592, %v569, 0
        %v1143 = vsel %vm592, %v570, 0
        %v1146 = vsel %vm592, %v571, 0
        %v1149 = vsel %vm592, %v572, 0
        %v1152 = vsel %vm592, %v573, 0
        %v1155 = vsel %vm592, %v574, 0
        %v1158 = vsel %vm592, %v575, 0
        %v1161 = vsel %vm592, %v576, 0
        %v1164 = vsel %vm592, %v577, 0
        %v1167 = vsel %vm592, %v578, 0
        %v1170 = vsel %vm592, %v579, 0
        %v1173 = vsel %vm592, %v580, 0
        %v1176 = vsel %vm592, %v581, 0
        %v1179 = vsel %vm592, %v582, 0
        %vm1181 = vcmask 1040384
        %v1183 = vsel %vm1181, %v584, 0
        %1185 = vmatprep.subr.mxu0 0.0
        %1186 = vmatpush1.msra.mxu0 0.0
        %1187 = vmatprep.subr.mxu0 0.0
        %1188 = vmatpush1.msra.mxu0 0.0
        %1189 = vmatprep.subr.mxu0 0.0
        %1190 = vmatpush1.msra.mxu0 0.0
        %1191 = vmatprep.subr.mxu0 0.0
        %1192 = vmatpush1.msra.mxu0 0.0
        %1193 = vmatprep.subr.mxu0 0.0
        %1194 = vmatpush1.msra.mxu0 0.0
        %1195 = vmatprep.subr.mxu0 0.0
        %1196 = vmatpush1.msra.mxu0 0.0
        %1197 = vmatprep.subr.mxu0 0.0
        %1198 = vmatpush1.msra.mxu0 0.0
        %1199 = vmatprep.subr.mxu0 0.0
        %1200 = vmatpush1.msra.mxu0 0.0
        %1201 = vmatprep.subr.mxu0 0.0
        %1202 = vmatpush1.msra.mxu0 0.0
        %1203 = vmatprep.subr.mxu0 0.0
        %1204 = vmatpush1.msra.mxu0 0.0
        %1205 = vmatprep.subr.mxu0 0.0
        %1206 = vmatpush1.msra.mxu0 0.0
        %1207 = vmatprep.subr.mxu0 0.0
        %1208 = vmatpush1.msra.mxu0 0.0
        %1209 = vmatprep.subr.mxu0 0.0
        %1210 = vmatpush1.msra.mxu0 0.0
        %1211 = vmatprep.subr.mxu0 0.0
        %1212 = vmatpush1.msra.mxu0 0.0
        %1213 = vmatprep.subr.mxu0 0.0
        %1214 = vmatpush1.msra.mxu0 %v1183
        %1215 = vmatprep.subr.mxu0 0.0
        %1216 = vmatpush1.msra.mxu0 %v583
        %1217 = vmatprep.subr.mxu0 0.0
        %1218 = vmatpush2.msra.mxu0 0.0
        %1219 = vmatprep.subr.mxu0 0.0
        %1220 = vmatpush2.msra.mxu0 0.0
        %1221 = vmatprep.subr.mxu0 0.0
        %1222 = vmatpush2.msra.mxu0 0.0
        %1223 = vmatprep.subr.mxu0 0.0
        %1224 = vmatpush2.msra.mxu0 0.0
        %1225 = vmatprep.subr.mxu0 0.0
        %1226 = vmatpush2.msra.mxu0 0.0
        %1227 = vmatprep.subr.mxu0 0.0
        %1228 = vmatpush2.msra.mxu0 0.0
        %1229 = vmatprep.subr.mxu0 0.0
        %1230 = vmatpush2.msra.mxu0 0.0
        %1231 = vmatprep.subr.mxu0 0.0
        %1232 = vmatpush2.msra.mxu0 0.0
        %1233 = vmatprep.subr.mxu0 0.0
        %1234 = vmatpush2.msra.mxu0 0.0
        %1235 = vmatprep.subr.mxu0 0.0
        %1236 = vmatpush2.msra.mxu0 0.0
        %1237 = vmatprep.subr.mxu0 0.0
        %1238 = vmatpush2.msra.mxu0 0.0
        %1239 = vmatprep.subr.mxu0 0.0
        %1240 = vmatpush2.msra.mxu0 0.0
        %1241 = vmatprep.subr.mxu0 0.0
        %1242 = vmatpush2.msra.mxu0 0.0
        %1243 = vmatprep.subr.mxu0 0.0
        %1244 = vmatpush2.msra.mxu0 0.0
        %1245 = vmatprep.subr.mxu0 0.0
        %1246 = vmatpush2.msra.mxu0 0.0
        %1247 = vmatprep.subr.mxu0 0.0
        %1248 = vmatpush2.msra.mxu0 0.0
        %1249 = vmatprep.mubr.f32.mxu0 0.0
        %1250 = vmatmul.mubr.f32.gmra.mxu0 %v594
        %v1251 = vpop.f32.mrf.mxu0
        %v1252 = vadd.f32 %v590, %v1251
        %v1253 = vpop.f32.mrf.mxu0
        %1254 = vmatprep.mubr.f32.mxu0 0.0
        %1255 = vmatmul.mubr.f32.gmra.mxu0 %v597
        %v1256 = vpop.f32.mrf.mxu0
        %v1257 = vadd.f32 %v590, %v1256
        %v1258 = vpop.f32.mrf.mxu0
        %1259 = vmatprep.mubr.f32.mxu0 0.0
        %1260 = vmatmul.mubr.f32.gmra.mxu0 %v600
        %v1261 = vpop.f32.mrf.mxu0
        %v1262 = vadd.f32 %v590, %v1261
        %v1263 = vpop.f32.mrf.mxu0
        %1264 = vmatprep.mubr.f32.mxu0 0.0
        %1265 = vmatmul.mubr.f32.gmra.mxu0 %v603
        %v1266 = vpop.f32.mrf.mxu0
        %v1267 = vadd.f32 %v590, %v1266
        %v1268 = vpop.f32.mrf.mxu0
        %1269 = vmatprep.mubr.f32.mxu0 0.0
        %1270 = vmatmul.mubr.f32.gmra.mxu0 %v606
        %v1271 = vpop.f32.mrf.mxu0
        %v1272 = vadd.f32 %v590, %v1271
        %v1273 = vpop.f32.mrf.mxu0
        %1274 = vmatprep.mubr.f32.mxu0 0.0
        %1275 = vmatmul.mubr.f32.gmra.mxu0 %v609
        %v1276 = vpop.f32.mrf.mxu0
        %v1277 = vadd.f32 %v590, %v1276
        %v1278 = vpop.f32.mrf.mxu0
        %1279 = vmatprep.mubr.f32.mxu0 0.0
        %1280 = vmatmul.mubr.f32.gmra.mxu0 %v612
        %v1281 = vpop.f32.mrf.mxu0
        %v1282 = vadd.f32 %v590, %v1281
        %v1283 = vpop.f32.mrf.mxu0
        %1284 = vmatprep.mubr.f32.mxu0 0.0
        %1285 = vmatmul.mubr.f32.gmra.mxu0 %v615
        %v1286 = vpop.f32.mrf.mxu0
        %v1287 = vadd.f32 %v590, %v1286
        %v1288 = vpop.f32.mrf.mxu0
        %1289 = vmatprep.mubr.f32.mxu0 0.0
        %1290 = vmatmul.mubr.f32.gmra.mxu0 %v618
        %v1291 = vpop.f32.mrf.mxu0
        %v1292 = vadd.f32 %v590, %v1291
        %v1293 = vpop.f32.mrf.mxu0
        %1294 = vmatprep.mubr.f32.mxu0 0.0
        %1295 = vmatmul.mubr.f32.gmra.mxu0 %v621
        %v1296 = vpop.f32.mrf.mxu0
        %v1297 = vadd.f32 %v590, %v1296
        %v1298 = vpop.f32.mrf.mxu0
        %1299 = vmatprep.mubr.f32.mxu0 0.0
        %1300 = vmatmul.mubr.f32.gmra.mxu0 %v624
        %v1301 = vpop.f32.mrf.mxu0
        %v1302 = vadd.f32 %v590, %v1301
        %v1303 = vpop.f32.mrf.mxu0
        %1304 = vmatprep.mubr.f32.mxu0 0.0
        %1305 = vmatmul.mubr.f32.gmra.mxu0 %v627
        %v1306 = vpop.f32.mrf.mxu0
        %v1307 = vadd.f32 %v590, %v1306
        %v1308 = vpop.f32.mrf.mxu0
        %1309 = vmatprep.mubr.f32.mxu0 0.0
        %1310 = vmatmul.mubr.f32.gmra.mxu0 %v630
        %v1311 = vpop.f32.mrf.mxu0
        %v1312 = vadd.f32 %v590, %v1311
        %v1313 = vpop.f32.mrf.mxu0
        %1314 = vmatprep.mubr.f32.mxu0 0.0
        %1315 = vmatmul.mubr.f32.gmra.mxu0 %v633
        %v1316 = vpop.f32.mrf.mxu0
        %v1317 = vadd.f32 %v590, %v1316
        %v1318 = vpop.f32.mrf.mxu0
        %1319 = vmatprep.mubr.f32.mxu0 0.0
        %1320 = vmatmul.mubr.f32.gmra.mxu0 %v636
        %v1321 = vpop.f32.mrf.mxu0
        %v1322 = vadd.f32 %v590, %v1321
        %v1323 = vpop.f32.mrf.mxu0
        %1324 = vmatprep.mubr.f32.mxu0 0.0
        %1325 = vmatmul.mubr.f32.gmra.mxu0 %v639
        %v1326 = vpop.f32.mrf.mxu0
        %v1327 = vadd.f32 %v590, %v1326
        %v1328 = vpop.f32.mrf.mxu0
        %1329 = vmatprep.mubr.f32.mxu0 0.0
        %1330 = vmatmul.mubr.f32.gmra.mxu0 %v642
        %v1331 = vpop.f32.mrf.mxu0
        %v1332 = vadd.f32 %v590, %v1331
        %v1333 = vpop.f32.mrf.mxu0
        %1334 = vmatprep.mubr.f32.mxu0 0.0
        %1335 = vmatmul.mubr.f32.gmra.mxu0 %v645
        %v1336 = vpop.f32.mrf.mxu0
        %v1337 = vadd.f32 %v590, %v1336
        %v1338 = vpop.f32.mrf.mxu0
        %1339 = vmatprep.mubr.f32.mxu0 0.0
        %1340 = vmatmul.mubr.f32.gmra.mxu0 %v648
        %v1341 = vpop.f32.mrf.mxu0
        %v1342 = vadd.f32 %v590, %v1341
        %v1343 = vpop.f32.mrf.mxu0
        %1344 = vmatprep.mubr.f32.mxu0 0.0
        %1345 = vmatmul.mubr.f32.gmra.mxu0 %v651
        %v1346 = vpop.f32.mrf.mxu0
        %v1347 = vadd.f32 %v590, %v1346
        %v1348 = vpop.f32.mrf.mxu0
        %1349 = vmatprep.mubr.f32.mxu0 0.0
        %1350 = vmatmul.mubr.f32.gmra.mxu0 %v654
        %v1351 = vpop.f32.mrf.mxu0
        %v1352 = vadd.f32 %v590, %v1351
        %v1353 = vpop.f32.mrf.mxu0
        %1354 = vmatprep.mubr.f32.mxu0 0.0
        %1355 = vmatmul.mubr.f32.gmra.mxu0 %v657
        %v1356 = vpop.f32.mrf.mxu0
        %v1357 = vadd.f32 %v590, %v1356
        %v1358 = vpop.f32.mrf.mxu0
        %1359 = vmatprep.mubr.f32.mxu0 0.0
        %1360 = vmatmul.mubr.f32.gmra.mxu0 %v660
        %v1361 = vpop.f32.mrf.mxu0
        %v1362 = vadd.f32 %v590, %v1361
        %v1363 = vpop.f32.mrf.mxu0
        %1364 = vmatprep.mubr.f32.mxu0 0.0
        %1365 = vmatmul.mubr.f32.gmra.mxu0 %v663
        %v1366 = vpop.f32.mrf.mxu0
        %v1367 = vadd.f32 %v590, %v1366
        %v1368 = vpop.f32.mrf.mxu0
        %1369 = vmatprep.mubr.f32.mxu0 0.0
        %1370 = vmatmul.mubr.f32.gmra.mxu0 %v666
        %v1371 = vpop.f32.mrf.mxu0
        %v1372 = vadd.f32 %v590, %v1371
        %v1373 = vpop.f32.mrf.mxu0
        %1374 = vmatprep.mubr.f32.mxu0 0.0
        %1375 = vmatmul.mubr.f32.gmra.mxu0 %v669
        %v1376 = vpop.f32.mrf.mxu0
        %v1377 = vadd.f32 %v590, %v1376
        %v1378 = vpop.f32.mrf.mxu0
        %1379 = vmatprep.mubr.f32.mxu0 0.0
        %1380 = vmatmul.mubr.f32.gmra.mxu0 %v672
        %v1381 = vpop.f32.mrf.mxu0
        %v1382 = vadd.f32 %v590, %v1381
        %v1383 = vpop.f32.mrf.mxu0
        %1384 = vmatprep.mubr.f32.mxu0 0.0
        %1385 = vmatmul.mubr.f32.gmra.mxu0 %v675
        %v1386 = vpop.f32.mrf.mxu0
        %v1387 = vadd.f32 %v590, %v1386
        %v1388 = vpop.f32.mrf.mxu0
        %1389 = vmatprep.mubr.f32.mxu0 0.0
        %1390 = vmatmul.mubr.f32.gmra.mxu0 %v678
        %v1391 = vpop.f32.mrf.mxu0
        %v1392 = vadd.f32 %v590, %v1391
        %v1393 = vpop.f32.mrf.mxu0
        %1394 = vmatprep.mubr.f32.mxu0 0.0
        %1395 = vmatmul.mubr.f32.gmra.mxu0 %v681
        %v1396 = vpop.f32.mrf.mxu0
        %v1397 = vadd.f32 %v590, %v1396
        %v1398 = vpop.f32.mrf.mxu0
        %1399 = vmatprep.mubr.f32.mxu0 0.0
        %1400 = vmatmul.mubr.f32.gmra.mxu0 %v684
        %v1401 = vpop.f32.mrf.mxu0
        %v1402 = vadd.f32 %v590, %v1401
        %v1403 = vpop.f32.mrf.mxu0
        %1404 = vmatprep.mubr.f32.mxu0 0.0
        %1405 = vmatmul.mubr.f32.gmra.mxu0 %v687
        %v1406 = vpop.f32.mrf.mxu0
        %v1407 = vadd.f32 %v590, %v1406
        %v1408 = vpop.f32.mrf.mxu0
        %1409 = vmatprep.mubr.f32.mxu0 0.0
        %1410 = vmatmul.mubr.f32.gmra.mxu0 %v690
        %v1411 = vpop.f32.mrf.mxu0
        %v1412 = vadd.f32 %v590, %v1411
        %v1413 = vpop.f32.mrf.mxu0
        %1414 = vmatprep.mubr.f32.mxu0 0.0
        %1415 = vmatmul.mubr.f32.gmra.mxu0 %v693
        %v1416 = vpop.f32.mrf.mxu0
        %v1417 = vadd.f32 %v590, %v1416
        %v1418 = vpop.f32.mrf.mxu0
        %1419 = vmatprep.mubr.f32.mxu0 0.0
        %1420 = vmatmul.mubr.f32.gmra.mxu0 %v696
        %v1421 = vpop.f32.mrf.mxu0
        %v1422 = vadd.f32 %v590, %v1421
        %v1423 = vpop.f32.mrf.mxu0
        %1424 = vmatprep.mubr.f32.mxu0 0.0
        %1425 = vmatmul.mubr.f32.gmra.mxu0 %v699
        %v1426 = vpop.f32.mrf.mxu0
        %v1427 = vadd.f32 %v590, %v1426
        %v1428 = vpop.f32.mrf.mxu0
        %1429 = vmatprep.mubr.f32.mxu0 0.0
        %1430 = vmatmul.mubr.f32.gmra.mxu0 %v702
        %v1431 = vpop.f32.mrf.mxu0
        %v1432 = vadd.f32 %v590, %v1431
        %v1433 = vpop.f32.mrf.mxu0
        %1434 = vmatprep.mubr.f32.mxu0 0.0
        %1435 = vmatmul.mubr.f32.gmra.mxu0 %v705
        %v1436 = vpop.f32.mrf.mxu0
        %v1437 = vadd.f32 %v590, %v1436
        %v1438 = vpop.f32.mrf.mxu0
        %1439 = vmatprep.mubr.f32.mxu0 0.0
        %1440 = vmatmul.mubr.f32.gmra.mxu0 %v708
        %v1441 = vpop.f32.mrf.mxu0
        %v1442 = vadd.f32 %v590, %v1441
        %v1443 = vpop.f32.mrf.mxu0
        %1444 = vmatprep.mubr.f32.mxu0 0.0
        %1445 = vmatmul.mubr.f32.gmra.mxu0 %v711
        %v1446 = vpop.f32.mrf.mxu0
        %v1447 = vadd.f32 %v590, %v1446
        %v1448 = vpop.f32.mrf.mxu0
        %1449 = vmatprep.mubr.f32.mxu0 0.0
        %1450 = vmatmul.mubr.f32.gmra.mxu0 %v714
        %v1451 = vpop.f32.mrf.mxu0
        %v1452 = vadd.f32 %v590, %v1451
        %v1453 = vpop.f32.mrf.mxu0
        %1454 = vmatprep.mubr.f32.mxu0 0.0
        %1455 = vmatmul.mubr.f32.gmra.mxu0 %v717
        %v1456 = vpop.f32.mrf.mxu0
        %v1457 = vadd.f32 %v590, %v1456
        %v1458 = vpop.f32.mrf.mxu0
        %1459 = vmatprep.mubr.f32.mxu0 0.0
        %1460 = vmatmul.mubr.f32.gmra.mxu0 %v720
        %v1461 = vpop.f32.mrf.mxu0
        %v1462 = vadd.f32 %v590, %v1461
        %v1463 = vpop.f32.mrf.mxu0
        %1464 = vmatprep.mubr.f32.mxu0 0.0
        %1465 = vmatmul.mubr.f32.gmra.mxu0 %v723
        %v1466 = vpop.f32.mrf.mxu0
        %v1467 = vadd.f32 %v590, %v1466
        %v1468 = vpop.f32.mrf.mxu0
        %1469 = vmatprep.mubr.f32.mxu0 0.0
        %1470 = vmatmul.mubr.f32.gmra.mxu0 %v726
        %v1471 = vpop.f32.mrf.mxu0
        %v1472 = vadd.f32 %v590, %v1471
        %v1473 = vpop.f32.mrf.mxu0
        %1474 = vmatprep.mubr.f32.mxu0 0.0
        %1475 = vmatmul.mubr.f32.gmra.mxu0 %v729
        %v1476 = vpop.f32.mrf.mxu0
        %v1477 = vadd.f32 %v590, %v1476
        %v1478 = vpop.f32.mrf.mxu0
        %1479 = vmatprep.mubr.f32.mxu0 0.0
        %1480 = vmatmul.mubr.f32.gmra.mxu0 %v732
        %v1481 = vpop.f32.mrf.mxu0
        %v1482 = vadd.f32 %v590, %v1481
        %v1483 = vpop.f32.mrf.mxu0
        %1484 = vmatprep.mubr.f32.mxu0 0.0
        %1485 = vmatmul.mubr.f32.gmra.mxu0 %v735
        %v1486 = vpop.f32.mrf.mxu0
        %v1487 = vadd.f32 %v590, %v1486
        %v1488 = vpop.f32.mrf.mxu0
        %1489 = vmatprep.mubr.f32.mxu0 0.0
        %1490 = vmatmul.mubr.f32.gmra.mxu0 %v738
        %v1491 = vpop.f32.mrf.mxu0
        %v1492 = vadd.f32 %v590, %v1491
        %v1493 = vpop.f32.mrf.mxu0
        %1494 = vmatprep.mubr.f32.mxu0 0.0
        %1495 = vmatmul.mubr.f32.gmra.mxu0 %v741
        %v1496 = vpop.f32.mrf.mxu0
        %v1497 = vadd.f32 %v590, %v1496
        %v1498 = vpop.f32.mrf.mxu0
        %1499 = vmatprep.mubr.f32.mxu0 0.0
        %1500 = vmatmul.mubr.f32.gmra.mxu0 %v744
        %v1501 = vpop.f32.mrf.mxu0
        %v1502 = vadd.f32 %v590, %v1501
        %v1503 = vpop.f32.mrf.mxu0
        %1504 = vmatprep.mubr.f32.mxu0 0.0
        %1505 = vmatmul.mubr.f32.gmra.mxu0 %v747
        %v1506 = vpop.f32.mrf.mxu0
        %v1507 = vadd.f32 %v590, %v1506
        %v1508 = vpop.f32.mrf.mxu0
        %1509 = vmatprep.mubr.f32.mxu0 0.0
        %1510 = vmatmul.mubr.f32.gmra.mxu0 %v750
        %v1511 = vpop.f32.mrf.mxu0
        %v1512 = vadd.f32 %v590, %v1511
        %v1513 = vpop.f32.mrf.mxu0
        %1514 = vmatprep.mubr.f32.mxu0 0.0
        %1515 = vmatmul.mubr.f32.gmra.mxu0 %v753
        %v1516 = vpop.f32.mrf.mxu0
        %v1517 = vadd.f32 %v590, %v1516
        %v1518 = vpop.f32.mrf.mxu0
        %1519 = vmatprep.mubr.f32.mxu0 0.0
        %1520 = vmatmul.mubr.f32.gmra.mxu0 %v756
        %v1521 = vpop.f32.mrf.mxu0
        %v1522 = vadd.f32 %v590, %v1521
        %v1523 = vpop.f32.mrf.mxu0
        %1524 = vmatprep.mubr.f32.mxu0 0.0
        %1525 = vmatmul.mubr.f32.gmra.mxu0 %v759
        %v1526 = vpop.f32.mrf.mxu0
        %v1527 = vadd.f32 %v590, %v1526
        %v1528 = vpop.f32.mrf.mxu0
        %1529 = vmatprep.mubr.f32.mxu0 0.0
        %1530 = vmatmul.mubr.f32.gmra.mxu0 %v762
        %v1531 = vpop.f32.mrf.mxu0
        %v1532 = vadd.f32 %v590, %v1531
        %v1533 = vpop.f32.mrf.mxu0
        %1534 = vmatprep.mubr.f32.mxu0 0.0
        %1535 = vmatmul.mubr.f32.gmra.mxu0 %v765
        %v1536 = vpop.f32.mrf.mxu0
        %v1537 = vadd.f32 %v590, %v1536
        %v1538 = vpop.f32.mrf.mxu0
        %1539 = vmatprep.mubr.f32.mxu0 0.0
        %1540 = vmatmul.mubr.f32.gmra.mxu0 %v768
        %v1541 = vpop.f32.mrf.mxu0
        %v1542 = vadd.f32 %v590, %v1541
        %v1543 = vpop.f32.mrf.mxu0
        %1544 = vmatprep.mubr.f32.mxu0 0.0
        %1545 = vmatmul.mubr.f32.gmra.mxu0 %v771
        %v1546 = vpop.f32.mrf.mxu0
        %v1547 = vadd.f32 %v590, %v1546
        %v1548 = vpop.f32.mrf.mxu0
        %1549 = vmatprep.mubr.f32.mxu0 0.0
        %1550 = vmatmul.mubr.f32.gmra.mxu0 %v774
        %v1551 = vpop.f32.mrf.mxu0
        %v1552 = vadd.f32 %v590, %v1551
        %v1553 = vpop.f32.mrf.mxu0
        %1554 = vmatprep.mubr.f32.mxu0 0.0
        %1555 = vmatmul.mubr.f32.gmra.mxu0 %v777
        %v1556 = vpop.f32.mrf.mxu0
        %v1557 = vadd.f32 %v590, %v1556
        %v1558 = vpop.f32.mrf.mxu0
        %1559 = vmatprep.mubr.f32.mxu0 0.0
        %1560 = vmatmul.mubr.f32.gmra.mxu0 %v780
        %v1561 = vpop.f32.mrf.mxu0
        %v1562 = vadd.f32 %v590, %v1561
        %v1563 = vpop.f32.mrf.mxu0
        %1564 = vmatprep.mubr.f32.mxu0 0.0
        %1565 = vmatmul.mubr.f32.gmra.mxu0 %v783
        %v1566 = vpop.f32.mrf.mxu0
        %v1567 = vadd.f32 %v590, %v1566
        %v1568 = vpop.f32.mrf.mxu0
        %1569 = vmatprep.mubr.f32.mxu0 0.0
        %1570 = vmatmul.mubr.f32.gmra.mxu0 %v786
        %v1571 = vpop.f32.mrf.mxu0
        %v1572 = vadd.f32 %v590, %v1571
        %v1573 = vpop.f32.mrf.mxu0
        %1574 = vmatprep.mubr.f32.mxu0 0.0
        %1575 = vmatmul.mubr.f32.gmra.mxu0 %v789
        %v1576 = vpop.f32.mrf.mxu0
        %v1577 = vadd.f32 %v590, %v1576
        %v1578 = vpop.f32.mrf.mxu0
        %1579 = vmatprep.mubr.f32.mxu0 0.0
        %1580 = vmatmul.mubr.f32.gmra.mxu0 %v792
        %v1581 = vpop.f32.mrf.mxu0
        %v1582 = vadd.f32 %v590, %v1581
        %v1583 = vpop.f32.mrf.mxu0
        %1584 = vmatprep.mubr.f32.mxu0 0.0
        %1585 = vmatmul.mubr.f32.gmra.mxu0 %v795
        %v1586 = vpop.f32.mrf.mxu0
        %v1587 = vadd.f32 %v590, %v1586
        %v1588 = vpop.f32.mrf.mxu0
        %1589 = vmatprep.mubr.f32.mxu0 0.0
        %1590 = vmatmul.mubr.f32.gmra.mxu0 %v798
        %v1591 = vpop.f32.mrf.mxu0
        %v1592 = vadd.f32 %v590, %v1591
        %v1593 = vpop.f32.mrf.mxu0
        %1594 = vmatprep.mubr.f32.mxu0 0.0
        %1595 = vmatmul.mubr.f32.gmra.mxu0 %v801
        %v1596 = vpop.f32.mrf.mxu0
        %v1597 = vadd.f32 %v590, %v1596
        %v1598 = vpop.f32.mrf.mxu0
        %1599 = vmatprep.mubr.f32.mxu0 0.0
        %1600 = vmatmul.mubr.f32.gmra.mxu0 %v804
        %v1601 = vpop.f32.mrf.mxu0
        %v1602 = vadd.f32 %v590, %v1601
        %v1603 = vpop.f32.mrf.mxu0
        %1604 = vmatprep.mubr.f32.mxu0 0.0
        %1605 = vmatmul.mubr.f32.gmra.mxu0 %v807
        %v1606 = vpop.f32.mrf.mxu0
        %v1607 = vadd.f32 %v590, %v1606
        %v1608 = vpop.f32.mrf.mxu0
        %1609 = vmatprep.mubr.f32.mxu0 0.0
        %1610 = vmatmul.mubr.f32.gmra.mxu0 %v810
        %v1611 = vpop.f32.mrf.mxu0
        %v1612 = vadd.f32 %v590, %v1611
        %v1613 = vpop.f32.mrf.mxu0
        %1614 = vmatprep.mubr.f32.mxu0 0.0
        %1615 = vmatmul.mubr.f32.gmra.mxu0 %v813
        %v1616 = vpop.f32.mrf.mxu0
        %v1617 = vadd.f32 %v590, %v1616
        %v1618 = vpop.f32.mrf.mxu0
        %1619 = vmatprep.mubr.f32.mxu0 0.0
        %1620 = vmatmul.mubr.f32.gmra.mxu0 %v816
        %v1621 = vpop.f32.mrf.mxu0
        %v1622 = vadd.f32 %v590, %v1621
        %v1623 = vpop.f32.mrf.mxu0
        %1624 = vmatprep.mubr.f32.mxu0 0.0
        %1625 = vmatmul.mubr.f32.gmra.mxu0 %v819
        %v1626 = vpop.f32.mrf.mxu0
        %v1627 = vadd.f32 %v590, %v1626
        %v1628 = vpop.f32.mrf.mxu0
        %1629 = vmatprep.mubr.f32.mxu0 0.0
        %1630 = vmatmul.mubr.f32.gmra.mxu0 %v822
        %v1631 = vpop.f32.mrf.mxu0
        %v1632 = vadd.f32 %v590, %v1631
        %v1633 = vpop.f32.mrf.mxu0
        %1634 = vmatprep.mubr.f32.mxu0 0.0
        %1635 = vmatmul.mubr.f32.gmra.mxu0 %v825
        %v1636 = vpop.f32.mrf.mxu0
        %v1637 = vadd.f32 %v590, %v1636
        %v1638 = vpop.f32.mrf.mxu0
        %1639 = vmatprep.mubr.f32.mxu0 0.0
        %1640 = vmatmul.mubr.f32.gmra.mxu0 %v828
        %v1641 = vpop.f32.mrf.mxu0
        %v1642 = vadd.f32 %v590, %v1641
        %v1643 = vpop.f32.mrf.mxu0
        %1644 = vmatprep.mubr.f32.mxu0 0.0
        %1645 = vmatmul.mubr.f32.gmra.mxu0 %v831
        %v1646 = vpop.f32.mrf.mxu0
        %v1647 = vadd.f32 %v590, %v1646
        %v1648 = vpop.f32.mrf.mxu0
        %1649 = vmatprep.mubr.f32.mxu0 0.0
        %1650 = vmatmul.mubr.f32.gmra.mxu0 %v834
        %v1651 = vpop.f32.mrf.mxu0
        %v1652 = vadd.f32 %v590, %v1651
        %v1653 = vpop.f32.mrf.mxu0
        %1654 = vmatprep.mubr.f32.mxu0 0.0
        %1655 = vmatmul.mubr.f32.gmra.mxu0 %v837
        %v1656 = vpop.f32.mrf.mxu0
        %v1657 = vadd.f32 %v590, %v1656
        %v1658 = vpop.f32.mrf.mxu0
        %1659 = vmatprep.mubr.f32.mxu0 0.0
        %1660 = vmatmul.mubr.f32.gmra.mxu0 %v840
        %v1661 = vpop.f32.mrf.mxu0
        %v1662 = vadd.f32 %v590, %v1661
        %v1663 = vpop.f32.mrf.mxu0
        %1664 = vmatprep.mubr.f32.mxu0 0.0
        %1665 = vmatmul.mubr.f32.gmra.mxu0 %v843
        %v1666 = vpop.f32.mrf.mxu0
        %v1667 = vadd.f32 %v590, %v1666
        %v1668 = vpop.f32.mrf.mxu0
        %1669 = vmatprep.mubr.f32.mxu0 0.0
        %1670 = vmatmul.mubr.f32.gmra.mxu0 %v846
        %v1671 = vpop.f32.mrf.mxu0
        %v1672 = vadd.f32 %v590, %v1671
        %v1673 = vpop.f32.mrf.mxu0
        %1674 = vmatprep.mubr.f32.mxu0 0.0
        %1675 = vmatmul.mubr.f32.gmra.mxu0 %v849
        %v1676 = vpop.f32.mrf.mxu0
        %v1677 = vadd.f32 %v590, %v1676
        %v1678 = vpop.f32.mrf.mxu0
        %1679 = vmatprep.mubr.f32.mxu0 0.0
        %1680 = vmatmul.mubr.f32.gmra.mxu0 %v852
        %v1681 = vpop.f32.mrf.mxu0
        %v1682 = vadd.f32 %v590, %v1681
        %v1683 = vpop.f32.mrf.mxu0
        %1684 = vmatprep.mubr.f32.mxu0 0.0
        %1685 = vmatmul.mubr.f32.gmra.mxu0 %v855
        %v1686 = vpop.f32.mrf.mxu0
        %v1687 = vadd.f32 %v590, %v1686
        %v1688 = vpop.f32.mrf.mxu0
        %1689 = vmatprep.mubr.f32.mxu0 0.0
        %1690 = vmatmul.mubr.f32.gmra.mxu0 %v858
        %v1691 = vpop.f32.mrf.mxu0
        %v1692 = vadd.f32 %v590, %v1691
        %v1693 = vpop.f32.mrf.mxu0
        %1694 = vmatprep.mubr.f32.mxu0 0.0
        %1695 = vmatmul.mubr.f32.gmra.mxu0 %v861
        %v1696 = vpop.f32.mrf.mxu0
        %v1697 = vadd.f32 %v590, %v1696
        %v1698 = vpop.f32.mrf.mxu0
        %1699 = vmatprep.mubr.f32.mxu0 0.0
        %1700 = vmatmul.mubr.f32.gmra.mxu0 %v864
        %v1701 = vpop.f32.mrf.mxu0
        %v1702 = vadd.f32 %v590, %v1701
        %v1703 = vpop.f32.mrf.mxu0
        %1704 = vmatprep.mubr.f32.mxu0 0.0
        %1705 = vmatmul.mubr.f32.gmra.mxu0 %v867
        %v1706 = vpop.f32.mrf.mxu0
        %v1707 = vadd.f32 %v590, %v1706
        %v1708 = vpop.f32.mrf.mxu0
        %1709 = vmatprep.mubr.f32.mxu0 0.0
        %1710 = vmatmul.mubr.f32.gmra.mxu0 %v870
        %v1711 = vpop.f32.mrf.mxu0
        %v1712 = vadd.f32 %v590, %v1711
        %v1713 = vpop.f32.mrf.mxu0
        %1714 = vmatprep.mubr.f32.mxu0 0.0
        %1715 = vmatmul.mubr.f32.gmra.mxu0 %v873
        %v1716 = vpop.f32.mrf.mxu0
        %v1717 = vadd.f32 %v590, %v1716
        %v1718 = vpop.f32.mrf.mxu0
        %1719 = vmatprep.mubr.f32.mxu0 0.0
        %1720 = vmatmul.mubr.f32.gmra.mxu0 %v876
        %v1721 = vpop.f32.mrf.mxu0
        %v1722 = vadd.f32 %v590, %v1721
        %v1723 = vpop.f32.mrf.mxu0
        %1724 = vmatprep.mubr.f32.mxu0 0.0
        %1725 = vmatmul.mubr.f32.gmra.mxu0 %v879
        %v1726 = vpop.f32.mrf.mxu0
        %v1727 = vadd.f32 %v590, %v1726
        %v1728 = vpop.f32.mrf.mxu0
        %1729 = vmatprep.mubr.f32.mxu0 0.0
        %1730 = vmatmul.mubr.f32.gmra.mxu0 %v882
        %v1731 = vpop.f32.mrf.mxu0
        %v1732 = vadd.f32 %v590, %v1731
        %v1733 = vpop.f32.mrf.mxu0
        %1734 = vmatprep.mubr.f32.mxu0 0.0
        %1735 = vmatmul.mubr.f32.gmra.mxu0 %v885
        %v1736 = vpop.f32.mrf.mxu0
        %v1737 = vadd.f32 %v590, %v1736
        %v1738 = vpop.f32.mrf.mxu0
        %1739 = vmatprep.mubr.f32.mxu0 0.0
        %1740 = vmatmul.mubr.f32.gmra.mxu0 %v888
        %v1741 = vpop.f32.mrf.mxu0
        %v1742 = vadd.f32 %v590, %v1741
        %v1743 = vpop.f32.mrf.mxu0
        %1744 = vmatprep.mubr.f32.mxu0 0.0
        %1745 = vmatmul.mubr.f32.gmra.mxu0 %v891
        %v1746 = vpop.f32.mrf.mxu0
        %v1747 = vadd.f32 %v590, %v1746
        %v1748 = vpop.f32.mrf.mxu0
        %1749 = vmatprep.mubr.f32.mxu0 0.0
        %1750 = vmatmul.mubr.f32.gmra.mxu0 %v894
        %v1751 = vpop.f32.mrf.mxu0
        %v1752 = vadd.f32 %v590, %v1751
        %v1753 = vpop.f32.mrf.mxu0
        %1754 = vmatprep.mubr.f32.mxu0 0.0
        %1755 = vmatmul.mubr.f32.gmra.mxu0 %v897
        %v1756 = vpop.f32.mrf.mxu0
        %v1757 = vadd.f32 %v590, %v1756
        %v1758 = vpop.f32.mrf.mxu0
        %1759 = vmatprep.mubr.f32.mxu0 0.0
        %1760 = vmatmul.mubr.f32.gmra.mxu0 %v900
        %v1761 = vpop.f32.mrf.mxu0
        %v1762 = vadd.f32 %v590, %v1761
        %v1763 = vpop.f32.mrf.mxu0
        %1764 = vmatprep.mubr.f32.mxu0 0.0
        %1765 = vmatmul.mubr.f32.gmra.mxu0 %v903
        %v1766 = vpop.f32.mrf.mxu0
        %v1767 = vadd.f32 %v590, %v1766
        %v1768 = vpop.f32.mrf.mxu0
        %1769 = vmatprep.mubr.f32.mxu0 0.0
        %1770 = vmatmul.mubr.f32.gmra.mxu0 %v906
        %v1771 = vpop.f32.mrf.mxu0
        %v1772 = vadd.f32 %v590, %v1771
        %v1773 = vpop.f32.mrf.mxu0
        %1774 = vmatprep.mubr.f32.mxu0 0.0
        %1775 = vmatmul.mubr.f32.gmra.mxu0 %v909
        %v1776 = vpop.f32.mrf.mxu0
        %v1777 = vadd.f32 %v590, %v1776
        %v1778 = vpop.f32.mrf.mxu0
        %1779 = vmatprep.mubr.f32.mxu0 0.0
        %1780 = vmatmul.mubr.f32.gmra.mxu0 %v912
        %v1781 = vpop.f32.mrf.mxu0
        %v1782 = vadd.f32 %v590, %v1781
        %v1783 = vpop.f32.mrf.mxu0
        %1784 = vmatprep.mubr.f32.mxu0 0.0
        %1785 = vmatmul.mubr.f32.gmra.mxu0 %v915
        %v1786 = vpop.f32.mrf.mxu0
        %v1787 = vadd.f32 %v590, %v1786
        %v1788 = vpop.f32.mrf.mxu0
        %1789 = vmatprep.mubr.f32.mxu0 0.0
        %1790 = vmatmul.mubr.f32.gmra.mxu0 %v918
        %v1791 = vpop.f32.mrf.mxu0
        %v1792 = vadd.f32 %v590, %v1791
        %v1793 = vpop.f32.mrf.mxu0
        %1794 = vmatprep.mubr.f32.mxu0 0.0
        %1795 = vmatmul.mubr.f32.gmra.mxu0 %v921
        %v1796 = vpop.f32.mrf.mxu0
        %v1797 = vadd.f32 %v590, %v1796
        %v1798 = vpop.f32.mrf.mxu0
        %1799 = vmatprep.mubr.f32.mxu0 0.0
        %1800 = vmatmul.mubr.f32.gmra.mxu0 %v924
        %v1801 = vpop.f32.mrf.mxu0
        %v1802 = vadd.f32 %v590, %v1801
        %v1803 = vpop.f32.mrf.mxu0
        %1804 = vmatprep.mubr.f32.mxu0 0.0
        %1805 = vmatmul.mubr.f32.gmra.mxu0 %v927
        %v1806 = vpop.f32.mrf.mxu0
        %v1807 = vadd.f32 %v590, %v1806
        %v1808 = vpop.f32.mrf.mxu0
        %1809 = vmatprep.mubr.f32.mxu0 0.0
        %1810 = vmatmul.mubr.f32.gmra.mxu0 %v930
        %v1811 = vpop.f32.mrf.mxu0
        %v1812 = vadd.f32 %v590, %v1811
        %v1813 = vpop.f32.mrf.mxu0
        %1814 = vmatprep.mubr.f32.mxu0 0.0
        %1815 = vmatmul.mubr.f32.gmra.mxu0 %v933
        %v1816 = vpop.f32.mrf.mxu0
        %v1817 = vadd.f32 %v590, %v1816
        %v1818 = vpop.f32.mrf.mxu0
        %1819 = vmatprep.mubr.f32.mxu0 0.0
        %1820 = vmatmul.mubr.f32.gmra.mxu0 %v936
        %v1821 = vpop.f32.mrf.mxu0
        %v1822 = vadd.f32 %v590, %v1821
        %v1823 = vpop.f32.mrf.mxu0
        %1824 = vmatprep.mubr.f32.mxu0 0.0
        %1825 = vmatmul.mubr.f32.gmra.mxu0 %v939
        %v1826 = vpop.f32.mrf.mxu0
        %v1827 = vadd.f32 %v590, %v1826
        %v1828 = vpop.f32.mrf.mxu0
        %1829 = vmatprep.mubr.f32.mxu0 0.0
        %1830 = vmatmul.mubr.f32.gmra.mxu0 %v942
        %v1831 = vpop.f32.mrf.mxu0
        %v1832 = vadd.f32 %v590, %v1831
        %v1833 = vpop.f32.mrf.mxu0
        %1834 = vmatprep.mubr.f32.mxu0 0.0
        %1835 = vmatmul.mubr.f32.gmra.mxu0 %v945
        %v1836 = vpop.f32.mrf.mxu0
        %v1837 = vadd.f32 %v590, %v1836
        %v1838 = vpop.f32.mrf.mxu0
        %1839 = vmatprep.mubr.f32.mxu0 0.0
        %1840 = vmatmul.mubr.f32.gmra.mxu0 %v948
        %v1841 = vpop.f32.mrf.mxu0
        %v1842 = vadd.f32 %v590, %v1841
        %v1843 = vpop.f32.mrf.mxu0
        %1844 = vmatprep.mubr.f32.mxu0 0.0
        %1845 = vmatmul.mubr.f32.gmra.mxu0 %v951
        %v1846 = vpop.f32.mrf.mxu0
        %v1847 = vadd.f32 %v590, %v1846
        %v1848 = vpop.f32.mrf.mxu0
        %1849 = vmatprep.mubr.f32.mxu0 0.0
        %1850 = vmatmul.mubr.f32.gmra.mxu0 %v954
        %v1851 = vpop.f32.mrf.mxu0
        %v1852 = vadd.f32 %v590, %v1851
        %v1853 = vpop.f32.mrf.mxu0
        %1854 = vmatprep.mubr.f32.mxu0 0.0
        %1855 = vmatmul.mubr.f32.gmra.mxu0 %v957
        %v1856 = vpop.f32.mrf.mxu0
        %v1857 = vadd.f32 %v590, %v1856
        %v1858 = vpop.f32.mrf.mxu0
        %1859 = vmatprep.mubr.f32.mxu0 0.0
        %1860 = vmatmul.mubr.f32.gmra.mxu0 %v960
        %v1861 = vpop.f32.mrf.mxu0
        %v1862 = vadd.f32 %v590, %v1861
        %v1863 = vpop.f32.mrf.mxu0
        %1864 = vmatprep.mubr.f32.mxu0 0.0
        %1865 = vmatmul.mubr.f32.gmra.mxu0 %v963
        %v1866 = vpop.f32.mrf.mxu0
        %v1867 = vadd.f32 %v590, %v1866
        %v1868 = vpop.f32.mrf.mxu0
        %1869 = vmatprep.mubr.f32.mxu0 0.0
        %1870 = vmatmul.mubr.f32.gmra.mxu0 %v966
        %v1871 = vpop.f32.mrf.mxu0
        %v1872 = vadd.f32 %v590, %v1871
        %v1873 = vpop.f32.mrf.mxu0
        %1874 = vmatprep.mubr.f32.mxu0 0.0
        %1875 = vmatmul.mubr.f32.gmra.mxu0 %v969
        %v1876 = vpop.f32.mrf.mxu0
        %v1877 = vadd.f32 %v590, %v1876
        %v1878 = vpop.f32.mrf.mxu0
        %1879 = vmatprep.mubr.f32.mxu0 0.0
        %1880 = vmatmul.mubr.f32.gmra.mxu0 %v972
        %v1881 = vpop.f32.mrf.mxu0
        %v1882 = vadd.f32 %v590, %v1881
        %v1883 = vpop.f32.mrf.mxu0
        %1884 = vmatprep.mubr.f32.mxu0 0.0
        %1885 = vmatmul.mubr.f32.gmra.mxu0 %v975
        %v1886 = vpop.f32.mrf.mxu0
        %v1887 = vadd.f32 %v590, %v1886
        %v1888 = vpop.f32.mrf.mxu0
        %1889 = vmatprep.mubr.f32.mxu0 0.0
        %1890 = vmatmul.mubr.f32.gmra.mxu0 %v978
        %v1891 = vpop.f32.mrf.mxu0
        %v1892 = vadd.f32 %v590, %v1891
        %v1893 = vpop.f32.mrf.mxu0
        %1894 = vmatprep.mubr.f32.mxu0 0.0
        %1895 = vmatmul.mubr.f32.gmra.mxu0 %v981
        %v1896 = vpop.f32.mrf.mxu0
        %v1897 = vadd.f32 %v590, %v1896
        %v1898 = vpop.f32.mrf.mxu0
        %1899 = vmatprep.mubr.f32.mxu0 0.0
        %1900 = vmatmul.mubr.f32.gmra.mxu0 %v984
        %v1901 = vpop.f32.mrf.mxu0
        %v1902 = vadd.f32 %v590, %v1901
        %v1903 = vpop.f32.mrf.mxu0
        %1904 = vmatprep.mubr.f32.mxu0 0.0
        %1905 = vmatmul.mubr.f32.gmra.mxu0 %v987
        %v1906 = vpop.f32.mrf.mxu0
        %v1907 = vadd.f32 %v590, %v1906
        %v1908 = vpop.f32.mrf.mxu0
        %1909 = vmatprep.mubr.f32.mxu0 0.0
        %1910 = vmatmul.mubr.f32.gmra.mxu0 %v990
        %v1911 = vpop.f32.mrf.mxu0
        %v1912 = vadd.f32 %v590, %v1911
        %v1913 = vpop.f32.mrf.mxu0
        %1914 = vmatprep.mubr.f32.mxu0 0.0
        %1915 = vmatmul.mubr.f32.gmra.mxu0 %v993
        %v1916 = vpop.f32.mrf.mxu0
        %v1917 = vadd.f32 %v590, %v1916
        %v1918 = vpop.f32.mrf.mxu0
        %1919 = vmatprep.mubr.f32.mxu0 0.0
        %1920 = vmatmul.mubr.f32.gmra.mxu0 %v996
        %v1921 = vpop.f32.mrf.mxu0
        %v1922 = vadd.f32 %v590, %v1921
        %v1923 = vpop.f32.mrf.mxu0
        %1924 = vmatprep.mubr.f32.mxu0 0.0
        %1925 = vmatmul.mubr.f32.gmra.mxu0 %v999
        %v1926 = vpop.f32.mrf.mxu0
        %v1927 = vadd.f32 %v590, %v1926
        %v1928 = vpop.f32.mrf.mxu0
        %1929 = vmatprep.mubr.f32.mxu0 0.0
        %1930 = vmatmul.mubr.f32.gmra.mxu0 %v1002
        %v1931 = vpop.f32.mrf.mxu0
        %v1932 = vadd.f32 %v590, %v1931
        %v1933 = vpop.f32.mrf.mxu0
        %1934 = vmatprep.mubr.f32.mxu0 0.0
        %1935 = vmatmul.mubr.f32.gmra.mxu0 %v1005
        %v1936 = vpop.f32.mrf.mxu0
        %v1937 = vadd.f32 %v590, %v1936
        %v1938 = vpop.f32.mrf.mxu0
        %1939 = vmatprep.mubr.f32.mxu0 0.0
        %1940 = vmatmul.mubr.f32.gmra.mxu0 %v1008
        %v1941 = vpop.f32.mrf.mxu0
        %v1942 = vadd.f32 %v590, %v1941
        %v1943 = vpop.f32.mrf.mxu0
        %1944 = vmatprep.mubr.f32.mxu0 0.0
        %1945 = vmatmul.mubr.f32.gmra.mxu0 %v1011
        %v1946 = vpop.f32.mrf.mxu0
        %v1947 = vadd.f32 %v590, %v1946
        %v1948 = vpop.f32.mrf.mxu0
        %1949 = vmatprep.mubr.f32.mxu0 0.0
        %1950 = vmatmul.mubr.f32.gmra.mxu0 %v1014
        %v1951 = vpop.f32.mrf.mxu0
        %v1952 = vadd.f32 %v590, %v1951
        %v1953 = vpop.f32.mrf.mxu0
        %1954 = vmatprep.mubr.f32.mxu0 0.0
        %1955 = vmatmul.mubr.f32.gmra.mxu0 %v1017
        %v1956 = vpop.f32.mrf.mxu0
        %v1957 = vadd.f32 %v590, %v1956
        %v1958 = vpop.f32.mrf.mxu0
        %1959 = vmatprep.mubr.f32.mxu0 0.0
        %1960 = vmatmul.mubr.f32.gmra.mxu0 %v1020
        %v1961 = vpop.f32.mrf.mxu0
        %v1962 = vadd.f32 %v590, %v1961
        %v1963 = vpop.f32.mrf.mxu0
        %1964 = vmatprep.mubr.f32.mxu0 0.0
        %1965 = vmatmul.mubr.f32.gmra.mxu0 %v1023
        %v1966 = vpop.f32.mrf.mxu0
        %v1967 = vadd.f32 %v590, %v1966
        %v1968 = vpop.f32.mrf.mxu0
        %1969 = vmatprep.mubr.f32.mxu0 0.0
        %1970 = vmatmul.mubr.f32.gmra.mxu0 %v1026
        %v1971 = vpop.f32.mrf.mxu0
        %v1972 = vadd.f32 %v590, %v1971
        %v1973 = vpop.f32.mrf.mxu0
        %1974 = vmatprep.mubr.f32.mxu0 0.0
        %1975 = vmatmul.mubr.f32.gmra.mxu0 %v1029
        %v1976 = vpop.f32.mrf.mxu0
        %v1977 = vadd.f32 %v590, %v1976
        %v1978 = vpop.f32.mrf.mxu0
        %1979 = vmatprep.mubr.f32.mxu0 0.0
        %1980 = vmatmul.mubr.f32.gmra.mxu0 %v1032
        %v1981 = vpop.f32.mrf.mxu0
        %v1982 = vadd.f32 %v590, %v1981
        %v1983 = vpop.f32.mrf.mxu0
        %1984 = vmatprep.mubr.f32.mxu0 0.0
        %1985 = vmatmul.mubr.f32.gmra.mxu0 %v1035
        %v1986 = vpop.f32.mrf.mxu0
        %v1987 = vadd.f32 %v590, %v1986
        %v1988 = vpop.f32.mrf.mxu0
        %1989 = vmatprep.mubr.f32.mxu0 0.0
        %1990 = vmatmul.mubr.f32.gmra.mxu0 %v1038
        %v1991 = vpop.f32.mrf.mxu0
        %v1992 = vadd.f32 %v590, %v1991
        %v1993 = vpop.f32.mrf.mxu0
        %1994 = vmatprep.mubr.f32.mxu0 0.0
        %1995 = vmatmul.mubr.f32.gmra.mxu0 %v1041
        %v1996 = vpop.f32.mrf.mxu0
        %v1997 = vadd.f32 %v590, %v1996
        %v1998 = vpop.f32.mrf.mxu0
        %1999 = vmatprep.mubr.f32.mxu0 0.0
        %2000 = vmatmul.mubr.f32.gmra.mxu0 %v1044
        %v2001 = vpop.f32.mrf.mxu0
        %v2002 = vadd.f32 %v590, %v2001
        %v2003 = vpop.f32.mrf.mxu0
        %2004 = vmatprep.mubr.f32.mxu0 0.0
        %2005 = vmatmul.mubr.f32.gmra.mxu0 %v1047
        %v2006 = vpop.f32.mrf.mxu0
        %v2007 = vadd.f32 %v590, %v2006
        %v2008 = vpop.f32.mrf.mxu0
        %2009 = vmatprep.mubr.f32.mxu0 0.0
        %2010 = vmatmul.mubr.f32.gmra.mxu0 %v1050
        %v2011 = vpop.f32.mrf.mxu0
        %v2012 = vadd.f32 %v590, %v2011
        %v2013 = vpop.f32.mrf.mxu0
        %2014 = vmatprep.mubr.f32.mxu0 0.0
        %2015 = vmatmul.mubr.f32.gmra.mxu0 %v1053
        %v2016 = vpop.f32.mrf.mxu0
        %v2017 = vadd.f32 %v590, %v2016
        %v2018 = vpop.f32.mrf.mxu0
        %2019 = vmatprep.mubr.f32.mxu0 0.0
        %2020 = vmatmul.mubr.f32.gmra.mxu0 %v1056
        %v2021 = vpop.f32.mrf.mxu0
        %v2022 = vadd.f32 %v590, %v2021
        %v2023 = vpop.f32.mrf.mxu0
        %2024 = vmatprep.mubr.f32.mxu0 0.0
        %2025 = vmatmul.mubr.f32.gmra.mxu0 %v1059
        %v2026 = vpop.f32.mrf.mxu0
        %v2027 = vadd.f32 %v590, %v2026
        %v2028 = vpop.f32.mrf.mxu0
        %2029 = vmatprep.mubr.f32.mxu0 0.0
        %2030 = vmatmul.mubr.f32.gmra.mxu0 %v1062
        %v2031 = vpop.f32.mrf.mxu0
        %v2032 = vadd.f32 %v590, %v2031
        %v2033 = vpop.f32.mrf.mxu0
        %2034 = vmatprep.mubr.f32.mxu0 0.0
        %2035 = vmatmul.mubr.f32.gmra.mxu0 %v1065
        %v2036 = vpop.f32.mrf.mxu0
        %v2037 = vadd.f32 %v590, %v2036
        %v2038 = vpop.f32.mrf.mxu0
        %2039 = vmatprep.mubr.f32.mxu0 0.0
        %2040 = vmatmul.mubr.f32.gmra.mxu0 %v1068
        %v2041 = vpop.f32.mrf.mxu0
        %v2042 = vadd.f32 %v590, %v2041
        %v2043 = vpop.f32.mrf.mxu0
        %2044 = vmatprep.mubr.f32.mxu0 0.0
        %2045 = vmatmul.mubr.f32.gmra.mxu0 %v1071
        %v2046 = vpop.f32.mrf.mxu0
        %v2047 = vadd.f32 %v590, %v2046
        %v2048 = vpop.f32.mrf.mxu0
        %2049 = vmatprep.mubr.f32.mxu0 0.0
        %2050 = vmatmul.mubr.f32.gmra.mxu0 %v1074
        %v2051 = vpop.f32.mrf.mxu0
        %v2052 = vadd.f32 %v590, %v2051
        %v2053 = vpop.f32.mrf.mxu0
        %2054 = vmatprep.mubr.f32.mxu0 0.0
        %2055 = vmatmul.mubr.f32.gmra.mxu0 %v1077
        %v2056 = vpop.f32.mrf.mxu0
        %v2057 = vadd.f32 %v590, %v2056
        %v2058 = vpop.f32.mrf.mxu0
        %2059 = vmatprep.mubr.f32.mxu0 0.0
        %2060 = vmatmul.mubr.f32.gmra.mxu0 %v1080
        %v2061 = vpop.f32.mrf.mxu0
        %v2062 = vadd.f32 %v590, %v2061
        %v2063 = vpop.f32.mrf.mxu0
        %2064 = vmatprep.mubr.f32.mxu0 0.0
        %2065 = vmatmul.mubr.f32.gmra.mxu0 %v1083
        %v2066 = vpop.f32.mrf.mxu0
        %v2067 = vadd.f32 %v590, %v2066
        %v2068 = vpop.f32.mrf.mxu0
        %2069 = vmatprep.mubr.f32.mxu0 0.0
        %2070 = vmatmul.mubr.f32.gmra.mxu0 %v1086
        %v2071 = vpop.f32.mrf.mxu0
        %v2072 = vadd.f32 %v590, %v2071
        %v2073 = vpop.f32.mrf.mxu0
        %2074 = vmatprep.mubr.f32.mxu0 0.0
        %2075 = vmatmul.mubr.f32.gmra.mxu0 %v1089
        %v2076 = vpop.f32.mrf.mxu0
        %v2077 = vadd.f32 %v590, %v2076
        %v2078 = vpop.f32.mrf.mxu0
        %2079 = vmatprep.mubr.f32.mxu0 0.0
        %2080 = vmatmul.mubr.f32.gmra.mxu0 %v1092
        %v2081 = vpop.f32.mrf.mxu0
        %v2082 = vadd.f32 %v590, %v2081
        %v2083 = vpop.f32.mrf.mxu0
        %2084 = vmatprep.mubr.f32.mxu0 0.0
        %2085 = vmatmul.mubr.f32.gmra.mxu0 %v1095
        %v2086 = vpop.f32.mrf.mxu0
        %v2087 = vadd.f32 %v590, %v2086
        %v2088 = vpop.f32.mrf.mxu0
        %2089 = vmatprep.mubr.f32.mxu0 0.0
        %2090 = vmatmul.mubr.f32.gmra.mxu0 %v1098
        %v2091 = vpop.f32.mrf.mxu0
        %v2092 = vadd.f32 %v590, %v2091
        %v2093 = vpop.f32.mrf.mxu0
        %2094 = vmatprep.mubr.f32.mxu0 0.0
        %2095 = vmatmul.mubr.f32.gmra.mxu0 %v1101
        %v2096 = vpop.f32.mrf.mxu0
        %v2097 = vadd.f32 %v590, %v2096
        %v2098 = vpop.f32.mrf.mxu0
        %2099 = vmatprep.mubr.f32.mxu0 0.0
        %2100 = vmatmul.mubr.f32.gmra.mxu0 %v1104
        %v2101 = vpop.f32.mrf.mxu0
        %v2102 = vadd.f32 %v590, %v2101
        %v2103 = vpop.f32.mrf.mxu0
        %2104 = vmatprep.mubr.f32.mxu0 0.0
        %2105 = vmatmul.mubr.f32.gmra.mxu0 %v1107
        %v2106 = vpop.f32.mrf.mxu0
        %v2107 = vadd.f32 %v590, %v2106
        %v2108 = vpop.f32.mrf.mxu0
        %2109 = vmatprep.mubr.f32.mxu0 0.0
        %2110 = vmatmul.mubr.f32.gmra.mxu0 %v1110
        %v2111 = vpop.f32.mrf.mxu0
        %v2112 = vadd.f32 %v590, %v2111
        %v2113 = vpop.f32.mrf.mxu0
        %2114 = vmatprep.mubr.f32.mxu0 0.0
        %2115 = vmatmul.mubr.f32.gmra.mxu0 %v1113
        %v2116 = vpop.f32.mrf.mxu0
        %v2117 = vadd.f32 %v590, %v2116
        %v2118 = vpop.f32.mrf.mxu0
        %2119 = vmatprep.mubr.f32.mxu0 0.0
        %2120 = vmatmul.mubr.f32.gmra.mxu0 %v1116
        %v2121 = vpop.f32.mrf.mxu0
        %v2122 = vadd.f32 %v590, %v2121
        %v2123 = vpop.f32.mrf.mxu0
        %2124 = vmatprep.mubr.f32.mxu0 0.0
        %2125 = vmatmul.mubr.f32.gmra.mxu0 %v1119
        %v2126 = vpop.f32.mrf.mxu0
        %v2127 = vadd.f32 %v590, %v2126
        %v2128 = vpop.f32.mrf.mxu0
        %2129 = vmatprep.mubr.f32.mxu0 0.0
        %2130 = vmatmul.mubr.f32.gmra.mxu0 %v1122
        %v2131 = vpop.f32.mrf.mxu0
        %v2132 = vadd.f32 %v590, %v2131
        %v2133 = vpop.f32.mrf.mxu0
        %2134 = vmatprep.mubr.f32.mxu0 0.0
        %2135 = vmatmul.mubr.f32.gmra.mxu0 %v1125
        %v2136 = vpop.f32.mrf.mxu0
        %v2137 = vadd.f32 %v590, %v2136
        %v2138 = vpop.f32.mrf.mxu0
        %2139 = vmatprep.mubr.f32.mxu0 0.0
        %2140 = vmatmul.mubr.f32.gmra.mxu0 %v1128
        %v2141 = vpop.f32.mrf.mxu0
        %v2142 = vadd.f32 %v590, %v2141
        %v2143 = vpop.f32.mrf.mxu0
        %2144 = vmatprep.mubr.f32.mxu0 0.0
        %2145 = vmatmul.mubr.f32.gmra.mxu0 %v1131
        %v2146 = vpop.f32.mrf.mxu0
        %v2147 = vadd.f32 %v590, %v2146
        %v2148 = vpop.f32.mrf.mxu0
        %2149 = vmatprep.mubr.f32.mxu0 0.0
        %2150 = vmatmul.mubr.f32.gmra.mxu0 %v1134
        %v2151 = vpop.f32.mrf.mxu0
        %v2152 = vadd.f32 %v590, %v2151
        %v2153 = vpop.f32.mrf.mxu0
        %2154 = vmatprep.mubr.f32.mxu0 0.0
        %2155 = vmatmul.mubr.f32.gmra.mxu0 %v1137
        %v2156 = vpop.f32.mrf.mxu0
        %v2157 = vadd.f32 %v590, %v2156
        %v2158 = vpop.f32.mrf.mxu0
        %2159 = vmatprep.mubr.f32.mxu0 0.0
        %2160 = vmatmul.mubr.f32.gmra.mxu0 %v1140
        %v2161 = vpop.f32.mrf.mxu0
        %v2162 = vadd.f32 %v590, %v2161
        %v2163 = vpop.f32.mrf.mxu0
        %2164 = vmatprep.mubr.f32.mxu0 0.0
        %2165 = vmatmul.mubr.f32.gmra.mxu0 %v1143
        %v2166 = vpop.f32.mrf.mxu0
        %v2167 = vadd.f32 %v590, %v2166
        %v2168 = vpop.f32.mrf.mxu0
        %2169 = vmatprep.mubr.f32.mxu0 0.0
        %2170 = vmatmul.mubr.f32.gmra.mxu0 %v1146
        %v2171 = vpop.f32.mrf.mxu0
        %v2172 = vadd.f32 %v590, %v2171
        %v2173 = vpop.f32.mrf.mxu0
        %2174 = vmatprep.mubr.f32.mxu0 0.0
        %2175 = vmatmul.mubr.f32.gmra.mxu0 %v1149
        %v2176 = vpop.f32.mrf.mxu0
        %v2177 = vadd.f32 %v590, %v2176
        %v2178 = vpop.f32.mrf.mxu0
        %2179 = vmatprep.mubr.f32.mxu0 0.0
        %2180 = vmatmul.mubr.f32.gmra.mxu0 %v1152
        %v2181 = vpop.f32.mrf.mxu0
        %v2182 = vadd.f32 %v590, %v2181
        %v2183 = vpop.f32.mrf.mxu0
        %2184 = vmatprep.mubr.f32.mxu0 0.0
        %2185 = vmatmul.mubr.f32.gmra.mxu0 %v1155
        %v2186 = vpop.f32.mrf.mxu0
        %v2187 = vadd.f32 %v590, %v2186
        %v2188 = vpop.f32.mrf.mxu0
        %2189 = vmatprep.mubr.f32.mxu0 0.0
        %2190 = vmatmul.mubr.f32.gmra.mxu0 %v1158
        %v2191 = vpop.f32.mrf.mxu0
        %v2192 = vadd.f32 %v590, %v2191
        %v2193 = vpop.f32.mrf.mxu0
        %2194 = vmatprep.mubr.f32.mxu0 0.0
        %2195 = vmatmul.mubr.f32.gmra.mxu0 %v1161
        %v2196 = vpop.f32.mrf.mxu0
        %v2197 = vadd.f32 %v590, %v2196
        %v2198 = vpop.f32.mrf.mxu0
        %2199 = vmatprep.mubr.f32.mxu0 0.0
        %2200 = vmatmul.mubr.f32.gmra.mxu0 %v1164
        %v2201 = vpop.f32.mrf.mxu0
        %v2202 = vadd.f32 %v590, %v2201
        %v2203 = vpop.f32.mrf.mxu0
        %2204 = vmatprep.mubr.f32.mxu0 0.0
        %2205 = vmatmul.mubr.f32.gmra.mxu0 %v1167
        %v2206 = vpop.f32.mrf.mxu0
        %v2207 = vadd.f32 %v590, %v2206
        %v2208 = vpop.f32.mrf.mxu0
        %2209 = vmatprep.mubr.f32.mxu0 0.0
        %2210 = vmatmul.mubr.f32.gmra.mxu0 %v1170
        %v2211 = vpop.f32.mrf.mxu0
        %v2212 = vadd.f32 %v590, %v2211
        %v2213 = vpop.f32.mrf.mxu0
        %2214 = vmatprep.mubr.f32.mxu0 0.0
        %2215 = vmatmul.mubr.f32.gmra.mxu0 %v1173
        %v2216 = vpop.f32.mrf.mxu0
        %v2217 = vadd.f32 %v590, %v2216
        %v2218 = vpop.f32.mrf.mxu0
        %2219 = vmatprep.mubr.f32.mxu0 0.0
        %2220 = vmatmul.mubr.f32.gmra.mxu0 %v1176
        %v2221 = vpop.f32.mrf.mxu0
        %v2222 = vadd.f32 %v590, %v2221
        %v2223 = vpop.f32.mrf.mxu0
        %2224 = vmatprep.mubr.f32.mxu0 0.0
        %2225 = vmatmul.mubr.f32.gmra.mxu0 %v1179
        %v2226 = vpop.f32.mrf.mxu0
        %v2227 = vadd.f32 %v590, %v2226
        %v2228 = vpop.f32.mrf.mxu0
        %2229 = vdwg.mxu0
        %v2230 = vmax.f32 %v1252, 0.0
        %v2231 = vmax.f32 %v1257, 0.0
        %v2232 = vmax.f32 %v1262, 0.0
        %v2233 = vmax.f32 %v1267, 0.0
        %v2234 = vmax.f32 %v1272, 0.0
        %v2235 = vmax.f32 %v1277, 0.0
        %v2236 = vmax.f32 %v1282, 0.0
        %v2237 = vmax.f32 %v1287, 0.0
        %v2238 = vmax.f32 %v1292, 0.0
        %v2239 = vmax.f32 %v1297, 0.0
        %v2240 = vmax.f32 %v1302, 0.0
        %v2241 = vmax.f32 %v1307, 0.0
        %v2242 = vmax.f32 %v1312, 0.0
        %v2243 = vmax.f32 %v1317, 0.0
        %v2244 = vmax.f32 %v1322, 0.0
        %v2245 = vmax.f32 %v1327, 0.0
        %v2246 = vmax.f32 %v1332, 0.0
        %v2247 = vmax.f32 %v1337, 0.0
        %v2248 = vmax.f32 %v1342, 0.0
        %v2249 = vmax.f32 %v1347, 0.0
        %v2250 = vmax.f32 %v1352, 0.0
        %v2251 = vmax.f32 %v1357, 0.0
        %v2252 = vmax.f32 %v1362, 0.0
        %v2253 = vmax.f32 %v1367, 0.0
        %v2254 = vmax.f32 %v1372, 0.0
        %v2255 = vmax.f32 %v1377, 0.0
        %v2256 = vmax.f32 %v1382, 0.0
        %v2257 = vmax.f32 %v1387, 0.0
        %v2258 = vmax.f32 %v1392, 0.0
        %v2259 = vmax.f32 %v1397, 0.0
        %v2260 = vmax.f32 %v1402, 0.0
        %v2261 = vmax.f32 %v1407, 0.0
        %v2262 = vmax.f32 %v1412, 0.0
        %v2263 = vmax.f32 %v1417, 0.0
        %v2264 = vmax.f32 %v1422, 0.0
        %v2265 = vmax.f32 %v1427, 0.0
        %v2266 = vmax.f32 %v1432, 0.0
        %v2267 = vmax.f32 %v1437, 0.0
        %v2268 = vmax.f32 %v1442, 0.0
        %v2269 = vmax.f32 %v1447, 0.0
        %v2270 = vmax.f32 %v1452, 0.0
        %v2271 = vmax.f32 %v1457, 0.0
        %v2272 = vmax.f32 %v1462, 0.0
        %v2273 = vmax.f32 %v1467, 0.0
        %v2274 = vmax.f32 %v1472, 0.0
        %v2275 = vmax.f32 %v1477, 0.0
        %v2276 = vmax.f32 %v1482, 0.0
        %v2277 = vmax.f32 %v1487, 0.0
        %v2278 = vmax.f32 %v1492, 0.0
        %v2279 = vmax.f32 %v1497, 0.0
        %v2280 = vmax.f32 %v1502, 0.0
        %v2281 = vmax.f32 %v1507, 0.0
        %v2282 = vmax.f32 %v1512, 0.0
        %v2283 = vmax.f32 %v1517, 0.0
        %v2284 = vmax.f32 %v1522, 0.0
        %v2285 = vmax.f32 %v1527, 0.0
        %v2286 = vmax.f32 %v1532, 0.0
        %v2287 = vmax.f32 %v1537, 0.0
        %v2288 = vmax.f32 %v1542, 0.0
        %v2289 = vmax.f32 %v1547, 0.0
        %v2290 = vmax.f32 %v1552, 0.0
        %v2291 = vmax.f32 %v1557, 0.0
        %v2292 = vmax.f32 %v1562, 0.0
        %v2293 = vmax.f32 %v1567, 0.0
        %v2294 = vmax.f32 %v1572, 0.0
        %v2295 = vmax.f32 %v1577, 0.0
        %v2296 = vmax.f32 %v1582, 0.0
        %v2297 = vmax.f32 %v1587, 0.0
        %v2298 = vmax.f32 %v1592, 0.0
        %v2299 = vmax.f32 %v1597, 0.0
        %v2300 = vmax.f32 %v1602, 0.0
        %v2301 = vmax.f32 %v1607, 0.0
        %v2302 = vmax.f32 %v1612, 0.0
        %v2303 = vmax.f32 %v1617, 0.0
        %v2304 = vmax.f32 %v1622, 0.0
        %v2305 = vmax.f32 %v1627, 0.0
        %v2306 = vmax.f32 %v1632, 0.0
        %v2307 = vmax.f32 %v1637, 0.0
        %v2308 = vmax.f32 %v1642, 0.0
        %v2309 = vmax.f32 %v1647, 0.0
        %v2310 = vmax.f32 %v1652, 0.0
        %v2311 = vmax.f32 %v1657, 0.0
        %v2312 = vmax.f32 %v1662, 0.0
        %v2313 = vmax.f32 %v1667, 0.0
        %v2314 = vmax.f32 %v1672, 0.0
        %v2315 = vmax.f32 %v1677, 0.0
        %v2316 = vmax.f32 %v1682, 0.0
        %v2317 = vmax.f32 %v1687, 0.0
        %v2318 = vmax.f32 %v1692, 0.0
        %v2319 = vmax.f32 %v1697, 0.0
        %v2320 = vmax.f32 %v1702, 0.0
        %v2321 = vmax.f32 %v1707, 0.0
        %v2322 = vmax.f32 %v1712, 0.0
        %v2323 = vmax.f32 %v1717, 0.0
        %v2324 = vmax.f32 %v1722, 0.0
        %v2325 = vmax.f32 %v1727, 0.0
        %v2326 = vmax.f32 %v1732, 0.0
        %v2327 = vmax.f32 %v1737, 0.0
        %v2328 = vmax.f32 %v1742, 0.0
        %v2329 = vmax.f32 %v1747, 0.0
        %v2330 = vmax.f32 %v1752, 0.0
        %v2331 = vmax.f32 %v1757, 0.0
        %v2332 = vmax.f32 %v1762, 0.0
        %v2333 = vmax.f32 %v1767, 0.0
        %v2334 = vmax.f32 %v1772, 0.0
        %v2335 = vmax.f32 %v1777, 0.0
        %v2336 = vmax.f32 %v1782, 0.0
        %v2337 = vmax.f32 %v1787, 0.0
        %v2338 = vmax.f32 %v1792, 0.0
        %v2339 = vmax.f32 %v1797, 0.0
        %v2340 = vmax.f32 %v1802, 0.0
        %v2341 = vmax.f32 %v1807, 0.0
        %v2342 = vmax.f32 %v1812, 0.0
        %v2343 = vmax.f32 %v1817, 0.0
        %v2344 = vmax.f32 %v1822, 0.0
        %v2345 = vmax.f32 %v1827, 0.0
        %v2346 = vmax.f32 %v1832, 0.0
        %v2347 = vmax.f32 %v1837, 0.0
        %v2348 = vmax.f32 %v1842, 0.0
        %v2349 = vmax.f32 %v1847, 0.0
        %v2350 = vmax.f32 %v1852, 0.0
        %v2351 = vmax.f32 %v1857, 0.0
        %v2352 = vmax.f32 %v1862, 0.0
        %v2353 = vmax.f32 %v1867, 0.0
        %v2354 = vmax.f32 %v1872, 0.0
        %v2355 = vmax.f32 %v1877, 0.0
        %v2356 = vmax.f32 %v1882, 0.0
        %v2357 = vmax.f32 %v1887, 0.0
        %v2358 = vmax.f32 %v1892, 0.0
        %v2359 = vmax.f32 %v1897, 0.0
        %v2360 = vmax.f32 %v1902, 0.0
        %v2361 = vmax.f32 %v1907, 0.0
        %v2362 = vmax.f32 %v1912, 0.0
        %v2363 = vmax.f32 %v1917, 0.0
        %v2364 = vmax.f32 %v1922, 0.0
        %v2365 = vmax.f32 %v1927, 0.0
        %v2366 = vmax.f32 %v1932, 0.0
        %v2367 = vmax.f32 %v1937, 0.0
        %v2368 = vmax.f32 %v1942, 0.0
        %v2369 = vmax.f32 %v1947, 0.0
        %v2370 = vmax.f32 %v1952, 0.0
        %v2371 = vmax.f32 %v1957, 0.0
        %v2372 = vmax.f32 %v1962, 0.0
        %v2373 = vmax.f32 %v1967, 0.0
        %v2374 = vmax.f32 %v1972, 0.0
        %v2375 = vmax.f32 %v1977, 0.0
        %v2376 = vmax.f32 %v1982, 0.0
        %v2377 = vmax.f32 %v1987, 0.0
        %v2378 = vmax.f32 %v1992, 0.0
        %v2379 = vmax.f32 %v1997, 0.0
        %v2380 = vmax.f32 %v2002, 0.0
        %v2381 = vmax.f32 %v2007, 0.0
        %v2382 = vmax.f32 %v2012, 0.0
        %v2383 = vmax.f32 %v2017, 0.0
        %v2384 = vmax.f32 %v2022, 0.0
        %v2385 = vmax.f32 %v2027, 0.0
        %v2386 = vmax.f32 %v2032, 0.0
        %v2387 = vmax.f32 %v2037, 0.0
        %v2388 = vmax.f32 %v2042, 0.0
        %v2389 = vmax.f32 %v2047, 0.0
        %v2390 = vmax.f32 %v2052, 0.0
        %v2391 = vmax.f32 %v2057, 0.0
        %v2392 = vmax.f32 %v2062, 0.0
        %v2393 = vmax.f32 %v2067, 0.0
        %v2394 = vmax.f32 %v2072, 0.0
        %v2395 = vmax.f32 %v2077, 0.0
        %v2396 = vmax.f32 %v2082, 0.0
        %v2397 = vmax.f32 %v2087, 0.0
        %v2398 = vmax.f32 %v2092, 0.0
        %v2399 = vmax.f32 %v2097, 0.0
        %v2400 = vmax.f32 %v2102, 0.0
        %v2401 = vmax.f32 %v2107, 0.0
        %v2402 = vmax.f32 %v2112, 0.0
        %v2403 = vmax.f32 %v2117, 0.0
        %v2404 = vmax.f32 %v2122, 0.0
        %v2405 = vmax.f32 %v2127, 0.0
        %v2406 = vmax.f32 %v2132, 0.0
        %v2407 = vmax.f32 %v2137, 0.0
        %v2408 = vmax.f32 %v2142, 0.0
        %v2409 = vmax.f32 %v2147, 0.0
        %v2410 = vmax.f32 %v2152, 0.0
        %v2411 = vmax.f32 %v2157, 0.0
        %v2412 = vmax.f32 %v2162, 0.0
        %v2413 = vmax.f32 %v2167, 0.0
        %v2414 = vmax.f32 %v2172, 0.0
        %v2415 = vmax.f32 %v2177, 0.0
        %v2416 = vmax.f32 %v2182, 0.0
        %v2417 = vmax.f32 %v2187, 0.0
        %v2418 = vmax.f32 %v2192, 0.0
        %v2419 = vmax.f32 %v2197, 0.0
        %v2420 = vmax.f32 %v2202, 0.0
        %v2421 = vmax.f32 %v2207, 0.0
        %v2422 = vmax.f32 %v2212, 0.0
        %v2423 = vmax.f32 %v2217, 0.0
        %v2424 = vmax.f32 %v2222, 0.0
        %v2425 = vmax.f32 %v2227, 0.0
        %v2426 = vmax.f32 %v2230, %v2279
        %v2427 = vmax.f32 %v2231, %v2280
        %v2428 = vmax.f32 %v2232, %v2281
        %v2429 = vmax.f32 %v2233, %v2282
        %v2430 = vmax.f32 %v2234, %v2283
        %v2431 = vmax.f32 %v2235, %v2284
        %v2432 = vmax.f32 %v2236, %v2285
        %v2433 = vmax.f32 %v2237, %v2286
        %v2434 = vmax.f32 %v2238, %v2287
        %v2435 = vmax.f32 %v2239, %v2288
        %v2436 = vmax.f32 %v2240, %v2289
        %v2437 = vmax.f32 %v2241, %v2290
        %v2438 = vmax.f32 %v2242, %v2291
        %v2439 = vmax.f32 %v2243, %v2292
        %v2440 = vmax.f32 %v2244, %v2293
        %v2441 = vmax.f32 %v2245, %v2294
        %v2442 = vmax.f32 %v2246, %v2295
        %v2443 = vmax.f32 %v2247, %v2296
        %v2444 = vmax.f32 %v2248, %v2297
        %v2445 = vmax.f32 %v2249, %v2298
        %v2446 = vmax.f32 %v2250, %v2299
        %v2447 = vmax.f32 %v2251, %v2300
        %v2448 = vmax.f32 %v2252, %v2301
        %v2449 = vmax.f32 %v2253, %v2302
        %v2450 = vmax.f32 %v2254, %v2303
        %v2451 = vmax.f32 %v2255, %v2304
        %v2452 = vmax.f32 %v2256, %v2305
        %v2453 = vmax.f32 %v2257, %v2306
        %v2454 = vmax.f32 %v2258, %v2307
        %v2455 = vmax.f32 %v2259, %v2308
        %v2456 = vmax.f32 %v2260, %v2309
        %v2457 = vmax.f32 %v2261, %v2310
        %v2458 = vmax.f32 %v2262, %v2311
        %v2459 = vmax.f32 %v2263, %v2312
        %v2460 = vmax.f32 %v2264, %v2313
        %v2461 = vmax.f32 %v2265, %v2314
        %v2462 = vmax.f32 %v2266, %v2315
        %v2463 = vmax.f32 %v2267, %v2316
        %v2464 = vmax.f32 %v2268, %v2317
        %v2465 = vmax.f32 %v2269, %v2318
        %v2466 = vmax.f32 %v2270, %v2319
        %v2467 = vmax.f32 %v2271, %v2320
        %v2468 = vmax.f32 %v2272, %v2321
        %v2469 = vmax.f32 %v2273, %v2322
        %v2470 = vmax.f32 %v2274, %v2323
        %v2471 = vmax.f32 %v2275, %v2324
        %v2472 = vmax.f32 %v2276, %v2325
        %v2473 = vmax.f32 %v2277, %v2326
        %v2474 = vmax.f32 %v2278, %v2327
        %v2475 = vmax.f32 %v2328, %v2377
        %v2476 = vmax.f32 %v2329, %v2378
        %v2477 = vmax.f32 %v2330, %v2379
        %v2478 = vmax.f32 %v2331, %v2380
        %v2479 = vmax.f32 %v2332, %v2381
        %v2480 = vmax.f32 %v2333, %v2382
        %v2481 = vmax.f32 %v2334, %v2383
        %v2482 = vmax.f32 %v2335, %v2384
        %v2483 = vmax.f32 %v2336, %v2385
        %v2484 = vmax.f32 %v2337, %v2386
        %v2485 = vmax.f32 %v2338, %v2387
        %v2486 = vmax.f32 %v2339, %v2388
        %v2487 = vmax.f32 %v2340, %v2389
        %v2488 = vmax.f32 %v2341, %v2390
        %v2489 = vmax.f32 %v2342, %v2391
        %v2490 = vmax.f32 %v2343, %v2392
        %v2491 = vmax.f32 %v2344, %v2393
        %v2492 = vmax.f32 %v2345, %v2394
        %v2493 = vmax.f32 %v2346, %v2395
        %v2494 = vmax.f32 %v2347, %v2396
        %v2495 = vmax.f32 %v2348, %v2397
        %v2496 = vmax.f32 %v2349, %v2398
        %v2497 = vmax.f32 %v2350, %v2399
        %v2498 = vmax.f32 %v2351, %v2400
        %v2499 = vmax.f32 %v2352, %v2401
        %v2500 = vmax.f32 %v2353, %v2402
        %v2501 = vmax.f32 %v2354, %v2403
        %v2502 = vmax.f32 %v2355, %v2404
        %v2503 = vmax.f32 %v2356, %v2405
        %v2504 = vmax.f32 %v2357, %v2406
        %v2505 = vmax.f32 %v2358, %v2407
        %v2506 = vmax.f32 %v2359, %v2408
        %v2507 = vmax.f32 %v2360, %v2409
        %v2508 = vmax.f32 %v2361, %v2410
        %v2509 = vmax.f32 %v2362, %v2411
        %v2510 = vmax.f32 %v2363, %v2412
        %v2511 = vmax.f32 %v2364, %v2413
        %v2512 = vmax.f32 %v2365, %v2414
        %v2513 = vmax.f32 %v2366, %v2415
        %v2514 = vmax.f32 %v2367, %v2416
        %v2515 = vmax.f32 %v2368, %v2417
        %v2516 = vmax.f32 %v2369, %v2418
        %v2517 = vmax.f32 %v2370, %v2419
        %v2518 = vmax.f32 %v2371, %v2420
        %v2519 = vmax.f32 %v2372, %v2421
        %v2520 = vmax.f32 %v2373, %v2422
        %v2521 = vmax.f32 %v2374, %v2423
        %v2522 = vmax.f32 %v2375, %v2424
        %v2523 = vmax.f32 %v2376, %v2425
        %v2524 = vmax.f32 %v2426, %v2475
        %v2525 = vmax.f32 %v2427, %v2476
        %v2526 = vmax.f32 %v2428, %v2477
        %v2527 = vmax.f32 %v2429, %v2478
        %v2528 = vmax.f32 %v2430, %v2479
        %v2529 = vmax.f32 %v2431, %v2480
        %v2530 = vmax.f32 %v2432, %v2481
        %v2531 = vmax.f32 %v2433, %v2482
        %v2532 = vmax.f32 %v2434, %v2483
        %v2533 = vmax.f32 %v2435, %v2484
        %v2534 = vmax.f32 %v2436, %v2485
        %v2535 = vmax.f32 %v2437, %v2486
        %v2536 = vmax.f32 %v2438, %v2487
        %v2537 = vmax.f32 %v2439, %v2488
        %v2538 = vmax.f32 %v2440, %v2489
        %v2539 = vmax.f32 %v2441, %v2490
        %v2540 = vmax.f32 %v2442, %v2491
        %v2541 = vmax.f32 %v2443, %v2492
        %v2542 = vmax.f32 %v2444, %v2493
        %v2543 = vmax.f32 %v2445, %v2494
        %v2544 = vmax.f32 %v2446, %v2495
        %v2545 = vmax.f32 %v2447, %v2496
        %v2546 = vmax.f32 %v2448, %v2497
        %v2547 = vmax.f32 %v2449, %v2498
        %v2548 = vmax.f32 %v2450, %v2499
        %v2549 = vmax.f32 %v2451, %v2500
        %v2550 = vmax.f32 %v2452, %v2501
        %v2551 = vmax.f32 %v2453, %v2502
        %v2552 = vmax.f32 %v2454, %v2503
        %v2553 = vmax.f32 %v2455, %v2504
        %v2554 = vmax.f32 %v2456, %v2505
        %v2555 = vmax.f32 %v2457, %v2506
        %v2556 = vmax.f32 %v2458, %v2507
        %v2557 = vmax.f32 %v2459, %v2508
        %v2558 = vmax.f32 %v2460, %v2509
        %v2559 = vmax.f32 %v2461, %v2510
        %v2560 = vmax.f32 %v2462, %v2511
        %v2561 = vmax.f32 %v2463, %v2512
        %v2562 = vmax.f32 %v2464, %v2513
        %v2563 = vmax.f32 %v2465, %v2514
        %v2564 = vmax.f32 %v2466, %v2515
        %v2565 = vmax.f32 %v2467, %v2516
        %v2566 = vmax.f32 %v2468, %v2517
        %v2567 = vmax.f32 %v2469, %v2518
        %v2568 = vmax.f32 %v2470, %v2519
        %v2569 = vmax.f32 %v2471, %v2520
        %v2570 = vmax.f32 %v2472, %v2521
        %v2571 = vmax.f32 %v2473, %v2522
        %v2572 = vmax.f32 %v2474, %v2523
        %vm2573 = vcmask 261120
        %2574 = vst.msk [vmem:[#allocation2] sm:$0xff] %vm2573, 0.0
        %2575 = vst.msk [vmem:[#allocation2 + $0x8] sm:$0xff] %vm2573, 0.0
        %2576 = vst.msk [vmem:[#allocation2 + $0x10] sm:$0xff] %vm2573, 0.0
        %2577 = vst.msk [vmem:[#allocation2 + $0x18] sm:$0xff] %vm2573, 0.0
        %2578 = vst.msk [vmem:[#allocation2 + $0x20] sm:$0xff] %vm2573, 0.0
        %2579 = vst.msk [vmem:[#allocation2 + $0x28] sm:$0xff] %vm2573, 0.0
        %2580 = vst.msk [vmem:[#allocation2 + $0x30] sm:$0xff] %vm2573, 0.0
        %2581 = vst.msk [vmem:[#allocation2 + $0x38] sm:$0xff] %vm2573, 0.0
        %2582 = vst.msk [vmem:[#allocation2 + $0x40] sm:$0xff] %vm2573, 0.0
        %2583 = vst.msk [vmem:[#allocation2 + $0x48] sm:$0xff] %vm2573, 0.0
        %2584 = vst.msk [vmem:[#allocation2 + $0x50] sm:$0xff] %vm2573, 0.0
        %2585 = vst.msk [vmem:[#allocation2 + $0x58] sm:$0xff] %vm2573, 0.0
        %2586 = vst.msk [vmem:[#allocation2 + $0x60] sm:$0xff] %vm2573, 0.0
        %2587 = vst.msk [vmem:[#allocation2 + $0x68] sm:$0xff] %vm2573, 0.0
        %2588 = vst.msk [vmem:[#allocation2 + $0x70] sm:$0xff] %vm2573, 0.0
        %2589 = vst.msk [vmem:[#allocation2 + $0x78] sm:$0xff] %vm2573, 0.0
        %2590 = vst.msk [vmem:[#allocation2 + $0x80] sm:$0xff] %vm2573, 0.0
        %2591 = vst.msk [vmem:[#allocation2 + $0x88] sm:$0xff] %vm2573, 0.0
        %2592 = vst.msk [vmem:[#allocation2 + $0x90] sm:$0xff] %vm2573, 0.0
        %2593 = vst.msk [vmem:[#allocation2 + $0x98] sm:$0xff] %vm2573, 0.0
        %2594 = vst.msk [vmem:[#allocation2 + $0xa0] sm:$0xff] %vm2573, 0.0
        %2595 = vst.msk [vmem:[#allocation2 + $0xa8] sm:$0xff] %vm2573, 0.0
        %2596 = vst.msk [vmem:[#allocation2 + $0xb0] sm:$0xff] %vm2573, 0.0
        %2597 = vst.msk [vmem:[#allocation2 + $0xb8] sm:$0xff] %vm2573, 0.0
        %2598 = vst.msk [vmem:[#allocation2 + $0xc0] sm:$0xff] %vm2573, 0.0
        %2599 = vst.msk [vmem:[#allocation2 + $0xc8] sm:$0xff] %vm2573, 0.0
        %2600 = vst.msk [vmem:[#allocation2 + $0xd0] sm:$0xff] %vm2573, 0.0
        %2601 = vst.msk [vmem:[#allocation2 + $0xd8] sm:$0xff] %vm2573, 0.0
        %2602 = vst.msk [vmem:[#allocation2 + $0xe0] sm:$0xff] %vm2573, 0.0
        %2603 = vst.msk [vmem:[#allocation2 + $0xe8] sm:$0xff] %vm2573, 0.0
        %2604 = vst.msk [vmem:[#allocation2 + $0xf0] sm:$0xff] %vm2573, 0.0
        %2605 = vst.msk [vmem:[#allocation2 + $0xf8] sm:$0xff] %vm2573, 0.0
        %2606 = vst.msk [vmem:[#allocation2 + $0x100] sm:$0xff] %vm2573, 0.0
        %2607 = vst.msk [vmem:[#allocation2 + $0x108] sm:$0xff] %vm2573, 0.0
        %2608 = vst.msk [vmem:[#allocation2 + $0x110] sm:$0xff] %vm2573, 0.0
        %2609 = vst.msk [vmem:[#allocation2 + $0x118] sm:$0xff] %vm2573, 0.0
        %2610 = vst.msk [vmem:[#allocation3] sm:$0xff] %vm2573, 0.0
        %2611 = vst.msk [vmem:[#allocation3 + $0x8] sm:$0xff] %vm2573, 0.0
        %2612 = vst.msk [vmem:[#allocation3 + $0x10] sm:$0xff] %vm2573, 0.0
        %2613 = vst.msk [vmem:[#allocation3 + $0x18] sm:$0xff] %vm2573, 0.0
        %2614 = vst.msk [vmem:[#allocation3 + $0x20] sm:$0xff] %vm2573, 0.0
        %2615 = vst.msk [vmem:[#allocation3 + $0x28] sm:$0xff] %vm2573, 0.0
        %2616 = vst.msk [vmem:[#allocation3 + $0x30] sm:$0xff] %vm2573, 0.0
        %2617 = vst.msk [vmem:[#allocation3 + $0x38] sm:$0xff] %vm2573, 0.0
        %2618 = vst.msk [vmem:[#allocation3 + $0x40] sm:$0xff] %vm2573, 0.0
        %2619 = vst.msk [vmem:[#allocation3 + $0x48] sm:$0xff] %vm2573, 0.0
        %2620 = vst.msk [vmem:[#allocation3 + $0x50] sm:$0xff] %vm2573, 0.0
        %2621 = vst.msk [vmem:[#allocation3 + $0x58] sm:$0xff] %vm2573, 0.0
        %2622 = vst.msk [vmem:[#allocation3 + $0x60] sm:$0xff] %vm2573, 0.0
        %2623 = vst.msk [vmem:[#allocation3 + $0x68] sm:$0xff] %vm2573, 0.0
        %2624 = vst.msk [vmem:[#allocation3 + $0x70] sm:$0xff] %vm2573, 0.0
        %2625 = vst.msk [vmem:[#allocation3 + $0x78] sm:$0xff] %vm2573, 0.0
        %2626 = vst.msk [vmem:[#allocation3 + $0x80] sm:$0xff] %vm2573, 0.0
        %2627 = vst.msk [vmem:[#allocation3 + $0x88] sm:$0xff] %vm2573, 0.0
        %2628 = vst.msk [vmem:[#allocation3 + $0x90] sm:$0xff] %vm2573, 0.0
        %2629 = vst.msk [vmem:[#allocation3 + $0x98] sm:$0xff] %vm2573, 0.0
        %2630 = vst.msk [vmem:[#allocation3 + $0xa0] sm:$0xff] %vm2573, 0.0
        %2631 = vst.msk [vmem:[#allocation3 + $0xa8] sm:$0xff] %vm2573, 0.0
        %2632 = vst.msk [vmem:[#allocation3 + $0xb0] sm:$0xff] %vm2573, 0.0
        %2633 = vst.msk [vmem:[#allocation3 + $0xb8] sm:$0xff] %vm2573, 0.0
        %2634 = vst.msk [vmem:[#allocation3 + $0xc0] sm:$0xff] %vm2573, 0.0
        %2635 = vst.msk [vmem:[#allocation3 + $0xc8] sm:$0xff] %vm2573, 0.0
        %2636 = vst.msk [vmem:[#allocation3 + $0xd0] sm:$0xff] %vm2573, 0.0
        %2637 = vst.msk [vmem:[#allocation3 + $0xd8] sm:$0xff] %vm2573, 0.0
        %2638 = vst.msk [vmem:[#allocation3 + $0xe0] sm:$0xff] %vm2573, 0.0
        %2639 = vst.msk [vmem:[#allocation3 + $0xe8] sm:$0xff] %vm2573, 0.0
        %2640 = vst.msk [vmem:[#allocation4] sm:$0xff] %vm2573, 0.0
        %2641 = vst.msk [vmem:[#allocation4 + $0x8] sm:$0xff] %vm2573, 0.0
        %2642 = vst.msk [vmem:[#allocation4 + $0x10] sm:$0xff] %vm2573, 0.0
        %2643 = vst.msk [vmem:[#allocation4 + $0x18] sm:$0xff] %vm2573, 0.0
        %2644 = vst.msk [vmem:[#allocation4 + $0x20] sm:$0xff] %vm2573, 0.0
        %2645 = vst.msk [vmem:[#allocation4 + $0x28] sm:$0xff] %vm2573, 0.0
        %2646 = vst.msk [vmem:[#allocation4 + $0x30] sm:$0xff] %vm2573, 0.0
        %2647 = vst.msk [vmem:[#allocation4 + $0x38] sm:$0xff] %vm2573, 0.0
        %2648 = vst.msk [vmem:[#allocation4 + $0x40] sm:$0xff] %vm2573, 0.0
        %2649 = vst.msk [vmem:[#allocation4 + $0x48] sm:$0xff] %vm2573, 0.0
        %2650 = vst.msk [vmem:[#allocation4 + $0x50] sm:$0xff] %vm2573, 0.0
        %2651 = vst.msk [vmem:[#allocation4 + $0x58] sm:$0xff] %vm2573, 0.0
        %2652 = vst.msk [vmem:[#allocation4 + $0x60] sm:$0xff] %vm2573, 0.0
        %2653 = vst.msk [vmem:[#allocation4 + $0x68] sm:$0xff] %vm2573, 0.0
        %2654 = vst.msk [vmem:[#allocation4 + $0x70] sm:$0xff] %vm2573, 0.0
        %2655 = vst.msk [vmem:[#allocation4 + $0x78] sm:$0xff] %vm2573, 0.0
        %2656 = vst.msk [vmem:[#allocation4 + $0x80] sm:$0xff] %vm2573, 0.0
        %2657 = vst.msk [vmem:[#allocation4 + $0x88] sm:$0xff] %vm2573, 0.0
        %2658 = vst.msk [vmem:[#allocation4 + $0x90] sm:$0xff] %vm2573, 0.0
        %2659 = vst.msk [vmem:[#allocation4 + $0x98] sm:$0xff] %vm2573, 0.0
        %2660 = vst.msk [vmem:[#allocation4 + $0xa0] sm:$0xff] %vm2573, 0.0
        %2661 = vst.msk [vmem:[#allocation4 + $0xa8] sm:$0xff] %vm2573, 0.0
        %2662 = vst.msk [vmem:[#allocation4 + $0xb0] sm:$0xff] %vm2573, 0.0
        %2663 = vst.msk [vmem:[#allocation4 + $0xb8] sm:$0xff] %vm2573, 0.0
        %2664 = vst.msk [vmem:[#allocation4 + $0xc0] sm:$0xff] %vm2573, 0.0
        %2665 = vst.msk [vmem:[#allocation4 + $0xc8] sm:$0xff] %vm2573, 0.0
        %2666 = vst.msk [vmem:[#allocation4 + $0xd0] sm:$0xff] %vm2573, 0.0
        %2667 = vst.msk [vmem:[#allocation4 + $0xd8] sm:$0xff] %vm2573, 0.0
        %2668 = vst.msk [vmem:[#allocation4 + $0xe0] sm:$0xff] %vm2573, 0.0
        %2669 = vst.msk [vmem:[#allocation4 + $0xe8] sm:$0xff] %vm2573, 0.0
        %2670 = vst.msk [vmem:[#allocation5] sm:$0xff] %vm2573, 0.0
        %2671 = vst.msk [vmem:[#allocation5 + $0x8] sm:$0xff] %vm2573, 0.0
        %2672 = vst.msk [vmem:[#allocation5 + $0x10] sm:$0xff] %vm2573, 0.0
        %2673 = vst.msk [vmem:[#allocation5 + $0x18] sm:$0xff] %vm2573, 0.0
        %2674 = vst.msk [vmem:[#allocation5 + $0x20] sm:$0xff] %vm2573, 0.0
        %2675 = vst.msk [vmem:[#allocation5 + $0x28] sm:$0xff] %vm2573, 0.0
        %2676 = vst.msk [vmem:[#allocation5 + $0x30] sm:$0xff] %vm2573, 0.0
        %2677 = vst.msk [vmem:[#allocation5 + $0x38] sm:$0xff] %vm2573, 0.0
        %2678 = vst.msk [vmem:[#allocation5 + $0x40] sm:$0xff] %vm2573, 0.0
        %2679 = vst.msk [vmem:[#allocation5 + $0x48] sm:$0xff] %vm2573, 0.0
        %2680 = vst.msk [vmem:[#allocation5 + $0x50] sm:$0xff] %vm2573, 0.0
        %2681 = vst.msk [vmem:[#allocation5 + $0x58] sm:$0xff] %vm2573, 0.0
        %2682 = vst.msk [vmem:[#allocation5 + $0x60] sm:$0xff] %vm2573, 0.0
        %2683 = vst.msk [vmem:[#allocation5 + $0x68] sm:$0xff] %vm2573, 0.0
        %2684 = vst.msk [vmem:[#allocation5 + $0x70] sm:$0xff] %vm2573, 0.0
        %2685 = vst.msk [vmem:[#allocation5 + $0x78] sm:$0xff] %vm2573, 0.0
        %2686 = vst.msk [vmem:[#allocation5 + $0x80] sm:$0xff] %vm2573, 0.0
        %2687 = vst.msk [vmem:[#allocation5 + $0x88] sm:$0xff] %vm2573, 0.0
        %2688 = vst.msk [vmem:[#allocation5 + $0x90] sm:$0xff] %vm2573, 0.0
        %2689 = vst.msk [vmem:[#allocation5 + $0x98] sm:$0xff] %vm2573, 0.0
        %2690 = vst.msk [vmem:[#allocation5 + $0xa0] sm:$0xff] %vm2573, 0.0
        %2691 = vst.msk [vmem:[#allocation5 + $0xa8] sm:$0xff] %vm2573, 0.0
        %2692 = vst.msk [vmem:[#allocation5 + $0xb0] sm:$0xff] %vm2573, 0.0
        %2693 = vst.msk [vmem:[#allocation5 + $0xb8] sm:$0xff] %vm2573, 0.0
        %2694 = vst.msk [vmem:[#allocation5 + $0xc0] sm:$0xff] %vm2573, 0.0
        %s2695 = scalar_lea.vmem [#allocation2], 56
        %2696 = vst.msk [vmem:[%s2695] sm:$0xff] %vm2573, %v2524
        %2697 = vst.msk [vmem:[%s2695 + $0x8] sm:$0xff] %vm2573, %v2525
        %2698 = vst.msk [vmem:[%s2695 + $0x10] sm:$0xff] %vm2573, %v2526
        %2699 = vst.msk [vmem:[%s2695 + $0x18] sm:$0xff] %vm2573, %v2527
        %2700 = vst.msk [vmem:[%s2695 + $0x30] sm:$0xff] %vm2573, %v2528
        %2701 = vst.msk [vmem:[%s2695 + $0x38] sm:$0xff] %vm2573, %v2529
        %2702 = vst.msk [vmem:[%s2695 + $0x40] sm:$0xff] %vm2573, %v2530
        %2703 = vst.msk [vmem:[%s2695 + $0x48] sm:$0xff] %vm2573, %v2531
        %2704 = vst.msk [vmem:[%s2695 + $0x60] sm:$0xff] %vm2573, %v2532
        %2705 = vst.msk [vmem:[%s2695 + $0x68] sm:$0xff] %vm2573, %v2533
        %2706 = vst.msk [vmem:[%s2695 + $0x70] sm:$0xff] %vm2573, %v2534
        %2707 = vst.msk [vmem:[%s2695 + $0x78] sm:$0xff] %vm2573, %v2535
        %2708 = vst.msk [vmem:[%s2695 + $0x90] sm:$0xff] %vm2573, %v2536
        %2709 = vst.msk [vmem:[%s2695 + $0x98] sm:$0xff] %vm2573, %v2537
        %2710 = vst.msk [vmem:[%s2695 + $0xa0] sm:$0xff] %vm2573, %v2538
        %2711 = vst.msk [vmem:[%s2695 + $0xa8] sm:$0xff] %vm2573, %v2539
        %s2712 = scalar_lea.vmem [#allocation3], 48
        %2713 = vst.msk [vmem:[%s2712] sm:$0xff] %vm2573, %v2540
        %2714 = vst.msk [vmem:[%s2712 + $0x8] sm:$0xff] %vm2573, %v2541
        %2715 = vst.msk [vmem:[%s2712 + $0x10] sm:$0xff] %vm2573, %v2542
        %2716 = vst.msk [vmem:[%s2712 + $0x28] sm:$0xff] %vm2573, %v2543
        %2717 = vst.msk [vmem:[%s2712 + $0x30] sm:$0xff] %vm2573, %v2544
        %2718 = vst.msk [vmem:[%s2712 + $0x38] sm:$0xff] %vm2573, %v2545
        %2719 = vst.msk [vmem:[%s2712 + $0x50] sm:$0xff] %vm2573, %v2546
        %2720 = vst.msk [vmem:[%s2712 + $0x58] sm:$0xff] %vm2573, %v2547
        %2721 = vst.msk [vmem:[%s2712 + $0x60] sm:$0xff] %vm2573, %v2548
        %2722 = vst.msk [vmem:[%s2712 + $0x78] sm:$0xff] %vm2573, %v2549
        %2723 = vst.msk [vmem:[%s2712 + $0x80] sm:$0xff] %vm2573, %v2550
        %2724 = vst.msk [vmem:[%s2712 + $0x88] sm:$0xff] %vm2573, %v2551
        %s2725 = scalar_lea.vmem [#allocation4], 56
        %2726 = vst.msk [vmem:[%s2725] sm:$0xff] %vm2573, %v2552
        %2727 = vst.msk [vmem:[%s2725 + $0x8] sm:$0xff] %vm2573, %v2553
        %2728 = vst.msk [vmem:[%s2725 + $0x10] sm:$0xff] %vm2573, %v2554
        %2729 = vst.msk [vmem:[%s2725 + $0x18] sm:$0xff] %vm2573, %v2555
        %2730 = vst.msk [vmem:[%s2725 + $0x30] sm:$0xff] %vm2573, %v2556
        %2731 = vst.msk [vmem:[%s2725 + $0x38] sm:$0xff] %vm2573, %v2557
        %2732 = vst.msk [vmem:[%s2725 + $0x40] sm:$0xff] %vm2573, %v2558
        %2733 = vst.msk [vmem:[%s2725 + $0x48] sm:$0xff] %vm2573, %v2559
        %2734 = vst.msk [vmem:[%s2725 + $0x60] sm:$0xff] %vm2573, %v2560
        %2735 = vst.msk [vmem:[%s2725 + $0x68] sm:$0xff] %vm2573, %v2561
        %2736 = vst.msk [vmem:[%s2725 + $0x70] sm:$0xff] %vm2573, %v2562
        %2737 = vst.msk [vmem:[%s2725 + $0x78] sm:$0xff] %vm2573, %v2563
        %s2738 = scalar_lea.vmem [#allocation5], 48
        %2739 = vst.msk [vmem:[%s2738] sm:$0xff] %vm2573, %v2564
        %2740 = vst.msk [vmem:[%s2738 + $0x8] sm:$0xff] %vm2573, %v2565
        %2741 = vst.msk [vmem:[%s2738 + $0x10] sm:$0xff] %vm2573, %v2566
        %2742 = vst.msk [vmem:[%s2738 + $0x28] sm:$0xff] %vm2573, %v2567
        %2743 = vst.msk [vmem:[%s2738 + $0x30] sm:$0xff] %vm2573, %v2568
        %2744 = vst.msk [vmem:[%s2738 + $0x38] sm:$0xff] %vm2573, %v2569
        %2745 = vst.msk [vmem:[%s2738 + $0x50] sm:$0xff] %vm2573, %v2570
        %2746 = vst.msk [vmem:[%s2738 + $0x58] sm:$0xff] %vm2573, %v2571
        %2747 = vst.msk [vmem:[%s2738 + $0x60] sm:$0xff] %vm2573, %v2572
        %v2748 = vld [vmem:[#allocation2] sm:$0xff]
        %v2749 = vld [vmem:[#allocation2 + $0x8] sm:$0xff]
        %v2750 = vld [vmem:[#allocation2 + $0x10] sm:$0xff]
        %v2751 = vld [vmem:[#allocation2 + $0x18] sm:$0xff]
        %v2752 = vld [vmem:[#allocation2 + $0x30] sm:$0xff]
        %v2753 = vld [vmem:[#allocation2 + $0x38] sm:$0xff]
        %v2754 = vld [vmem:[#allocation2 + $0x40] sm:$0xff]
        %v2755 = vld [vmem:[#allocation2 + $0x48] sm:$0xff]
        %v2756 = vld [vmem:[#allocation2 + $0x60] sm:$0xff]
        %v2757 = vld [vmem:[#allocation2 + $0x68] sm:$0xff]
        %v2758 = vld [vmem:[#allocation2 + $0x70] sm:$0xff]
        %v2759 = vld [vmem:[#allocation2 + $0x78] sm:$0xff]
        %v2760 = vld [vmem:[#allocation2 + $0x90] sm:$0xff]
        %v2761 = vld [vmem:[#allocation2 + $0x98] sm:$0xff]
        %v2762 = vld [vmem:[#allocation2 + $0xa0] sm:$0xff]
        %v2763 = vld [vmem:[#allocation2 + $0xa8] sm:$0xff]
        %v2764 = vld [vmem:[%s3] sm:$0xff]
        %v2765 = vld [vmem:[%s3 + $0x8] sm:$0xff]
        %v2766 = vld [vmem:[%s3 + $0x10] sm:$0xff]
        %v2767 = vld [vmem:[%s3 + $0x18] sm:$0xff]
        %v2768 = vld [vmem:[#allocation3] sm:$0xff]
        %v2769 = vld [vmem:[#allocation3 + $0x8] sm:$0xff]
        %v2770 = vld [vmem:[#allocation3 + $0x10] sm:$0xff]
        %v2771 = vld [vmem:[#allocation3 + $0x18] sm:$0xff]
        %v2772 = vld [vmem:[#allocation3 + $0x28] sm:$0xff]
        %v2773 = vld [vmem:[#allocation3 + $0x30] sm:$0xff]
        %v2774 = vld [vmem:[#allocation3 + $0x38] sm:$0xff]
        %v2775 = vld [vmem:[#allocation3 + $0x40] sm:$0xff]
        %v2776 = vld [vmem:[#allocation3 + $0x50] sm:$0xff]
        %v2777 = vld [vmem:[#allocation3 + $0x58] sm:$0xff]
        %v2778 = vld [vmem:[#allocation3 + $0x60] sm:$0xff]
        %v2779 = vld [vmem:[#allocation3 + $0x68] sm:$0xff]
        %v2780 = vld [vmem:[#allocation3 + $0x78] sm:$0xff]
        %v2781 = vld [vmem:[#allocation3 + $0x80] sm:$0xff]
        %v2782 = vld [vmem:[#allocation3 + $0x88] sm:$0xff]
        %v2783 = vld [vmem:[#allocation3 + $0x90] sm:$0xff]
        %v2784 = vld [vmem:[%s3 + $0x20] sm:$0xff]
        %v2785 = vld [vmem:[%s3 + $0x28] sm:$0xff]
        %v2786 = vld [vmem:[%s3 + $0x30] sm:$0xff]
        %v2787 = vld [vmem:[%s3 + $0x38] sm:$0xff]
        %v2789 = vsel %vm2573, %v2768, 0
        %v2792 = vsel %vm2573, %v2769, 0
        %v2795 = vsel %vm2573, %v2770, 0
        %v2798 = vsel %vm2573, %v2771, 0
        %v2801 = vsel %vm2573, %v2772, 0
        %v2804 = vsel %vm2573, %v2773, 0
        %v2807 = vsel %vm2573, %v2774, 0
        %v2810 = vsel %vm2573, %v2775, 0
        %v2813 = vsel %vm2573, %v2776, 0
        %v2816 = vsel %vm2573, %v2777, 0
        %v2819 = vsel %vm2573, %v2778, 0
        %v2822 = vsel %vm2573, %v2779, 0
        %v2825 = vsel %vm2573, %v2780, 0
        %v2828 = vsel %vm2573, %v2781, 0
        %v2831 = vsel %vm2573, %v2782, 0
        %v2834 = vsel %vm2573, %v2783, 0
        %2836 = vmatprep.subr.mxu0 0.0
        %2837 = vmatpush1.msra.mxu0 0.0
        %2838 = vmatprep.subr.mxu0 0.0
        %2839 = vmatpush1.msra.mxu0 0.0
        %2840 = vmatprep.subr.mxu0 0.0
        %2841 = vmatpush1.msra.mxu0 0.0
        %2842 = vmatprep.subr.mxu0 0.0
        %2843 = vmatpush1.msra.mxu0 0.0
        %2844 = vmatprep.subr.mxu0 0.0
        %2845 = vmatpush1.msra.mxu0 0.0
        %2846 = vmatprep.subr.mxu0 0.0
        %2847 = vmatpush1.msra.mxu0 0.0
        %2848 = vmatprep.subr.mxu0 0.0
        %2849 = vmatpush1.msra.mxu0 0.0
        %2850 = vmatprep.subr.mxu0 0.0
        %2851 = vmatpush1.msra.mxu0 0.0
        %2852 = vmatprep.subr.mxu0 0.0
        %2853 = vmatpush1.msra.mxu0 0.0
        %2854 = vmatprep.subr.mxu0 0.0
        %2855 = vmatpush1.msra.mxu0 0.0
        %2856 = vmatprep.subr.mxu0 0.0
        %2857 = vmatpush1.msra.mxu0 0.0
        %2858 = vmatprep.subr.mxu0 0.0
        %2859 = vmatpush1.msra.mxu0 0.0
        %2860 = vmatprep.subr.mxu0 0.0
        %2861 = vmatpush1.msra.mxu0 %v2787
        %2862 = vmatprep.subr.mxu0 0.0
        %2863 = vmatpush1.msra.mxu0 %v2786
        %2864 = vmatprep.subr.mxu0 0.0
        %2865 = vmatpush1.msra.mxu0 %v2785
        %2866 = vmatprep.subr.mxu0 0.0
        %2867 = vmatpush1.msra.mxu0 %v2784
        %2868 = vmatprep.subr.mxu0 0.0
        %2869 = vmatpush2.msra.mxu0 0.0
        %2870 = vmatprep.subr.mxu0 0.0
        %2871 = vmatpush2.msra.mxu0 0.0
        %2872 = vmatprep.subr.mxu0 0.0
        %2873 = vmatpush2.msra.mxu0 0.0
        %2874 = vmatprep.subr.mxu0 0.0
        %2875 = vmatpush2.msra.mxu0 0.0
        %2876 = vmatprep.subr.mxu0 0.0
        %2877 = vmatpush2.msra.mxu0 0.0
        %2878 = vmatprep.subr.mxu0 0.0
        %2879 = vmatpush2.msra.mxu0 0.0
        %2880 = vmatprep.subr.mxu0 0.0
        %2881 = vmatpush2.msra.mxu0 0.0
        %2882 = vmatprep.subr.mxu0 0.0
        %2883 = vmatpush2.msra.mxu0 0.0
        %2884 = vmatprep.subr.mxu0 0.0
        %2885 = vmatpush2.msra.mxu0 0.0
        %2886 = vmatprep.subr.mxu0 0.0
        %2887 = vmatpush2.msra.mxu0 0.0
        %2888 = vmatprep.subr.mxu0 0.0
        %2889 = vmatpush2.msra.mxu0 0.0
        %2890 = vmatprep.subr.mxu0 0.0
        %2891 = vmatpush2.msra.mxu0 0.0
        %2892 = vmatprep.subr.mxu0 0.0
        %2893 = vmatpush2.msra.mxu0 0.0
        %2894 = vmatprep.subr.mxu0 0.0
        %2895 = vmatpush2.msra.mxu0 0.0
        %2896 = vmatprep.subr.mxu0 0.0
        %2897 = vmatpush2.msra.mxu0 0.0
        %2898 = vmatprep.subr.mxu0 0.0
        %2899 = vmatpush2.msra.mxu0 0.0
        %2900 = vmatprep.mubr.f32.mxu0 0.0
        %2901 = vmatmul.mubr.f32.gmra.mxu0 %v2789
        %v2902 = vpop.f32.mrf.mxu0
        %v2903 = vadd.f32 0.0, %v2902
        %v2904 = vpop.f32.mrf.mxu0
        %2905 = vmatprep.mubr.f32.mxu0 0.0
        %2906 = vmatmul.mubr.f32.gmra.mxu0 %v2792
        %v2907 = vpop.f32.mrf.mxu0
        %v2908 = vadd.f32 0.0, %v2907
        %v2909 = vpop.f32.mrf.mxu0
        %2910 = vmatprep.mubr.f32.mxu0 0.0
        %2911 = vmatmul.mubr.f32.gmra.mxu0 %v2795
        %v2912 = vpop.f32.mrf.mxu0
        %v2913 = vadd.f32 0.0, %v2912
        %v2914 = vpop.f32.mrf.mxu0
        %2915 = vmatprep.mubr.f32.mxu0 0.0
        %2916 = vmatmul.mubr.f32.gmra.mxu0 %v2798
        %v2917 = vpop.f32.mrf.mxu0
        %v2918 = vadd.f32 0.0, %v2917
        %v2919 = vpop.f32.mrf.mxu0
        %2920 = vmatprep.mubr.f32.mxu0 0.0
        %2921 = vmatmul.mubr.f32.gmra.mxu0 %v2801
        %v2922 = vpop.f32.mrf.mxu0
        %v2923 = vadd.f32 0.0, %v2922
        %v2924 = vpop.f32.mrf.mxu0
        %2925 = vmatprep.mubr.f32.mxu0 0.0
        %2926 = vmatmul.mubr.f32.gmra.mxu0 %v2804
        %v2927 = vpop.f32.mrf.mxu0
        %v2928 = vadd.f32 0.0, %v2927
        %v2929 = vpop.f32.mrf.mxu0
        %2930 = vmatprep.mubr.f32.mxu0 0.0
        %2931 = vmatmul.mubr.f32.gmra.mxu0 %v2807
        %v2932 = vpop.f32.mrf.mxu0
        %v2933 = vadd.f32 0.0, %v2932
        %v2934 = vpop.f32.mrf.mxu0
        %2935 = vmatprep.mubr.f32.mxu0 0.0
        %2936 = vmatmul.mubr.f32.gmra.mxu0 %v2810
        %v2937 = vpop.f32.mrf.mxu0
        %v2938 = vadd.f32 0.0, %v2937
        %v2939 = vpop.f32.mrf.mxu0
        %2940 = vmatprep.mubr.f32.mxu0 0.0
        %2941 = vmatmul.mubr.f32.gmra.mxu0 %v2813
        %v2942 = vpop.f32.mrf.mxu0
        %v2943 = vadd.f32 0.0, %v2942
        %v2944 = vpop.f32.mrf.mxu0
        %2945 = vmatprep.mubr.f32.mxu0 0.0
        %2946 = vmatmul.mubr.f32.gmra.mxu0 %v2816
        %v2947 = vpop.f32.mrf.mxu0
        %v2948 = vadd.f32 0.0, %v2947
        %v2949 = vpop.f32.mrf.mxu0
        %2950 = vmatprep.mubr.f32.mxu0 0.0
        %2951 = vmatmul.mubr.f32.gmra.mxu0 %v2819
        %v2952 = vpop.f32.mrf.mxu0
        %v2953 = vadd.f32 0.0, %v2952
        %v2954 = vpop.f32.mrf.mxu0
        %2955 = vmatprep.mubr.f32.mxu0 0.0
        %2956 = vmatmul.mubr.f32.gmra.mxu0 %v2822
        %v2957 = vpop.f32.mrf.mxu0
        %v2958 = vadd.f32 0.0, %v2957
        %v2959 = vpop.f32.mrf.mxu0
        %2960 = vmatprep.mubr.f32.mxu0 0.0
        %2961 = vmatmul.mubr.f32.gmra.mxu0 %v2825
        %v2962 = vpop.f32.mrf.mxu0
        %v2963 = vadd.f32 0.0, %v2962
        %v2964 = vpop.f32.mrf.mxu0
        %2965 = vmatprep.mubr.f32.mxu0 0.0
        %2966 = vmatmul.mubr.f32.gmra.mxu0 %v2828
        %v2967 = vpop.f32.mrf.mxu0
        %v2968 = vadd.f32 0.0, %v2967
        %v2969 = vpop.f32.mrf.mxu0
        %2970 = vmatprep.mubr.f32.mxu0 0.0
        %2971 = vmatmul.mubr.f32.gmra.mxu0 %v2831
        %v2972 = vpop.f32.mrf.mxu0
        %v2973 = vadd.f32 0.0, %v2972
        %v2974 = vpop.f32.mrf.mxu0
        %2975 = vmatprep.mubr.f32.mxu0 0.0
        %2976 = vmatmul.mubr.f32.gmra.mxu0 %v2834
        %v2977 = vpop.f32.mrf.mxu0
        %v2978 = vadd.f32 0.0, %v2977
        %v2979 = vpop.f32.mrf.mxu0
        %2980 = vdwg.mxu0
        %v2982 = vsel %vm2573, %v2748, 0
        %v2985 = vsel %vm2573, %v2749, 0
        %v2988 = vsel %vm2573, %v2750, 0
        %v2991 = vsel %vm2573, %v2751, 0
        %v2994 = vsel %vm2573, %v2752, 0
        %v2997 = vsel %vm2573, %v2753, 0
        %v3000 = vsel %vm2573, %v2754, 0
        %v3003 = vsel %vm2573, %v2755, 0
        %v3006 = vsel %vm2573, %v2756, 0
        %v3009 = vsel %vm2573, %v2757, 0
        %v3012 = vsel %vm2573, %v2758, 0
        %v3015 = vsel %vm2573, %v2759, 0
        %v3018 = vsel %vm2573, %v2760, 0
        %v3021 = vsel %vm2573, %v2761, 0
        %v3024 = vsel %vm2573, %v2762, 0
        %v3027 = vsel %vm2573, %v2763, 0
        %3029 = vmatprep.subr.mxu0 0.0
        %3030 = vmatpush1.msra.mxu0 0.0
        %3031 = vmatprep.subr.mxu0 0.0
        %3032 = vmatpush1.msra.mxu0 0.0
        %3033 = vmatprep.subr.mxu0 0.0
        %3034 = vmatpush1.msra.mxu0 0.0
        %3035 = vmatprep.subr.mxu0 0.0
        %3036 = vmatpush1.msra.mxu0 0.0
        %3037 = vmatprep.subr.mxu0 0.0
        %3038 = vmatpush1.msra.mxu0 0.0
        %3039 = vmatprep.subr.mxu0 0.0
        %3040 = vmatpush1.msra.mxu0 0.0
        %3041 = vmatprep.subr.mxu0 0.0
        %3042 = vmatpush1.msra.mxu0 0.0
        %3043 = vmatprep.subr.mxu0 0.0
        %3044 = vmatpush1.msra.mxu0 0.0
        %3045 = vmatprep.subr.mxu0 0.0
        %3046 = vmatpush1.msra.mxu0 0.0
        %3047 = vmatprep.subr.mxu0 0.0
        %3048 = vmatpush1.msra.mxu0 0.0
        %3049 = vmatprep.subr.mxu0 0.0
        %3050 = vmatpush1.msra.mxu0 0.0
        %3051 = vmatprep.subr.mxu0 0.0
        %3052 = vmatpush1.msra.mxu0 0.0
        %3053 = vmatprep.subr.mxu0 0.0
        %3054 = vmatpush1.msra.mxu0 %v2767
        %3055 = vmatprep.subr.mxu0 0.0
        %3056 = vmatpush1.msra.mxu0 %v2766
        %3057 = vmatprep.subr.mxu0 0.0
        %3058 = vmatpush1.msra.mxu0 %v2765
        %3059 = vmatprep.subr.mxu0 0.0
        %3060 = vmatpush1.msra.mxu0 %v2764
        %3061 = vmatprep.subr.mxu0 0.0
        %3062 = vmatpush2.msra.mxu0 0.0
        %3063 = vmatprep.subr.mxu0 0.0
        %3064 = vmatpush2.msra.mxu0 0.0
        %3065 = vmatprep.subr.mxu0 0.0
        %3066 = vmatpush2.msra.mxu0 0.0
        %3067 = vmatprep.subr.mxu0 0.0
        %3068 = vmatpush2.msra.mxu0 0.0
        %3069 = vmatprep.subr.mxu0 0.0
        %3070 = vmatpush2.msra.mxu0 0.0
        %3071 = vmatprep.subr.mxu0 0.0
        %3072 = vmatpush2.msra.mxu0 0.0
        %3073 = vmatprep.subr.mxu0 0.0
        %3074 = vmatpush2.msra.mxu0 0.0
        %3075 = vmatprep.subr.mxu0 0.0
        %3076 = vmatpush2.msra.mxu0 0.0
        %3077 = vmatprep.subr.mxu0 0.0
        %3078 = vmatpush2.msra.mxu0 0.0
        %3079 = vmatprep.subr.mxu0 0.0
        %3080 = vmatpush2.msra.mxu0 0.0
        %3081 = vmatprep.subr.mxu0 0.0
        %3082 = vmatpush2.msra.mxu0 0.0
        %3083 = vmatprep.subr.mxu0 0.0
        %3084 = vmatpush2.msra.mxu0 0.0
        %3085 = vmatprep.subr.mxu0 0.0
        %3086 = vmatpush2.msra.mxu0 0.0
        %3087 = vmatprep.subr.mxu0 0.0
        %3088 = vmatpush2.msra.mxu0 0.0
        %3089 = vmatprep.subr.mxu0 0.0
        %3090 = vmatpush2.msra.mxu0 0.0
        %3091 = vmatprep.subr.mxu0 0.0
        %3092 = vmatpush2.msra.mxu0 0.0
        %3093 = vmatprep.mubr.f32.mxu0 0.0
        %3094 = vmatmul.mubr.f32.gmra.mxu0 %v2982
        %v3095 = vpop.f32.mrf.mxu0
        %v3096 = vadd.f32 %v2903, %v3095
        %v3097 = vpop.f32.mrf.mxu0
        %3098 = vmatprep.mubr.f32.mxu0 0.0
        %3099 = vmatmul.mubr.f32.gmra.mxu0 %v2985
        %v3100 = vpop.f32.mrf.mxu0
        %v3101 = vadd.f32 %v2908, %v3100
        %v3102 = vpop.f32.mrf.mxu0
        %3103 = vmatprep.mubr.f32.mxu0 0.0
        %3104 = vmatmul.mubr.f32.gmra.mxu0 %v2988
        %v3105 = vpop.f32.mrf.mxu0
        %v3106 = vadd.f32 %v2913, %v3105
        %v3107 = vpop.f32.mrf.mxu0
        %3108 = vmatprep.mubr.f32.mxu0 0.0
        %3109 = vmatmul.mubr.f32.gmra.mxu0 %v2991
        %v3110 = vpop.f32.mrf.mxu0
        %v3111 = vadd.f32 %v2918, %v3110
        %v3112 = vpop.f32.mrf.mxu0
        %3113 = vmatprep.mubr.f32.mxu0 0.0
        %3114 = vmatmul.mubr.f32.gmra.mxu0 %v2994
        %v3115 = vpop.f32.mrf.mxu0
        %v3116 = vadd.f32 %v2923, %v3115
        %v3117 = vpop.f32.mrf.mxu0
        %3118 = vmatprep.mubr.f32.mxu0 0.0
        %3119 = vmatmul.mubr.f32.gmra.mxu0 %v2997
        %v3120 = vpop.f32.mrf.mxu0
        %v3121 = vadd.f32 %v2928, %v3120
        %v3122 = vpop.f32.mrf.mxu0
        %3123 = vmatprep.mubr.f32.mxu0 0.0
        %3124 = vmatmul.mubr.f32.gmra.mxu0 %v3000
        %v3125 = vpop.f32.mrf.mxu0
        %v3126 = vadd.f32 %v2933, %v3125
        %v3127 = vpop.f32.mrf.mxu0
        %3128 = vmatprep.mubr.f32.mxu0 0.0
        %3129 = vmatmul.mubr.f32.gmra.mxu0 %v3003
        %v3130 = vpop.f32.mrf.mxu0
        %v3131 = vadd.f32 %v2938, %v3130
        %v3132 = vpop.f32.mrf.mxu0
        %3133 = vmatprep.mubr.f32.mxu0 0.0
        %3134 = vmatmul.mubr.f32.gmra.mxu0 %v3006
        %v3135 = vpop.f32.mrf.mxu0
        %v3136 = vadd.f32 %v2943, %v3135
        %v3137 = vpop.f32.mrf.mxu0
        %3138 = vmatprep.mubr.f32.mxu0 0.0
        %3139 = vmatmul.mubr.f32.gmra.mxu0 %v3009
        %v3140 = vpop.f32.mrf.mxu0
        %v3141 = vadd.f32 %v2948, %v3140
        %v3142 = vpop.f32.mrf.mxu0
        %3143 = vmatprep.mubr.f32.mxu0 0.0
        %3144 = vmatmul.mubr.f32.gmra.mxu0 %v3012
        %v3145 = vpop.f32.mrf.mxu0
        %v3146 = vadd.f32 %v2953, %v3145
        %v3147 = vpop.f32.mrf.mxu0
        %3148 = vmatprep.mubr.f32.mxu0 0.0
        %3149 = vmatmul.mubr.f32.gmra.mxu0 %v3015
        %v3150 = vpop.f32.mrf.mxu0
        %v3151 = vadd.f32 %v2958, %v3150
        %v3152 = vpop.f32.mrf.mxu0
        %3153 = vmatprep.mubr.f32.mxu0 0.0
        %3154 = vmatmul.mubr.f32.gmra.mxu0 %v3018
        %v3155 = vpop.f32.mrf.mxu0
        %v3156 = vadd.f32 %v2963, %v3155
        %v3157 = vpop.f32.mrf.mxu0
        %3158 = vmatprep.mubr.f32.mxu0 0.0
        %3159 = vmatmul.mubr.f32.gmra.mxu0 %v3021
        %v3160 = vpop.f32.mrf.mxu0
        %v3161 = vadd.f32 %v2968, %v3160
        %v3162 = vpop.f32.mrf.mxu0
        %3163 = vmatprep.mubr.f32.mxu0 0.0
        %3164 = vmatmul.mubr.f32.gmra.mxu0 %v3024
        %v3165 = vpop.f32.mrf.mxu0
        %v3166 = vadd.f32 %v2973, %v3165
        %v3167 = vpop.f32.mrf.mxu0
        %3168 = vmatprep.mubr.f32.mxu0 0.0
        %3169 = vmatmul.mubr.f32.gmra.mxu0 %v3027
        %v3170 = vpop.f32.mrf.mxu0
        %v3171 = vadd.f32 %v2978, %v3170
        %v3172 = vpop.f32.mrf.mxu0
        %3173 = vdwg.mxu0
        %s3174 = scalar_lea.vmem [#allocation2], 8
        %v3175 = vld [vmem:[%s3174] sm:$0xff]
        %v3176 = vld [vmem:[%s3174 + $0x8] sm:$0xff]
        %v3177 = vld [vmem:[%s3174 + $0x10] sm:$0xff]
        %v3178 = vld [vmem:[%s3174 + $0x18] sm:$0xff]
        %v3179 = vld [vmem:[%s3174 + $0x30] sm:$0xff]
        %v3180 = vld [vmem:[%s3174 + $0x38] sm:$0xff]
        %v3181 = vld [vmem:[%s3174 + $0x40] sm:$0xff]
        %v3182 = vld [vmem:[%s3174 + $0x48] sm:$0xff]
        %v3183 = vld [vmem:[%s3174 + $0x60] sm:$0xff]
        %v3184 = vld [vmem:[%s3174 + $0x68] sm:$0xff]
        %v3185 = vld [vmem:[%s3174 + $0x70] sm:$0xff]
        %v3186 = vld [vmem:[%s3174 + $0x78] sm:$0xff]
        %v3187 = vld [vmem:[%s3174 + $0x90] sm:$0xff]
        %v3188 = vld [vmem:[%s3174 + $0x98] sm:$0xff]
        %v3189 = vld [vmem:[%s3174 + $0xa0] sm:$0xff]
        %v3190 = vld [vmem:[%s3174 + $0xa8] sm:$0xff]
        %v3191 = vld [vmem:[%s3 + $0x40] sm:$0xff]
        %v3192 = vld [vmem:[%s3 + $0x48] sm:$0xff]
        %v3193 = vld [vmem:[%s3 + $0x50] sm:$0xff]
        %v3194 = vld [vmem:[%s3 + $0x58] sm:$0xff]
        %v3196 = vsel %vm2573, %v3175, 0
        %v3199 = vsel %vm2573, %v3176, 0
        %v3202 = vsel %vm2573, %v3177, 0
        %v3205 = vsel %vm2573, %v3178, 0
        %v3208 = vsel %vm2573, %v3179, 0
        %v3211 = vsel %vm2573, %v3180, 0
        %v3214 = vsel %vm2573, %v3181, 0
        %v3217 = vsel %vm2573, %v3182, 0
        %v3220 = vsel %vm2573, %v3183, 0
        %v3223 = vsel %vm2573, %v3184, 0
        %v3226 = vsel %vm2573, %v3185, 0
        %v3229 = vsel %vm2573, %v3186, 0
        %v3232 = vsel %vm2573, %v3187, 0
        %v3235 = vsel %vm2573, %v3188, 0
        %v3238 = vsel %vm2573, %v3189, 0
        %v3241 = vsel %vm2573, %v3190, 0
        %3243 = vmatprep.subr.mxu0 0.0
        %3244 = vmatpush1.msra.mxu0 0.0
        %3245 = vmatprep.subr.mxu0 0.0
        %3246 = vmatpush1.msra.mxu0 0.0
        %3247 = vmatprep.subr.mxu0 0.0
        %3248 = vmatpush1.msra.mxu0 0.0
        %3249 = vmatprep.subr.mxu0 0.0
        %3250 = vmatpush1.msra.mxu0 0.0
        %3251 = vmatprep.subr.mxu0 0.0
        %3252 = vmatpush1.msra.mxu0 0.0
        %3253 = vmatprep.subr.mxu0 0.0
        %3254 = vmatpush1.msra.mxu0 0.0
        %3255 = vmatprep.subr.mxu0 0.0
        %3256 = vmatpush1.msra.mxu0 0.0
        %3257 = vmatprep.subr.mxu0 0.0
        %3258 = vmatpush1.msra.mxu0 0.0
        %3259 = vmatprep.subr.mxu0 0.0
        %3260 = vmatpush1.msra.mxu0 0.0
        %3261 = vmatprep.subr.mxu0 0.0
        %3262 = vmatpush1.msra.mxu0 0.0
        %3263 = vmatprep.subr.mxu0 0.0
        %3264 = vmatpush1.msra.mxu0 0.0
        %3265 = vmatprep.subr.mxu0 0.0
        %3266 = vmatpush1.msra.mxu0 0.0
        %3267 = vmatprep.subr.mxu0 0.0
        %3268 = vmatpush1.msra.mxu0 %v3194
        %3269 = vmatprep.subr.mxu0 0.0
        %3270 = vmatpush1.msra.mxu0 %v3193
        %3271 = vmatprep.subr.mxu0 0.0
        %3272 = vmatpush1.msra.mxu0 %v3192
        %3273 = vmatprep.subr.mxu0 0.0
        %3274 = vmatpush1.msra.mxu0 %v3191
        %3275 = vmatprep.subr.mxu0 0.0
        %3276 = vmatpush2.msra.mxu0 0.0
        %3277 = vmatprep.subr.mxu0 0.0
        %3278 = vmatpush2.msra.mxu0 0.0
        %3279 = vmatprep.subr.mxu0 0.0
        %3280 = vmatpush2.msra.mxu0 0.0
        %3281 = vmatprep.subr.mxu0 0.0
        %3282 = vmatpush2.msra.mxu0 0.0
        %3283 = vmatprep.subr.mxu0 0.0
        %3284 = vmatpush2.msra.mxu0 0.0
        %3285 = vmatprep.subr.mxu0 0.0
        %3286 = vmatpush2.msra.mxu0 0.0
        %3287 = vmatprep.subr.mxu0 0.0
        %3288 = vmatpush2.msra.mxu0 0.0
        %3289 = vmatprep.subr.mxu0 0.0
        %3290 = vmatpush2.msra.mxu0 0.0
        %3291 = vmatprep.subr.mxu0 0.0
        %3292 = vmatpush2.msra.mxu0 0.0
        %3293 = vmatprep.subr.mxu0 0.0
        %3294 = vmatpush2.msra.mxu0 0.0
        %3295 = vmatprep.subr.mxu0 0.0
        %3296 = vmatpush2.msra.mxu0 0.0
        %3297 = vmatprep.subr.mxu0 0.0
        %3298 = vmatpush2.msra.mxu0 0.0
        %3299 = vmatprep.subr.mxu0 0.0
        %3300 = vmatpush2.msra.mxu0 0.0
        %3301 = vmatprep.subr.mxu0 0.0
        %3302 = vmatpush2.msra.mxu0 0.0
        %3303 = vmatprep.subr.mxu0 0.0
        %3304 = vmatpush2.msra.mxu0 0.0
        %3305 = vmatprep.subr.mxu0 0.0
        %3306 = vmatpush2.msra.mxu0 0.0
        %3307 = vmatprep.mubr.f32.mxu0 0.0
        %3308 = vmatmul.mubr.f32.gmra.mxu0 %v3196
        %v3309 = vpop.f32.mrf.mxu0
        %v3310 = vadd.f32 0.0, %v3309
        %v3311 = vpop.f32.mrf.mxu0
        %3312 = vmatprep.mubr.f32.mxu0 0.0
        %3313 = vmatmul.mubr.f32.gmra.mxu0 %v3199
        %v3314 = vpop.f32.mrf.mxu0
        %v3315 = vadd.f32 0.0, %v3314
        %v3316 = vpop.f32.mrf.mxu0
        %3317 = vmatprep.mubr.f32.mxu0 0.0
        %3318 = vmatmul.mubr.f32.gmra.mxu0 %v3202
        %v3319 = vpop.f32.mrf.mxu0
        %v3320 = vadd.f32 0.0, %v3319
        %v3321 = vpop.f32.mrf.mxu0
        %3322 = vmatprep.mubr.f32.mxu0 0.0
        %3323 = vmatmul.mubr.f32.gmra.mxu0 %v3205
        %v3324 = vpop.f32.mrf.mxu0
        %v3325 = vadd.f32 0.0, %v3324
        %v3326 = vpop.f32.mrf.mxu0
        %3327 = vmatprep.mubr.f32.mxu0 0.0
        %3328 = vmatmul.mubr.f32.gmra.mxu0 %v3208
        %v3329 = vpop.f32.mrf.mxu0
        %v3330 = vadd.f32 0.0, %v3329
        %v3331 = vpop.f32.mrf.mxu0
        %3332 = vmatprep.mubr.f32.mxu0 0.0
        %3333 = vmatmul.mubr.f32.gmra.mxu0 %v3211
        %v3334 = vpop.f32.mrf.mxu0
        %v3335 = vadd.f32 0.0, %v3334
        %v3336 = vpop.f32.mrf.mxu0
        %3337 = vmatprep.mubr.f32.mxu0 0.0
        %3338 = vmatmul.mubr.f32.gmra.mxu0 %v3214
        %v3339 = vpop.f32.mrf.mxu0
        %v3340 = vadd.f32 0.0, %v3339
        %v3341 = vpop.f32.mrf.mxu0
        %3342 = vmatprep.mubr.f32.mxu0 0.0
        %3343 = vmatmul.mubr.f32.gmra.mxu0 %v3217
        %v3344 = vpop.f32.mrf.mxu0
        %v3345 = vadd.f32 0.0, %v3344
        %v3346 = vpop.f32.mrf.mxu0
        %3347 = vmatprep.mubr.f32.mxu0 0.0
        %3348 = vmatmul.mubr.f32.gmra.mxu0 %v3220
        %v3349 = vpop.f32.mrf.mxu0
        %v3350 = vadd.f32 0.0, %v3349
        %v3351 = vpop.f32.mrf.mxu0
        %3352 = vmatprep.mubr.f32.mxu0 0.0
        %3353 = vmatmul.mubr.f32.gmra.mxu0 %v3223
        %v3354 = vpop.f32.mrf.mxu0
        %v3355 = vadd.f32 0.0, %v3354
        %v3356 = vpop.f32.mrf.mxu0
        %3357 = vmatprep.mubr.f32.mxu0 0.0
        %3358 = vmatmul.mubr.f32.gmra.mxu0 %v3226
        %v3359 = vpop.f32.mrf.mxu0
        %v3360 = vadd.f32 0.0, %v3359
        %v3361 = vpop.f32.mrf.mxu0
        %3362 = vmatprep.mubr.f32.mxu0 0.0
        %3363 = vmatmul.mubr.f32.gmra.mxu0 %v3229
        %v3364 = vpop.f32.mrf.mxu0
        %v3365 = vadd.f32 0.0, %v3364
        %v3366 = vpop.f32.mrf.mxu0
        %3367 = vmatprep.mubr.f32.mxu0 0.0
        %3368 = vmatmul.mubr.f32.gmra.mxu0 %v3232
        %v3369 = vpop.f32.mrf.mxu0
        %v3370 = vadd.f32 0.0, %v3369
        %v3371 = vpop.f32.mrf.mxu0
        %3372 = vmatprep.mubr.f32.mxu0 0.0
        %3373 = vmatmul.mubr.f32.gmra.mxu0 %v3235
        %v3374 = vpop.f32.mrf.mxu0
        %v3375 = vadd.f32 0.0, %v3374
        %v3376 = vpop.f32.mrf.mxu0
        %3377 = vmatprep.mubr.f32.mxu0 0.0
        %3378 = vmatmul.mubr.f32.gmra.mxu0 %v3238
        %v3379 = vpop.f32.mrf.mxu0
        %v3380 = vadd.f32 0.0, %v3379
        %v3381 = vpop.f32.mrf.mxu0
        %3382 = vmatprep.mubr.f32.mxu0 0.0
        %3383 = vmatmul.mubr.f32.gmra.mxu0 %v3241
        %v3384 = vpop.f32.mrf.mxu0
        %v3385 = vadd.f32 0.0, %v3384
        %v3386 = vpop.f32.mrf.mxu0
        %3387 = vdwg.mxu0
        %v3388 = vadd.f32 %v3096, %v3310
        %v3389 = vadd.f32 %v3101, %v3315
        %v3390 = vadd.f32 %v3106, %v3320
        %v3391 = vadd.f32 %v3111, %v3325
        %v3392 = vadd.f32 %v3116, %v3330
        %v3393 = vadd.f32 %v3121, %v3335
        %v3394 = vadd.f32 %v3126, %v3340
        %v3395 = vadd.f32 %v3131, %v3345
        %v3396 = vadd.f32 %v3136, %v3350
        %v3397 = vadd.f32 %v3141, %v3355
        %v3398 = vadd.f32 %v3146, %v3360
        %v3399 = vadd.f32 %v3151, %v3365
        %v3400 = vadd.f32 %v3156, %v3370
        %v3401 = vadd.f32 %v3161, %v3375
        %v3402 = vadd.f32 %v3166, %v3380
        %v3403 = vadd.f32 %v3171, %v3385
        %s3404 = scalar_lea.vmem [#allocation3], 8
        %v3405 = vld [vmem:[%s3404] sm:$0xff]
        %v3406 = vld [vmem:[%s3404 + $0x8] sm:$0xff]
        %v3407 = vld [vmem:[%s3404 + $0x10] sm:$0xff]
        %v3408 = vld [vmem:[%s3404 + $0x18] sm:$0xff]
        %v3409 = vld [vmem:[%s3404 + $0x28] sm:$0xff]
        %v3410 = vld [vmem:[%s3404 + $0x30] sm:$0xff]
        %v3411 = vld [vmem:[%s3404 + $0x38] sm:$0xff]
        %v3412 = vld [vmem:[%s3404 + $0x40] sm:$0xff]
        %v3413 = vld [vmem:[%s3404 + $0x50] sm:$0xff]
        %v3414 = vld [vmem:[%s3404 + $0x58] sm:$0xff]
        %v3415 = vld [vmem:[%s3404 + $0x60] sm:$0xff]
        %v3416 = vld [vmem:[%s3404 + $0x68] sm:$0xff]
        %v3417 = vld [vmem:[%s3404 + $0x78] sm:$0xff]
        %v3418 = vld [vmem:[%s3404 + $0x80] sm:$0xff]
        %v3419 = vld [vmem:[%s3404 + $0x88] sm:$0xff]
        %v3420 = vld [vmem:[%s3404 + $0x90] sm:$0xff]
        %v3421 = vld [vmem:[%s3 + $0x60] sm:$0xff]
        %v3422 = vld [vmem:[%s3 + $0x68] sm:$0xff]
        %v3423 = vld [vmem:[%s3 + $0x70] sm:$0xff]
        %v3424 = vld [vmem:[%s3 + $0x78] sm:$0xff]
        %v3426 = vsel %vm2573, %v3405, 0
        %v3429 = vsel %vm2573, %v3406, 0
        %v3432 = vsel %vm2573, %v3407, 0
        %v3435 = vsel %vm2573, %v3408, 0
        %v3438 = vsel %vm2573, %v3409, 0
        %v3441 = vsel %vm2573, %v3410, 0
        %v3444 = vsel %vm2573, %v3411, 0
        %v3447 = vsel %vm2573, %v3412, 0
        %v3450 = vsel %vm2573, %v3413, 0
        %v3453 = vsel %vm2573, %v3414, 0
        %v3456 = vsel %vm2573, %v3415, 0
        %v3459 = vsel %vm2573, %v3416, 0
        %v3462 = vsel %vm2573, %v3417, 0
        %v3465 = vsel %vm2573, %v3418, 0
        %v3468 = vsel %vm2573, %v3419, 0
        %v3471 = vsel %vm2573, %v3420, 0
        %3473 = vmatprep.subr.mxu0 0.0
        %3474 = vmatpush1.msra.mxu0 0.0
        %3475 = vmatprep.subr.mxu0 0.0
        %3476 = vmatpush1.msra.mxu0 0.0
        %3477 = vmatprep.subr.mxu0 0.0
        %3478 = vmatpush1.msra.mxu0 0.0
        %3479 = vmatprep.subr.mxu0 0.0
        %3480 = vmatpush1.msra.mxu0 0.0
        %3481 = vmatprep.subr.mxu0 0.0
        %3482 = vmatpush1.msra.mxu0 0.0
        %3483 = vmatprep.subr.mxu0 0.0
        %3484 = vmatpush1.msra.mxu0 0.0
        %3485 = vmatprep.subr.mxu0 0.0
        %3486 = vmatpush1.msra.mxu0 0.0
        %3487 = vmatprep.subr.mxu0 0.0
        %3488 = vmatpush1.msra.mxu0 0.0
        %3489 = vmatprep.subr.mxu0 0.0
        %3490 = vmatpush1.msra.mxu0 0.0
        %3491 = vmatprep.subr.mxu0 0.0
        %3492 = vmatpush1.msra.mxu0 0.0
        %3493 = vmatprep.subr.mxu0 0.0
        %3494 = vmatpush1.msra.mxu0 0.0
        %3495 = vmatprep.subr.mxu0 0.0
        %3496 = vmatpush1.msra.mxu0 0.0
        %3497 = vmatprep.subr.mxu0 0.0
        %3498 = vmatpush1.msra.mxu0 %v3424
        %3499 = vmatprep.subr.mxu0 0.0
        %3500 = vmatpush1.msra.mxu0 %v3423
        %3501 = vmatprep.subr.mxu0 0.0
        %3502 = vmatpush1.msra.mxu0 %v3422
        %3503 = vmatprep.subr.mxu0 0.0
        %3504 = vmatpush1.msra.mxu0 %v3421
        %3505 = vmatprep.subr.mxu0 0.0
        %3506 = vmatpush2.msra.mxu0 0.0
        %3507 = vmatprep.subr.mxu0 0.0
        %3508 = vmatpush2.msra.mxu0 0.0
        %3509 = vmatprep.subr.mxu0 0.0
        %3510 = vmatpush2.msra.mxu0 0.0
        %3511 = vmatprep.subr.mxu0 0.0
        %3512 = vmatpush2.msra.mxu0 0.0
        %3513 = vmatprep.subr.mxu0 0.0
        %3514 = vmatpush2.msra.mxu0 0.0
        %3515 = vmatprep.subr.mxu0 0.0
        %3516 = vmatpush2.msra.mxu0 0.0
        %3517 = vmatprep.subr.mxu0 0.0
        %3518 = vmatpush2.msra.mxu0 0.0
        %3519 = vmatprep.subr.mxu0 0.0
        %3520 = vmatpush2.msra.mxu0 0.0
        %3521 = vmatprep.subr.mxu0 0.0
        %3522 = vmatpush2.msra.mxu0 0.0
        %3523 = vmatprep.subr.mxu0 0.0
        %3524 = vmatpush2.msra.mxu0 0.0
        %3525 = vmatprep.subr.mxu0 0.0
        %3526 = vmatpush2.msra.mxu0 0.0
        %3527 = vmatprep.subr.mxu0 0.0
        %3528 = vmatpush2.msra.mxu0 0.0
        %3529 = vmatprep.subr.mxu0 0.0
        %3530 = vmatpush2.msra.mxu0 0.0
        %3531 = vmatprep.subr.mxu0 0.0
        %3532 = vmatpush2.msra.mxu0 0.0
        %3533 = vmatprep.subr.mxu0 0.0
        %3534 = vmatpush2.msra.mxu0 0.0
        %3535 = vmatprep.subr.mxu0 0.0
        %3536 = vmatpush2.msra.mxu0 0.0
        %3537 = vmatprep.mubr.f32.mxu0 0.0
        %3538 = vmatmul.mubr.f32.gmra.mxu0 %v3426
        %v3539 = vpop.f32.mrf.mxu0
        %v3540 = vadd.f32 0.0, %v3539
        %v3541 = vpop.f32.mrf.mxu0
        %3542 = vmatprep.mubr.f32.mxu0 0.0
        %3543 = vmatmul.mubr.f32.gmra.mxu0 %v3429
        %v3544 = vpop.f32.mrf.mxu0
        %v3545 = vadd.f32 0.0, %v3544
        %v3546 = vpop.f32.mrf.mxu0
        %3547 = vmatprep.mubr.f32.mxu0 0.0
        %3548 = vmatmul.mubr.f32.gmra.mxu0 %v3432
        %v3549 = vpop.f32.mrf.mxu0
        %v3550 = vadd.f32 0.0, %v3549
        %v3551 = vpop.f32.mrf.mxu0
        %3552 = vmatprep.mubr.f32.mxu0 0.0
        %3553 = vmatmul.mubr.f32.gmra.mxu0 %v3435
        %v3554 = vpop.f32.mrf.mxu0
        %v3555 = vadd.f32 0.0, %v3554
        %v3556 = vpop.f32.mrf.mxu0
        %3557 = vmatprep.mubr.f32.mxu0 0.0
        %3558 = vmatmul.mubr.f32.gmra.mxu0 %v3438
        %v3559 = vpop.f32.mrf.mxu0
        %v3560 = vadd.f32 0.0, %v3559
        %v3561 = vpop.f32.mrf.mxu0
        %3562 = vmatprep.mubr.f32.mxu0 0.0
        %3563 = vmatmul.mubr.f32.gmra.mxu0 %v3441
        %v3564 = vpop.f32.mrf.mxu0
        %v3565 = vadd.f32 0.0, %v3564
        %v3566 = vpop.f32.mrf.mxu0
        %3567 = vmatprep.mubr.f32.mxu0 0.0
        %3568 = vmatmul.mubr.f32.gmra.mxu0 %v3444
        %v3569 = vpop.f32.mrf.mxu0
        %v3570 = vadd.f32 0.0, %v3569
        %v3571 = vpop.f32.mrf.mxu0
        %3572 = vmatprep.mubr.f32.mxu0 0.0
        %3573 = vmatmul.mubr.f32.gmra.mxu0 %v3447
        %v3574 = vpop.f32.mrf.mxu0
        %v3575 = vadd.f32 0.0, %v3574
        %v3576 = vpop.f32.mrf.mxu0
        %3577 = vmatprep.mubr.f32.mxu0 0.0
        %3578 = vmatmul.mubr.f32.gmra.mxu0 %v3450
        %v3579 = vpop.f32.mrf.mxu0
        %v3580 = vadd.f32 0.0, %v3579
        %v3581 = vpop.f32.mrf.mxu0
        %3582 = vmatprep.mubr.f32.mxu0 0.0
        %3583 = vmatmul.mubr.f32.gmra.mxu0 %v3453
        %v3584 = vpop.f32.mrf.mxu0
        %v3585 = vadd.f32 0.0, %v3584
        %v3586 = vpop.f32.mrf.mxu0
        %3587 = vmatprep.mubr.f32.mxu0 0.0
        %3588 = vmatmul.mubr.f32.gmra.mxu0 %v3456
        %v3589 = vpop.f32.mrf.mxu0
        %v3590 = vadd.f32 0.0, %v3589
        %v3591 = vpop.f32.mrf.mxu0
        %3592 = vmatprep.mubr.f32.mxu0 0.0
        %3593 = vmatmul.mubr.f32.gmra.mxu0 %v3459
        %v3594 = vpop.f32.mrf.mxu0
        %v3595 = vadd.f32 0.0, %v3594
        %v3596 = vpop.f32.mrf.mxu0
        %3597 = vmatprep.mubr.f32.mxu0 0.0
        %3598 = vmatmul.mubr.f32.gmra.mxu0 %v3462
        %v3599 = vpop.f32.mrf.mxu0
        %v3600 = vadd.f32 0.0, %v3599
        %v3601 = vpop.f32.mrf.mxu0
        %3602 = vmatprep.mubr.f32.mxu0 0.0
        %3603 = vmatmul.mubr.f32.gmra.mxu0 %v3465
        %v3604 = vpop.f32.mrf.mxu0
        %v3605 = vadd.f32 0.0, %v3604
        %v3606 = vpop.f32.mrf.mxu0
        %3607 = vmatprep.mubr.f32.mxu0 0.0
        %3608 = vmatmul.mubr.f32.gmra.mxu0 %v3468
        %v3609 = vpop.f32.mrf.mxu0
        %v3610 = vadd.f32 0.0, %v3609
        %v3611 = vpop.f32.mrf.mxu0
        %3612 = vmatprep.mubr.f32.mxu0 0.0
        %3613 = vmatmul.mubr.f32.gmra.mxu0 %v3471
        %v3614 = vpop.f32.mrf.mxu0
        %v3615 = vadd.f32 0.0, %v3614
        %v3616 = vpop.f32.mrf.mxu0
        %3617 = vdwg.mxu0
        %v3618 = vadd.f32 %v3388, %v3540
        %v3619 = vadd.f32 %v3389, %v3545
        %v3620 = vadd.f32 %v3390, %v3550
        %v3621 = vadd.f32 %v3391, %v3555
        %v3622 = vadd.f32 %v3392, %v3560
        %v3623 = vadd.f32 %v3393, %v3565
        %v3624 = vadd.f32 %v3394, %v3570
        %v3625 = vadd.f32 %v3395, %v3575
        %v3626 = vadd.f32 %v3396, %v3580
        %v3627 = vadd.f32 %v3397, %v3585
        %v3628 = vadd.f32 %v3398, %v3590
        %v3629 = vadd.f32 %v3399, %v3595
        %v3630 = vadd.f32 %v3400, %v3600
        %v3631 = vadd.f32 %v3401, %v3605
        %v3632 = vadd.f32 %v3402, %v3610
        %v3633 = vadd.f32 %v3403, %v3615
        %s3634 = scalar_lea.vmem [#allocation2], 16
        %v3635 = vld [vmem:[%s3634] sm:$0xff]
        %v3636 = vld [vmem:[%s3634 + $0x8] sm:$0xff]
        %v3637 = vld [vmem:[%s3634 + $0x10] sm:$0xff]
        %v3638 = vld [vmem:[%s3634 + $0x18] sm:$0xff]
        %v3639 = vld [vmem:[%s3634 + $0x30] sm:$0xff]
        %v3640 = vld [vmem:[%s3634 + $0x38] sm:$0xff]
        %v3641 = vld [vmem:[%s3634 + $0x40] sm:$0xff]
        %v3642 = vld [vmem:[%s3634 + $0x48] sm:$0xff]
        %v3643 = vld [vmem:[%s3634 + $0x60] sm:$0xff]
        %v3644 = vld [vmem:[%s3634 + $0x68] sm:$0xff]
        %v3645 = vld [vmem:[%s3634 + $0x70] sm:$0xff]
        %v3646 = vld [vmem:[%s3634 + $0x78] sm:$0xff]
        %v3647 = vld [vmem:[%s3634 + $0x90] sm:$0xff]
        %v3648 = vld [vmem:[%s3634 + $0x98] sm:$0xff]
        %v3649 = vld [vmem:[%s3634 + $0xa0] sm:$0xff]
        %v3650 = vld [vmem:[%s3634 + $0xa8] sm:$0xff]
        %v3651 = vld [vmem:[%s3 + $0x80] sm:$0xff]
        %v3652 = vld [vmem:[%s3 + $0x88] sm:$0xff]
        %v3653 = vld [vmem:[%s3 + $0x90] sm:$0xff]
        %v3654 = vld [vmem:[%s3 + $0x98] sm:$0xff]
        %v3656 = vsel %vm2573, %v3635, 0
        %v3659 = vsel %vm2573, %v3636, 0
        %v3662 = vsel %vm2573, %v3637, 0
        %v3665 = vsel %vm2573, %v3638, 0
        %v3668 = vsel %vm2573, %v3639, 0
        %v3671 = vsel %vm2573, %v3640, 0
        %v3674 = vsel %vm2573, %v3641, 0
        %v3677 = vsel %vm2573, %v3642, 0
        %v3680 = vsel %vm2573, %v3643, 0
        %v3683 = vsel %vm2573, %v3644, 0
        %v3686 = vsel %vm2573, %v3645, 0
        %v3689 = vsel %vm2573, %v3646, 0
        %v3692 = vsel %vm2573, %v3647, 0
        %v3695 = vsel %vm2573, %v3648, 0
        %v3698 = vsel %vm2573, %v3649, 0
        %v3701 = vsel %vm2573, %v3650, 0
        %3703 = vmatprep.subr.mxu0 0.0
        %3704 = vmatpush1.msra.mxu0 0.0
        %3705 = vmatprep.subr.mxu0 0.0
        %3706 = vmatpush1.msra.mxu0 0.0
        %3707 = vmatprep.subr.mxu0 0.0
        %3708 = vmatpush1.msra.mxu0 0.0
        %3709 = vmatprep.subr.mxu0 0.0
        %3710 = vmatpush1.msra.mxu0 0.0
        %3711 = vmatprep.subr.mxu0 0.0
        %3712 = vmatpush1.msra.mxu0 0.0
        %3713 = vmatprep.subr.mxu0 0.0
        %3714 = vmatpush1.msra.mxu0 0.0
        %3715 = vmatprep.subr.mxu0 0.0
        %3716 = vmatpush1.msra.mxu0 0.0
        %3717 = vmatprep.subr.mxu0 0.0
        %3718 = vmatpush1.msra.mxu0 0.0
        %3719 = vmatprep.subr.mxu0 0.0
        %3720 = vmatpush1.msra.mxu0 0.0
        %3721 = vmatprep.subr.mxu0 0.0
        %3722 = vmatpush1.msra.mxu0 0.0
        %3723 = vmatprep.subr.mxu0 0.0
        %3724 = vmatpush1.msra.mxu0 0.0
        %3725 = vmatprep.subr.mxu0 0.0
        %3726 = vmatpush1.msra.mxu0 0.0
        %3727 = vmatprep.subr.mxu0 0.0
        %3728 = vmatpush1.msra.mxu0 %v3654
        %3729 = vmatprep.subr.mxu0 0.0
        %3730 = vmatpush1.msra.mxu0 %v3653
        %3731 = vmatprep.subr.mxu0 0.0
        %3732 = vmatpush1.msra.mxu0 %v3652
        %3733 = vmatprep.subr.mxu0 0.0
        %3734 = vmatpush1.msra.mxu0 %v3651
        %3735 = vmatprep.subr.mxu0 0.0
        %3736 = vmatpush2.msra.mxu0 0.0
        %3737 = vmatprep.subr.mxu0 0.0
        %3738 = vmatpush2.msra.mxu0 0.0
        %3739 = vmatprep.subr.mxu0 0.0
        %3740 = vmatpush2.msra.mxu0 0.0
        %3741 = vmatprep.subr.mxu0 0.0
        %3742 = vmatpush2.msra.mxu0 0.0
        %3743 = vmatprep.subr.mxu0 0.0
        %3744 = vmatpush2.msra.mxu0 0.0
        %3745 = vmatprep.subr.mxu0 0.0
        %3746 = vmatpush2.msra.mxu0 0.0
        %3747 = vmatprep.subr.mxu0 0.0
        %3748 = vmatpush2.msra.mxu0 0.0
        %3749 = vmatprep.subr.mxu0 0.0
        %3750 = vmatpush2.msra.mxu0 0.0
        %3751 = vmatprep.subr.mxu0 0.0
        %3752 = vmatpush2.msra.mxu0 0.0
        %3753 = vmatprep.subr.mxu0 0.0
        %3754 = vmatpush2.msra.mxu0 0.0
        %3755 = vmatprep.subr.mxu0 0.0
        %3756 = vmatpush2.msra.mxu0 0.0
        %3757 = vmatprep.subr.mxu0 0.0
        %3758 = vmatpush2.msra.mxu0 0.0
        %3759 = vmatprep.subr.mxu0 0.0
        %3760 = vmatpush2.msra.mxu0 0.0
        %3761 = vmatprep.subr.mxu0 0.0
        %3762 = vmatpush2.msra.mxu0 0.0
        %3763 = vmatprep.subr.mxu0 0.0
        %3764 = vmatpush2.msra.mxu0 0.0
        %3765 = vmatprep.subr.mxu0 0.0
        %3766 = vmatpush2.msra.mxu0 0.0
        %3767 = vmatprep.mubr.f32.mxu0 0.0
        %3768 = vmatmul.mubr.f32.gmra.mxu0 %v3656
        %v3769 = vpop.f32.mrf.mxu0
        %v3770 = vadd.f32 0.0, %v3769
        %v3771 = vpop.f32.mrf.mxu0
        %3772 = vmatprep.mubr.f32.mxu0 0.0
        %3773 = vmatmul.mubr.f32.gmra.mxu0 %v3659
        %v3774 = vpop.f32.mrf.mxu0
        %v3775 = vadd.f32 0.0, %v3774
        %v3776 = vpop.f32.mrf.mxu0
        %3777 = vmatprep.mubr.f32.mxu0 0.0
        %3778 = vmatmul.mubr.f32.gmra.mxu0 %v3662
        %v3779 = vpop.f32.mrf.mxu0
        %v3780 = vadd.f32 0.0, %v3779
        %v3781 = vpop.f32.mrf.mxu0
        %3782 = vmatprep.mubr.f32.mxu0 0.0
        %3783 = vmatmul.mubr.f32.gmra.mxu0 %v3665
        %v3784 = vpop.f32.mrf.mxu0
        %v3785 = vadd.f32 0.0, %v3784
        %v3786 = vpop.f32.mrf.mxu0
        %3787 = vmatprep.mubr.f32.mxu0 0.0
        %3788 = vmatmul.mubr.f32.gmra.mxu0 %v3668
        %v3789 = vpop.f32.mrf.mxu0
        %v3790 = vadd.f32 0.0, %v3789
        %v3791 = vpop.f32.mrf.mxu0
        %3792 = vmatprep.mubr.f32.mxu0 0.0
        %3793 = vmatmul.mubr.f32.gmra.mxu0 %v3671
        %v3794 = vpop.f32.mrf.mxu0
        %v3795 = vadd.f32 0.0, %v3794
        %v3796 = vpop.f32.mrf.mxu0
        %3797 = vmatprep.mubr.f32.mxu0 0.0
        %3798 = vmatmul.mubr.f32.gmra.mxu0 %v3674
        %v3799 = vpop.f32.mrf.mxu0
        %v3800 = vadd.f32 0.0, %v3799
        %v3801 = vpop.f32.mrf.mxu0
        %3802 = vmatprep.mubr.f32.mxu0 0.0
        %3803 = vmatmul.mubr.f32.gmra.mxu0 %v3677
        %v3804 = vpop.f32.mrf.mxu0
        %v3805 = vadd.f32 0.0, %v3804
        %v3806 = vpop.f32.mrf.mxu0
        %3807 = vmatprep.mubr.f32.mxu0 0.0
        %3808 = vmatmul.mubr.f32.gmra.mxu0 %v3680
        %v3809 = vpop.f32.mrf.mxu0
        %v3810 = vadd.f32 0.0, %v3809
        %v3811 = vpop.f32.mrf.mxu0
        %3812 = vmatprep.mubr.f32.mxu0 0.0
        %3813 = vmatmul.mubr.f32.gmra.mxu0 %v3683
        %v3814 = vpop.f32.mrf.mxu0
        %v3815 = vadd.f32 0.0, %v3814
        %v3816 = vpop.f32.mrf.mxu0
        %3817 = vmatprep.mubr.f32.mxu0 0.0
        %3818 = vmatmul.mubr.f32.gmra.mxu0 %v3686
        %v3819 = vpop.f32.mrf.mxu0
        %v3820 = vadd.f32 0.0, %v3819
        %v3821 = vpop.f32.mrf.mxu0
        %3822 = vmatprep.mubr.f32.mxu0 0.0
        %3823 = vmatmul.mubr.f32.gmra.mxu0 %v3689
        %v3824 = vpop.f32.mrf.mxu0
        %v3825 = vadd.f32 0.0, %v3824
        %v3826 = vpop.f32.mrf.mxu0
        %3827 = vmatprep.mubr.f32.mxu0 0.0
        %3828 = vmatmul.mubr.f32.gmra.mxu0 %v3692
        %v3829 = vpop.f32.mrf.mxu0
        %v3830 = vadd.f32 0.0, %v3829
        %v3831 = vpop.f32.mrf.mxu0
        %3832 = vmatprep.mubr.f32.mxu0 0.0
        %3833 = vmatmul.mubr.f32.gmra.mxu0 %v3695
        %v3834 = vpop.f32.mrf.mxu0
        %v3835 = vadd.f32 0.0, %v3834
        %v3836 = vpop.f32.mrf.mxu0
        %3837 = vmatprep.mubr.f32.mxu0 0.0
        %3838 = vmatmul.mubr.f32.gmra.mxu0 %v3698
        %v3839 = vpop.f32.mrf.mxu0
        %v3840 = vadd.f32 0.0, %v3839
        %v3841 = vpop.f32.mrf.mxu0
        %3842 = vmatprep.mubr.f32.mxu0 0.0
        %3843 = vmatmul.mubr.f32.gmra.mxu0 %v3701
        %v3844 = vpop.f32.mrf.mxu0
        %v3845 = vadd.f32 0.0, %v3844
        %v3846 = vpop.f32.mrf.mxu0
        %3847 = vdwg.mxu0
        %v3848 = vadd.f32 %v3618, %v3770
        %v3849 = vadd.f32 %v3619, %v3775
        %v3850 = vadd.f32 %v3620, %v3780
        %v3851 = vadd.f32 %v3621, %v3785
        %v3852 = vadd.f32 %v3622, %v3790
        %v3853 = vadd.f32 %v3623, %v3795
        %v3854 = vadd.f32 %v3624, %v3800
        %v3855 = vadd.f32 %v3625, %v3805
        %v3856 = vadd.f32 %v3626, %v3810
        %v3857 = vadd.f32 %v3627, %v3815
        %v3858 = vadd.f32 %v3628, %v3820
        %v3859 = vadd.f32 %v3629, %v3825
        %v3860 = vadd.f32 %v3630, %v3830
        %v3861 = vadd.f32 %v3631, %v3835
        %v3862 = vadd.f32 %v3632, %v3840
        %v3863 = vadd.f32 %v3633, %v3845
        %v3864 = vld [vmem:[#allocation4] sm:$0xff]
        %v3865 = vld [vmem:[#allocation4 + $0x8] sm:$0xff]
        %v3866 = vld [vmem:[#allocation4 + $0x10] sm:$0xff]
        %v3867 = vld [vmem:[#allocation4 + $0x18] sm:$0xff]
        %v3868 = vld [vmem:[#allocation4 + $0x30] sm:$0xff]
        %v3869 = vld [vmem:[#allocation4 + $0x38] sm:$0xff]
        %v3870 = vld [vmem:[#allocation4 + $0x40] sm:$0xff]
        %v3871 = vld [vmem:[#allocation4 + $0x48] sm:$0xff]
        %v3872 = vld [vmem:[#allocation4 + $0x60] sm:$0xff]
        %v3873 = vld [vmem:[#allocation4 + $0x68] sm:$0xff]
        %v3874 = vld [vmem:[#allocation4 + $0x70] sm:$0xff]
        %v3875 = vld [vmem:[#allocation4 + $0x78] sm:$0xff]
        %v3876 = vld [vmem:[#allocation4 + $0x90] sm:$0xff]
        %v3877 = vld [vmem:[#allocation4 + $0x98] sm:$0xff]
        %v3878 = vld [vmem:[#allocation4 + $0xa0] sm:$0xff]
        %v3879 = vld [vmem:[#allocation4 + $0xa8] sm:$0xff]
        %v3880 = vld [vmem:[%s3 + $0xa0] sm:$0xff]
        %v3881 = vld [vmem:[%s3 + $0xa8] sm:$0xff]
        %v3882 = vld [vmem:[%s3 + $0xb0] sm:$0xff]
        %v3883 = vld [vmem:[%s3 + $0xb8] sm:$0xff]
        %v3885 = vsel %vm2573, %v3864, 0
        %v3888 = vsel %vm2573, %v3865, 0
        %v3891 = vsel %vm2573, %v3866, 0
        %v3894 = vsel %vm2573, %v3867, 0
        %v3897 = vsel %vm2573, %v3868, 0
        %v3900 = vsel %vm2573, %v3869, 0
        %v3903 = vsel %vm2573, %v3870, 0
        %v3906 = vsel %vm2573, %v3871, 0
        %v3909 = vsel %vm2573, %v3872, 0
        %v3912 = vsel %vm2573, %v3873, 0
        %v3915 = vsel %vm2573, %v3874, 0
        %v3918 = vsel %vm2573, %v3875, 0
        %v3921 = vsel %vm2573, %v3876, 0
        %v3924 = vsel %vm2573, %v3877, 0
        %v3927 = vsel %vm2573, %v3878, 0
        %v3930 = vsel %vm2573, %v3879, 0
        %3932 = vmatprep.subr.mxu0 0.0
        %3933 = vmatpush1.msra.mxu0 0.0
        %3934 = vmatprep.subr.mxu0 0.0
        %3935 = vmatpush1.msra.mxu0 0.0
        %3936 = vmatprep.subr.mxu0 0.0
        %3937 = vmatpush1.msra.mxu0 0.0
        %3938 = vmatprep.subr.mxu0 0.0
        %3939 = vmatpush1.msra.mxu0 0.0
        %3940 = vmatprep.subr.mxu0 0.0
        %3941 = vmatpush1.msra.mxu0 0.0
        %3942 = vmatprep.subr.mxu0 0.0
        %3943 = vmatpush1.msra.mxu0 0.0
        %3944 = vmatprep.subr.mxu0 0.0
        %3945 = vmatpush1.msra.mxu0 0.0
        %3946 = vmatprep.subr.mxu0 0.0
        %3947 = vmatpush1.msra.mxu0 0.0
        %3948 = vmatprep.subr.mxu0 0.0
        %3949 = vmatpush1.msra.mxu0 0.0
        %3950 = vmatprep.subr.mxu0 0.0
        %3951 = vmatpush1.msra.mxu0 0.0
        %3952 = vmatprep.subr.mxu0 0.0
        %3953 = vmatpush1.msra.mxu0 0.0
        %3954 = vmatprep.subr.mxu0 0.0
        %3955 = vmatpush1.msra.mxu0 0.0
        %3956 = vmatprep.subr.mxu0 0.0
        %3957 = vmatpush1.msra.mxu0 %v3883
        %3958 = vmatprep.subr.mxu0 0.0
        %3959 = vmatpush1.msra.mxu0 %v3882
        %3960 = vmatprep.subr.mxu0 0.0
        %3961 = vmatpush1.msra.mxu0 %v3881
        %3962 = vmatprep.subr.mxu0 0.0
        %3963 = vmatpush1.msra.mxu0 %v3880
        %3964 = vmatprep.subr.mxu0 0.0
        %3965 = vmatpush2.msra.mxu0 0.0
        %3966 = vmatprep.subr.mxu0 0.0
        %3967 = vmatpush2.msra.mxu0 0.0
        %3968 = vmatprep.subr.mxu0 0.0
        %3969 = vmatpush2.msra.mxu0 0.0
        %3970 = vmatprep.subr.mxu0 0.0
        %3971 = vmatpush2.msra.mxu0 0.0
        %3972 = vmatprep.subr.mxu0 0.0
        %3973 = vmatpush2.msra.mxu0 0.0
        %3974 = vmatprep.subr.mxu0 0.0
        %3975 = vmatpush2.msra.mxu0 0.0
        %3976 = vmatprep.subr.mxu0 0.0
        %3977 = vmatpush2.msra.mxu0 0.0
        %3978 = vmatprep.subr.mxu0 0.0
        %3979 = vmatpush2.msra.mxu0 0.0
        %3980 = vmatprep.subr.mxu0 0.0
        %3981 = vmatpush2.msra.mxu0 0.0
        %3982 = vmatprep.subr.mxu0 0.0
        %3983 = vmatpush2.msra.mxu0 0.0
        %3984 = vmatprep.subr.mxu0 0.0
        %3985 = vmatpush2.msra.mxu0 0.0
        %3986 = vmatprep.subr.mxu0 0.0
        %3987 = vmatpush2.msra.mxu0 0.0
        %3988 = vmatprep.subr.mxu0 0.0
        %3989 = vmatpush2.msra.mxu0 0.0
        %3990 = vmatprep.subr.mxu0 0.0
        %3991 = vmatpush2.msra.mxu0 0.0
        %3992 = vmatprep.subr.mxu0 0.0
        %3993 = vmatpush2.msra.mxu0 0.0
        %3994 = vmatprep.subr.mxu0 0.0
        %3995 = vmatpush2.msra.mxu0 0.0
        %3996 = vmatprep.mubr.f32.mxu0 0.0
        %3997 = vmatmul.mubr.f32.gmra.mxu0 %v3885
        %v3998 = vpop.f32.mrf.mxu0
        %v3999 = vadd.f32 0.0, %v3998
        %v4000 = vpop.f32.mrf.mxu0
        %4001 = vmatprep.mubr.f32.mxu0 0.0
        %4002 = vmatmul.mubr.f32.gmra.mxu0 %v3888
        %v4003 = vpop.f32.mrf.mxu0
        %v4004 = vadd.f32 0.0, %v4003
        %v4005 = vpop.f32.mrf.mxu0
        %4006 = vmatprep.mubr.f32.mxu0 0.0
        %4007 = vmatmul.mubr.f32.gmra.mxu0 %v3891
        %v4008 = vpop.f32.mrf.mxu0
        %v4009 = vadd.f32 0.0, %v4008
        %v4010 = vpop.f32.mrf.mxu0
        %4011 = vmatprep.mubr.f32.mxu0 0.0
        %4012 = vmatmul.mubr.f32.gmra.mxu0 %v3894
        %v4013 = vpop.f32.mrf.mxu0
        %v4014 = vadd.f32 0.0, %v4013
        %v4015 = vpop.f32.mrf.mxu0
        %4016 = vmatprep.mubr.f32.mxu0 0.0
        %4017 = vmatmul.mubr.f32.gmra.mxu0 %v3897
        %v4018 = vpop.f32.mrf.mxu0
        %v4019 = vadd.f32 0.0, %v4018
        %v4020 = vpop.f32.mrf.mxu0
        %4021 = vmatprep.mubr.f32.mxu0 0.0
        %4022 = vmatmul.mubr.f32.gmra.mxu0 %v3900
        %v4023 = vpop.f32.mrf.mxu0
        %v4024 = vadd.f32 0.0, %v4023
        %v4025 = vpop.f32.mrf.mxu0
        %4026 = vmatprep.mubr.f32.mxu0 0.0
        %4027 = vmatmul.mubr.f32.gmra.mxu0 %v3903
        %v4028 = vpop.f32.mrf.mxu0
        %v4029 = vadd.f32 0.0, %v4028
        %v4030 = vpop.f32.mrf.mxu0
        %4031 = vmatprep.mubr.f32.mxu0 0.0
        %4032 = vmatmul.mubr.f32.gmra.mxu0 %v3906
        %v4033 = vpop.f32.mrf.mxu0
        %v4034 = vadd.f32 0.0, %v4033
        %v4035 = vpop.f32.mrf.mxu0
        %4036 = vmatprep.mubr.f32.mxu0 0.0
        %4037 = vmatmul.mubr.f32.gmra.mxu0 %v3909
        %v4038 = vpop.f32.mrf.mxu0
        %v4039 = vadd.f32 0.0, %v4038
        %v4040 = vpop.f32.mrf.mxu0
        %4041 = vmatprep.mubr.f32.mxu0 0.0
        %4042 = vmatmul.mubr.f32.gmra.mxu0 %v3912
        %v4043 = vpop.f32.mrf.mxu0
        %v4044 = vadd.f32 0.0, %v4043
        %v4045 = vpop.f32.mrf.mxu0
        %4046 = vmatprep.mubr.f32.mxu0 0.0
        %4047 = vmatmul.mubr.f32.gmra.mxu0 %v3915
        %v4048 = vpop.f32.mrf.mxu0
        %v4049 = vadd.f32 0.0, %v4048
        %v4050 = vpop.f32.mrf.mxu0
        %4051 = vmatprep.mubr.f32.mxu0 0.0
        %4052 = vmatmul.mubr.f32.gmra.mxu0 %v3918
        %v4053 = vpop.f32.mrf.mxu0
        %v4054 = vadd.f32 0.0, %v4053
        %v4055 = vpop.f32.mrf.mxu0
        %4056 = vmatprep.mubr.f32.mxu0 0.0
        %4057 = vmatmul.mubr.f32.gmra.mxu0 %v3921
        %v4058 = vpop.f32.mrf.mxu0
        %v4059 = vadd.f32 0.0, %v4058
        %v4060 = vpop.f32.mrf.mxu0
        %4061 = vmatprep.mubr.f32.mxu0 0.0
        %4062 = vmatmul.mubr.f32.gmra.mxu0 %v3924
        %v4063 = vpop.f32.mrf.mxu0
        %v4064 = vadd.f32 0.0, %v4063
        %v4065 = vpop.f32.mrf.mxu0
        %4066 = vmatprep.mubr.f32.mxu0 0.0
        %4067 = vmatmul.mubr.f32.gmra.mxu0 %v3927
        %v4068 = vpop.f32.mrf.mxu0
        %v4069 = vadd.f32 0.0, %v4068
        %v4070 = vpop.f32.mrf.mxu0
        %4071 = vmatprep.mubr.f32.mxu0 0.0
        %4072 = vmatmul.mubr.f32.gmra.mxu0 %v3930
        %v4073 = vpop.f32.mrf.mxu0
        %v4074 = vadd.f32 0.0, %v4073
        %v4075 = vpop.f32.mrf.mxu0
        %4076 = vdwg.mxu0
        %v4077 = vadd.f32 %v3848, %v3999
        %v4078 = vadd.f32 %v3849, %v4004
        %v4079 = vadd.f32 %v3850, %v4009
        %v4080 = vadd.f32 %v3851, %v4014
        %v4081 = vadd.f32 %v3852, %v4019
        %v4082 = vadd.f32 %v3853, %v4024
        %v4083 = vadd.f32 %v3854, %v4029
        %v4084 = vadd.f32 %v3855, %v4034
        %v4085 = vadd.f32 %v3856, %v4039
        %v4086 = vadd.f32 %v3857, %v4044
        %v4087 = vadd.f32 %v3858, %v4049
        %v4088 = vadd.f32 %v3859, %v4054
        %v4089 = vadd.f32 %v3860, %v4059
        %v4090 = vadd.f32 %v3861, %v4064
        %v4091 = vadd.f32 %v3862, %v4069
        %v4092 = vadd.f32 %v3863, %v4074
        %v4093 = vld [vmem:[#allocation5] sm:$0xff]
        %v4094 = vld [vmem:[#allocation5 + $0x8] sm:$0xff]
        %v4095 = vld [vmem:[#allocation5 + $0x10] sm:$0xff]
        %v4096 = vld [vmem:[#allocation5 + $0x18] sm:$0xff]
        %v4097 = vld [vmem:[#allocation5 + $0x28] sm:$0xff]
        %v4098 = vld [vmem:[#allocation5 + $0x30] sm:$0xff]
        %v4099 = vld [vmem:[#allocation5 + $0x38] sm:$0xff]
        %v4100 = vld [vmem:[#allocation5 + $0x40] sm:$0xff]
        %v4101 = vld [vmem:[#allocation5 + $0x50] sm:$0xff]
        %v4102 = vld [vmem:[#allocation5 + $0x58] sm:$0xff]
        %v4103 = vld [vmem:[#allocation5 + $0x60] sm:$0xff]
        %v4104 = vld [vmem:[#allocation5 + $0x68] sm:$0xff]
        %v4105 = vld [vmem:[#allocation5 + $0x78] sm:$0xff]
        %v4106 = vld [vmem:[#allocation5 + $0x80] sm:$0xff]
        %v4107 = vld [vmem:[#allocation5 + $0x88] sm:$0xff]
        %v4108 = vld [vmem:[#allocation5 + $0x90] sm:$0xff]
        %v4109 = vld [vmem:[%s3 + $0xc0] sm:$0xff]
        %v4110 = vld [vmem:[%s3 + $0xc8] sm:$0xff]
        %v4111 = vld [vmem:[%s3 + $0xd0] sm:$0xff]
        %v4112 = vld [vmem:[%s3 + $0xd8] sm:$0xff]
        %v4114 = vsel %vm2573, %v4093, 0
        %v4117 = vsel %vm2573, %v4094, 0
        %v4120 = vsel %vm2573, %v4095, 0
        %v4123 = vsel %vm2573, %v4096, 0
        %v4126 = vsel %vm2573, %v4097, 0
        %v4129 = vsel %vm2573, %v4098, 0
        %v4132 = vsel %vm2573, %v4099, 0
        %v4135 = vsel %vm2573, %v4100, 0
        %v4138 = vsel %vm2573, %v4101, 0
        %v4141 = vsel %vm2573, %v4102, 0
        %v4144 = vsel %vm2573, %v4103, 0
        %v4147 = vsel %vm2573, %v4104, 0
        %v4150 = vsel %vm2573, %v4105, 0
        %v4153 = vsel %vm2573, %v4106, 0
        %v4156 = vsel %vm2573, %v4107, 0
        %v4159 = vsel %vm2573, %v4108, 0
        %4161 = vmatprep.subr.mxu0 0.0
        %4162 = vmatpush1.msra.mxu0 0.0
        %4163 = vmatprep.subr.mxu0 0.0
        %4164 = vmatpush1.msra.mxu0 0.0
        %4165 = vmatprep.subr.mxu0 0.0
        %4166 = vmatpush1.msra.mxu0 0.0
        %4167 = vmatprep.subr.mxu0 0.0
        %4168 = vmatpush1.msra.mxu0 0.0
        %4169 = vmatprep.subr.mxu0 0.0
        %4170 = vmatpush1.msra.mxu0 0.0
        %4171 = vmatprep.subr.mxu0 0.0
        %4172 = vmatpush1.msra.mxu0 0.0
        %4173 = vmatprep.subr.mxu0 0.0
        %4174 = vmatpush1.msra.mxu0 0.0
        %4175 = vmatprep.subr.mxu0 0.0
        %4176 = vmatpush1.msra.mxu0 0.0
        %4177 = vmatprep.subr.mxu0 0.0
        %4178 = vmatpush1.msra.mxu0 0.0
        %4179 = vmatprep.subr.mxu0 0.0
        %4180 = vmatpush1.msra.mxu0 0.0
        %4181 = vmatprep.subr.mxu0 0.0
        %4182 = vmatpush1.msra.mxu0 0.0
        %4183 = vmatprep.subr.mxu0 0.0
        %4184 = vmatpush1.msra.mxu0 0.0
        %4185 = vmatprep.subr.mxu0 0.0
        %4186 = vmatpush1.msra.mxu0 %v4112
        %4187 = vmatprep.subr.mxu0 0.0
        %4188 = vmatpush1.msra.mxu0 %v4111
        %4189 = vmatprep.subr.mxu0 0.0
        %4190 = vmatpush1.msra.mxu0 %v4110
        %4191 = vmatprep.subr.mxu0 0.0
        %4192 = vmatpush1.msra.mxu0 %v4109
        %4193 = vmatprep.subr.mxu0 0.0
        %4194 = vmatpush2.msra.mxu0 0.0
        %4195 = vmatprep.subr.mxu0 0.0
        %4196 = vmatpush2.msra.mxu0 0.0
        %4197 = vmatprep.subr.mxu0 0.0
        %4198 = vmatpush2.msra.mxu0 0.0
        %4199 = vmatprep.subr.mxu0 0.0
        %4200 = vmatpush2.msra.mxu0 0.0
        %4201 = vmatprep.subr.mxu0 0.0
        %4202 = vmatpush2.msra.mxu0 0.0
        %4203 = vmatprep.subr.mxu0 0.0
        %4204 = vmatpush2.msra.mxu0 0.0
        %4205 = vmatprep.subr.mxu0 0.0
        %4206 = vmatpush2.msra.mxu0 0.0
        %4207 = vmatprep.subr.mxu0 0.0
        %4208 = vmatpush2.msra.mxu0 0.0
        %4209 = vmatprep.subr.mxu0 0.0
        %4210 = vmatpush2.msra.mxu0 0.0
        %4211 = vmatprep.subr.mxu0 0.0
        %4212 = vmatpush2.msra.mxu0 0.0
        %4213 = vmatprep.subr.mxu0 0.0
        %4214 = vmatpush2.msra.mxu0 0.0
        %4215 = vmatprep.subr.mxu0 0.0
        %4216 = vmatpush2.msra.mxu0 0.0
        %4217 = vmatprep.subr.mxu0 0.0
        %4218 = vmatpush2.msra.mxu0 0.0
        %4219 = vmatprep.subr.mxu0 0.0
        %4220 = vmatpush2.msra.mxu0 0.0
        %4221 = vmatprep.subr.mxu0 0.0
        %4222 = vmatpush2.msra.mxu0 0.0
        %4223 = vmatprep.subr.mxu0 0.0
        %4224 = vmatpush2.msra.mxu0 0.0
        %4225 = vmatprep.mubr.f32.mxu0 0.0
        %4226 = vmatmul.mubr.f32.gmra.mxu0 %v4114
        %v4227 = vpop.f32.mrf.mxu0
        %v4228 = vadd.f32 0.0, %v4227
        %v4229 = vpop.f32.mrf.mxu0
        %4230 = vmatprep.mubr.f32.mxu0 0.0
        %4231 = vmatmul.mubr.f32.gmra.mxu0 %v4117
        %v4232 = vpop.f32.mrf.mxu0
        %v4233 = vadd.f32 0.0, %v4232
        %v4234 = vpop.f32.mrf.mxu0
        %4235 = vmatprep.mubr.f32.mxu0 0.0
        %4236 = vmatmul.mubr.f32.gmra.mxu0 %v4120
        %v4237 = vpop.f32.mrf.mxu0
        %v4238 = vadd.f32 0.0, %v4237
        %v4239 = vpop.f32.mrf.mxu0
        %4240 = vmatprep.mubr.f32.mxu0 0.0
        %4241 = vmatmul.mubr.f32.gmra.mxu0 %v4123
        %v4242 = vpop.f32.mrf.mxu0
        %v4243 = vadd.f32 0.0, %v4242
        %v4244 = vpop.f32.mrf.mxu0
        %4245 = vmatprep.mubr.f32.mxu0 0.0
        %4246 = vmatmul.mubr.f32.gmra.mxu0 %v4126
        %v4247 = vpop.f32.mrf.mxu0
        %v4248 = vadd.f32 0.0, %v4247
        %v4249 = vpop.f32.mrf.mxu0
        %4250 = vmatprep.mubr.f32.mxu0 0.0
        %4251 = vmatmul.mubr.f32.gmra.mxu0 %v4129
        %v4252 = vpop.f32.mrf.mxu0
        %v4253 = vadd.f32 0.0, %v4252
        %v4254 = vpop.f32.mrf.mxu0
        %4255 = vmatprep.mubr.f32.mxu0 0.0
        %4256 = vmatmul.mubr.f32.gmra.mxu0 %v4132
        %v4257 = vpop.f32.mrf.mxu0
        %v4258 = vadd.f32 0.0, %v4257
        %v4259 = vpop.f32.mrf.mxu0
        %4260 = vmatprep.mubr.f32.mxu0 0.0
        %4261 = vmatmul.mubr.f32.gmra.mxu0 %v4135
        %v4262 = vpop.f32.mrf.mxu0
        %v4263 = vadd.f32 0.0, %v4262
        %v4264 = vpop.f32.mrf.mxu0
        %4265 = vmatprep.mubr.f32.mxu0 0.0
        %4266 = vmatmul.mubr.f32.gmra.mxu0 %v4138
        %v4267 = vpop.f32.mrf.mxu0
        %v4268 = vadd.f32 0.0, %v4267
        %v4269 = vpop.f32.mrf.mxu0
        %4270 = vmatprep.mubr.f32.mxu0 0.0
        %4271 = vmatmul.mubr.f32.gmra.mxu0 %v4141
        %v4272 = vpop.f32.mrf.mxu0
        %v4273 = vadd.f32 0.0, %v4272
        %v4274 = vpop.f32.mrf.mxu0
        %4275 = vmatprep.mubr.f32.mxu0 0.0
        %4276 = vmatmul.mubr.f32.gmra.mxu0 %v4144
        %v4277 = vpop.f32.mrf.mxu0
        %v4278 = vadd.f32 0.0, %v4277
        %v4279 = vpop.f32.mrf.mxu0
        %4280 = vmatprep.mubr.f32.mxu0 0.0
        %4281 = vmatmul.mubr.f32.gmra.mxu0 %v4147
        %v4282 = vpop.f32.mrf.mxu0
        %v4283 = vadd.f32 0.0, %v4282
        %v4284 = vpop.f32.mrf.mxu0
        %4285 = vmatprep.mubr.f32.mxu0 0.0
        %4286 = vmatmul.mubr.f32.gmra.mxu0 %v4150
        %v4287 = vpop.f32.mrf.mxu0
        %v4288 = vadd.f32 0.0, %v4287
        %v4289 = vpop.f32.mrf.mxu0
        %4290 = vmatprep.mubr.f32.mxu0 0.0
        %4291 = vmatmul.mubr.f32.gmra.mxu0 %v4153
        %v4292 = vpop.f32.mrf.mxu0
        %v4293 = vadd.f32 0.0, %v4292
        %v4294 = vpop.f32.mrf.mxu0
        %4295 = vmatprep.mubr.f32.mxu0 0.0
        %4296 = vmatmul.mubr.f32.gmra.mxu0 %v4156
        %v4297 = vpop.f32.mrf.mxu0
        %v4298 = vadd.f32 0.0, %v4297
        %v4299 = vpop.f32.mrf.mxu0
        %4300 = vmatprep.mubr.f32.mxu0 0.0
        %4301 = vmatmul.mubr.f32.gmra.mxu0 %v4159
        %v4302 = vpop.f32.mrf.mxu0
        %v4303 = vadd.f32 0.0, %v4302
        %v4304 = vpop.f32.mrf.mxu0
        %4305 = vdwg.mxu0
        %v4306 = vadd.f32 %v4077, %v4228
        %v4307 = vadd.f32 %v4078, %v4233
        %v4308 = vadd.f32 %v4079, %v4238
        %v4309 = vadd.f32 %v4080, %v4243
        %v4310 = vadd.f32 %v4081, %v4248
        %v4311 = vadd.f32 %v4082, %v4253
        %v4312 = vadd.f32 %v4083, %v4258
        %v4313 = vadd.f32 %v4084, %v4263
        %v4314 = vadd.f32 %v4085, %v4268
        %v4315 = vadd.f32 %v4086, %v4273
        %v4316 = vadd.f32 %v4087, %v4278
        %v4317 = vadd.f32 %v4088, %v4283
        %v4318 = vadd.f32 %v4089, %v4288
        %v4319 = vadd.f32 %v4090, %v4293
        %v4320 = vadd.f32 %v4091, %v4298
        %v4321 = vadd.f32 %v4092, %v4303
        %s4322 = scalar_lea.vmem [#allocation4], 8
        %v4323 = vld [vmem:[%s4322] sm:$0xff]
        %v4324 = vld [vmem:[%s4322 + $0x8] sm:$0xff]
        %v4325 = vld [vmem:[%s4322 + $0x10] sm:$0xff]
        %v4326 = vld [vmem:[%s4322 + $0x18] sm:$0xff]
        %v4327 = vld [vmem:[%s4322 + $0x30] sm:$0xff]
        %v4328 = vld [vmem:[%s4322 + $0x38] sm:$0xff]
        %v4329 = vld [vmem:[%s4322 + $0x40] sm:$0xff]
        %v4330 = vld [vmem:[%s4322 + $0x48] sm:$0xff]
        %v4331 = vld [vmem:[%s4322 + $0x60] sm:$0xff]
        %v4332 = vld [vmem:[%s4322 + $0x68] sm:$0xff]
        %v4333 = vld [vmem:[%s4322 + $0x70] sm:$0xff]
        %v4334 = vld [vmem:[%s4322 + $0x78] sm:$0xff]
        %v4335 = vld [vmem:[%s4322 + $0x90] sm:$0xff]
        %v4336 = vld [vmem:[%s4322 + $0x98] sm:$0xff]
        %v4337 = vld [vmem:[%s4322 + $0xa0] sm:$0xff]
        %v4338 = vld [vmem:[%s4322 + $0xa8] sm:$0xff]
        %v4339 = vld [vmem:[%s3 + $0xe0] sm:$0xff]
        %v4340 = vld [vmem:[%s3 + $0xe8] sm:$0xff]
        %v4341 = vld [vmem:[%s3 + $0xf0] sm:$0xff]
        %v4342 = vld [vmem:[%s3 + $0xf8] sm:$0xff]
        %v4344 = vsel %vm2573, %v4323, 0
        %v4347 = vsel %vm2573, %v4324, 0
        %v4350 = vsel %vm2573, %v4325, 0
        %v4353 = vsel %vm2573, %v4326, 0
        %v4356 = vsel %vm2573, %v4327, 0
        %v4359 = vsel %vm2573, %v4328, 0
        %v4362 = vsel %vm2573, %v4329, 0
        %v4365 = vsel %vm2573, %v4330, 0
        %v4368 = vsel %vm2573, %v4331, 0
        %v4371 = vsel %vm2573, %v4332, 0
        %v4374 = vsel %vm2573, %v4333, 0
        %v4377 = vsel %vm2573, %v4334, 0
        %v4380 = vsel %vm2573, %v4335, 0
        %v4383 = vsel %vm2573, %v4336, 0
        %v4386 = vsel %vm2573, %v4337, 0
        %v4389 = vsel %vm2573, %v4338, 0
        %4391 = vmatprep.subr.mxu0 0.0
        %4392 = vmatpush1.msra.mxu0 0.0
        %4393 = vmatprep.subr.mxu0 0.0
        %4394 = vmatpush1.msra.mxu0 0.0
        %4395 = vmatprep.subr.mxu0 0.0
        %4396 = vmatpush1.msra.mxu0 0.0
        %4397 = vmatprep.subr.mxu0 0.0
        %4398 = vmatpush1.msra.mxu0 0.0
        %4399 = vmatprep.subr.mxu0 0.0
        %4400 = vmatpush1.msra.mxu0 0.0
        %4401 = vmatprep.subr.mxu0 0.0
        %4402 = vmatpush1.msra.mxu0 0.0
        %4403 = vmatprep.subr.mxu0 0.0
        %4404 = vmatpush1.msra.mxu0 0.0
        %4405 = vmatprep.subr.mxu0 0.0
        %4406 = vmatpush1.msra.mxu0 0.0
        %4407 = vmatprep.subr.mxu0 0.0
        %4408 = vmatpush1.msra.mxu0 0.0
        %4409 = vmatprep.subr.mxu0 0.0
        %4410 = vmatpush1.msra.mxu0 0.0
        %4411 = vmatprep.subr.mxu0 0.0
        %4412 = vmatpush1.msra.mxu0 0.0
        %4413 = vmatprep.subr.mxu0 0.0
        %4414 = vmatpush1.msra.mxu0 0.0
        %4415 = vmatprep.subr.mxu0 0.0
        %4416 = vmatpush1.msra.mxu0 %v4342
        %4417 = vmatprep.subr.mxu0 0.0
        %4418 = vmatpush1.msra.mxu0 %v4341
        %4419 = vmatprep.subr.mxu0 0.0
        %4420 = vmatpush1.msra.mxu0 %v4340
        %4421 = vmatprep.subr.mxu0 0.0
        %4422 = vmatpush1.msra.mxu0 %v4339
        %4423 = vmatprep.subr.mxu0 0.0
        %4424 = vmatpush2.msra.mxu0 0.0
        %4425 = vmatprep.subr.mxu0 0.0
        %4426 = vmatpush2.msra.mxu0 0.0
        %4427 = vmatprep.subr.mxu0 0.0
        %4428 = vmatpush2.msra.mxu0 0.0
        %4429 = vmatprep.subr.mxu0 0.0
        %4430 = vmatpush2.msra.mxu0 0.0
        %4431 = vmatprep.subr.mxu0 0.0
        %4432 = vmatpush2.msra.mxu0 0.0
        %4433 = vmatprep.subr.mxu0 0.0
        %4434 = vmatpush2.msra.mxu0 0.0
        %4435 = vmatprep.subr.mxu0 0.0
        %4436 = vmatpush2.msra.mxu0 0.0
        %4437 = vmatprep.subr.mxu0 0.0
        %4438 = vmatpush2.msra.mxu0 0.0
        %4439 = vmatprep.subr.mxu0 0.0
        %4440 = vmatpush2.msra.mxu0 0.0
        %4441 = vmatprep.subr.mxu0 0.0
        %4442 = vmatpush2.msra.mxu0 0.0
        %4443 = vmatprep.subr.mxu0 0.0
        %4444 = vmatpush2.msra.mxu0 0.0
        %4445 = vmatprep.subr.mxu0 0.0
        %4446 = vmatpush2.msra.mxu0 0.0
        %4447 = vmatprep.subr.mxu0 0.0
        %4448 = vmatpush2.msra.mxu0 0.0
        %4449 = vmatprep.subr.mxu0 0.0
        %4450 = vmatpush2.msra.mxu0 0.0
        %4451 = vmatprep.subr.mxu0 0.0
        %4452 = vmatpush2.msra.mxu0 0.0
        %4453 = vmatprep.subr.mxu0 0.0
        %4454 = vmatpush2.msra.mxu0 0.0
        %4455 = vmatprep.mubr.f32.mxu0 0.0
        %4456 = vmatmul.mubr.f32.gmra.mxu0 %v4344
        %v4457 = vpop.f32.mrf.mxu0
        %v4458 = vadd.f32 0.0, %v4457
        %v4459 = vpop.f32.mrf.mxu0
        %4460 = vmatprep.mubr.f32.mxu0 0.0
        %4461 = vmatmul.mubr.f32.gmra.mxu0 %v4347
        %v4462 = vpop.f32.mrf.mxu0
        %v4463 = vadd.f32 0.0, %v4462
        %v4464 = vpop.f32.mrf.mxu0
        %4465 = vmatprep.mubr.f32.mxu0 0.0
        %4466 = vmatmul.mubr.f32.gmra.mxu0 %v4350
        %v4467 = vpop.f32.mrf.mxu0
        %v4468 = vadd.f32 0.0, %v4467
        %v4469 = vpop.f32.mrf.mxu0
        %4470 = vmatprep.mubr.f32.mxu0 0.0
        %4471 = vmatmul.mubr.f32.gmra.mxu0 %v4353
        %v4472 = vpop.f32.mrf.mxu0
        %v4473 = vadd.f32 0.0, %v4472
        %v4474 = vpop.f32.mrf.mxu0
        %4475 = vmatprep.mubr.f32.mxu0 0.0
        %4476 = vmatmul.mubr.f32.gmra.mxu0 %v4356
        %v4477 = vpop.f32.mrf.mxu0
        %v4478 = vadd.f32 0.0, %v4477
        %v4479 = vpop.f32.mrf.mxu0
        %4480 = vmatprep.mubr.f32.mxu0 0.0
        %4481 = vmatmul.mubr.f32.gmra.mxu0 %v4359
        %v4482 = vpop.f32.mrf.mxu0
        %v4483 = vadd.f32 0.0, %v4482
        %v4484 = vpop.f32.mrf.mxu0
        %4485 = vmatprep.mubr.f32.mxu0 0.0
        %4486 = vmatmul.mubr.f32.gmra.mxu0 %v4362
        %v4487 = vpop.f32.mrf.mxu0
        %v4488 = vadd.f32 0.0, %v4487
        %v4489 = vpop.f32.mrf.mxu0
        %4490 = vmatprep.mubr.f32.mxu0 0.0
        %4491 = vmatmul.mubr.f32.gmra.mxu0 %v4365
        %v4492 = vpop.f32.mrf.mxu0
        %v4493 = vadd.f32 0.0, %v4492
        %v4494 = vpop.f32.mrf.mxu0
        %4495 = vmatprep.mubr.f32.mxu0 0.0
        %4496 = vmatmul.mubr.f32.gmra.mxu0 %v4368
        %v4497 = vpop.f32.mrf.mxu0
        %v4498 = vadd.f32 0.0, %v4497
        %v4499 = vpop.f32.mrf.mxu0
        %4500 = vmatprep.mubr.f32.mxu0 0.0
        %4501 = vmatmul.mubr.f32.gmra.mxu0 %v4371
        %v4502 = vpop.f32.mrf.mxu0
        %v4503 = vadd.f32 0.0, %v4502
        %v4504 = vpop.f32.mrf.mxu0
        %4505 = vmatprep.mubr.f32.mxu0 0.0
        %4506 = vmatmul.mubr.f32.gmra.mxu0 %v4374
        %v4507 = vpop.f32.mrf.mxu0
        %v4508 = vadd.f32 0.0, %v4507
        %v4509 = vpop.f32.mrf.mxu0
        %4510 = vmatprep.mubr.f32.mxu0 0.0
        %4511 = vmatmul.mubr.f32.gmra.mxu0 %v4377
        %v4512 = vpop.f32.mrf.mxu0
        %v4513 = vadd.f32 0.0, %v4512
        %v4514 = vpop.f32.mrf.mxu0
        %4515 = vmatprep.mubr.f32.mxu0 0.0
        %4516 = vmatmul.mubr.f32.gmra.mxu0 %v4380
        %v4517 = vpop.f32.mrf.mxu0
        %v4518 = vadd.f32 0.0, %v4517
        %v4519 = vpop.f32.mrf.mxu0
        %4520 = vmatprep.mubr.f32.mxu0 0.0
        %4521 = vmatmul.mubr.f32.gmra.mxu0 %v4383
        %v4522 = vpop.f32.mrf.mxu0
        %v4523 = vadd.f32 0.0, %v4522
        %v4524 = vpop.f32.mrf.mxu0
        %4525 = vmatprep.mubr.f32.mxu0 0.0
        %4526 = vmatmul.mubr.f32.gmra.mxu0 %v4386
        %v4527 = vpop.f32.mrf.mxu0
        %v4528 = vadd.f32 0.0, %v4527
        %v4529 = vpop.f32.mrf.mxu0
        %4530 = vmatprep.mubr.f32.mxu0 0.0
        %4531 = vmatmul.mubr.f32.gmra.mxu0 %v4389
        %v4532 = vpop.f32.mrf.mxu0
        %v4533 = vadd.f32 0.0, %v4532
        %v4534 = vpop.f32.mrf.mxu0
        %4535 = vdwg.mxu0
        %v4536 = vadd.f32 %v4306, %v4458
        %v4537 = vadd.f32 %v4307, %v4463
        %v4538 = vadd.f32 %v4308, %v4468
        %v4539 = vadd.f32 %v4309, %v4473
        %v4540 = vadd.f32 %v4310, %v4478
        %v4541 = vadd.f32 %v4311, %v4483
        %v4542 = vadd.f32 %v4312, %v4488
        %v4543 = vadd.f32 %v4313, %v4493
        %v4544 = vadd.f32 %v4314, %v4498
        %v4545 = vadd.f32 %v4315, %v4503
        %v4546 = vadd.f32 %v4316, %v4508
        %v4547 = vadd.f32 %v4317, %v4513
        %v4548 = vadd.f32 %v4318, %v4518
        %v4549 = vadd.f32 %v4319, %v4523
        %v4550 = vadd.f32 %v4320, %v4528
        %v4551 = vadd.f32 %v4321, %v4533
        %s4552 = scalar_lea.vmem [#allocation5], 8
        %v4553 = vld [vmem:[%s4552] sm:$0xff]
        %v4554 = vld [vmem:[%s4552 + $0x8] sm:$0xff]
        %v4555 = vld [vmem:[%s4552 + $0x10] sm:$0xff]
        %v4556 = vld [vmem:[%s4552 + $0x18] sm:$0xff]
        %v4557 = vld [vmem:[%s4552 + $0x28] sm:$0xff]
        %v4558 = vld [vmem:[%s4552 + $0x30] sm:$0xff]
        %v4559 = vld [vmem:[%s4552 + $0x38] sm:$0xff]
        %v4560 = vld [vmem:[%s4552 + $0x40] sm:$0xff]
        %v4561 = vld [vmem:[%s4552 + $0x50] sm:$0xff]
        %v4562 = vld [vmem:[%s4552 + $0x58] sm:$0xff]
        %v4563 = vld [vmem:[%s4552 + $0x60] sm:$0xff]
        %v4564 = vld [vmem:[%s4552 + $0x68] sm:$0xff]
        %v4565 = vld [vmem:[%s4552 + $0x78] sm:$0xff]
        %v4566 = vld [vmem:[%s4552 + $0x80] sm:$0xff]
        %v4567 = vld [vmem:[%s4552 + $0x88] sm:$0xff]
        %v4568 = vld [vmem:[%s4552 + $0x90] sm:$0xff]
        %v4569 = vld [vmem:[%s3 + $0x100] sm:$0xff]
        %v4570 = vld [vmem:[%s3 + $0x108] sm:$0xff]
        %v4571 = vld [vmem:[%s3 + $0x110] sm:$0xff]
        %v4572 = vld [vmem:[%s3 + $0x118] sm:$0xff]
        %v4574 = vsel %vm2573, %v4553, 0
        %v4577 = vsel %vm2573, %v4554, 0
        %v4580 = vsel %vm2573, %v4555, 0
        %v4583 = vsel %vm2573, %v4556, 0
        %v4586 = vsel %vm2573, %v4557, 0
        %v4589 = vsel %vm2573, %v4558, 0
        %v4592 = vsel %vm2573, %v4559, 0
        %v4595 = vsel %vm2573, %v4560, 0
        %v4598 = vsel %vm2573, %v4561, 0
        %v4601 = vsel %vm2573, %v4562, 0
        %v4604 = vsel %vm2573, %v4563, 0
        %v4607 = vsel %vm2573, %v4564, 0
        %v4610 = vsel %vm2573, %v4565, 0
        %v4613 = vsel %vm2573, %v4566, 0
        %v4616 = vsel %vm2573, %v4567, 0
        %v4619 = vsel %vm2573, %v4568, 0
        %4621 = vmatprep.subr.mxu0 0.0
        %4622 = vmatpush1.msra.mxu0 0.0
        %4623 = vmatprep.subr.mxu0 0.0
        %4624 = vmatpush1.msra.mxu0 0.0
        %4625 = vmatprep.subr.mxu0 0.0
        %4626 = vmatpush1.msra.mxu0 0.0
        %4627 = vmatprep.subr.mxu0 0.0
        %4628 = vmatpush1.msra.mxu0 0.0
        %4629 = vmatprep.subr.mxu0 0.0
        %4630 = vmatpush1.msra.mxu0 0.0
        %4631 = vmatprep.subr.mxu0 0.0
        %4632 = vmatpush1.msra.mxu0 0.0
        %4633 = vmatprep.subr.mxu0 0.0
        %4634 = vmatpush1.msra.mxu0 0.0
        %4635 = vmatprep.subr.mxu0 0.0
        %4636 = vmatpush1.msra.mxu0 0.0
        %4637 = vmatprep.subr.mxu0 0.0
        %4638 = vmatpush1.msra.mxu0 0.0
        %4639 = vmatprep.subr.mxu0 0.0
        %4640 = vmatpush1.msra.mxu0 0.0
        %4641 = vmatprep.subr.mxu0 0.0
        %4642 = vmatpush1.msra.mxu0 0.0
        %4643 = vmatprep.subr.mxu0 0.0
        %4644 = vmatpush1.msra.mxu0 0.0
        %4645 = vmatprep.subr.mxu0 0.0
        %4646 = vmatpush1.msra.mxu0 %v4572
        %4647 = vmatprep.subr.mxu0 0.0
        %4648 = vmatpush1.msra.mxu0 %v4571
        %4649 = vmatprep.subr.mxu0 0.0
        %4650 = vmatpush1.msra.mxu0 %v4570
        %4651 = vmatprep.subr.mxu0 0.0
        %4652 = vmatpush1.msra.mxu0 %v4569
        %4653 = vmatprep.subr.mxu0 0.0
        %4654 = vmatpush2.msra.mxu0 0.0
        %4655 = vmatprep.subr.mxu0 0.0
        %4656 = vmatpush2.msra.mxu0 0.0
        %4657 = vmatprep.subr.mxu0 0.0
        %4658 = vmatpush2.msra.mxu0 0.0
        %4659 = vmatprep.subr.mxu0 0.0
        %4660 = vmatpush2.msra.mxu0 0.0
        %4661 = vmatprep.subr.mxu0 0.0
        %4662 = vmatpush2.msra.mxu0 0.0
        %4663 = vmatprep.subr.mxu0 0.0
        %4664 = vmatpush2.msra.mxu0 0.0
        %4665 = vmatprep.subr.mxu0 0.0
        %4666 = vmatpush2.msra.mxu0 0.0
        %4667 = vmatprep.subr.mxu0 0.0
        %4668 = vmatpush2.msra.mxu0 0.0
        %4669 = vmatprep.subr.mxu0 0.0
        %4670 = vmatpush2.msra.mxu0 0.0
        %4671 = vmatprep.subr.mxu0 0.0
        %4672 = vmatpush2.msra.mxu0 0.0
        %4673 = vmatprep.subr.mxu0 0.0
        %4674 = vmatpush2.msra.mxu0 0.0
        %4675 = vmatprep.subr.mxu0 0.0
        %4676 = vmatpush2.msra.mxu0 0.0
        %4677 = vmatprep.subr.mxu0 0.0
        %4678 = vmatpush2.msra.mxu0 0.0
        %4679 = vmatprep.subr.mxu0 0.0
        %4680 = vmatpush2.msra.mxu0 0.0
        %4681 = vmatprep.subr.mxu0 0.0
        %4682 = vmatpush2.msra.mxu0 0.0
        %4683 = vmatprep.subr.mxu0 0.0
        %4684 = vmatpush2.msra.mxu0 0.0
        %4685 = vmatprep.mubr.f32.mxu0 0.0
        %4686 = vmatmul.mubr.f32.gmra.mxu0 %v4574
        %v4687 = vpop.f32.mrf.mxu0
        %v4688 = vadd.f32 0.0, %v4687
        %v4689 = vpop.f32.mrf.mxu0
        %4690 = vmatprep.mubr.f32.mxu0 0.0
        %4691 = vmatmul.mubr.f32.gmra.mxu0 %v4577
        %v4692 = vpop.f32.mrf.mxu0
        %v4693 = vadd.f32 0.0, %v4692
        %v4694 = vpop.f32.mrf.mxu0
        %4695 = vmatprep.mubr.f32.mxu0 0.0
        %4696 = vmatmul.mubr.f32.gmra.mxu0 %v4580
        %v4697 = vpop.f32.mrf.mxu0
        %v4698 = vadd.f32 0.0, %v4697
        %v4699 = vpop.f32.mrf.mxu0
        %4700 = vmatprep.mubr.f32.mxu0 0.0
        %4701 = vmatmul.mubr.f32.gmra.mxu0 %v4583
        %v4702 = vpop.f32.mrf.mxu0
        %v4703 = vadd.f32 0.0, %v4702
        %v4704 = vpop.f32.mrf.mxu0
        %4705 = vmatprep.mubr.f32.mxu0 0.0
        %4706 = vmatmul.mubr.f32.gmra.mxu0 %v4586
        %v4707 = vpop.f32.mrf.mxu0
        %v4708 = vadd.f32 0.0, %v4707
        %v4709 = vpop.f32.mrf.mxu0
        %4710 = vmatprep.mubr.f32.mxu0 0.0
        %4711 = vmatmul.mubr.f32.gmra.mxu0 %v4589
        %v4712 = vpop.f32.mrf.mxu0
        %v4713 = vadd.f32 0.0, %v4712
        %v4714 = vpop.f32.mrf.mxu0
        %4715 = vmatprep.mubr.f32.mxu0 0.0
        %4716 = vmatmul.mubr.f32.gmra.mxu0 %v4592
        %v4717 = vpop.f32.mrf.mxu0
        %v4718 = vadd.f32 0.0, %v4717
        %v4719 = vpop.f32.mrf.mxu0
        %4720 = vmatprep.mubr.f32.mxu0 0.0
        %4721 = vmatmul.mubr.f32.gmra.mxu0 %v4595
        %v4722 = vpop.f32.mrf.mxu0
        %v4723 = vadd.f32 0.0, %v4722
        %v4724 = vpop.f32.mrf.mxu0
        %4725 = vmatprep.mubr.f32.mxu0 0.0
        %4726 = vmatmul.mubr.f32.gmra.mxu0 %v4598
        %v4727 = vpop.f32.mrf.mxu0
        %v4728 = vadd.f32 0.0, %v4727
        %v4729 = vpop.f32.mrf.mxu0
        %4730 = vmatprep.mubr.f32.mxu0 0.0
        %4731 = vmatmul.mubr.f32.gmra.mxu0 %v4601
        %v4732 = vpop.f32.mrf.mxu0
        %v4733 = vadd.f32 0.0, %v4732
        %v4734 = vpop.f32.mrf.mxu0
        %4735 = vmatprep.mubr.f32.mxu0 0.0
        %4736 = vmatmul.mubr.f32.gmra.mxu0 %v4604
        %v4737 = vpop.f32.mrf.mxu0
        %v4738 = vadd.f32 0.0, %v4737
        %v4739 = vpop.f32.mrf.mxu0
        %4740 = vmatprep.mubr.f32.mxu0 0.0
        %4741 = vmatmul.mubr.f32.gmra.mxu0 %v4607
        %v4742 = vpop.f32.mrf.mxu0
        %v4743 = vadd.f32 0.0, %v4742
        %v4744 = vpop.f32.mrf.mxu0
        %4745 = vmatprep.mubr.f32.mxu0 0.0
        %4746 = vmatmul.mubr.f32.gmra.mxu0 %v4610
        %v4747 = vpop.f32.mrf.mxu0
        %v4748 = vadd.f32 0.0, %v4747
        %v4749 = vpop.f32.mrf.mxu0
        %4750 = vmatprep.mubr.f32.mxu0 0.0
        %4751 = vmatmul.mubr.f32.gmra.mxu0 %v4613
        %v4752 = vpop.f32.mrf.mxu0
        %v4753 = vadd.f32 0.0, %v4752
        %v4754 = vpop.f32.mrf.mxu0
        %4755 = vmatprep.mubr.f32.mxu0 0.0
        %4756 = vmatmul.mubr.f32.gmra.mxu0 %v4616
        %v4757 = vpop.f32.mrf.mxu0
        %v4758 = vadd.f32 0.0, %v4757
        %v4759 = vpop.f32.mrf.mxu0
        %4760 = vmatprep.mubr.f32.mxu0 0.0
        %4761 = vmatmul.mubr.f32.gmra.mxu0 %v4619
        %v4762 = vpop.f32.mrf.mxu0
        %v4763 = vadd.f32 0.0, %v4762
        %v4764 = vpop.f32.mrf.mxu0
        %4765 = vdwg.mxu0
        %v4766 = vadd.f32 %v4536, %v4688
        %v4767 = vadd.f32 %v4537, %v4693
        %v4768 = vadd.f32 %v4538, %v4698
        %v4769 = vadd.f32 %v4539, %v4703
        %v4770 = vadd.f32 %v4540, %v4708
        %v4771 = vadd.f32 %v4541, %v4713
        %v4772 = vadd.f32 %v4542, %v4718
        %v4773 = vadd.f32 %v4543, %v4723
        %v4774 = vadd.f32 %v4544, %v4728
        %v4775 = vadd.f32 %v4545, %v4733
        %v4776 = vadd.f32 %v4546, %v4738
        %v4777 = vadd.f32 %v4547, %v4743
        %v4778 = vadd.f32 %v4548, %v4748
        %v4779 = vadd.f32 %v4549, %v4753
        %v4780 = vadd.f32 %v4550, %v4758
        %v4781 = vadd.f32 %v4551, %v4763
        %s4782 = scalar_lea.vmem [#allocation4], 16
        %v4783 = vld [vmem:[%s4782] sm:$0xff]
        %v4784 = vld [vmem:[%s4782 + $0x8] sm:$0xff]
        %v4785 = vld [vmem:[%s4782 + $0x10] sm:$0xff]
        %v4786 = vld [vmem:[%s4782 + $0x18] sm:$0xff]
        %v4787 = vld [vmem:[%s4782 + $0x30] sm:$0xff]
        %v4788 = vld [vmem:[%s4782 + $0x38] sm:$0xff]
        %v4789 = vld [vmem:[%s4782 + $0x40] sm:$0xff]
        %v4790 = vld [vmem:[%s4782 + $0x48] sm:$0xff]
        %v4791 = vld [vmem:[%s4782 + $0x60] sm:$0xff]
        %v4792 = vld [vmem:[%s4782 + $0x68] sm:$0xff]
        %v4793 = vld [vmem:[%s4782 + $0x70] sm:$0xff]
        %v4794 = vld [vmem:[%s4782 + $0x78] sm:$0xff]
        %v4795 = vld [vmem:[%s4782 + $0x90] sm:$0xff]
        %v4796 = vld [vmem:[%s4782 + $0x98] sm:$0xff]
        %v4797 = vld [vmem:[%s4782 + $0xa0] sm:$0xff]
        %v4798 = vld [vmem:[%s4782 + $0xa8] sm:$0xff]
        %v4799 = vld [vmem:[%s3 + $0x120] sm:$0xff]
        %v4800 = vld [vmem:[%s3 + $0x128] sm:$0xff]
        %v4801 = vld [vmem:[%s3 + $0x130] sm:$0xff]
        %v4802 = vld [vmem:[%s3 + $0x138] sm:$0xff]
        %v4804 = vsel %vm2573, %v4783, 0
        %v4807 = vsel %vm2573, %v4784, 0
        %v4810 = vsel %vm2573, %v4785, 0
        %v4813 = vsel %vm2573, %v4786, 0
        %v4816 = vsel %vm2573, %v4787, 0
        %v4819 = vsel %vm2573, %v4788, 0
        %v4822 = vsel %vm2573, %v4789, 0
        %v4825 = vsel %vm2573, %v4790, 0
        %v4828 = vsel %vm2573, %v4791, 0
        %v4831 = vsel %vm2573, %v4792, 0
        %v4834 = vsel %vm2573, %v4793, 0
        %v4837 = vsel %vm2573, %v4794, 0
        %v4840 = vsel %vm2573, %v4795, 0
        %v4843 = vsel %vm2573, %v4796, 0
        %v4846 = vsel %vm2573, %v4797, 0
        %v4849 = vsel %vm2573, %v4798, 0
        %4851 = vmatprep.subr.mxu0 0.0
        %4852 = vmatpush1.msra.mxu0 0.0
        %4853 = vmatprep.subr.mxu0 0.0
        %4854 = vmatpush1.msra.mxu0 0.0
        %4855 = vmatprep.subr.mxu0 0.0
        %4856 = vmatpush1.msra.mxu0 0.0
        %4857 = vmatprep.subr.mxu0 0.0
        %4858 = vmatpush1.msra.mxu0 0.0
        %4859 = vmatprep.subr.mxu0 0.0
        %4860 = vmatpush1.msra.mxu0 0.0
        %4861 = vmatprep.subr.mxu0 0.0
        %4862 = vmatpush1.msra.mxu0 0.0
        %4863 = vmatprep.subr.mxu0 0.0
        %4864 = vmatpush1.msra.mxu0 0.0
        %4865 = vmatprep.subr.mxu0 0.0
        %4866 = vmatpush1.msra.mxu0 0.0
        %4867 = vmatprep.subr.mxu0 0.0
        %4868 = vmatpush1.msra.mxu0 0.0
        %4869 = vmatprep.subr.mxu0 0.0
        %4870 = vmatpush1.msra.mxu0 0.0
        %4871 = vmatprep.subr.mxu0 0.0
        %4872 = vmatpush1.msra.mxu0 0.0
        %4873 = vmatprep.subr.mxu0 0.0
        %4874 = vmatpush1.msra.mxu0 0.0
        %4875 = vmatprep.subr.mxu0 0.0
        %4876 = vmatpush1.msra.mxu0 %v4802
        %4877 = vmatprep.subr.mxu0 0.0
        %4878 = vmatpush1.msra.mxu0 %v4801
        %4879 = vmatprep.subr.mxu0 0.0
        %4880 = vmatpush1.msra.mxu0 %v4800
        %4881 = vmatprep.subr.mxu0 0.0
        %4882 = vmatpush1.msra.mxu0 %v4799
        %4883 = vmatprep.subr.mxu0 0.0
        %4884 = vmatpush2.msra.mxu0 0.0
        %4885 = vmatprep.subr.mxu0 0.0
        %4886 = vmatpush2.msra.mxu0 0.0
        %4887 = vmatprep.subr.mxu0 0.0
        %4888 = vmatpush2.msra.mxu0 0.0
        %4889 = vmatprep.subr.mxu0 0.0
        %4890 = vmatpush2.msra.mxu0 0.0
        %4891 = vmatprep.subr.mxu0 0.0
        %4892 = vmatpush2.msra.mxu0 0.0
        %4893 = vmatprep.subr.mxu0 0.0
        %4894 = vmatpush2.msra.mxu0 0.0
        %4895 = vmatprep.subr.mxu0 0.0
        %4896 = vmatpush2.msra.mxu0 0.0
        %4897 = vmatprep.subr.mxu0 0.0
        %4898 = vmatpush2.msra.mxu0 0.0
        %4899 = vmatprep.subr.mxu0 0.0
        %4900 = vmatpush2.msra.mxu0 0.0
        %4901 = vmatprep.subr.mxu0 0.0
        %4902 = vmatpush2.msra.mxu0 0.0
        %4903 = vmatprep.subr.mxu0 0.0
        %4904 = vmatpush2.msra.mxu0 0.0
        %4905 = vmatprep.subr.mxu0 0.0
        %4906 = vmatpush2.msra.mxu0 0.0
        %4907 = vmatprep.subr.mxu0 0.0
        %4908 = vmatpush2.msra.mxu0 0.0
        %4909 = vmatprep.subr.mxu0 0.0
        %4910 = vmatpush2.msra.mxu0 0.0
        %4911 = vmatprep.subr.mxu0 0.0
        %4912 = vmatpush2.msra.mxu0 0.0
        %4913 = vmatprep.subr.mxu0 0.0
        %4914 = vmatpush2.msra.mxu0 0.0
        %4915 = vmatprep.mubr.f32.mxu0 0.0
        %4916 = vmatmul.mubr.f32.gmra.mxu0 %v4804
        %v4917 = vpop.f32.mrf.mxu0
        %v4918 = vadd.f32 0.0, %v4917
        %v4919 = vpop.f32.mrf.mxu0
        %4920 = vmatprep.mubr.f32.mxu0 0.0
        %4921 = vmatmul.mubr.f32.gmra.mxu0 %v4807
        %v4922 = vpop.f32.mrf.mxu0
        %v4923 = vadd.f32 0.0, %v4922
        %v4924 = vpop.f32.mrf.mxu0
        %4925 = vmatprep.mubr.f32.mxu0 0.0
        %4926 = vmatmul.mubr.f32.gmra.mxu0 %v4810
        %v4927 = vpop.f32.mrf.mxu0
        %v4928 = vadd.f32 0.0, %v4927
        %v4929 = vpop.f32.mrf.mxu0
        %4930 = vmatprep.mubr.f32.mxu0 0.0
        %4931 = vmatmul.mubr.f32.gmra.mxu0 %v4813
        %v4932 = vpop.f32.mrf.mxu0
        %v4933 = vadd.f32 0.0, %v4932
        %v4934 = vpop.f32.mrf.mxu0
        %4935 = vmatprep.mubr.f32.mxu0 0.0
        %4936 = vmatmul.mubr.f32.gmra.mxu0 %v4816
        %v4937 = vpop.f32.mrf.mxu0
        %v4938 = vadd.f32 0.0, %v4937
        %v4939 = vpop.f32.mrf.mxu0
        %4940 = vmatprep.mubr.f32.mxu0 0.0
        %4941 = vmatmul.mubr.f32.gmra.mxu0 %v4819
        %v4942 = vpop.f32.mrf.mxu0
        %v4943 = vadd.f32 0.0, %v4942
        %v4944 = vpop.f32.mrf.mxu0
        %4945 = vmatprep.mubr.f32.mxu0 0.0
        %4946 = vmatmul.mubr.f32.gmra.mxu0 %v4822
        %v4947 = vpop.f32.mrf.mxu0
        %v4948 = vadd.f32 0.0, %v4947
        %v4949 = vpop.f32.mrf.mxu0
        %4950 = vmatprep.mubr.f32.mxu0 0.0
        %4951 = vmatmul.mubr.f32.gmra.mxu0 %v4825
        %v4952 = vpop.f32.mrf.mxu0
        %v4953 = vadd.f32 0.0, %v4952
        %v4954 = vpop.f32.mrf.mxu0
        %4955 = vmatprep.mubr.f32.mxu0 0.0
        %4956 = vmatmul.mubr.f32.gmra.mxu0 %v4828
        %v4957 = vpop.f32.mrf.mxu0
        %v4958 = vadd.f32 0.0, %v4957
        %v4959 = vpop.f32.mrf.mxu0
        %4960 = vmatprep.mubr.f32.mxu0 0.0
        %4961 = vmatmul.mubr.f32.gmra.mxu0 %v4831
        %v4962 = vpop.f32.mrf.mxu0
        %v4963 = vadd.f32 0.0, %v4962
        %v4964 = vpop.f32.mrf.mxu0
        %4965 = vmatprep.mubr.f32.mxu0 0.0
        %4966 = vmatmul.mubr.f32.gmra.mxu0 %v4834
        %v4967 = vpop.f32.mrf.mxu0
        %v4968 = vadd.f32 0.0, %v4967
        %v4969 = vpop.f32.mrf.mxu0
        %4970 = vmatprep.mubr.f32.mxu0 0.0
        %4971 = vmatmul.mubr.f32.gmra.mxu0 %v4837
        %v4972 = vpop.f32.mrf.mxu0
        %v4973 = vadd.f32 0.0, %v4972
        %v4974 = vpop.f32.mrf.mxu0
        %4975 = vmatprep.mubr.f32.mxu0 0.0
        %4976 = vmatmul.mubr.f32.gmra.mxu0 %v4840
        %v4977 = vpop.f32.mrf.mxu0
        %v4978 = vadd.f32 0.0, %v4977
        %v4979 = vpop.f32.mrf.mxu0
        %4980 = vmatprep.mubr.f32.mxu0 0.0
        %4981 = vmatmul.mubr.f32.gmra.mxu0 %v4843
        %v4982 = vpop.f32.mrf.mxu0
        %v4983 = vadd.f32 0.0, %v4982
        %v4984 = vpop.f32.mrf.mxu0
        %4985 = vmatprep.mubr.f32.mxu0 0.0
        %4986 = vmatmul.mubr.f32.gmra.mxu0 %v4846
        %v4987 = vpop.f32.mrf.mxu0
        %v4988 = vadd.f32 0.0, %v4987
        %v4989 = vpop.f32.mrf.mxu0
        %4990 = vmatprep.mubr.f32.mxu0 0.0
        %4991 = vmatmul.mubr.f32.gmra.mxu0 %v4849
        %v4992 = vpop.f32.mrf.mxu0
        %v4993 = vadd.f32 0.0, %v4992
        %v4994 = vpop.f32.mrf.mxu0
        %4995 = vdwg.mxu0
        %v4996 = vadd.f32 %v4766, %v4918
        %v4997 = vadd.f32 %v4767, %v4923
        %v4998 = vadd.f32 %v4768, %v4928
        %v4999 = vadd.f32 %v4769, %v4933
        %v5000 = vadd.f32 %v4770, %v4938
        %v5001 = vadd.f32 %v4771, %v4943
        %v5002 = vadd.f32 %v4772, %v4948
        %v5003 = vadd.f32 %v4773, %v4953
        %v5004 = vadd.f32 %v4774, %v4958
        %v5005 = vadd.f32 %v4775, %v4963
        %v5006 = vadd.f32 %v4776, %v4968
        %v5007 = vadd.f32 %v4777, %v4973
        %v5008 = vadd.f32 %v4778, %v4978
        %v5009 = vadd.f32 %v4779, %v4983
        %v5010 = vadd.f32 %v4780, %v4988
        %v5011 = vadd.f32 %v4781, %v4993
        %s5012 = scalar_lea.vmem [#allocation2], 48
        %v5013 = vld [vmem:[%s5012] sm:$0xff]
        %v5014 = vld [vmem:[%s5012 + $0x8] sm:$0xff]
        %v5015 = vld [vmem:[%s5012 + $0x10] sm:$0xff]
        %v5016 = vld [vmem:[%s5012 + $0x18] sm:$0xff]
        %v5017 = vld [vmem:[%s5012 + $0x30] sm:$0xff]
        %v5018 = vld [vmem:[%s5012 + $0x38] sm:$0xff]
        %v5019 = vld [vmem:[%s5012 + $0x40] sm:$0xff]
        %v5020 = vld [vmem:[%s5012 + $0x48] sm:$0xff]
        %v5021 = vld [vmem:[%s5012 + $0x60] sm:$0xff]
        %v5022 = vld [vmem:[%s5012 + $0x68] sm:$0xff]
        %v5023 = vld [vmem:[%s5012 + $0x70] sm:$0xff]
        %v5024 = vld [vmem:[%s5012 + $0x78] sm:$0xff]
        %v5025 = vld [vmem:[%s5012 + $0x90] sm:$0xff]
        %v5026 = vld [vmem:[%s5012 + $0x98] sm:$0xff]
        %v5027 = vld [vmem:[%s5012 + $0xa0] sm:$0xff]
        %v5028 = vld [vmem:[%s5012 + $0xa8] sm:$0xff]
        %v5029 = vld [vmem:[%s3 + $0x140] sm:$0xff]
        %v5030 = vld [vmem:[%s3 + $0x148] sm:$0xff]
        %v5031 = vld [vmem:[%s3 + $0x150] sm:$0xff]
        %v5032 = vld [vmem:[%s3 + $0x158] sm:$0xff]
        %v5034 = vsel %vm2573, %v5013, 0
        %v5037 = vsel %vm2573, %v5014, 0
        %v5040 = vsel %vm2573, %v5015, 0
        %v5043 = vsel %vm2573, %v5016, 0
        %v5046 = vsel %vm2573, %v5017, 0
        %v5049 = vsel %vm2573, %v5018, 0
        %v5052 = vsel %vm2573, %v5019, 0
        %v5055 = vsel %vm2573, %v5020, 0
        %v5058 = vsel %vm2573, %v5021, 0
        %v5061 = vsel %vm2573, %v5022, 0
        %v5064 = vsel %vm2573, %v5023, 0
        %v5067 = vsel %vm2573, %v5024, 0
        %v5070 = vsel %vm2573, %v5025, 0
        %v5073 = vsel %vm2573, %v5026, 0
        %v5076 = vsel %vm2573, %v5027, 0
        %v5079 = vsel %vm2573, %v5028, 0
        %5081 = vmatprep.subr.mxu0 0.0
        %5082 = vmatpush1.msra.mxu0 0.0
        %5083 = vmatprep.subr.mxu0 0.0
        %5084 = vmatpush1.msra.mxu0 0.0
        %5085 = vmatprep.subr.mxu0 0.0
        %5086 = vmatpush1.msra.mxu0 0.0
        %5087 = vmatprep.subr.mxu0 0.0
        %5088 = vmatpush1.msra.mxu0 0.0
        %5089 = vmatprep.subr.mxu0 0.0
        %5090 = vmatpush1.msra.mxu0 0.0
        %5091 = vmatprep.subr.mxu0 0.0
        %5092 = vmatpush1.msra.mxu0 0.0
        %5093 = vmatprep.subr.mxu0 0.0
        %5094 = vmatpush1.msra.mxu0 0.0
        %5095 = vmatprep.subr.mxu0 0.0
        %5096 = vmatpush1.msra.mxu0 0.0
        %5097 = vmatprep.subr.mxu0 0.0
        %5098 = vmatpush1.msra.mxu0 0.0
        %5099 = vmatprep.subr.mxu0 0.0
        %5100 = vmatpush1.msra.mxu0 0.0
        %5101 = vmatprep.subr.mxu0 0.0
        %5102 = vmatpush1.msra.mxu0 0.0
        %5103 = vmatprep.subr.mxu0 0.0
        %5104 = vmatpush1.msra.mxu0 0.0
        %5105 = vmatprep.subr.mxu0 0.0
        %5106 = vmatpush1.msra.mxu0 %v5032
        %5107 = vmatprep.subr.mxu0 0.0
        %5108 = vmatpush1.msra.mxu0 %v5031
        %5109 = vmatprep.subr.mxu0 0.0
        %5110 = vmatpush1.msra.mxu0 %v5030
        %5111 = vmatprep.subr.mxu0 0.0
        %5112 = vmatpush1.msra.mxu0 %v5029
        %5113 = vmatprep.subr.mxu0 0.0
        %5114 = vmatpush2.msra.mxu0 0.0
        %5115 = vmatprep.subr.mxu0 0.0
        %5116 = vmatpush2.msra.mxu0 0.0
        %5117 = vmatprep.subr.mxu0 0.0
        %5118 = vmatpush2.msra.mxu0 0.0
        %5119 = vmatprep.subr.mxu0 0.0
        %5120 = vmatpush2.msra.mxu0 0.0
        %5121 = vmatprep.subr.mxu0 0.0
        %5122 = vmatpush2.msra.mxu0 0.0
        %5123 = vmatprep.subr.mxu0 0.0
        %5124 = vmatpush2.msra.mxu0 0.0
        %5125 = vmatprep.subr.mxu0 0.0
        %5126 = vmatpush2.msra.mxu0 0.0
        %5127 = vmatprep.subr.mxu0 0.0
        %5128 = vmatpush2.msra.mxu0 0.0
        %5129 = vmatprep.subr.mxu0 0.0
        %5130 = vmatpush2.msra.mxu0 0.0
        %5131 = vmatprep.subr.mxu0 0.0
        %5132 = vmatpush2.msra.mxu0 0.0
        %5133 = vmatprep.subr.mxu0 0.0
        %5134 = vmatpush2.msra.mxu0 0.0
        %5135 = vmatprep.subr.mxu0 0.0
        %5136 = vmatpush2.msra.mxu0 0.0
        %5137 = vmatprep.subr.mxu0 0.0
        %5138 = vmatpush2.msra.mxu0 0.0
        %5139 = vmatprep.subr.mxu0 0.0
        %5140 = vmatpush2.msra.mxu0 0.0
        %5141 = vmatprep.subr.mxu0 0.0
        %5142 = vmatpush2.msra.mxu0 0.0
        %5143 = vmatprep.subr.mxu0 0.0
        %5144 = vmatpush2.msra.mxu0 0.0
        %5145 = vmatprep.mubr.f32.mxu0 0.0
        %5146 = vmatmul.mubr.f32.gmra.mxu0 %v5034
        %v5147 = vpop.f32.mrf.mxu0
        %v5148 = vadd.f32 0.0, %v5147
        %v5149 = vpop.f32.mrf.mxu0
        %5150 = vmatprep.mubr.f32.mxu0 0.0
        %5151 = vmatmul.mubr.f32.gmra.mxu0 %v5037
        %v5152 = vpop.f32.mrf.mxu0
        %v5153 = vadd.f32 0.0, %v5152
        %v5154 = vpop.f32.mrf.mxu0
        %5155 = vmatprep.mubr.f32.mxu0 0.0
        %5156 = vmatmul.mubr.f32.gmra.mxu0 %v5040
        %v5157 = vpop.f32.mrf.mxu0
        %v5158 = vadd.f32 0.0, %v5157
        %v5159 = vpop.f32.mrf.mxu0
        %5160 = vmatprep.mubr.f32.mxu0 0.0
        %5161 = vmatmul.mubr.f32.gmra.mxu0 %v5043
        %v5162 = vpop.f32.mrf.mxu0
        %v5163 = vadd.f32 0.0, %v5162
        %v5164 = vpop.f32.mrf.mxu0
        %5165 = vmatprep.mubr.f32.mxu0 0.0
        %5166 = vmatmul.mubr.f32.gmra.mxu0 %v5046
        %v5167 = vpop.f32.mrf.mxu0
        %v5168 = vadd.f32 0.0, %v5167
        %v5169 = vpop.f32.mrf.mxu0
        %5170 = vmatprep.mubr.f32.mxu0 0.0
        %5171 = vmatmul.mubr.f32.gmra.mxu0 %v5049
        %v5172 = vpop.f32.mrf.mxu0
        %v5173 = vadd.f32 0.0, %v5172
        %v5174 = vpop.f32.mrf.mxu0
        %5175 = vmatprep.mubr.f32.mxu0 0.0
        %5176 = vmatmul.mubr.f32.gmra.mxu0 %v5052
        %v5177 = vpop.f32.mrf.mxu0
        %v5178 = vadd.f32 0.0, %v5177
        %v5179 = vpop.f32.mrf.mxu0
        %5180 = vmatprep.mubr.f32.mxu0 0.0
        %5181 = vmatmul.mubr.f32.gmra.mxu0 %v5055
        %v5182 = vpop.f32.mrf.mxu0
        %v5183 = vadd.f32 0.0, %v5182
        %v5184 = vpop.f32.mrf.mxu0
        %5185 = vmatprep.mubr.f32.mxu0 0.0
        %5186 = vmatmul.mubr.f32.gmra.mxu0 %v5058
        %v5187 = vpop.f32.mrf.mxu0
        %v5188 = vadd.f32 0.0, %v5187
        %v5189 = vpop.f32.mrf.mxu0
        %5190 = vmatprep.mubr.f32.mxu0 0.0
        %5191 = vmatmul.mubr.f32.gmra.mxu0 %v5061
        %v5192 = vpop.f32.mrf.mxu0
        %v5193 = vadd.f32 0.0, %v5192
        %v5194 = vpop.f32.mrf.mxu0
        %5195 = vmatprep.mubr.f32.mxu0 0.0
        %5196 = vmatmul.mubr.f32.gmra.mxu0 %v5064
        %v5197 = vpop.f32.mrf.mxu0
        %v5198 = vadd.f32 0.0, %v5197
        %v5199 = vpop.f32.mrf.mxu0
        %5200 = vmatprep.mubr.f32.mxu0 0.0
        %5201 = vmatmul.mubr.f32.gmra.mxu0 %v5067
        %v5202 = vpop.f32.mrf.mxu0
        %v5203 = vadd.f32 0.0, %v5202
        %v5204 = vpop.f32.mrf.mxu0
        %5205 = vmatprep.mubr.f32.mxu0 0.0
        %5206 = vmatmul.mubr.f32.gmra.mxu0 %v5070
        %v5207 = vpop.f32.mrf.mxu0
        %v5208 = vadd.f32 0.0, %v5207
        %v5209 = vpop.f32.mrf.mxu0
        %5210 = vmatprep.mubr.f32.mxu0 0.0
        %5211 = vmatmul.mubr.f32.gmra.mxu0 %v5073
        %v5212 = vpop.f32.mrf.mxu0
        %v5213 = vadd.f32 0.0, %v5212
        %v5214 = vpop.f32.mrf.mxu0
        %5215 = vmatprep.mubr.f32.mxu0 0.0
        %5216 = vmatmul.mubr.f32.gmra.mxu0 %v5076
        %v5217 = vpop.f32.mrf.mxu0
        %v5218 = vadd.f32 0.0, %v5217
        %v5219 = vpop.f32.mrf.mxu0
        %5220 = vmatprep.mubr.f32.mxu0 0.0
        %5221 = vmatmul.mubr.f32.gmra.mxu0 %v5079
        %v5222 = vpop.f32.mrf.mxu0
        %v5223 = vadd.f32 0.0, %v5222
        %v5224 = vpop.f32.mrf.mxu0
        %5225 = vdwg.mxu0
        %v5226 = vadd.f32 %v4996, %v5148
        %v5227 = vadd.f32 %v4997, %v5153
        %v5228 = vadd.f32 %v4998, %v5158
        %v5229 = vadd.f32 %v4999, %v5163
        %v5230 = vadd.f32 %v5000, %v5168
        %v5231 = vadd.f32 %v5001, %v5173
        %v5232 = vadd.f32 %v5002, %v5178
        %v5233 = vadd.f32 %v5003, %v5183
        %v5234 = vadd.f32 %v5004, %v5188
        %v5235 = vadd.f32 %v5005, %v5193
        %v5236 = vadd.f32 %v5006, %v5198
        %v5237 = vadd.f32 %v5007, %v5203
        %v5238 = vadd.f32 %v5008, %v5208
        %v5239 = vadd.f32 %v5009, %v5213
        %v5240 = vadd.f32 %v5010, %v5218
        %v5241 = vadd.f32 %v5011, %v5223
        %s5242 = scalar_lea.vmem [#allocation3], 40
        %v5243 = vld [vmem:[%s5242] sm:$0xff]
        %v5244 = vld [vmem:[%s5242 + $0x8] sm:$0xff]
        %v5245 = vld [vmem:[%s5242 + $0x10] sm:$0xff]
        %v5246 = vld [vmem:[%s5242 + $0x18] sm:$0xff]
        %v5247 = vld [vmem:[%s5242 + $0x28] sm:$0xff]
        %v5248 = vld [vmem:[%s5242 + $0x30] sm:$0xff]
        %v5249 = vld [vmem:[%s5242 + $0x38] sm:$0xff]
        %v5250 = vld [vmem:[%s5242 + $0x40] sm:$0xff]
        %v5251 = vld [vmem:[%s5242 + $0x50] sm:$0xff]
        %v5252 = vld [vmem:[%s5242 + $0x58] sm:$0xff]
        %v5253 = vld [vmem:[%s5242 + $0x60] sm:$0xff]
        %v5254 = vld [vmem:[%s5242 + $0x68] sm:$0xff]
        %v5255 = vld [vmem:[%s5242 + $0x78] sm:$0xff]
        %v5256 = vld [vmem:[%s5242 + $0x80] sm:$0xff]
        %v5257 = vld [vmem:[%s5242 + $0x88] sm:$0xff]
        %v5258 = vld [vmem:[%s5242 + $0x90] sm:$0xff]
        %v5259 = vld [vmem:[%s3 + $0x160] sm:$0xff]
        %v5260 = vld [vmem:[%s3 + $0x168] sm:$0xff]
        %v5261 = vld [vmem:[%s3 + $0x170] sm:$0xff]
        %v5262 = vld [vmem:[%s3 + $0x178] sm:$0xff]
        %v5264 = vsel %vm2573, %v5243, 0
        %v5267 = vsel %vm2573, %v5244, 0
        %v5270 = vsel %vm2573, %v5245, 0
        %v5273 = vsel %vm2573, %v5246, 0
        %v5276 = vsel %vm2573, %v5247, 0
        %v5279 = vsel %vm2573, %v5248, 0
        %v5282 = vsel %vm2573, %v5249, 0
        %v5285 = vsel %vm2573, %v5250, 0
        %v5288 = vsel %vm2573, %v5251, 0
        %v5291 = vsel %vm2573, %v5252, 0
        %v5294 = vsel %vm2573, %v5253, 0
        %v5297 = vsel %vm2573, %v5254, 0
        %v5300 = vsel %vm2573, %v5255, 0
        %v5303 = vsel %vm2573, %v5256, 0
        %v5306 = vsel %vm2573, %v5257, 0
        %v5309 = vsel %vm2573, %v5258, 0
        %5311 = vmatprep.subr.mxu0 0.0
        %5312 = vmatpush1.msra.mxu0 0.0
        %5313 = vmatprep.subr.mxu0 0.0
        %5314 = vmatpush1.msra.mxu0 0.0
        %5315 = vmatprep.subr.mxu0 0.0
        %5316 = vmatpush1.msra.mxu0 0.0
        %5317 = vmatprep.subr.mxu0 0.0
        %5318 = vmatpush1.msra.mxu0 0.0
        %5319 = vmatprep.subr.mxu0 0.0
        %5320 = vmatpush1.msra.mxu0 0.0
        %5321 = vmatprep.subr.mxu0 0.0
        %5322 = vmatpush1.msra.mxu0 0.0
        %5323 = vmatprep.subr.mxu0 0.0
        %5324 = vmatpush1.msra.mxu0 0.0
        %5325 = vmatprep.subr.mxu0 0.0
        %5326 = vmatpush1.msra.mxu0 0.0
        %5327 = vmatprep.subr.mxu0 0.0
        %5328 = vmatpush1.msra.mxu0 0.0
        %5329 = vmatprep.subr.mxu0 0.0
        %5330 = vmatpush1.msra.mxu0 0.0
        %5331 = vmatprep.subr.mxu0 0.0
        %5332 = vmatpush1.msra.mxu0 0.0
        %5333 = vmatprep.subr.mxu0 0.0
        %5334 = vmatpush1.msra.mxu0 0.0
        %5335 = vmatprep.subr.mxu0 0.0
        %5336 = vmatpush1.msra.mxu0 %v5262
        %5337 = vmatprep.subr.mxu0 0.0
        %5338 = vmatpush1.msra.mxu0 %v5261
        %5339 = vmatprep.subr.mxu0 0.0
        %5340 = vmatpush1.msra.mxu0 %v5260
        %5341 = vmatprep.subr.mxu0 0.0
        %5342 = vmatpush1.msra.mxu0 %v5259
        %5343 = vmatprep.subr.mxu0 0.0
        %5344 = vmatpush2.msra.mxu0 0.0
        %5345 = vmatprep.subr.mxu0 0.0
        %5346 = vmatpush2.msra.mxu0 0.0
        %5347 = vmatprep.subr.mxu0 0.0
        %5348 = vmatpush2.msra.mxu0 0.0
        %5349 = vmatprep.subr.mxu0 0.0
        %5350 = vmatpush2.msra.mxu0 0.0
        %5351 = vmatprep.subr.mxu0 0.0
        %5352 = vmatpush2.msra.mxu0 0.0
        %5353 = vmatprep.subr.mxu0 0.0
        %5354 = vmatpush2.msra.mxu0 0.0
        %5355 = vmatprep.subr.mxu0 0.0
        %5356 = vmatpush2.msra.mxu0 0.0
        %5357 = vmatprep.subr.mxu0 0.0
        %5358 = vmatpush2.msra.mxu0 0.0
        %5359 = vmatprep.subr.mxu0 0.0
        %5360 = vmatpush2.msra.mxu0 0.0
        %5361 = vmatprep.subr.mxu0 0.0
        %5362 = vmatpush2.msra.mxu0 0.0
        %5363 = vmatprep.subr.mxu0 0.0
        %5364 = vmatpush2.msra.mxu0 0.0
        %5365 = vmatprep.subr.mxu0 0.0
        %5366 = vmatpush2.msra.mxu0 0.0
        %5367 = vmatprep.subr.mxu0 0.0
        %5368 = vmatpush2.msra.mxu0 0.0
        %5369 = vmatprep.subr.mxu0 0.0
        %5370 = vmatpush2.msra.mxu0 0.0
        %5371 = vmatprep.subr.mxu0 0.0
        %5372 = vmatpush2.msra.mxu0 0.0
        %5373 = vmatprep.subr.mxu0 0.0
        %5374 = vmatpush2.msra.mxu0 0.0
        %5375 = vmatprep.mubr.f32.mxu0 0.0
        %5376 = vmatmul.mubr.f32.gmra.mxu0 %v5264
        %v5377 = vpop.f32.mrf.mxu0
        %v5378 = vadd.f32 0.0, %v5377
        %v5379 = vpop.f32.mrf.mxu0
        %5380 = vmatprep.mubr.f32.mxu0 0.0
        %5381 = vmatmul.mubr.f32.gmra.mxu0 %v5267
        %v5382 = vpop.f32.mrf.mxu0
        %v5383 = vadd.f32 0.0, %v5382
        %v5384 = vpop.f32.mrf.mxu0
        %5385 = vmatprep.mubr.f32.mxu0 0.0
        %5386 = vmatmul.mubr.f32.gmra.mxu0 %v5270
        %v5387 = vpop.f32.mrf.mxu0
        %v5388 = vadd.f32 0.0, %v5387
        %v5389 = vpop.f32.mrf.mxu0
        %5390 = vmatprep.mubr.f32.mxu0 0.0
        %5391 = vmatmul.mubr.f32.gmra.mxu0 %v5273
        %v5392 = vpop.f32.mrf.mxu0
        %v5393 = vadd.f32 0.0, %v5392
        %v5394 = vpop.f32.mrf.mxu0
        %5395 = vmatprep.mubr.f32.mxu0 0.0
        %5396 = vmatmul.mubr.f32.gmra.mxu0 %v5276
        %v5397 = vpop.f32.mrf.mxu0
        %v5398 = vadd.f32 0.0, %v5397
        %v5399 = vpop.f32.mrf.mxu0
        %5400 = vmatprep.mubr.f32.mxu0 0.0
        %5401 = vmatmul.mubr.f32.gmra.mxu0 %v5279
        %v5402 = vpop.f32.mrf.mxu0
        %v5403 = vadd.f32 0.0, %v5402
        %v5404 = vpop.f32.mrf.mxu0
        %5405 = vmatprep.mubr.f32.mxu0 0.0
        %5406 = vmatmul.mubr.f32.gmra.mxu0 %v5282
        %v5407 = vpop.f32.mrf.mxu0
        %v5408 = vadd.f32 0.0, %v5407
        %v5409 = vpop.f32.mrf.mxu0
        %5410 = vmatprep.mubr.f32.mxu0 0.0
        %5411 = vmatmul.mubr.f32.gmra.mxu0 %v5285
        %v5412 = vpop.f32.mrf.mxu0
        %v5413 = vadd.f32 0.0, %v5412
        %v5414 = vpop.f32.mrf.mxu0
        %5415 = vmatprep.mubr.f32.mxu0 0.0
        %5416 = vmatmul.mubr.f32.gmra.mxu0 %v5288
        %v5417 = vpop.f32.mrf.mxu0
        %v5418 = vadd.f32 0.0, %v5417
        %v5419 = vpop.f32.mrf.mxu0
        %5420 = vmatprep.mubr.f32.mxu0 0.0
        %5421 = vmatmul.mubr.f32.gmra.mxu0 %v5291
        %v5422 = vpop.f32.mrf.mxu0
        %v5423 = vadd.f32 0.0, %v5422
        %v5424 = vpop.f32.mrf.mxu0
        %5425 = vmatprep.mubr.f32.mxu0 0.0
        %5426 = vmatmul.mubr.f32.gmra.mxu0 %v5294
        %v5427 = vpop.f32.mrf.mxu0
        %v5428 = vadd.f32 0.0, %v5427
        %v5429 = vpop.f32.mrf.mxu0
        %5430 = vmatprep.mubr.f32.mxu0 0.0
        %5431 = vmatmul.mubr.f32.gmra.mxu0 %v5297
        %v5432 = vpop.f32.mrf.mxu0
        %v5433 = vadd.f32 0.0, %v5432
        %v5434 = vpop.f32.mrf.mxu0
        %5435 = vmatprep.mubr.f32.mxu0 0.0
        %5436 = vmatmul.mubr.f32.gmra.mxu0 %v5300
        %v5437 = vpop.f32.mrf.mxu0
        %v5438 = vadd.f32 0.0, %v5437
        %v5439 = vpop.f32.mrf.mxu0
        %5440 = vmatprep.mubr.f32.mxu0 0.0
        %5441 = vmatmul.mubr.f32.gmra.mxu0 %v5303
        %v5442 = vpop.f32.mrf.mxu0
        %v5443 = vadd.f32 0.0, %v5442
        %v5444 = vpop.f32.mrf.mxu0
        %5445 = vmatprep.mubr.f32.mxu0 0.0
        %5446 = vmatmul.mubr.f32.gmra.mxu0 %v5306
        %v5447 = vpop.f32.mrf.mxu0
        %v5448 = vadd.f32 0.0, %v5447
        %v5449 = vpop.f32.mrf.mxu0
        %5450 = vmatprep.mubr.f32.mxu0 0.0
        %5451 = vmatmul.mubr.f32.gmra.mxu0 %v5309
        %v5452 = vpop.f32.mrf.mxu0
        %v5453 = vadd.f32 0.0, %v5452
        %v5454 = vpop.f32.mrf.mxu0
        %5455 = vdwg.mxu0
        %v5456 = vadd.f32 %v5226, %v5378
        %v5457 = vadd.f32 %v5227, %v5383
        %v5458 = vadd.f32 %v5228, %v5388
        %v5459 = vadd.f32 %v5229, %v5393
        %v5460 = vadd.f32 %v5230, %v5398
        %v5461 = vadd.f32 %v5231, %v5403
        %v5462 = vadd.f32 %v5232, %v5408
        %v5463 = vadd.f32 %v5233, %v5413
        %v5464 = vadd.f32 %v5234, %v5418
        %v5465 = vadd.f32 %v5235, %v5423
        %v5466 = vadd.f32 %v5236, %v5428
        %v5467 = vadd.f32 %v5237, %v5433
        %v5468 = vadd.f32 %v5238, %v5438
        %v5469 = vadd.f32 %v5239, %v5443
        %v5470 = vadd.f32 %v5240, %v5448
        %v5471 = vadd.f32 %v5241, %v5453
        %v5472 = vld [vmem:[%s2695] sm:$0xff]
        %v5473 = vld [vmem:[%s2695 + $0x8] sm:$0xff]
        %v5474 = vld [vmem:[%s2695 + $0x10] sm:$0xff]
        %v5475 = vld [vmem:[%s2695 + $0x18] sm:$0xff]
        %v5476 = vld [vmem:[%s2695 + $0x30] sm:$0xff]
        %v5477 = vld [vmem:[%s2695 + $0x38] sm:$0xff]
        %v5478 = vld [vmem:[%s2695 + $0x40] sm:$0xff]
        %v5479 = vld [vmem:[%s2695 + $0x48] sm:$0xff]
        %v5480 = vld [vmem:[%s2695 + $0x60] sm:$0xff]
        %v5481 = vld [vmem:[%s2695 + $0x68] sm:$0xff]
        %v5482 = vld [vmem:[%s2695 + $0x70] sm:$0xff]
        %v5483 = vld [vmem:[%s2695 + $0x78] sm:$0xff]
        %v5484 = vld [vmem:[%s2695 + $0x90] sm:$0xff]
        %v5485 = vld [vmem:[%s2695 + $0x98] sm:$0xff]
        %v5486 = vld [vmem:[%s2695 + $0xa0] sm:$0xff]
        %v5487 = vld [vmem:[%s2695 + $0xa8] sm:$0xff]
        %v5488 = vld [vmem:[%s3 + $0x180] sm:$0xff]
        %v5489 = vld [vmem:[%s3 + $0x188] sm:$0xff]
        %v5490 = vld [vmem:[%s3 + $0x190] sm:$0xff]
        %v5491 = vld [vmem:[%s3 + $0x198] sm:$0xff]
        %v5493 = vsel %vm2573, %v5472, 0
        %v5496 = vsel %vm2573, %v5473, 0
        %v5499 = vsel %vm2573, %v5474, 0
        %v5502 = vsel %vm2573, %v5475, 0
        %v5505 = vsel %vm2573, %v5476, 0
        %v5508 = vsel %vm2573, %v5477, 0
        %v5511 = vsel %vm2573, %v5478, 0
        %v5514 = vsel %vm2573, %v5479, 0
        %v5517 = vsel %vm2573, %v5480, 0
        %v5520 = vsel %vm2573, %v5481, 0
        %v5523 = vsel %vm2573, %v5482, 0
        %v5526 = vsel %vm2573, %v5483, 0
        %v5529 = vsel %vm2573, %v5484, 0
        %v5532 = vsel %vm2573, %v5485, 0
        %v5535 = vsel %vm2573, %v5486, 0
        %v5538 = vsel %vm2573, %v5487, 0
        %5540 = vmatprep.subr.mxu0 0.0
        %5541 = vmatpush1.msra.mxu0 0.0
        %5542 = vmatprep.subr.mxu0 0.0
        %5543 = vmatpush1.msra.mxu0 0.0
        %5544 = vmatprep.subr.mxu0 0.0
        %5545 = vmatpush1.msra.mxu0 0.0
        %5546 = vmatprep.subr.mxu0 0.0
        %5547 = vmatpush1.msra.mxu0 0.0
        %5548 = vmatprep.subr.mxu0 0.0
        %5549 = vmatpush1.msra.mxu0 0.0
        %5550 = vmatprep.subr.mxu0 0.0
        %5551 = vmatpush1.msra.mxu0 0.0
        %5552 = vmatprep.subr.mxu0 0.0
        %5553 = vmatpush1.msra.mxu0 0.0
        %5554 = vmatprep.subr.mxu0 0.0
        %5555 = vmatpush1.msra.mxu0 0.0
        %5556 = vmatprep.subr.mxu0 0.0
        %5557 = vmatpush1.msra.mxu0 0.0
        %5558 = vmatprep.subr.mxu0 0.0
        %5559 = vmatpush1.msra.mxu0 0.0
        %5560 = vmatprep.subr.mxu0 0.0
        %5561 = vmatpush1.msra.mxu0 0.0
        %5562 = vmatprep.subr.mxu0 0.0
        %5563 = vmatpush1.msra.mxu0 0.0
        %5564 = vmatprep.subr.mxu0 0.0
        %5565 = vmatpush1.msra.mxu0 %v5491
        %5566 = vmatprep.subr.mxu0 0.0
        %5567 = vmatpush1.msra.mxu0 %v5490
        %5568 = vmatprep.subr.mxu0 0.0
        %5569 = vmatpush1.msra.mxu0 %v5489
        %5570 = vmatprep.subr.mxu0 0.0
        %5571 = vmatpush1.msra.mxu0 %v5488
        %5572 = vmatprep.subr.mxu0 0.0
        %5573 = vmatpush2.msra.mxu0 0.0
        %5574 = vmatprep.subr.mxu0 0.0
        %5575 = vmatpush2.msra.mxu0 0.0
        %5576 = vmatprep.subr.mxu0 0.0
        %5577 = vmatpush2.msra.mxu0 0.0
        %5578 = vmatprep.subr.mxu0 0.0
        %5579 = vmatpush2.msra.mxu0 0.0
        %5580 = vmatprep.subr.mxu0 0.0
        %5581 = vmatpush2.msra.mxu0 0.0
        %5582 = vmatprep.subr.mxu0 0.0
        %5583 = vmatpush2.msra.mxu0 0.0
        %5584 = vmatprep.subr.mxu0 0.0
        %5585 = vmatpush2.msra.mxu0 0.0
        %5586 = vmatprep.subr.mxu0 0.0
        %5587 = vmatpush2.msra.mxu0 0.0
        %5588 = vmatprep.subr.mxu0 0.0
        %5589 = vmatpush2.msra.mxu0 0.0
        %5590 = vmatprep.subr.mxu0 0.0
        %5591 = vmatpush2.msra.mxu0 0.0
        %5592 = vmatprep.subr.mxu0 0.0
        %5593 = vmatpush2.msra.mxu0 0.0
        %5594 = vmatprep.subr.mxu0 0.0
        %5595 = vmatpush2.msra.mxu0 0.0
        %5596 = vmatprep.subr.mxu0 0.0
        %5597 = vmatpush2.msra.mxu0 0.0
        %5598 = vmatprep.subr.mxu0 0.0
        %5599 = vmatpush2.msra.mxu0 0.0
        %5600 = vmatprep.subr.mxu0 0.0
        %5601 = vmatpush2.msra.mxu0 0.0
        %5602 = vmatprep.subr.mxu0 0.0
        %5603 = vmatpush2.msra.mxu0 0.0
        %5604 = vmatprep.mubr.f32.mxu0 0.0
        %5605 = vmatmul.mubr.f32.gmra.mxu0 %v5493
        %v5606 = vpop.f32.mrf.mxu0
        %v5607 = vadd.f32 0.0, %v5606
        %v5608 = vpop.f32.mrf.mxu0
        %5609 = vmatprep.mubr.f32.mxu0 0.0
        %5610 = vmatmul.mubr.f32.gmra.mxu0 %v5496
        %v5611 = vpop.f32.mrf.mxu0
        %v5612 = vadd.f32 0.0, %v5611
        %v5613 = vpop.f32.mrf.mxu0
        %5614 = vmatprep.mubr.f32.mxu0 0.0
        %5615 = vmatmul.mubr.f32.gmra.mxu0 %v5499
        %v5616 = vpop.f32.mrf.mxu0
        %v5617 = vadd.f32 0.0, %v5616
        %v5618 = vpop.f32.mrf.mxu0
        %5619 = vmatprep.mubr.f32.mxu0 0.0
        %5620 = vmatmul.mubr.f32.gmra.mxu0 %v5502
        %v5621 = vpop.f32.mrf.mxu0
        %v5622 = vadd.f32 0.0, %v5621
        %v5623 = vpop.f32.mrf.mxu0
        %5624 = vmatprep.mubr.f32.mxu0 0.0
        %5625 = vmatmul.mubr.f32.gmra.mxu0 %v5505
        %v5626 = vpop.f32.mrf.mxu0
        %v5627 = vadd.f32 0.0, %v5626
        %v5628 = vpop.f32.mrf.mxu0
        %5629 = vmatprep.mubr.f32.mxu0 0.0
        %5630 = vmatmul.mubr.f32.gmra.mxu0 %v5508
        %v5631 = vpop.f32.mrf.mxu0
        %v5632 = vadd.f32 0.0, %v5631
        %v5633 = vpop.f32.mrf.mxu0
        %5634 = vmatprep.mubr.f32.mxu0 0.0
        %5635 = vmatmul.mubr.f32.gmra.mxu0 %v5511
        %v5636 = vpop.f32.mrf.mxu0
        %v5637 = vadd.f32 0.0, %v5636
        %v5638 = vpop.f32.mrf.mxu0
        %5639 = vmatprep.mubr.f32.mxu0 0.0
        %5640 = vmatmul.mubr.f32.gmra.mxu0 %v5514
        %v5641 = vpop.f32.mrf.mxu0
        %v5642 = vadd.f32 0.0, %v5641
        %v5643 = vpop.f32.mrf.mxu0
        %5644 = vmatprep.mubr.f32.mxu0 0.0
        %5645 = vmatmul.mubr.f32.gmra.mxu0 %v5517
        %v5646 = vpop.f32.mrf.mxu0
        %v5647 = vadd.f32 0.0, %v5646
        %v5648 = vpop.f32.mrf.mxu0
        %5649 = vmatprep.mubr.f32.mxu0 0.0
        %5650 = vmatmul.mubr.f32.gmra.mxu0 %v5520
        %v5651 = vpop.f32.mrf.mxu0
        %v5652 = vadd.f32 0.0, %v5651
        %v5653 = vpop.f32.mrf.mxu0
        %5654 = vmatprep.mubr.f32.mxu0 0.0
        %5655 = vmatmul.mubr.f32.gmra.mxu0 %v5523
        %v5656 = vpop.f32.mrf.mxu0
        %v5657 = vadd.f32 0.0, %v5656
        %v5658 = vpop.f32.mrf.mxu0
        %5659 = vmatprep.mubr.f32.mxu0 0.0
        %5660 = vmatmul.mubr.f32.gmra.mxu0 %v5526
        %v5661 = vpop.f32.mrf.mxu0
        %v5662 = vadd.f32 0.0, %v5661
        %v5663 = vpop.f32.mrf.mxu0
        %5664 = vmatprep.mubr.f32.mxu0 0.0
        %5665 = vmatmul.mubr.f32.gmra.mxu0 %v5529
        %v5666 = vpop.f32.mrf.mxu0
        %v5667 = vadd.f32 0.0, %v5666
        %v5668 = vpop.f32.mrf.mxu0
        %5669 = vmatprep.mubr.f32.mxu0 0.0
        %5670 = vmatmul.mubr.f32.gmra.mxu0 %v5532
        %v5671 = vpop.f32.mrf.mxu0
        %v5672 = vadd.f32 0.0, %v5671
        %v5673 = vpop.f32.mrf.mxu0
        %5674 = vmatprep.mubr.f32.mxu0 0.0
        %5675 = vmatmul.mubr.f32.gmra.mxu0 %v5535
        %v5676 = vpop.f32.mrf.mxu0
        %v5677 = vadd.f32 0.0, %v5676
        %v5678 = vpop.f32.mrf.mxu0
        %5679 = vmatprep.mubr.f32.mxu0 0.0
        %5680 = vmatmul.mubr.f32.gmra.mxu0 %v5538
        %v5681 = vpop.f32.mrf.mxu0
        %v5682 = vadd.f32 0.0, %v5681
        %v5683 = vpop.f32.mrf.mxu0
        %5684 = vdwg.mxu0
        %v5685 = vadd.f32 %v5456, %v5607
        %v5686 = vadd.f32 %v5457, %v5612
        %v5687 = vadd.f32 %v5458, %v5617
        %v5688 = vadd.f32 %v5459, %v5622
        %v5689 = vadd.f32 %v5460, %v5627
        %v5690 = vadd.f32 %v5461, %v5632
        %v5691 = vadd.f32 %v5462, %v5637
        %v5692 = vadd.f32 %v5463, %v5642
        %v5693 = vadd.f32 %v5464, %v5647
        %v5694 = vadd.f32 %v5465, %v5652
        %v5695 = vadd.f32 %v5466, %v5657
        %v5696 = vadd.f32 %v5467, %v5662
        %v5697 = vadd.f32 %v5468, %v5667
        %v5698 = vadd.f32 %v5469, %v5672
        %v5699 = vadd.f32 %v5470, %v5677
        %v5700 = vadd.f32 %v5471, %v5682
        %v5701 = vld [vmem:[%s2712] sm:$0xff]
        %v5702 = vld [vmem:[%s2712 + $0x8] sm:$0xff]
        %v5703 = vld [vmem:[%s2712 + $0x10] sm:$0xff]
        %v5704 = vld [vmem:[%s2712 + $0x18] sm:$0xff]
        %v5705 = vld [vmem:[%s2712 + $0x28] sm:$0xff]
        %v5706 = vld [vmem:[%s2712 + $0x30] sm:$0xff]
        %v5707 = vld [vmem:[%s2712 + $0x38] sm:$0xff]
        %v5708 = vld [vmem:[%s2712 + $0x40] sm:$0xff]
        %v5709 = vld [vmem:[%s2712 + $0x50] sm:$0xff]
        %v5710 = vld [vmem:[%s2712 + $0x58] sm:$0xff]
        %v5711 = vld [vmem:[%s2712 + $0x60] sm:$0xff]
        %v5712 = vld [vmem:[%s2712 + $0x68] sm:$0xff]
        %v5713 = vld [vmem:[%s2712 + $0x78] sm:$0xff]
        %v5714 = vld [vmem:[%s2712 + $0x80] sm:$0xff]
        %v5715 = vld [vmem:[%s2712 + $0x88] sm:$0xff]
        %v5716 = vld [vmem:[%s2712 + $0x90] sm:$0xff]
        %v5717 = vld [vmem:[%s3 + $0x1a0] sm:$0xff]
        %v5718 = vld [vmem:[%s3 + $0x1a8] sm:$0xff]
        %v5719 = vld [vmem:[%s3 + $0x1b0] sm:$0xff]
        %v5720 = vld [vmem:[%s3 + $0x1b8] sm:$0xff]
        %v5722 = vsel %vm2573, %v5701, 0
        %v5725 = vsel %vm2573, %v5702, 0
        %v5728 = vsel %vm2573, %v5703, 0
        %v5731 = vsel %vm2573, %v5704, 0
        %v5734 = vsel %vm2573, %v5705, 0
        %v5737 = vsel %vm2573, %v5706, 0
        %v5740 = vsel %vm2573, %v5707, 0
        %v5743 = vsel %vm2573, %v5708, 0
        %v5746 = vsel %vm2573, %v5709, 0
        %v5749 = vsel %vm2573, %v5710, 0
        %v5752 = vsel %vm2573, %v5711, 0
        %v5755 = vsel %vm2573, %v5712, 0
        %v5758 = vsel %vm2573, %v5713, 0
        %v5761 = vsel %vm2573, %v5714, 0
        %v5764 = vsel %vm2573, %v5715, 0
        %v5767 = vsel %vm2573, %v5716, 0
        %5769 = vmatprep.subr.mxu0 0.0
        %5770 = vmatpush1.msra.mxu0 0.0
        %5771 = vmatprep.subr.mxu0 0.0
        %5772 = vmatpush1.msra.mxu0 0.0
        %5773 = vmatprep.subr.mxu0 0.0
        %5774 = vmatpush1.msra.mxu0 0.0
        %5775 = vmatprep.subr.mxu0 0.0
        %5776 = vmatpush1.msra.mxu0 0.0
        %5777 = vmatprep.subr.mxu0 0.0
        %5778 = vmatpush1.msra.mxu0 0.0
        %5779 = vmatprep.subr.mxu0 0.0
        %5780 = vmatpush1.msra.mxu0 0.0
        %5781 = vmatprep.subr.mxu0 0.0
        %5782 = vmatpush1.msra.mxu0 0.0
        %5783 = vmatprep.subr.mxu0 0.0
        %5784 = vmatpush1.msra.mxu0 0.0
        %5785 = vmatprep.subr.mxu0 0.0
        %5786 = vmatpush1.msra.mxu0 0.0
        %5787 = vmatprep.subr.mxu0 0.0
        %5788 = vmatpush1.msra.mxu0 0.0
        %5789 = vmatprep.subr.mxu0 0.0
        %5790 = vmatpush1.msra.mxu0 0.0
        %5791 = vmatprep.subr.mxu0 0.0
        %5792 = vmatpush1.msra.mxu0 0.0
        %5793 = vmatprep.subr.mxu0 0.0
        %5794 = vmatpush1.msra.mxu0 %v5720
        %5795 = vmatprep.subr.mxu0 0.0
        %5796 = vmatpush1.msra.mxu0 %v5719
        %5797 = vmatprep.subr.mxu0 0.0
        %5798 = vmatpush1.msra.mxu0 %v5718
        %5799 = vmatprep.subr.mxu0 0.0
        %5800 = vmatpush1.msra.mxu0 %v5717
        %5801 = vmatprep.subr.mxu0 0.0
        %5802 = vmatpush2.msra.mxu0 0.0
        %5803 = vmatprep.subr.mxu0 0.0
        %5804 = vmatpush2.msra.mxu0 0.0
        %5805 = vmatprep.subr.mxu0 0.0
        %5806 = vmatpush2.msra.mxu0 0.0
        %5807 = vmatprep.subr.mxu0 0.0
        %5808 = vmatpush2.msra.mxu0 0.0
        %5809 = vmatprep.subr.mxu0 0.0
        %5810 = vmatpush2.msra.mxu0 0.0
        %5811 = vmatprep.subr.mxu0 0.0
        %5812 = vmatpush2.msra.mxu0 0.0
        %5813 = vmatprep.subr.mxu0 0.0
        %5814 = vmatpush2.msra.mxu0 0.0
        %5815 = vmatprep.subr.mxu0 0.0
        %5816 = vmatpush2.msra.mxu0 0.0
        %5817 = vmatprep.subr.mxu0 0.0
        %5818 = vmatpush2.msra.mxu0 0.0
        %5819 = vmatprep.subr.mxu0 0.0
        %5820 = vmatpush2.msra.mxu0 0.0
        %5821 = vmatprep.subr.mxu0 0.0
        %5822 = vmatpush2.msra.mxu0 0.0
        %5823 = vmatprep.subr.mxu0 0.0
        %5824 = vmatpush2.msra.mxu0 0.0
        %5825 = vmatprep.subr.mxu0 0.0
        %5826 = vmatpush2.msra.mxu0 0.0
        %5827 = vmatprep.subr.mxu0 0.0
        %5828 = vmatpush2.msra.mxu0 0.0
        %5829 = vmatprep.subr.mxu0 0.0
        %5830 = vmatpush2.msra.mxu0 0.0
        %5831 = vmatprep.subr.mxu0 0.0
        %5832 = vmatpush2.msra.mxu0 0.0
        %5833 = vmatprep.mubr.f32.mxu0 0.0
        %5834 = vmatmul.mubr.f32.gmra.mxu0 %v5722
        %v5835 = vpop.f32.mrf.mxu0
        %v5836 = vadd.f32 0.0, %v5835
        %v5837 = vpop.f32.mrf.mxu0
        %5838 = vmatprep.mubr.f32.mxu0 0.0
        %5839 = vmatmul.mubr.f32.gmra.mxu0 %v5725
        %v5840 = vpop.f32.mrf.mxu0
        %v5841 = vadd.f32 0.0, %v5840
        %v5842 = vpop.f32.mrf.mxu0
        %5843 = vmatprep.mubr.f32.mxu0 0.0
        %5844 = vmatmul.mubr.f32.gmra.mxu0 %v5728
        %v5845 = vpop.f32.mrf.mxu0
        %v5846 = vadd.f32 0.0, %v5845
        %v5847 = vpop.f32.mrf.mxu0
        %5848 = vmatprep.mubr.f32.mxu0 0.0
        %5849 = vmatmul.mubr.f32.gmra.mxu0 %v5731
        %v5850 = vpop.f32.mrf.mxu0
        %v5851 = vadd.f32 0.0, %v5850
        %v5852 = vpop.f32.mrf.mxu0
        %5853 = vmatprep.mubr.f32.mxu0 0.0
        %5854 = vmatmul.mubr.f32.gmra.mxu0 %v5734
        %v5855 = vpop.f32.mrf.mxu0
        %v5856 = vadd.f32 0.0, %v5855
        %v5857 = vpop.f32.mrf.mxu0
        %5858 = vmatprep.mubr.f32.mxu0 0.0
        %5859 = vmatmul.mubr.f32.gmra.mxu0 %v5737
        %v5860 = vpop.f32.mrf.mxu0
        %v5861 = vadd.f32 0.0, %v5860
        %v5862 = vpop.f32.mrf.mxu0
        %5863 = vmatprep.mubr.f32.mxu0 0.0
        %5864 = vmatmul.mubr.f32.gmra.mxu0 %v5740
        %v5865 = vpop.f32.mrf.mxu0
        %v5866 = vadd.f32 0.0, %v5865
        %v5867 = vpop.f32.mrf.mxu0
        %5868 = vmatprep.mubr.f32.mxu0 0.0
        %5869 = vmatmul.mubr.f32.gmra.mxu0 %v5743
        %v5870 = vpop.f32.mrf.mxu0
        %v5871 = vadd.f32 0.0, %v5870
        %v5872 = vpop.f32.mrf.mxu0
        %5873 = vmatprep.mubr.f32.mxu0 0.0
        %5874 = vmatmul.mubr.f32.gmra.mxu0 %v5746
        %v5875 = vpop.f32.mrf.mxu0
        %v5876 = vadd.f32 0.0, %v5875
        %v5877 = vpop.f32.mrf.mxu0
        %5878 = vmatprep.mubr.f32.mxu0 0.0
        %5879 = vmatmul.mubr.f32.gmra.mxu0 %v5749
        %v5880 = vpop.f32.mrf.mxu0
        %v5881 = vadd.f32 0.0, %v5880
        %v5882 = vpop.f32.mrf.mxu0
        %5883 = vmatprep.mubr.f32.mxu0 0.0
        %5884 = vmatmul.mubr.f32.gmra.mxu0 %v5752
        %v5885 = vpop.f32.mrf.mxu0
        %v5886 = vadd.f32 0.0, %v5885
        %v5887 = vpop.f32.mrf.mxu0
        %5888 = vmatprep.mubr.f32.mxu0 0.0
        %5889 = vmatmul.mubr.f32.gmra.mxu0 %v5755
        %v5890 = vpop.f32.mrf.mxu0
        %v5891 = vadd.f32 0.0, %v5890
        %v5892 = vpop.f32.mrf.mxu0
        %5893 = vmatprep.mubr.f32.mxu0 0.0
        %5894 = vmatmul.mubr.f32.gmra.mxu0 %v5758
        %v5895 = vpop.f32.mrf.mxu0
        %v5896 = vadd.f32 0.0, %v5895
        %v5897 = vpop.f32.mrf.mxu0
        %5898 = vmatprep.mubr.f32.mxu0 0.0
        %5899 = vmatmul.mubr.f32.gmra.mxu0 %v5761
        %v5900 = vpop.f32.mrf.mxu0
        %v5901 = vadd.f32 0.0, %v5900
        %v5902 = vpop.f32.mrf.mxu0
        %5903 = vmatprep.mubr.f32.mxu0 0.0
        %5904 = vmatmul.mubr.f32.gmra.mxu0 %v5764
        %v5905 = vpop.f32.mrf.mxu0
        %v5906 = vadd.f32 0.0, %v5905
        %v5907 = vpop.f32.mrf.mxu0
        %5908 = vmatprep.mubr.f32.mxu0 0.0
        %5909 = vmatmul.mubr.f32.gmra.mxu0 %v5767
        %v5910 = vpop.f32.mrf.mxu0
        %v5911 = vadd.f32 0.0, %v5910
        %v5912 = vpop.f32.mrf.mxu0
        %5913 = vdwg.mxu0
        %v5914 = vadd.f32 %v5685, %v5836
        %v5915 = vadd.f32 %v5686, %v5841
        %v5916 = vadd.f32 %v5687, %v5846
        %v5917 = vadd.f32 %v5688, %v5851
        %v5918 = vadd.f32 %v5689, %v5856
        %v5919 = vadd.f32 %v5690, %v5861
        %v5920 = vadd.f32 %v5691, %v5866
        %v5921 = vadd.f32 %v5692, %v5871
        %v5922 = vadd.f32 %v5693, %v5876
        %v5923 = vadd.f32 %v5694, %v5881
        %v5924 = vadd.f32 %v5695, %v5886
        %v5925 = vadd.f32 %v5696, %v5891
        %v5926 = vadd.f32 %v5697, %v5896
        %v5927 = vadd.f32 %v5698, %v5901
        %v5928 = vadd.f32 %v5699, %v5906
        %v5929 = vadd.f32 %v5700, %v5911
        %s5930 = scalar_lea.vmem [#allocation2], 64
        %v5931 = vld [vmem:[%s5930] sm:$0xff]
        %v5932 = vld [vmem:[%s5930 + $0x8] sm:$0xff]
        %v5933 = vld [vmem:[%s5930 + $0x10] sm:$0xff]
        %v5934 = vld [vmem:[%s5930 + $0x18] sm:$0xff]
        %v5935 = vld [vmem:[%s5930 + $0x30] sm:$0xff]
        %v5936 = vld [vmem:[%s5930 + $0x38] sm:$0xff]
        %v5937 = vld [vmem:[%s5930 + $0x40] sm:$0xff]
        %v5938 = vld [vmem:[%s5930 + $0x48] sm:$0xff]
        %v5939 = vld [vmem:[%s5930 + $0x60] sm:$0xff]
        %v5940 = vld [vmem:[%s5930 + $0x68] sm:$0xff]
        %v5941 = vld [vmem:[%s5930 + $0x70] sm:$0xff]
        %v5942 = vld [vmem:[%s5930 + $0x78] sm:$0xff]
        %v5943 = vld [vmem:[%s5930 + $0x90] sm:$0xff]
        %v5944 = vld [vmem:[%s5930 + $0x98] sm:$0xff]
        %v5945 = vld [vmem:[%s5930 + $0xa0] sm:$0xff]
        %v5946 = vld [vmem:[%s5930 + $0xa8] sm:$0xff]
        %v5947 = vld [vmem:[%s3 + $0x1c0] sm:$0xff]
        %v5948 = vld [vmem:[%s3 + $0x1c8] sm:$0xff]
        %v5949 = vld [vmem:[%s3 + $0x1d0] sm:$0xff]
        %v5950 = vld [vmem:[%s3 + $0x1d8] sm:$0xff]
        %v5952 = vsel %vm2573, %v5931, 0
        %v5955 = vsel %vm2573, %v5932, 0
        %v5958 = vsel %vm2573, %v5933, 0
        %v5961 = vsel %vm2573, %v5934, 0
        %v5964 = vsel %vm2573, %v5935, 0
        %v5967 = vsel %vm2573, %v5936, 0
        %v5970 = vsel %vm2573, %v5937, 0
        %v5973 = vsel %vm2573, %v5938, 0
        %v5976 = vsel %vm2573, %v5939, 0
        %v5979 = vsel %vm2573, %v5940, 0
        %v5982 = vsel %vm2573, %v5941, 0
        %v5985 = vsel %vm2573, %v5942, 0
        %v5988 = vsel %vm2573, %v5943, 0
        %v5991 = vsel %vm2573, %v5944, 0
        %v5994 = vsel %vm2573, %v5945, 0
        %v5997 = vsel %vm2573, %v5946, 0
        %5999 = vmatprep.subr.mxu0 0.0
        %6000 = vmatpush1.msra.mxu0 0.0
        %6001 = vmatprep.subr.mxu0 0.0
        %6002 = vmatpush1.msra.mxu0 0.0
        %6003 = vmatprep.subr.mxu0 0.0
        %6004 = vmatpush1.msra.mxu0 0.0
        %6005 = vmatprep.subr.mxu0 0.0
        %6006 = vmatpush1.msra.mxu0 0.0
        %6007 = vmatprep.subr.mxu0 0.0
        %6008 = vmatpush1.msra.mxu0 0.0
        %6009 = vmatprep.subr.mxu0 0.0
        %6010 = vmatpush1.msra.mxu0 0.0
        %6011 = vmatprep.subr.mxu0 0.0
        %6012 = vmatpush1.msra.mxu0 0.0
        %6013 = vmatprep.subr.mxu0 0.0
        %6014 = vmatpush1.msra.mxu0 0.0
        %6015 = vmatprep.subr.mxu0 0.0
        %6016 = vmatpush1.msra.mxu0 0.0
        %6017 = vmatprep.subr.mxu0 0.0
        %6018 = vmatpush1.msra.mxu0 0.0
        %6019 = vmatprep.subr.mxu0 0.0
        %6020 = vmatpush1.msra.mxu0 0.0
        %6021 = vmatprep.subr.mxu0 0.0
        %6022 = vmatpush1.msra.mxu0 0.0
        %6023 = vmatprep.subr.mxu0 0.0
        %6024 = vmatpush1.msra.mxu0 %v5950
        %6025 = vmatprep.subr.mxu0 0.0
        %6026 = vmatpush1.msra.mxu0 %v5949
        %6027 = vmatprep.subr.mxu0 0.0
        %6028 = vmatpush1.msra.mxu0 %v5948
        %6029 = vmatprep.subr.mxu0 0.0
        %6030 = vmatpush1.msra.mxu0 %v5947
        %6031 = vmatprep.subr.mxu0 0.0
        %6032 = vmatpush2.msra.mxu0 0.0
        %6033 = vmatprep.subr.mxu0 0.0
        %6034 = vmatpush2.msra.mxu0 0.0
        %6035 = vmatprep.subr.mxu0 0.0
        %6036 = vmatpush2.msra.mxu0 0.0
        %6037 = vmatprep.subr.mxu0 0.0
        %6038 = vmatpush2.msra.mxu0 0.0
        %6039 = vmatprep.subr.mxu0 0.0
        %6040 = vmatpush2.msra.mxu0 0.0
        %6041 = vmatprep.subr.mxu0 0.0
        %6042 = vmatpush2.msra.mxu0 0.0
        %6043 = vmatprep.subr.mxu0 0.0
        %6044 = vmatpush2.msra.mxu0 0.0
        %6045 = vmatprep.subr.mxu0 0.0
        %6046 = vmatpush2.msra.mxu0 0.0
        %6047 = vmatprep.subr.mxu0 0.0
        %6048 = vmatpush2.msra.mxu0 0.0
        %6049 = vmatprep.subr.mxu0 0.0
        %6050 = vmatpush2.msra.mxu0 0.0
        %6051 = vmatprep.subr.mxu0 0.0
        %6052 = vmatpush2.msra.mxu0 0.0
        %6053 = vmatprep.subr.mxu0 0.0
        %6054 = vmatpush2.msra.mxu0 0.0
        %6055 = vmatprep.subr.mxu0 0.0
        %6056 = vmatpush2.msra.mxu0 0.0
        %6057 = vmatprep.subr.mxu0 0.0
        %6058 = vmatpush2.msra.mxu0 0.0
        %6059 = vmatprep.subr.mxu0 0.0
        %6060 = vmatpush2.msra.mxu0 0.0
        %6061 = vmatprep.subr.mxu0 0.0
        %6062 = vmatpush2.msra.mxu0 0.0
        %6063 = vmatprep.mubr.f32.mxu0 0.0
        %6064 = vmatmul.mubr.f32.gmra.mxu0 %v5952
        %v6065 = vpop.f32.mrf.mxu0
        %v6066 = vadd.f32 0.0, %v6065
        %v6067 = vpop.f32.mrf.mxu0
        %6068 = vmatprep.mubr.f32.mxu0 0.0
        %6069 = vmatmul.mubr.f32.gmra.mxu0 %v5955
        %v6070 = vpop.f32.mrf.mxu0
        %v6071 = vadd.f32 0.0, %v6070
        %v6072 = vpop.f32.mrf.mxu0
        %6073 = vmatprep.mubr.f32.mxu0 0.0
        %6074 = vmatmul.mubr.f32.gmra.mxu0 %v5958
        %v6075 = vpop.f32.mrf.mxu0
        %v6076 = vadd.f32 0.0, %v6075
        %v6077 = vpop.f32.mrf.mxu0
        %6078 = vmatprep.mubr.f32.mxu0 0.0
        %6079 = vmatmul.mubr.f32.gmra.mxu0 %v5961
        %v6080 = vpop.f32.mrf.mxu0
        %v6081 = vadd.f32 0.0, %v6080
        %v6082 = vpop.f32.mrf.mxu0
        %6083 = vmatprep.mubr.f32.mxu0 0.0
        %6084 = vmatmul.mubr.f32.gmra.mxu0 %v5964
        %v6085 = vpop.f32.mrf.mxu0
        %v6086 = vadd.f32 0.0, %v6085
        %v6087 = vpop.f32.mrf.mxu0
        %6088 = vmatprep.mubr.f32.mxu0 0.0
        %6089 = vmatmul.mubr.f32.gmra.mxu0 %v5967
        %v6090 = vpop.f32.mrf.mxu0
        %v6091 = vadd.f32 0.0, %v6090
        %v6092 = vpop.f32.mrf.mxu0
        %6093 = vmatprep.mubr.f32.mxu0 0.0
        %6094 = vmatmul.mubr.f32.gmra.mxu0 %v5970
        %v6095 = vpop.f32.mrf.mxu0
        %v6096 = vadd.f32 0.0, %v6095
        %v6097 = vpop.f32.mrf.mxu0
        %6098 = vmatprep.mubr.f32.mxu0 0.0
        %6099 = vmatmul.mubr.f32.gmra.mxu0 %v5973
        %v6100 = vpop.f32.mrf.mxu0
        %v6101 = vadd.f32 0.0, %v6100
        %v6102 = vpop.f32.mrf.mxu0
        %6103 = vmatprep.mubr.f32.mxu0 0.0
        %6104 = vmatmul.mubr.f32.gmra.mxu0 %v5976
        %v6105 = vpop.f32.mrf.mxu0
        %v6106 = vadd.f32 0.0, %v6105
        %v6107 = vpop.f32.mrf.mxu0
        %6108 = vmatprep.mubr.f32.mxu0 0.0
        %6109 = vmatmul.mubr.f32.gmra.mxu0 %v5979
        %v6110 = vpop.f32.mrf.mxu0
        %v6111 = vadd.f32 0.0, %v6110
        %v6112 = vpop.f32.mrf.mxu0
        %6113 = vmatprep.mubr.f32.mxu0 0.0
        %6114 = vmatmul.mubr.f32.gmra.mxu0 %v5982
        %v6115 = vpop.f32.mrf.mxu0
        %v6116 = vadd.f32 0.0, %v6115
        %v6117 = vpop.f32.mrf.mxu0
        %6118 = vmatprep.mubr.f32.mxu0 0.0
        %6119 = vmatmul.mubr.f32.gmra.mxu0 %v5985
        %v6120 = vpop.f32.mrf.mxu0
        %v6121 = vadd.f32 0.0, %v6120
        %v6122 = vpop.f32.mrf.mxu0
        %6123 = vmatprep.mubr.f32.mxu0 0.0
        %6124 = vmatmul.mubr.f32.gmra.mxu0 %v5988
        %v6125 = vpop.f32.mrf.mxu0
        %v6126 = vadd.f32 0.0, %v6125
        %v6127 = vpop.f32.mrf.mxu0
        %6128 = vmatprep.mubr.f32.mxu0 0.0
        %6129 = vmatmul.mubr.f32.gmra.mxu0 %v5991
        %v6130 = vpop.f32.mrf.mxu0
        %v6131 = vadd.f32 0.0, %v6130
        %v6132 = vpop.f32.mrf.mxu0
        %6133 = vmatprep.mubr.f32.mxu0 0.0
        %6134 = vmatmul.mubr.f32.gmra.mxu0 %v5994
        %v6135 = vpop.f32.mrf.mxu0
        %v6136 = vadd.f32 0.0, %v6135
        %v6137 = vpop.f32.mrf.mxu0
        %6138 = vmatprep.mubr.f32.mxu0 0.0
        %6139 = vmatmul.mubr.f32.gmra.mxu0 %v5997
        %v6140 = vpop.f32.mrf.mxu0
        %v6141 = vadd.f32 0.0, %v6140
        %v6142 = vpop.f32.mrf.mxu0
        %6143 = vdwg.mxu0
        %v6144 = vadd.f32 %v5914, %v6066
        %v6145 = vadd.f32 %v5915, %v6071
        %v6146 = vadd.f32 %v5916, %v6076
        %v6147 = vadd.f32 %v5917, %v6081
        %v6148 = vadd.f32 %v5918, %v6086
        %v6149 = vadd.f32 %v5919, %v6091
        %v6150 = vadd.f32 %v5920, %v6096
        %v6151 = vadd.f32 %v5921, %v6101
        %v6152 = vadd.f32 %v5922, %v6106
        %v6153 = vadd.f32 %v5923, %v6111
        %v6154 = vadd.f32 %v5924, %v6116
        %v6155 = vadd.f32 %v5925, %v6121
        %v6156 = vadd.f32 %v5926, %v6126
        %v6157 = vadd.f32 %v5927, %v6131
        %v6158 = vadd.f32 %v5928, %v6136
        %v6159 = vadd.f32 %v5929, %v6141
        %s6160 = scalar_lea.vmem [#allocation4], 48
        %v6161 = vld [vmem:[%s6160] sm:$0xff]
        %v6162 = vld [vmem:[%s6160 + $0x8] sm:$0xff]
        %v6163 = vld [vmem:[%s6160 + $0x10] sm:$0xff]
        %v6164 = vld [vmem:[%s6160 + $0x18] sm:$0xff]
        %v6165 = vld [vmem:[%s6160 + $0x30] sm:$0xff]
        %v6166 = vld [vmem:[%s6160 + $0x38] sm:$0xff]
        %v6167 = vld [vmem:[%s6160 + $0x40] sm:$0xff]
        %v6168 = vld [vmem:[%s6160 + $0x48] sm:$0xff]
        %v6169 = vld [vmem:[%s6160 + $0x60] sm:$0xff]
        %v6170 = vld [vmem:[%s6160 + $0x68] sm:$0xff]
        %v6171 = vld [vmem:[%s6160 + $0x70] sm:$0xff]
        %v6172 = vld [vmem:[%s6160 + $0x78] sm:$0xff]
        %v6173 = vld [vmem:[%s6160 + $0x90] sm:$0xff]
        %v6174 = vld [vmem:[%s6160 + $0x98] sm:$0xff]
        %v6175 = vld [vmem:[%s6160 + $0xa0] sm:$0xff]
        %v6176 = vld [vmem:[%s6160 + $0xa8] sm:$0xff]
        %v6177 = vld [vmem:[%s3 + $0x1e0] sm:$0xff]
        %v6178 = vld [vmem:[%s3 + $0x1e8] sm:$0xff]
        %v6179 = vld [vmem:[%s3 + $0x1f0] sm:$0xff]
        %v6180 = vld [vmem:[%s3 + $0x1f8] sm:$0xff]
        %v6182 = vsel %vm2573, %v6161, 0
        %v6185 = vsel %vm2573, %v6162, 0
        %v6188 = vsel %vm2573, %v6163, 0
        %v6191 = vsel %vm2573, %v6164, 0
        %v6194 = vsel %vm2573, %v6165, 0
        %v6197 = vsel %vm2573, %v6166, 0
        %v6200 = vsel %vm2573, %v6167, 0
        %v6203 = vsel %vm2573, %v6168, 0
        %v6206 = vsel %vm2573, %v6169, 0
        %v6209 = vsel %vm2573, %v6170, 0
        %v6212 = vsel %vm2573, %v6171, 0
        %v6215 = vsel %vm2573, %v6172, 0
        %v6218 = vsel %vm2573, %v6173, 0
        %v6221 = vsel %vm2573, %v6174, 0
        %v6224 = vsel %vm2573, %v6175, 0
        %v6227 = vsel %vm2573, %v6176, 0
        %6229 = vmatprep.subr.mxu0 0.0
        %6230 = vmatpush1.msra.mxu0 0.0
        %6231 = vmatprep.subr.mxu0 0.0
        %6232 = vmatpush1.msra.mxu0 0.0
        %6233 = vmatprep.subr.mxu0 0.0
        %6234 = vmatpush1.msra.mxu0 0.0
        %6235 = vmatprep.subr.mxu0 0.0
        %6236 = vmatpush1.msra.mxu0 0.0
        %6237 = vmatprep.subr.mxu0 0.0
        %6238 = vmatpush1.msra.mxu0 0.0
        %6239 = vmatprep.subr.mxu0 0.0
        %6240 = vmatpush1.msra.mxu0 0.0
        %6241 = vmatprep.subr.mxu0 0.0
        %6242 = vmatpush1.msra.mxu0 0.0
        %6243 = vmatprep.subr.mxu0 0.0
        %6244 = vmatpush1.msra.mxu0 0.0
        %6245 = vmatprep.subr.mxu0 0.0
        %6246 = vmatpush1.msra.mxu0 0.0
        %6247 = vmatprep.subr.mxu0 0.0
        %6248 = vmatpush1.msra.mxu0 0.0
        %6249 = vmatprep.subr.mxu0 0.0
        %6250 = vmatpush1.msra.mxu0 0.0
        %6251 = vmatprep.subr.mxu0 0.0
        %6252 = vmatpush1.msra.mxu0 0.0
        %6253 = vmatprep.subr.mxu0 0.0
        %6254 = vmatpush1.msra.mxu0 %v6180
        %6255 = vmatprep.subr.mxu0 0.0
        %6256 = vmatpush1.msra.mxu0 %v6179
        %6257 = vmatprep.subr.mxu0 0.0
        %6258 = vmatpush1.msra.mxu0 %v6178
        %6259 = vmatprep.subr.mxu0 0.0
        %6260 = vmatpush1.msra.mxu0 %v6177
        %6261 = vmatprep.subr.mxu0 0.0
        %6262 = vmatpush2.msra.mxu0 0.0
        %6263 = vmatprep.subr.mxu0 0.0
        %6264 = vmatpush2.msra.mxu0 0.0
        %6265 = vmatprep.subr.mxu0 0.0
        %6266 = vmatpush2.msra.mxu0 0.0
        %6267 = vmatprep.subr.mxu0 0.0
        %6268 = vmatpush2.msra.mxu0 0.0
        %6269 = vmatprep.subr.mxu0 0.0
        %6270 = vmatpush2.msra.mxu0 0.0
        %6271 = vmatprep.subr.mxu0 0.0
        %6272 = vmatpush2.msra.mxu0 0.0
        %6273 = vmatprep.subr.mxu0 0.0
        %6274 = vmatpush2.msra.mxu0 0.0
        %6275 = vmatprep.subr.mxu0 0.0
        %6276 = vmatpush2.msra.mxu0 0.0
        %6277 = vmatprep.subr.mxu0 0.0
        %6278 = vmatpush2.msra.mxu0 0.0
        %6279 = vmatprep.subr.mxu0 0.0
        %6280 = vmatpush2.msra.mxu0 0.0
        %6281 = vmatprep.subr.mxu0 0.0
        %6282 = vmatpush2.msra.mxu0 0.0
        %6283 = vmatprep.subr.mxu0 0.0
        %6284 = vmatpush2.msra.mxu0 0.0
        %6285 = vmatprep.subr.mxu0 0.0
        %6286 = vmatpush2.msra.mxu0 0.0
        %6287 = vmatprep.subr.mxu0 0.0
        %6288 = vmatpush2.msra.mxu0 0.0
        %6289 = vmatprep.subr.mxu0 0.0
        %6290 = vmatpush2.msra.mxu0 0.0
        %6291 = vmatprep.subr.mxu0 0.0
        %6292 = vmatpush2.msra.mxu0 0.0
        %6293 = vmatprep.mubr.f32.mxu0 0.0
        %6294 = vmatmul.mubr.f32.gmra.mxu0 %v6182
        %v6295 = vpop.f32.mrf.mxu0
        %v6296 = vadd.f32 0.0, %v6295
        %v6297 = vpop.f32.mrf.mxu0
        %6298 = vmatprep.mubr.f32.mxu0 0.0
        %6299 = vmatmul.mubr.f32.gmra.mxu0 %v6185
        %v6300 = vpop.f32.mrf.mxu0
        %v6301 = vadd.f32 0.0, %v6300
        %v6302 = vpop.f32.mrf.mxu0
        %6303 = vmatprep.mubr.f32.mxu0 0.0
        %6304 = vmatmul.mubr.f32.gmra.mxu0 %v6188
        %v6305 = vpop.f32.mrf.mxu0
        %v6306 = vadd.f32 0.0, %v6305
        %v6307 = vpop.f32.mrf.mxu0
        %6308 = vmatprep.mubr.f32.mxu0 0.0
        %6309 = vmatmul.mubr.f32.gmra.mxu0 %v6191
        %v6310 = vpop.f32.mrf.mxu0
        %v6311 = vadd.f32 0.0, %v6310
        %v6312 = vpop.f32.mrf.mxu0
        %6313 = vmatprep.mubr.f32.mxu0 0.0
        %6314 = vmatmul.mubr.f32.gmra.mxu0 %v6194
        %v6315 = vpop.f32.mrf.mxu0
        %v6316 = vadd.f32 0.0, %v6315
        %v6317 = vpop.f32.mrf.mxu0
        %6318 = vmatprep.mubr.f32.mxu0 0.0
        %6319 = vmatmul.mubr.f32.gmra.mxu0 %v6197
        %v6320 = vpop.f32.mrf.mxu0
        %v6321 = vadd.f32 0.0, %v6320
        %v6322 = vpop.f32.mrf.mxu0
        %6323 = vmatprep.mubr.f32.mxu0 0.0
        %6324 = vmatmul.mubr.f32.gmra.mxu0 %v6200
        %v6325 = vpop.f32.mrf.mxu0
        %v6326 = vadd.f32 0.0, %v6325
        %v6327 = vpop.f32.mrf.mxu0
        %6328 = vmatprep.mubr.f32.mxu0 0.0
        %6329 = vmatmul.mubr.f32.gmra.mxu0 %v6203
        %v6330 = vpop.f32.mrf.mxu0
        %v6331 = vadd.f32 0.0, %v6330
        %v6332 = vpop.f32.mrf.mxu0
        %6333 = vmatprep.mubr.f32.mxu0 0.0
        %6334 = vmatmul.mubr.f32.gmra.mxu0 %v6206
        %v6335 = vpop.f32.mrf.mxu0
        %v6336 = vadd.f32 0.0, %v6335
        %v6337 = vpop.f32.mrf.mxu0
        %6338 = vmatprep.mubr.f32.mxu0 0.0
        %6339 = vmatmul.mubr.f32.gmra.mxu0 %v6209
        %v6340 = vpop.f32.mrf.mxu0
        %v6341 = vadd.f32 0.0, %v6340
        %v6342 = vpop.f32.mrf.mxu0
        %6343 = vmatprep.mubr.f32.mxu0 0.0
        %6344 = vmatmul.mubr.f32.gmra.mxu0 %v6212
        %v6345 = vpop.f32.mrf.mxu0
        %v6346 = vadd.f32 0.0, %v6345
        %v6347 = vpop.f32.mrf.mxu0
        %6348 = vmatprep.mubr.f32.mxu0 0.0
        %6349 = vmatmul.mubr.f32.gmra.mxu0 %v6215
        %v6350 = vpop.f32.mrf.mxu0
        %v6351 = vadd.f32 0.0, %v6350
        %v6352 = vpop.f32.mrf.mxu0
        %6353 = vmatprep.mubr.f32.mxu0 0.0
        %6354 = vmatmul.mubr.f32.gmra.mxu0 %v6218
        %v6355 = vpop.f32.mrf.mxu0
        %v6356 = vadd.f32 0.0, %v6355
        %v6357 = vpop.f32.mrf.mxu0
        %6358 = vmatprep.mubr.f32.mxu0 0.0
        %6359 = vmatmul.mubr.f32.gmra.mxu0 %v6221
        %v6360 = vpop.f32.mrf.mxu0
        %v6361 = vadd.f32 0.0, %v6360
        %v6362 = vpop.f32.mrf.mxu0
        %6363 = vmatprep.mubr.f32.mxu0 0.0
        %6364 = vmatmul.mubr.f32.gmra.mxu0 %v6224
        %v6365 = vpop.f32.mrf.mxu0
        %v6366 = vadd.f32 0.0, %v6365
        %v6367 = vpop.f32.mrf.mxu0
        %6368 = vmatprep.mubr.f32.mxu0 0.0
        %6369 = vmatmul.mubr.f32.gmra.mxu0 %v6227
        %v6370 = vpop.f32.mrf.mxu0
        %v6371 = vadd.f32 0.0, %v6370
        %v6372 = vpop.f32.mrf.mxu0
        %6373 = vdwg.mxu0
        %v6374 = vadd.f32 %v6144, %v6296
        %v6375 = vadd.f32 %v6145, %v6301
        %v6376 = vadd.f32 %v6146, %v6306
        %v6377 = vadd.f32 %v6147, %v6311
        %v6378 = vadd.f32 %v6148, %v6316
        %v6379 = vadd.f32 %v6149, %v6321
        %v6380 = vadd.f32 %v6150, %v6326
        %v6381 = vadd.f32 %v6151, %v6331
        %v6382 = vadd.f32 %v6152, %v6336
        %v6383 = vadd.f32 %v6153, %v6341
        %v6384 = vadd.f32 %v6154, %v6346
        %v6385 = vadd.f32 %v6155, %v6351
        %v6386 = vadd.f32 %v6156, %v6356
        %v6387 = vadd.f32 %v6157, %v6361
        %v6388 = vadd.f32 %v6158, %v6366
        %v6389 = vadd.f32 %v6159, %v6371
        %s6390 = scalar_lea.vmem [#allocation5], 40
        %v6391 = vld [vmem:[%s6390] sm:$0xff]
        %v6392 = vld [vmem:[%s6390 + $0x8] sm:$0xff]
        %v6393 = vld [vmem:[%s6390 + $0x10] sm:$0xff]
        %v6394 = vld [vmem:[%s6390 + $0x18] sm:$0xff]
        %v6395 = vld [vmem:[%s6390 + $0x28] sm:$0xff]
        %v6396 = vld [vmem:[%s6390 + $0x30] sm:$0xff]
        %v6397 = vld [vmem:[%s6390 + $0x38] sm:$0xff]
        %v6398 = vld [vmem:[%s6390 + $0x40] sm:$0xff]
        %v6399 = vld [vmem:[%s6390 + $0x50] sm:$0xff]
        %v6400 = vld [vmem:[%s6390 + $0x58] sm:$0xff]
        %v6401 = vld [vmem:[%s6390 + $0x60] sm:$0xff]
        %v6402 = vld [vmem:[%s6390 + $0x68] sm:$0xff]
        %v6403 = vld [vmem:[%s6390 + $0x78] sm:$0xff]
        %v6404 = vld [vmem:[%s6390 + $0x80] sm:$0xff]
        %v6405 = vld [vmem:[%s6390 + $0x88] sm:$0xff]
        %v6406 = vld [vmem:[%s6390 + $0x90] sm:$0xff]
        %v6407 = vld [vmem:[%s3 + $0x200] sm:$0xff]
        %v6408 = vld [vmem:[%s3 + $0x208] sm:$0xff]
        %v6409 = vld [vmem:[%s3 + $0x210] sm:$0xff]
        %v6410 = vld [vmem:[%s3 + $0x218] sm:$0xff]
        %v6412 = vsel %vm2573, %v6391, 0
        %v6415 = vsel %vm2573, %v6392, 0
        %v6418 = vsel %vm2573, %v6393, 0
        %v6421 = vsel %vm2573, %v6394, 0
        %v6424 = vsel %vm2573, %v6395, 0
        %v6427 = vsel %vm2573, %v6396, 0
        %v6430 = vsel %vm2573, %v6397, 0
        %v6433 = vsel %vm2573, %v6398, 0
        %v6436 = vsel %vm2573, %v6399, 0
        %v6439 = vsel %vm2573, %v6400, 0
        %v6442 = vsel %vm2573, %v6401, 0
        %v6445 = vsel %vm2573, %v6402, 0
        %v6448 = vsel %vm2573, %v6403, 0
        %v6451 = vsel %vm2573, %v6404, 0
        %v6454 = vsel %vm2573, %v6405, 0
        %v6457 = vsel %vm2573, %v6406, 0
        %6459 = vmatprep.subr.mxu0 0.0
        %6460 = vmatpush1.msra.mxu0 0.0
        %6461 = vmatprep.subr.mxu0 0.0
        %6462 = vmatpush1.msra.mxu0 0.0
        %6463 = vmatprep.subr.mxu0 0.0
        %6464 = vmatpush1.msra.mxu0 0.0
        %6465 = vmatprep.subr.mxu0 0.0
        %6466 = vmatpush1.msra.mxu0 0.0
        %6467 = vmatprep.subr.mxu0 0.0
        %6468 = vmatpush1.msra.mxu0 0.0
        %6469 = vmatprep.subr.mxu0 0.0
        %6470 = vmatpush1.msra.mxu0 0.0
        %6471 = vmatprep.subr.mxu0 0.0
        %6472 = vmatpush1.msra.mxu0 0.0
        %6473 = vmatprep.subr.mxu0 0.0
        %6474 = vmatpush1.msra.mxu0 0.0
        %6475 = vmatprep.subr.mxu0 0.0
        %6476 = vmatpush1.msra.mxu0 0.0
        %6477 = vmatprep.subr.mxu0 0.0
        %6478 = vmatpush1.msra.mxu0 0.0
        %6479 = vmatprep.subr.mxu0 0.0
        %6480 = vmatpush1.msra.mxu0 0.0
        %6481 = vmatprep.subr.mxu0 0.0
        %6482 = vmatpush1.msra.mxu0 0.0
        %6483 = vmatprep.subr.mxu0 0.0
        %6484 = vmatpush1.msra.mxu0 %v6410
        %6485 = vmatprep.subr.mxu0 0.0
        %6486 = vmatpush1.msra.mxu0 %v6409
        %6487 = vmatprep.subr.mxu0 0.0
        %6488 = vmatpush1.msra.mxu0 %v6408
        %6489 = vmatprep.subr.mxu0 0.0
        %6490 = vmatpush1.msra.mxu0 %v6407
        %6491 = vmatprep.subr.mxu0 0.0
        %6492 = vmatpush2.msra.mxu0 0.0
        %6493 = vmatprep.subr.mxu0 0.0
        %6494 = vmatpush2.msra.mxu0 0.0
        %6495 = vmatprep.subr.mxu0 0.0
        %6496 = vmatpush2.msra.mxu0 0.0
        %6497 = vmatprep.subr.mxu0 0.0
        %6498 = vmatpush2.msra.mxu0 0.0
        %6499 = vmatprep.subr.mxu0 0.0
        %6500 = vmatpush2.msra.mxu0 0.0
        %6501 = vmatprep.subr.mxu0 0.0
        %6502 = vmatpush2.msra.mxu0 0.0
        %6503 = vmatprep.subr.mxu0 0.0
        %6504 = vmatpush2.msra.mxu0 0.0
        %6505 = vmatprep.subr.mxu0 0.0
        %6506 = vmatpush2.msra.mxu0 0.0
        %6507 = vmatprep.subr.mxu0 0.0
        %6508 = vmatpush2.msra.mxu0 0.0
        %6509 = vmatprep.subr.mxu0 0.0
        %6510 = vmatpush2.msra.mxu0 0.0
        %6511 = vmatprep.subr.mxu0 0.0
        %6512 = vmatpush2.msra.mxu0 0.0
        %6513 = vmatprep.subr.mxu0 0.0
        %6514 = vmatpush2.msra.mxu0 0.0
        %6515 = vmatprep.subr.mxu0 0.0
        %6516 = vmatpush2.msra.mxu0 0.0
        %6517 = vmatprep.subr.mxu0 0.0
        %6518 = vmatpush2.msra.mxu0 0.0
        %6519 = vmatprep.subr.mxu0 0.0
        %6520 = vmatpush2.msra.mxu0 0.0
        %6521 = vmatprep.subr.mxu0 0.0
        %6522 = vmatpush2.msra.mxu0 0.0
        %6523 = vmatprep.mubr.f32.mxu0 0.0
        %6524 = vmatmul.mubr.f32.gmra.mxu0 %v6412
        %v6525 = vpop.f32.mrf.mxu0
        %v6526 = vadd.f32 0.0, %v6525
        %v6527 = vpop.f32.mrf.mxu0
        %6528 = vmatprep.mubr.f32.mxu0 0.0
        %6529 = vmatmul.mubr.f32.gmra.mxu0 %v6415
        %v6530 = vpop.f32.mrf.mxu0
        %v6531 = vadd.f32 0.0, %v6530
        %v6532 = vpop.f32.mrf.mxu0
        %6533 = vmatprep.mubr.f32.mxu0 0.0
        %6534 = vmatmul.mubr.f32.gmra.mxu0 %v6418
        %v6535 = vpop.f32.mrf.mxu0
        %v6536 = vadd.f32 0.0, %v6535
        %v6537 = vpop.f32.mrf.mxu0
        %6538 = vmatprep.mubr.f32.mxu0 0.0
        %6539 = vmatmul.mubr.f32.gmra.mxu0 %v6421
        %v6540 = vpop.f32.mrf.mxu0
        %v6541 = vadd.f32 0.0, %v6540
        %v6542 = vpop.f32.mrf.mxu0
        %6543 = vmatprep.mubr.f32.mxu0 0.0
        %6544 = vmatmul.mubr.f32.gmra.mxu0 %v6424
        %v6545 = vpop.f32.mrf.mxu0
        %v6546 = vadd.f32 0.0, %v6545
        %v6547 = vpop.f32.mrf.mxu0
        %6548 = vmatprep.mubr.f32.mxu0 0.0
        %6549 = vmatmul.mubr.f32.gmra.mxu0 %v6427
        %v6550 = vpop.f32.mrf.mxu0
        %v6551 = vadd.f32 0.0, %v6550
        %v6552 = vpop.f32.mrf.mxu0
        %6553 = vmatprep.mubr.f32.mxu0 0.0
        %6554 = vmatmul.mubr.f32.gmra.mxu0 %v6430
        %v6555 = vpop.f32.mrf.mxu0
        %v6556 = vadd.f32 0.0, %v6555
        %v6557 = vpop.f32.mrf.mxu0
        %6558 = vmatprep.mubr.f32.mxu0 0.0
        %6559 = vmatmul.mubr.f32.gmra.mxu0 %v6433
        %v6560 = vpop.f32.mrf.mxu0
        %v6561 = vadd.f32 0.0, %v6560
        %v6562 = vpop.f32.mrf.mxu0
        %6563 = vmatprep.mubr.f32.mxu0 0.0
        %6564 = vmatmul.mubr.f32.gmra.mxu0 %v6436
        %v6565 = vpop.f32.mrf.mxu0
        %v6566 = vadd.f32 0.0, %v6565
        %v6567 = vpop.f32.mrf.mxu0
        %6568 = vmatprep.mubr.f32.mxu0 0.0
        %6569 = vmatmul.mubr.f32.gmra.mxu0 %v6439
        %v6570 = vpop.f32.mrf.mxu0
        %v6571 = vadd.f32 0.0, %v6570
        %v6572 = vpop.f32.mrf.mxu0
        %6573 = vmatprep.mubr.f32.mxu0 0.0
        %6574 = vmatmul.mubr.f32.gmra.mxu0 %v6442
        %v6575 = vpop.f32.mrf.mxu0
        %v6576 = vadd.f32 0.0, %v6575
        %v6577 = vpop.f32.mrf.mxu0
        %6578 = vmatprep.mubr.f32.mxu0 0.0
        %6579 = vmatmul.mubr.f32.gmra.mxu0 %v6445
        %v6580 = vpop.f32.mrf.mxu0
        %v6581 = vadd.f32 0.0, %v6580
        %v6582 = vpop.f32.mrf.mxu0
        %6583 = vmatprep.mubr.f32.mxu0 0.0
        %6584 = vmatmul.mubr.f32.gmra.mxu0 %v6448
        %v6585 = vpop.f32.mrf.mxu0
        %v6586 = vadd.f32 0.0, %v6585
        %v6587 = vpop.f32.mrf.mxu0
        %6588 = vmatprep.mubr.f32.mxu0 0.0
        %6589 = vmatmul.mubr.f32.gmra.mxu0 %v6451
        %v6590 = vpop.f32.mrf.mxu0
        %v6591 = vadd.f32 0.0, %v6590
        %v6592 = vpop.f32.mrf.mxu0
        %6593 = vmatprep.mubr.f32.mxu0 0.0
        %6594 = vmatmul.mubr.f32.gmra.mxu0 %v6454
        %v6595 = vpop.f32.mrf.mxu0
        %v6596 = vadd.f32 0.0, %v6595
        %v6597 = vpop.f32.mrf.mxu0
        %6598 = vmatprep.mubr.f32.mxu0 0.0
        %6599 = vmatmul.mubr.f32.gmra.mxu0 %v6457
        %v6600 = vpop.f32.mrf.mxu0
        %v6601 = vadd.f32 0.0, %v6600
        %v6602 = vpop.f32.mrf.mxu0
        %6603 = vdwg.mxu0
        %v6604 = vadd.f32 %v6374, %v6526
        %v6605 = vadd.f32 %v6375, %v6531
        %v6606 = vadd.f32 %v6376, %v6536
        %v6607 = vadd.f32 %v6377, %v6541
        %v6608 = vadd.f32 %v6378, %v6546
        %v6609 = vadd.f32 %v6379, %v6551
        %v6610 = vadd.f32 %v6380, %v6556
        %v6611 = vadd.f32 %v6381, %v6561
        %v6612 = vadd.f32 %v6382, %v6566
        %v6613 = vadd.f32 %v6383, %v6571
        %v6614 = vadd.f32 %v6384, %v6576
        %v6615 = vadd.f32 %v6385, %v6581
        %v6616 = vadd.f32 %v6386, %v6586
        %v6617 = vadd.f32 %v6387, %v6591
        %v6618 = vadd.f32 %v6388, %v6596
        %v6619 = vadd.f32 %v6389, %v6601
        %v6620 = vld [vmem:[%s2725] sm:$0xff]
        %v6621 = vld [vmem:[%s2725 + $0x8] sm:$0xff]
        %v6622 = vld [vmem:[%s2725 + $0x10] sm:$0xff]
        %v6623 = vld [vmem:[%s2725 + $0x18] sm:$0xff]
        %v6624 = vld [vmem:[%s2725 + $0x30] sm:$0xff]
        %v6625 = vld [vmem:[%s2725 + $0x38] sm:$0xff]
        %v6626 = vld [vmem:[%s2725 + $0x40] sm:$0xff]
        %v6627 = vld [vmem:[%s2725 + $0x48] sm:$0xff]
        %v6628 = vld [vmem:[%s2725 + $0x60] sm:$0xff]
        %v6629 = vld [vmem:[%s2725 + $0x68] sm:$0xff]
        %v6630 = vld [vmem:[%s2725 + $0x70] sm:$0xff]
        %v6631 = vld [vmem:[%s2725 + $0x78] sm:$0xff]
        %v6632 = vld [vmem:[%s2725 + $0x90] sm:$0xff]
        %v6633 = vld [vmem:[%s2725 + $0x98] sm:$0xff]
        %v6634 = vld [vmem:[%s2725 + $0xa0] sm:$0xff]
        %v6635 = vld [vmem:[%s2725 + $0xa8] sm:$0xff]
        %v6636 = vld [vmem:[%s3 + $0x220] sm:$0xff]
        %v6637 = vld [vmem:[%s3 + $0x228] sm:$0xff]
        %v6638 = vld [vmem:[%s3 + $0x230] sm:$0xff]
        %v6639 = vld [vmem:[%s3 + $0x238] sm:$0xff]
        %v6641 = vsel %vm2573, %v6620, 0
        %v6644 = vsel %vm2573, %v6621, 0
        %v6647 = vsel %vm2573, %v6622, 0
        %v6650 = vsel %vm2573, %v6623, 0
        %v6653 = vsel %vm2573, %v6624, 0
        %v6656 = vsel %vm2573, %v6625, 0
        %v6659 = vsel %vm2573, %v6626, 0
        %v6662 = vsel %vm2573, %v6627, 0
        %v6665 = vsel %vm2573, %v6628, 0
        %v6668 = vsel %vm2573, %v6629, 0
        %v6671 = vsel %vm2573, %v6630, 0
        %v6674 = vsel %vm2573, %v6631, 0
        %v6677 = vsel %vm2573, %v6632, 0
        %v6680 = vsel %vm2573, %v6633, 0
        %v6683 = vsel %vm2573, %v6634, 0
        %v6686 = vsel %vm2573, %v6635, 0
        %6688 = vmatprep.subr.mxu0 0.0
        %6689 = vmatpush1.msra.mxu0 0.0
        %6690 = vmatprep.subr.mxu0 0.0
        %6691 = vmatpush1.msra.mxu0 0.0
        %6692 = vmatprep.subr.mxu0 0.0
        %6693 = vmatpush1.msra.mxu0 0.0
        %6694 = vmatprep.subr.mxu0 0.0
        %6695 = vmatpush1.msra.mxu0 0.0
        %6696 = vmatprep.subr.mxu0 0.0
        %6697 = vmatpush1.msra.mxu0 0.0
        %6698 = vmatprep.subr.mxu0 0.0
        %6699 = vmatpush1.msra.mxu0 0.0
        %6700 = vmatprep.subr.mxu0 0.0
        %6701 = vmatpush1.msra.mxu0 0.0
        %6702 = vmatprep.subr.mxu0 0.0
        %6703 = vmatpush1.msra.mxu0 0.0
        %6704 = vmatprep.subr.mxu0 0.0
        %6705 = vmatpush1.msra.mxu0 0.0
        %6706 = vmatprep.subr.mxu0 0.0
        %6707 = vmatpush1.msra.mxu0 0.0
        %6708 = vmatprep.subr.mxu0 0.0
        %6709 = vmatpush1.msra.mxu0 0.0
        %6710 = vmatprep.subr.mxu0 0.0
        %6711 = vmatpush1.msra.mxu0 0.0
        %6712 = vmatprep.subr.mxu0 0.0
        %6713 = vmatpush1.msra.mxu0 %v6639
        %6714 = vmatprep.subr.mxu0 0.0
        %6715 = vmatpush1.msra.mxu0 %v6638
        %6716 = vmatprep.subr.mxu0 0.0
        %6717 = vmatpush1.msra.mxu0 %v6637
        %6718 = vmatprep.subr.mxu0 0.0
        %6719 = vmatpush1.msra.mxu0 %v6636
        %6720 = vmatprep.subr.mxu0 0.0
        %6721 = vmatpush2.msra.mxu0 0.0
        %6722 = vmatprep.subr.mxu0 0.0
        %6723 = vmatpush2.msra.mxu0 0.0
        %6724 = vmatprep.subr.mxu0 0.0
        %6725 = vmatpush2.msra.mxu0 0.0
        %6726 = vmatprep.subr.mxu0 0.0
        %6727 = vmatpush2.msra.mxu0 0.0
        %6728 = vmatprep.subr.mxu0 0.0
        %6729 = vmatpush2.msra.mxu0 0.0
        %6730 = vmatprep.subr.mxu0 0.0
        %6731 = vmatpush2.msra.mxu0 0.0
        %6732 = vmatprep.subr.mxu0 0.0
        %6733 = vmatpush2.msra.mxu0 0.0
        %6734 = vmatprep.subr.mxu0 0.0
        %6735 = vmatpush2.msra.mxu0 0.0
        %6736 = vmatprep.subr.mxu0 0.0
        %6737 = vmatpush2.msra.mxu0 0.0
        %6738 = vmatprep.subr.mxu0 0.0
        %6739 = vmatpush2.msra.mxu0 0.0
        %6740 = vmatprep.subr.mxu0 0.0
        %6741 = vmatpush2.msra.mxu0 0.0
        %6742 = vmatprep.subr.mxu0 0.0
        %6743 = vmatpush2.msra.mxu0 0.0
        %6744 = vmatprep.subr.mxu0 0.0
        %6745 = vmatpush2.msra.mxu0 0.0
        %6746 = vmatprep.subr.mxu0 0.0
        %6747 = vmatpush2.msra.mxu0 0.0
        %6748 = vmatprep.subr.mxu0 0.0
        %6749 = vmatpush2.msra.mxu0 0.0
        %6750 = vmatprep.subr.mxu0 0.0
        %6751 = vmatpush2.msra.mxu0 0.0
        %6752 = vmatprep.mubr.f32.mxu0 0.0
        %6753 = vmatmul.mubr.f32.gmra.mxu0 %v6641
        %v6754 = vpop.f32.mrf.mxu0
        %v6755 = vadd.f32 0.0, %v6754
        %v6756 = vpop.f32.mrf.mxu0
        %6757 = vmatprep.mubr.f32.mxu0 0.0
        %6758 = vmatmul.mubr.f32.gmra.mxu0 %v6644
        %v6759 = vpop.f32.mrf.mxu0
        %v6760 = vadd.f32 0.0, %v6759
        %v6761 = vpop.f32.mrf.mxu0
        %6762 = vmatprep.mubr.f32.mxu0 0.0
        %6763 = vmatmul.mubr.f32.gmra.mxu0 %v6647
        %v6764 = vpop.f32.mrf.mxu0
        %v6765 = vadd.f32 0.0, %v6764
        %v6766 = vpop.f32.mrf.mxu0
        %6767 = vmatprep.mubr.f32.mxu0 0.0
        %6768 = vmatmul.mubr.f32.gmra.mxu0 %v6650
        %v6769 = vpop.f32.mrf.mxu0
        %v6770 = vadd.f32 0.0, %v6769
        %v6771 = vpop.f32.mrf.mxu0
        %6772 = vmatprep.mubr.f32.mxu0 0.0
        %6773 = vmatmul.mubr.f32.gmra.mxu0 %v6653
        %v6774 = vpop.f32.mrf.mxu0
        %v6775 = vadd.f32 0.0, %v6774
        %v6776 = vpop.f32.mrf.mxu0
        %6777 = vmatprep.mubr.f32.mxu0 0.0
        %6778 = vmatmul.mubr.f32.gmra.mxu0 %v6656
        %v6779 = vpop.f32.mrf.mxu0
        %v6780 = vadd.f32 0.0, %v6779
        %v6781 = vpop.f32.mrf.mxu0
        %6782 = vmatprep.mubr.f32.mxu0 0.0
        %6783 = vmatmul.mubr.f32.gmra.mxu0 %v6659
        %v6784 = vpop.f32.mrf.mxu0
        %v6785 = vadd.f32 0.0, %v6784
        %v6786 = vpop.f32.mrf.mxu0
        %6787 = vmatprep.mubr.f32.mxu0 0.0
        %6788 = vmatmul.mubr.f32.gmra.mxu0 %v6662
        %v6789 = vpop.f32.mrf.mxu0
        %v6790 = vadd.f32 0.0, %v6789
        %v6791 = vpop.f32.mrf.mxu0
        %6792 = vmatprep.mubr.f32.mxu0 0.0
        %6793 = vmatmul.mubr.f32.gmra.mxu0 %v6665
        %v6794 = vpop.f32.mrf.mxu0
        %v6795 = vadd.f32 0.0, %v6794
        %v6796 = vpop.f32.mrf.mxu0
        %6797 = vmatprep.mubr.f32.mxu0 0.0
        %6798 = vmatmul.mubr.f32.gmra.mxu0 %v6668
        %v6799 = vpop.f32.mrf.mxu0
        %v6800 = vadd.f32 0.0, %v6799
        %v6801 = vpop.f32.mrf.mxu0
        %6802 = vmatprep.mubr.f32.mxu0 0.0
        %6803 = vmatmul.mubr.f32.gmra.mxu0 %v6671
        %v6804 = vpop.f32.mrf.mxu0
        %v6805 = vadd.f32 0.0, %v6804
        %v6806 = vpop.f32.mrf.mxu0
        %6807 = vmatprep.mubr.f32.mxu0 0.0
        %6808 = vmatmul.mubr.f32.gmra.mxu0 %v6674
        %v6809 = vpop.f32.mrf.mxu0
        %v6810 = vadd.f32 0.0, %v6809
        %v6811 = vpop.f32.mrf.mxu0
        %6812 = vmatprep.mubr.f32.mxu0 0.0
        %6813 = vmatmul.mubr.f32.gmra.mxu0 %v6677
        %v6814 = vpop.f32.mrf.mxu0
        %v6815 = vadd.f32 0.0, %v6814
        %v6816 = vpop.f32.mrf.mxu0
        %6817 = vmatprep.mubr.f32.mxu0 0.0
        %6818 = vmatmul.mubr.f32.gmra.mxu0 %v6680
        %v6819 = vpop.f32.mrf.mxu0
        %v6820 = vadd.f32 0.0, %v6819
        %v6821 = vpop.f32.mrf.mxu0
        %6822 = vmatprep.mubr.f32.mxu0 0.0
        %6823 = vmatmul.mubr.f32.gmra.mxu0 %v6683
        %v6824 = vpop.f32.mrf.mxu0
        %v6825 = vadd.f32 0.0, %v6824
        %v6826 = vpop.f32.mrf.mxu0
        %6827 = vmatprep.mubr.f32.mxu0 0.0
        %6828 = vmatmul.mubr.f32.gmra.mxu0 %v6686
        %v6829 = vpop.f32.mrf.mxu0
        %v6830 = vadd.f32 0.0, %v6829
        %v6831 = vpop.f32.mrf.mxu0
        %6832 = vdwg.mxu0
        %v6833 = vadd.f32 %v6604, %v6755
        %v6834 = vadd.f32 %v6605, %v6760
        %v6835 = vadd.f32 %v6606, %v6765
        %v6836 = vadd.f32 %v6607, %v6770
        %v6837 = vadd.f32 %v6608, %v6775
        %v6838 = vadd.f32 %v6609, %v6780
        %v6839 = vadd.f32 %v6610, %v6785
        %v6840 = vadd.f32 %v6611, %v6790
        %v6841 = vadd.f32 %v6612, %v6795
        %v6842 = vadd.f32 %v6613, %v6800
        %v6843 = vadd.f32 %v6614, %v6805
        %v6844 = vadd.f32 %v6615, %v6810
        %v6845 = vadd.f32 %v6616, %v6815
        %v6846 = vadd.f32 %v6617, %v6820
        %v6847 = vadd.f32 %v6618, %v6825
        %v6848 = vadd.f32 %v6619, %v6830
        %v6849 = vld [vmem:[%s2738] sm:$0xff]
        %v6850 = vld [vmem:[%s2738 + $0x8] sm:$0xff]
        %v6851 = vld [vmem:[%s2738 + $0x10] sm:$0xff]
        %v6852 = vld [vmem:[%s2738 + $0x18] sm:$0xff]
        %v6853 = vld [vmem:[%s2738 + $0x28] sm:$0xff]
        %v6854 = vld [vmem:[%s2738 + $0x30] sm:$0xff]
        %v6855 = vld [vmem:[%s2738 + $0x38] sm:$0xff]
        %v6856 = vld [vmem:[%s2738 + $0x40] sm:$0xff]
        %v6857 = vld [vmem:[%s2738 + $0x50] sm:$0xff]
        %v6858 = vld [vmem:[%s2738 + $0x58] sm:$0xff]
        %v6859 = vld [vmem:[%s2738 + $0x60] sm:$0xff]
        %v6860 = vld [vmem:[%s2738 + $0x68] sm:$0xff]
        %v6861 = vld [vmem:[%s2738 + $0x78] sm:$0xff]
        %v6862 = vld [vmem:[%s2738 + $0x80] sm:$0xff]
        %v6863 = vld [vmem:[%s2738 + $0x88] sm:$0xff]
        %v6864 = vld [vmem:[%s2738 + $0x90] sm:$0xff]
        %v6865 = vld [vmem:[%s3 + $0x240] sm:$0xff]
        %v6866 = vld [vmem:[%s3 + $0x248] sm:$0xff]
        %v6867 = vld [vmem:[%s3 + $0x250] sm:$0xff]
        %v6868 = vld [vmem:[%s3 + $0x258] sm:$0xff]
        %v6870 = vsel %vm2573, %v6849, 0
        %v6873 = vsel %vm2573, %v6850, 0
        %v6876 = vsel %vm2573, %v6851, 0
        %v6879 = vsel %vm2573, %v6852, 0
        %v6882 = vsel %vm2573, %v6853, 0
        %v6885 = vsel %vm2573, %v6854, 0
        %v6888 = vsel %vm2573, %v6855, 0
        %v6891 = vsel %vm2573, %v6856, 0
        %v6894 = vsel %vm2573, %v6857, 0
        %v6897 = vsel %vm2573, %v6858, 0
        %v6900 = vsel %vm2573, %v6859, 0
        %v6903 = vsel %vm2573, %v6860, 0
        %v6906 = vsel %vm2573, %v6861, 0
        %v6909 = vsel %vm2573, %v6862, 0
        %v6912 = vsel %vm2573, %v6863, 0
        %v6915 = vsel %vm2573, %v6864, 0
        %6917 = vmatprep.subr.mxu0 0.0
        %6918 = vmatpush1.msra.mxu0 0.0
        %6919 = vmatprep.subr.mxu0 0.0
        %6920 = vmatpush1.msra.mxu0 0.0
        %6921 = vmatprep.subr.mxu0 0.0
        %6922 = vmatpush1.msra.mxu0 0.0
        %6923 = vmatprep.subr.mxu0 0.0
        %6924 = vmatpush1.msra.mxu0 0.0
        %6925 = vmatprep.subr.mxu0 0.0
        %6926 = vmatpush1.msra.mxu0 0.0
        %6927 = vmatprep.subr.mxu0 0.0
        %6928 = vmatpush1.msra.mxu0 0.0
        %6929 = vmatprep.subr.mxu0 0.0
        %6930 = vmatpush1.msra.mxu0 0.0
        %6931 = vmatprep.subr.mxu0 0.0
        %6932 = vmatpush1.msra.mxu0 0.0
        %6933 = vmatprep.subr.mxu0 0.0
        %6934 = vmatpush1.msra.mxu0 0.0
        %6935 = vmatprep.subr.mxu0 0.0
        %6936 = vmatpush1.msra.mxu0 0.0
        %6937 = vmatprep.subr.mxu0 0.0
        %6938 = vmatpush1.msra.mxu0 0.0
        %6939 = vmatprep.subr.mxu0 0.0
        %6940 = vmatpush1.msra.mxu0 0.0
        %6941 = vmatprep.subr.mxu0 0.0
        %6942 = vmatpush1.msra.mxu0 %v6868
        %6943 = vmatprep.subr.mxu0 0.0
        %6944 = vmatpush1.msra.mxu0 %v6867
        %6945 = vmatprep.subr.mxu0 0.0
        %6946 = vmatpush1.msra.mxu0 %v6866
        %6947 = vmatprep.subr.mxu0 0.0
        %6948 = vmatpush1.msra.mxu0 %v6865
        %6949 = vmatprep.subr.mxu0 0.0
        %6950 = vmatpush2.msra.mxu0 0.0
        %6951 = vmatprep.subr.mxu0 0.0
        %6952 = vmatpush2.msra.mxu0 0.0
        %6953 = vmatprep.subr.mxu0 0.0
        %6954 = vmatpush2.msra.mxu0 0.0
        %6955 = vmatprep.subr.mxu0 0.0
        %6956 = vmatpush2.msra.mxu0 0.0
        %6957 = vmatprep.subr.mxu0 0.0
        %6958 = vmatpush2.msra.mxu0 0.0
        %6959 = vmatprep.subr.mxu0 0.0
        %6960 = vmatpush2.msra.mxu0 0.0
        %6961 = vmatprep.subr.mxu0 0.0
        %6962 = vmatpush2.msra.mxu0 0.0
        %6963 = vmatprep.subr.mxu0 0.0
        %6964 = vmatpush2.msra.mxu0 0.0
        %6965 = vmatprep.subr.mxu0 0.0
        %6966 = vmatpush2.msra.mxu0 0.0
        %6967 = vmatprep.subr.mxu0 0.0
        %6968 = vmatpush2.msra.mxu0 0.0
        %6969 = vmatprep.subr.mxu0 0.0
        %6970 = vmatpush2.msra.mxu0 0.0
        %6971 = vmatprep.subr.mxu0 0.0
        %6972 = vmatpush2.msra.mxu0 0.0
        %6973 = vmatprep.subr.mxu0 0.0
        %6974 = vmatpush2.msra.mxu0 0.0
        %6975 = vmatprep.subr.mxu0 0.0
        %6976 = vmatpush2.msra.mxu0 0.0
        %6977 = vmatprep.subr.mxu0 0.0
        %6978 = vmatpush2.msra.mxu0 0.0
        %6979 = vmatprep.subr.mxu0 0.0
        %6980 = vmatpush2.msra.mxu0 0.0
        %6981 = vmatprep.mubr.f32.mxu0 0.0
        %6982 = vmatmul.mubr.f32.gmra.mxu0 %v6870
        %v6983 = vpop.f32.mrf.mxu0
        %v6984 = vadd.f32 0.0, %v6983
        %v6985 = vpop.f32.mrf.mxu0
        %6986 = vmatprep.mubr.f32.mxu0 0.0
        %6987 = vmatmul.mubr.f32.gmra.mxu0 %v6873
        %v6988 = vpop.f32.mrf.mxu0
        %v6989 = vadd.f32 0.0, %v6988
        %v6990 = vpop.f32.mrf.mxu0
        %6991 = vmatprep.mubr.f32.mxu0 0.0
        %6992 = vmatmul.mubr.f32.gmra.mxu0 %v6876
        %v6993 = vpop.f32.mrf.mxu0
        %v6994 = vadd.f32 0.0, %v6993
        %v6995 = vpop.f32.mrf.mxu0
        %6996 = vmatprep.mubr.f32.mxu0 0.0
        %6997 = vmatmul.mubr.f32.gmra.mxu0 %v6879
        %v6998 = vpop.f32.mrf.mxu0
        %v6999 = vadd.f32 0.0, %v6998
        %v7000 = vpop.f32.mrf.mxu0
        %7001 = vmatprep.mubr.f32.mxu0 0.0
        %7002 = vmatmul.mubr.f32.gmra.mxu0 %v6882
        %v7003 = vpop.f32.mrf.mxu0
        %v7004 = vadd.f32 0.0, %v7003
        %v7005 = vpop.f32.mrf.mxu0
        %7006 = vmatprep.mubr.f32.mxu0 0.0
        %7007 = vmatmul.mubr.f32.gmra.mxu0 %v6885
        %v7008 = vpop.f32.mrf.mxu0
        %v7009 = vadd.f32 0.0, %v7008
        %v7010 = vpop.f32.mrf.mxu0
        %7011 = vmatprep.mubr.f32.mxu0 0.0
        %7012 = vmatmul.mubr.f32.gmra.mxu0 %v6888
        %v7013 = vpop.f32.mrf.mxu0
        %v7014 = vadd.f32 0.0, %v7013
        %v7015 = vpop.f32.mrf.mxu0
        %7016 = vmatprep.mubr.f32.mxu0 0.0
        %7017 = vmatmul.mubr.f32.gmra.mxu0 %v6891
        %v7018 = vpop.f32.mrf.mxu0
        %v7019 = vadd.f32 0.0, %v7018
        %v7020 = vpop.f32.mrf.mxu0
        %7021 = vmatprep.mubr.f32.mxu0 0.0
        %7022 = vmatmul.mubr.f32.gmra.mxu0 %v6894
        %v7023 = vpop.f32.mrf.mxu0
        %v7024 = vadd.f32 0.0, %v7023
        %v7025 = vpop.f32.mrf.mxu0
        %7026 = vmatprep.mubr.f32.mxu0 0.0
        %7027 = vmatmul.mubr.f32.gmra.mxu0 %v6897
        %v7028 = vpop.f32.mrf.mxu0
        %v7029 = vadd.f32 0.0, %v7028
        %v7030 = vpop.f32.mrf.mxu0
        %7031 = vmatprep.mubr.f32.mxu0 0.0
        %7032 = vmatmul.mubr.f32.gmra.mxu0 %v6900
        %v7033 = vpop.f32.mrf.mxu0
        %v7034 = vadd.f32 0.0, %v7033
        %v7035 = vpop.f32.mrf.mxu0
        %7036 = vmatprep.mubr.f32.mxu0 0.0
        %7037 = vmatmul.mubr.f32.gmra.mxu0 %v6903
        %v7038 = vpop.f32.mrf.mxu0
        %v7039 = vadd.f32 0.0, %v7038
        %v7040 = vpop.f32.mrf.mxu0
        %7041 = vmatprep.mubr.f32.mxu0 0.0
        %7042 = vmatmul.mubr.f32.gmra.mxu0 %v6906
        %v7043 = vpop.f32.mrf.mxu0
        %v7044 = vadd.f32 0.0, %v7043
        %v7045 = vpop.f32.mrf.mxu0
        %7046 = vmatprep.mubr.f32.mxu0 0.0
        %7047 = vmatmul.mubr.f32.gmra.mxu0 %v6909
        %v7048 = vpop.f32.mrf.mxu0
        %v7049 = vadd.f32 0.0, %v7048
        %v7050 = vpop.f32.mrf.mxu0
        %7051 = vmatprep.mubr.f32.mxu0 0.0
        %7052 = vmatmul.mubr.f32.gmra.mxu0 %v6912
        %v7053 = vpop.f32.mrf.mxu0
        %v7054 = vadd.f32 0.0, %v7053
        %v7055 = vpop.f32.mrf.mxu0
        %7056 = vmatprep.mubr.f32.mxu0 0.0
        %7057 = vmatmul.mubr.f32.gmra.mxu0 %v6915
        %v7058 = vpop.f32.mrf.mxu0
        %v7059 = vadd.f32 0.0, %v7058
        %v7060 = vpop.f32.mrf.mxu0
        %7061 = vdwg.mxu0
        %v7062 = vadd.f32 %v6833, %v6984
        %v7063 = vadd.f32 %v6834, %v6989
        %v7064 = vadd.f32 %v6835, %v6994
        %v7065 = vadd.f32 %v6836, %v6999
        %v7066 = vadd.f32 %v6837, %v7004
        %v7067 = vadd.f32 %v6838, %v7009
        %v7068 = vadd.f32 %v6839, %v7014
        %v7069 = vadd.f32 %v6840, %v7019
        %v7070 = vadd.f32 %v6841, %v7024
        %v7071 = vadd.f32 %v6842, %v7029
        %v7072 = vadd.f32 %v6843, %v7034
        %v7073 = vadd.f32 %v6844, %v7039
        %v7074 = vadd.f32 %v6845, %v7044
        %v7075 = vadd.f32 %v6846, %v7049
        %v7076 = vadd.f32 %v6847, %v7054
        %v7077 = vadd.f32 %v6848, %v7059
        %s7078 = scalar_lea.vmem [#allocation4], 64
        %v7079 = vld [vmem:[%s7078] sm:$0xff]
        %v7080 = vld [vmem:[%s7078 + $0x8] sm:$0xff]
        %v7081 = vld [vmem:[%s7078 + $0x10] sm:$0xff]
        %v7082 = vld [vmem:[%s7078 + $0x18] sm:$0xff]
        %v7083 = vld [vmem:[%s7078 + $0x30] sm:$0xff]
        %v7084 = vld [vmem:[%s7078 + $0x38] sm:$0xff]
        %v7085 = vld [vmem:[%s7078 + $0x40] sm:$0xff]
        %v7086 = vld [vmem:[%s7078 + $0x48] sm:$0xff]
        %v7087 = vld [vmem:[%s7078 + $0x60] sm:$0xff]
        %v7088 = vld [vmem:[%s7078 + $0x68] sm:$0xff]
        %v7089 = vld [vmem:[%s7078 + $0x70] sm:$0xff]
        %v7090 = vld [vmem:[%s7078 + $0x78] sm:$0xff]
        %v7091 = vld [vmem:[%s7078 + $0x90] sm:$0xff]
        %v7092 = vld [vmem:[%s7078 + $0x98] sm:$0xff]
        %v7093 = vld [vmem:[%s7078 + $0xa0] sm:$0xff]
        %v7094 = vld [vmem:[%s7078 + $0xa8] sm:$0xff]
        %v7095 = vld [vmem:[%s3 + $0x260] sm:$0xff]
        %v7096 = vld [vmem:[%s3 + $0x268] sm:$0xff]
        %v7097 = vld [vmem:[%s3 + $0x270] sm:$0xff]
        %v7098 = vld [vmem:[%s3 + $0x278] sm:$0xff]
        %v7100 = vsel %vm2573, %v7079, 0
        %v7103 = vsel %vm2573, %v7080, 0
        %v7106 = vsel %vm2573, %v7081, 0
        %v7109 = vsel %vm2573, %v7082, 0
        %v7112 = vsel %vm2573, %v7083, 0
        %v7115 = vsel %vm2573, %v7084, 0
        %v7118 = vsel %vm2573, %v7085, 0
        %v7121 = vsel %vm2573, %v7086, 0
        %v7124 = vsel %vm2573, %v7087, 0
        %v7127 = vsel %vm2573, %v7088, 0
        %v7130 = vsel %vm2573, %v7089, 0
        %v7133 = vsel %vm2573, %v7090, 0
        %v7136 = vsel %vm2573, %v7091, 0
        %v7139 = vsel %vm2573, %v7092, 0
        %v7142 = vsel %vm2573, %v7093, 0
        %v7145 = vsel %vm2573, %v7094, 0
        %7147 = vmatprep.subr.mxu0 0.0
        %7148 = vmatpush1.msra.mxu0 0.0
        %7149 = vmatprep.subr.mxu0 0.0
        %7150 = vmatpush1.msra.mxu0 0.0
        %7151 = vmatprep.subr.mxu0 0.0
        %7152 = vmatpush1.msra.mxu0 0.0
        %7153 = vmatprep.subr.mxu0 0.0
        %7154 = vmatpush1.msra.mxu0 0.0
        %7155 = vmatprep.subr.mxu0 0.0
        %7156 = vmatpush1.msra.mxu0 0.0
        %7157 = vmatprep.subr.mxu0 0.0
        %7158 = vmatpush1.msra.mxu0 0.0
        %7159 = vmatprep.subr.mxu0 0.0
        %7160 = vmatpush1.msra.mxu0 0.0
        %7161 = vmatprep.subr.mxu0 0.0
        %7162 = vmatpush1.msra.mxu0 0.0
        %7163 = vmatprep.subr.mxu0 0.0
        %7164 = vmatpush1.msra.mxu0 0.0
        %7165 = vmatprep.subr.mxu0 0.0
        %7166 = vmatpush1.msra.mxu0 0.0
        %7167 = vmatprep.subr.mxu0 0.0
        %7168 = vmatpush1.msra.mxu0 0.0
        %7169 = vmatprep.subr.mxu0 0.0
        %7170 = vmatpush1.msra.mxu0 0.0
        %7171 = vmatprep.subr.mxu0 0.0
        %7172 = vmatpush1.msra.mxu0 %v7098
        %7173 = vmatprep.subr.mxu0 0.0
        %7174 = vmatpush1.msra.mxu0 %v7097
        %7175 = vmatprep.subr.mxu0 0.0
        %7176 = vmatpush1.msra.mxu0 %v7096
        %7177 = vmatprep.subr.mxu0 0.0
        %7178 = vmatpush1.msra.mxu0 %v7095
        %7179 = vmatprep.subr.mxu0 0.0
        %7180 = vmatpush2.msra.mxu0 0.0
        %7181 = vmatprep.subr.mxu0 0.0
        %7182 = vmatpush2.msra.mxu0 0.0
        %7183 = vmatprep.subr.mxu0 0.0
        %7184 = vmatpush2.msra.mxu0 0.0
        %7185 = vmatprep.subr.mxu0 0.0
        %7186 = vmatpush2.msra.mxu0 0.0
        %7187 = vmatprep.subr.mxu0 0.0
        %7188 = vmatpush2.msra.mxu0 0.0
        %7189 = vmatprep.subr.mxu0 0.0
        %7190 = vmatpush2.msra.mxu0 0.0
        %7191 = vmatprep.subr.mxu0 0.0
        %7192 = vmatpush2.msra.mxu0 0.0
        %7193 = vmatprep.subr.mxu0 0.0
        %7194 = vmatpush2.msra.mxu0 0.0
        %7195 = vmatprep.subr.mxu0 0.0
        %7196 = vmatpush2.msra.mxu0 0.0
        %7197 = vmatprep.subr.mxu0 0.0
        %7198 = vmatpush2.msra.mxu0 0.0
        %7199 = vmatprep.subr.mxu0 0.0
        %7200 = vmatpush2.msra.mxu0 0.0
        %7201 = vmatprep.subr.mxu0 0.0
        %7202 = vmatpush2.msra.mxu0 0.0
        %7203 = vmatprep.subr.mxu0 0.0
        %7204 = vmatpush2.msra.mxu0 0.0
        %7205 = vmatprep.subr.mxu0 0.0
        %7206 = vmatpush2.msra.mxu0 0.0
        %7207 = vmatprep.subr.mxu0 0.0
        %7208 = vmatpush2.msra.mxu0 0.0
        %7209 = vmatprep.subr.mxu0 0.0
        %7210 = vmatpush2.msra.mxu0 0.0
        %7211 = vmatprep.mubr.f32.mxu0 0.0
        %7212 = vmatmul.mubr.f32.gmra.mxu0 %v7100
        %v7213 = vpop.f32.mrf.mxu0
        %v7214 = vadd.f32 0.0, %v7213
        %v7215 = vpop.f32.mrf.mxu0
        %7216 = vmatprep.mubr.f32.mxu0 0.0
        %7217 = vmatmul.mubr.f32.gmra.mxu0 %v7103
        %v7218 = vpop.f32.mrf.mxu0
        %v7219 = vadd.f32 0.0, %v7218
        %v7220 = vpop.f32.mrf.mxu0
        %7221 = vmatprep.mubr.f32.mxu0 0.0
        %7222 = vmatmul.mubr.f32.gmra.mxu0 %v7106
        %v7223 = vpop.f32.mrf.mxu0
        %v7224 = vadd.f32 0.0, %v7223
        %v7225 = vpop.f32.mrf.mxu0
        %7226 = vmatprep.mubr.f32.mxu0 0.0
        %7227 = vmatmul.mubr.f32.gmra.mxu0 %v7109
        %v7228 = vpop.f32.mrf.mxu0
        %v7229 = vadd.f32 0.0, %v7228
        %v7230 = vpop.f32.mrf.mxu0
        %7231 = vmatprep.mubr.f32.mxu0 0.0
        %7232 = vmatmul.mubr.f32.gmra.mxu0 %v7112
        %v7233 = vpop.f32.mrf.mxu0
        %v7234 = vadd.f32 0.0, %v7233
        %v7235 = vpop.f32.mrf.mxu0
        %7236 = vmatprep.mubr.f32.mxu0 0.0
        %7237 = vmatmul.mubr.f32.gmra.mxu0 %v7115
        %v7238 = vpop.f32.mrf.mxu0
        %v7239 = vadd.f32 0.0, %v7238
        %v7240 = vpop.f32.mrf.mxu0
        %7241 = vmatprep.mubr.f32.mxu0 0.0
        %7242 = vmatmul.mubr.f32.gmra.mxu0 %v7118
        %v7243 = vpop.f32.mrf.mxu0
        %v7244 = vadd.f32 0.0, %v7243
        %v7245 = vpop.f32.mrf.mxu0
        %7246 = vmatprep.mubr.f32.mxu0 0.0
        %7247 = vmatmul.mubr.f32.gmra.mxu0 %v7121
        %v7248 = vpop.f32.mrf.mxu0
        %v7249 = vadd.f32 0.0, %v7248
        %v7250 = vpop.f32.mrf.mxu0
        %7251 = vmatprep.mubr.f32.mxu0 0.0
        %7252 = vmatmul.mubr.f32.gmra.mxu0 %v7124
        %v7253 = vpop.f32.mrf.mxu0
        %v7254 = vadd.f32 0.0, %v7253
        %v7255 = vpop.f32.mrf.mxu0
        %7256 = vmatprep.mubr.f32.mxu0 0.0
        %7257 = vmatmul.mubr.f32.gmra.mxu0 %v7127
        %v7258 = vpop.f32.mrf.mxu0
        %v7259 = vadd.f32 0.0, %v7258
        %v7260 = vpop.f32.mrf.mxu0
        %7261 = vmatprep.mubr.f32.mxu0 0.0
        %7262 = vmatmul.mubr.f32.gmra.mxu0 %v7130
        %v7263 = vpop.f32.mrf.mxu0
        %v7264 = vadd.f32 0.0, %v7263
        %v7265 = vpop.f32.mrf.mxu0
        %7266 = vmatprep.mubr.f32.mxu0 0.0
        %7267 = vmatmul.mubr.f32.gmra.mxu0 %v7133
        %v7268 = vpop.f32.mrf.mxu0
        %v7269 = vadd.f32 0.0, %v7268
        %v7270 = vpop.f32.mrf.mxu0
        %7271 = vmatprep.mubr.f32.mxu0 0.0
        %7272 = vmatmul.mubr.f32.gmra.mxu0 %v7136
        %v7273 = vpop.f32.mrf.mxu0
        %v7274 = vadd.f32 0.0, %v7273
        %v7275 = vpop.f32.mrf.mxu0
        %7276 = vmatprep.mubr.f32.mxu0 0.0
        %7277 = vmatmul.mubr.f32.gmra.mxu0 %v7139
        %v7278 = vpop.f32.mrf.mxu0
        %v7279 = vadd.f32 0.0, %v7278
        %v7280 = vpop.f32.mrf.mxu0
        %7281 = vmatprep.mubr.f32.mxu0 0.0
        %7282 = vmatmul.mubr.f32.gmra.mxu0 %v7142
        %v7283 = vpop.f32.mrf.mxu0
        %v7284 = vadd.f32 0.0, %v7283
        %v7285 = vpop.f32.mrf.mxu0
        %7286 = vmatprep.mubr.f32.mxu0 0.0
        %7287 = vmatmul.mubr.f32.gmra.mxu0 %v7145
        %v7288 = vpop.f32.mrf.mxu0
        %v7289 = vadd.f32 0.0, %v7288
        %v7290 = vpop.f32.mrf.mxu0
        %7291 = vdwg.mxu0
        %v7292 = vadd.f32 %v7062, %v7214
        %v7293 = vadd.f32 %v7063, %v7219
        %v7294 = vadd.f32 %v7064, %v7224
        %v7295 = vadd.f32 %v7065, %v7229
        %v7296 = vadd.f32 %v7066, %v7234
        %v7297 = vadd.f32 %v7067, %v7239
        %v7298 = vadd.f32 %v7068, %v7244
        %v7299 = vadd.f32 %v7069, %v7249
        %v7300 = vadd.f32 %v7070, %v7254
        %v7301 = vadd.f32 %v7071, %v7259
        %v7302 = vadd.f32 %v7072, %v7264
        %v7303 = vadd.f32 %v7073, %v7269
        %v7304 = vadd.f32 %v7074, %v7274
        %v7305 = vadd.f32 %v7075, %v7279
        %v7306 = vadd.f32 %v7076, %v7284
        %v7307 = vadd.f32 %v7077, %v7289
        %s7308 = scalar_lea.vmem [#allocation2], 96
        %v7309 = vld [vmem:[%s7308] sm:$0xff]
        %v7310 = vld [vmem:[%s7308 + $0x8] sm:$0xff]
        %v7311 = vld [vmem:[%s7308 + $0x10] sm:$0xff]
        %v7312 = vld [vmem:[%s7308 + $0x18] sm:$0xff]
        %v7313 = vld [vmem:[%s7308 + $0x30] sm:$0xff]
        %v7314 = vld [vmem:[%s7308 + $0x38] sm:$0xff]
        %v7315 = vld [vmem:[%s7308 + $0x40] sm:$0xff]
        %v7316 = vld [vmem:[%s7308 + $0x48] sm:$0xff]
        %v7317 = vld [vmem:[%s7308 + $0x60] sm:$0xff]
        %v7318 = vld [vmem:[%s7308 + $0x68] sm:$0xff]
        %v7319 = vld [vmem:[%s7308 + $0x70] sm:$0xff]
        %v7320 = vld [vmem:[%s7308 + $0x78] sm:$0xff]
        %v7321 = vld [vmem:[%s7308 + $0x90] sm:$0xff]
        %v7322 = vld [vmem:[%s7308 + $0x98] sm:$0xff]
        %v7323 = vld [vmem:[%s7308 + $0xa0] sm:$0xff]
        %v7324 = vld [vmem:[%s7308 + $0xa8] sm:$0xff]
        %v7325 = vld [vmem:[%s3 + $0x280] sm:$0xff]
        %v7326 = vld [vmem:[%s3 + $0x288] sm:$0xff]
        %v7327 = vld [vmem:[%s3 + $0x290] sm:$0xff]
        %v7328 = vld [vmem:[%s3 + $0x298] sm:$0xff]
        %v7330 = vsel %vm2573, %v7309, 0
        %v7333 = vsel %vm2573, %v7310, 0
        %v7336 = vsel %vm2573, %v7311, 0
        %v7339 = vsel %vm2573, %v7312, 0
        %v7342 = vsel %vm2573, %v7313, 0
        %v7345 = vsel %vm2573, %v7314, 0
        %v7348 = vsel %vm2573, %v7315, 0
        %v7351 = vsel %vm2573, %v7316, 0
        %v7354 = vsel %vm2573, %v7317, 0
        %v7357 = vsel %vm2573, %v7318, 0
        %v7360 = vsel %vm2573, %v7319, 0
        %v7363 = vsel %vm2573, %v7320, 0
        %v7366 = vsel %vm2573, %v7321, 0
        %v7369 = vsel %vm2573, %v7322, 0
        %v7372 = vsel %vm2573, %v7323, 0
        %v7375 = vsel %vm2573, %v7324, 0
        %7377 = vmatprep.subr.mxu0 0.0
        %7378 = vmatpush1.msra.mxu0 0.0
        %7379 = vmatprep.subr.mxu0 0.0
        %7380 = vmatpush1.msra.mxu0 0.0
        %7381 = vmatprep.subr.mxu0 0.0
        %7382 = vmatpush1.msra.mxu0 0.0
        %7383 = vmatprep.subr.mxu0 0.0
        %7384 = vmatpush1.msra.mxu0 0.0
        %7385 = vmatprep.subr.mxu0 0.0
        %7386 = vmatpush1.msra.mxu0 0.0
        %7387 = vmatprep.subr.mxu0 0.0
        %7388 = vmatpush1.msra.mxu0 0.0
        %7389 = vmatprep.subr.mxu0 0.0
        %7390 = vmatpush1.msra.mxu0 0.0
        %7391 = vmatprep.subr.mxu0 0.0
        %7392 = vmatpush1.msra.mxu0 0.0
        %7393 = vmatprep.subr.mxu0 0.0
        %7394 = vmatpush1.msra.mxu0 0.0
        %7395 = vmatprep.subr.mxu0 0.0
        %7396 = vmatpush1.msra.mxu0 0.0
        %7397 = vmatprep.subr.mxu0 0.0
        %7398 = vmatpush1.msra.mxu0 0.0
        %7399 = vmatprep.subr.mxu0 0.0
        %7400 = vmatpush1.msra.mxu0 0.0
        %7401 = vmatprep.subr.mxu0 0.0
        %7402 = vmatpush1.msra.mxu0 %v7328
        %7403 = vmatprep.subr.mxu0 0.0
        %7404 = vmatpush1.msra.mxu0 %v7327
        %7405 = vmatprep.subr.mxu0 0.0
        %7406 = vmatpush1.msra.mxu0 %v7326
        %7407 = vmatprep.subr.mxu0 0.0
        %7408 = vmatpush1.msra.mxu0 %v7325
        %7409 = vmatprep.subr.mxu0 0.0
        %7410 = vmatpush2.msra.mxu0 0.0
        %7411 = vmatprep.subr.mxu0 0.0
        %7412 = vmatpush2.msra.mxu0 0.0
        %7413 = vmatprep.subr.mxu0 0.0
        %7414 = vmatpush2.msra.mxu0 0.0
        %7415 = vmatprep.subr.mxu0 0.0
        %7416 = vmatpush2.msra.mxu0 0.0
        %7417 = vmatprep.subr.mxu0 0.0
        %7418 = vmatpush2.msra.mxu0 0.0
        %7419 = vmatprep.subr.mxu0 0.0
        %7420 = vmatpush2.msra.mxu0 0.0
        %7421 = vmatprep.subr.mxu0 0.0
        %7422 = vmatpush2.msra.mxu0 0.0
        %7423 = vmatprep.subr.mxu0 0.0
        %7424 = vmatpush2.msra.mxu0 0.0
        %7425 = vmatprep.subr.mxu0 0.0
        %7426 = vmatpush2.msra.mxu0 0.0
        %7427 = vmatprep.subr.mxu0 0.0
        %7428 = vmatpush2.msra.mxu0 0.0
        %7429 = vmatprep.subr.mxu0 0.0
        %7430 = vmatpush2.msra.mxu0 0.0
        %7431 = vmatprep.subr.mxu0 0.0
        %7432 = vmatpush2.msra.mxu0 0.0
        %7433 = vmatprep.subr.mxu0 0.0
        %7434 = vmatpush2.msra.mxu0 0.0
        %7435 = vmatprep.subr.mxu0 0.0
        %7436 = vmatpush2.msra.mxu0 0.0
        %7437 = vmatprep.subr.mxu0 0.0
        %7438 = vmatpush2.msra.mxu0 0.0
        %7439 = vmatprep.subr.mxu0 0.0
        %7440 = vmatpush2.msra.mxu0 0.0
        %7441 = vmatprep.mubr.f32.mxu0 0.0
        %7442 = vmatmul.mubr.f32.gmra.mxu0 %v7330
        %v7443 = vpop.f32.mrf.mxu0
        %v7444 = vadd.f32 0.0, %v7443
        %v7445 = vpop.f32.mrf.mxu0
        %7446 = vmatprep.mubr.f32.mxu0 0.0
        %7447 = vmatmul.mubr.f32.gmra.mxu0 %v7333
        %v7448 = vpop.f32.mrf.mxu0
        %v7449 = vadd.f32 0.0, %v7448
        %v7450 = vpop.f32.mrf.mxu0
        %7451 = vmatprep.mubr.f32.mxu0 0.0
        %7452 = vmatmul.mubr.f32.gmra.mxu0 %v7336
        %v7453 = vpop.f32.mrf.mxu0
        %v7454 = vadd.f32 0.0, %v7453
        %v7455 = vpop.f32.mrf.mxu0
        %7456 = vmatprep.mubr.f32.mxu0 0.0
        %7457 = vmatmul.mubr.f32.gmra.mxu0 %v7339
        %v7458 = vpop.f32.mrf.mxu0
        %v7459 = vadd.f32 0.0, %v7458
        %v7460 = vpop.f32.mrf.mxu0
        %7461 = vmatprep.mubr.f32.mxu0 0.0
        %7462 = vmatmul.mubr.f32.gmra.mxu0 %v7342
        %v7463 = vpop.f32.mrf.mxu0
        %v7464 = vadd.f32 0.0, %v7463
        %v7465 = vpop.f32.mrf.mxu0
        %7466 = vmatprep.mubr.f32.mxu0 0.0
        %7467 = vmatmul.mubr.f32.gmra.mxu0 %v7345
        %v7468 = vpop.f32.mrf.mxu0
        %v7469 = vadd.f32 0.0, %v7468
        %v7470 = vpop.f32.mrf.mxu0
        %7471 = vmatprep.mubr.f32.mxu0 0.0
        %7472 = vmatmul.mubr.f32.gmra.mxu0 %v7348
        %v7473 = vpop.f32.mrf.mxu0
        %v7474 = vadd.f32 0.0, %v7473
        %v7475 = vpop.f32.mrf.mxu0
        %7476 = vmatprep.mubr.f32.mxu0 0.0
        %7477 = vmatmul.mubr.f32.gmra.mxu0 %v7351
        %v7478 = vpop.f32.mrf.mxu0
        %v7479 = vadd.f32 0.0, %v7478
        %v7480 = vpop.f32.mrf.mxu0
        %7481 = vmatprep.mubr.f32.mxu0 0.0
        %7482 = vmatmul.mubr.f32.gmra.mxu0 %v7354
        %v7483 = vpop.f32.mrf.mxu0
        %v7484 = vadd.f32 0.0, %v7483
        %v7485 = vpop.f32.mrf.mxu0
        %7486 = vmatprep.mubr.f32.mxu0 0.0
        %7487 = vmatmul.mubr.f32.gmra.mxu0 %v7357
        %v7488 = vpop.f32.mrf.mxu0
        %v7489 = vadd.f32 0.0, %v7488
        %v7490 = vpop.f32.mrf.mxu0
        %7491 = vmatprep.mubr.f32.mxu0 0.0
        %7492 = vmatmul.mubr.f32.gmra.mxu0 %v7360
        %v7493 = vpop.f32.mrf.mxu0
        %v7494 = vadd.f32 0.0, %v7493
        %v7495 = vpop.f32.mrf.mxu0
        %7496 = vmatprep.mubr.f32.mxu0 0.0
        %7497 = vmatmul.mubr.f32.gmra.mxu0 %v7363
        %v7498 = vpop.f32.mrf.mxu0
        %v7499 = vadd.f32 0.0, %v7498
        %v7500 = vpop.f32.mrf.mxu0
        %7501 = vmatprep.mubr.f32.mxu0 0.0
        %7502 = vmatmul.mubr.f32.gmra.mxu0 %v7366
        %v7503 = vpop.f32.mrf.mxu0
        %v7504 = vadd.f32 0.0, %v7503
        %v7505 = vpop.f32.mrf.mxu0
        %7506 = vmatprep.mubr.f32.mxu0 0.0
        %7507 = vmatmul.mubr.f32.gmra.mxu0 %v7369
        %v7508 = vpop.f32.mrf.mxu0
        %v7509 = vadd.f32 0.0, %v7508
        %v7510 = vpop.f32.mrf.mxu0
        %7511 = vmatprep.mubr.f32.mxu0 0.0
        %7512 = vmatmul.mubr.f32.gmra.mxu0 %v7372
        %v7513 = vpop.f32.mrf.mxu0
        %v7514 = vadd.f32 0.0, %v7513
        %v7515 = vpop.f32.mrf.mxu0
        %7516 = vmatprep.mubr.f32.mxu0 0.0
        %7517 = vmatmul.mubr.f32.gmra.mxu0 %v7375
        %v7518 = vpop.f32.mrf.mxu0
        %v7519 = vadd.f32 0.0, %v7518
        %v7520 = vpop.f32.mrf.mxu0
        %7521 = vdwg.mxu0
        %v7522 = vadd.f32 %v7292, %v7444
        %v7523 = vadd.f32 %v7293, %v7449
        %v7524 = vadd.f32 %v7294, %v7454
        %v7525 = vadd.f32 %v7295, %v7459
        %v7526 = vadd.f32 %v7296, %v7464
        %v7527 = vadd.f32 %v7297, %v7469
        %v7528 = vadd.f32 %v7298, %v7474
        %v7529 = vadd.f32 %v7299, %v7479
        %v7530 = vadd.f32 %v7300, %v7484
        %v7531 = vadd.f32 %v7301, %v7489
        %v7532 = vadd.f32 %v7302, %v7494
        %v7533 = vadd.f32 %v7303, %v7499
        %v7534 = vadd.f32 %v7304, %v7504
        %v7535 = vadd.f32 %v7305, %v7509
        %v7536 = vadd.f32 %v7306, %v7514
        %v7537 = vadd.f32 %v7307, %v7519
        %s7538 = scalar_lea.vmem [#allocation3], 80
        %v7539 = vld [vmem:[%s7538] sm:$0xff]
        %v7540 = vld [vmem:[%s7538 + $0x8] sm:$0xff]
        %v7541 = vld [vmem:[%s7538 + $0x10] sm:$0xff]
        %v7542 = vld [vmem:[%s7538 + $0x18] sm:$0xff]
        %v7543 = vld [vmem:[%s7538 + $0x28] sm:$0xff]
        %v7544 = vld [vmem:[%s7538 + $0x30] sm:$0xff]
        %v7545 = vld [vmem:[%s7538 + $0x38] sm:$0xff]
        %v7546 = vld [vmem:[%s7538 + $0x40] sm:$0xff]
        %v7547 = vld [vmem:[%s7538 + $0x50] sm:$0xff]
        %v7548 = vld [vmem:[%s7538 + $0x58] sm:$0xff]
        %v7549 = vld [vmem:[%s7538 + $0x60] sm:$0xff]
        %v7550 = vld [vmem:[%s7538 + $0x68] sm:$0xff]
        %v7551 = vld [vmem:[%s7538 + $0x78] sm:$0xff]
        %v7552 = vld [vmem:[%s7538 + $0x80] sm:$0xff]
        %v7553 = vld [vmem:[%s7538 + $0x88] sm:$0xff]
        %v7554 = vld [vmem:[%s7538 + $0x90] sm:$0xff]
        %v7555 = vld [vmem:[%s3 + $0x2a0] sm:$0xff]
        %v7556 = vld [vmem:[%s3 + $0x2a8] sm:$0xff]
        %v7557 = vld [vmem:[%s3 + $0x2b0] sm:$0xff]
        %v7558 = vld [vmem:[%s3 + $0x2b8] sm:$0xff]
        %v7560 = vsel %vm2573, %v7539, 0
        %v7563 = vsel %vm2573, %v7540, 0
        %v7566 = vsel %vm2573, %v7541, 0
        %v7569 = vsel %vm2573, %v7542, 0
        %v7572 = vsel %vm2573, %v7543, 0
        %v7575 = vsel %vm2573, %v7544, 0
        %v7578 = vsel %vm2573, %v7545, 0
        %v7581 = vsel %vm2573, %v7546, 0
        %v7584 = vsel %vm2573, %v7547, 0
        %v7587 = vsel %vm2573, %v7548, 0
        %v7590 = vsel %vm2573, %v7549, 0
        %v7593 = vsel %vm2573, %v7550, 0
        %v7596 = vsel %vm2573, %v7551, 0
        %v7599 = vsel %vm2573, %v7552, 0
        %v7602 = vsel %vm2573, %v7553, 0
        %v7605 = vsel %vm2573, %v7554, 0
        %7607 = vmatprep.subr.mxu0 0.0
        %7608 = vmatpush1.msra.mxu0 0.0
        %7609 = vmatprep.subr.mxu0 0.0
        %7610 = vmatpush1.msra.mxu0 0.0
        %7611 = vmatprep.subr.mxu0 0.0
        %7612 = vmatpush1.msra.mxu0 0.0
        %7613 = vmatprep.subr.mxu0 0.0
        %7614 = vmatpush1.msra.mxu0 0.0
        %7615 = vmatprep.subr.mxu0 0.0
        %7616 = vmatpush1.msra.mxu0 0.0
        %7617 = vmatprep.subr.mxu0 0.0
        %7618 = vmatpush1.msra.mxu0 0.0
        %7619 = vmatprep.subr.mxu0 0.0
        %7620 = vmatpush1.msra.mxu0 0.0
        %7621 = vmatprep.subr.mxu0 0.0
        %7622 = vmatpush1.msra.mxu0 0.0
        %7623 = vmatprep.subr.mxu0 0.0
        %7624 = vmatpush1.msra.mxu0 0.0
        %7625 = vmatprep.subr.mxu0 0.0
        %7626 = vmatpush1.msra.mxu0 0.0
        %7627 = vmatprep.subr.mxu0 0.0
        %7628 = vmatpush1.msra.mxu0 0.0
        %7629 = vmatprep.subr.mxu0 0.0
        %7630 = vmatpush1.msra.mxu0 0.0
        %7631 = vmatprep.subr.mxu0 0.0
        %7632 = vmatpush1.msra.mxu0 %v7558
        %7633 = vmatprep.subr.mxu0 0.0
        %7634 = vmatpush1.msra.mxu0 %v7557
        %7635 = vmatprep.subr.mxu0 0.0
        %7636 = vmatpush1.msra.mxu0 %v7556
        %7637 = vmatprep.subr.mxu0 0.0
        %7638 = vmatpush1.msra.mxu0 %v7555
        %7639 = vmatprep.subr.mxu0 0.0
        %7640 = vmatpush2.msra.mxu0 0.0
        %7641 = vmatprep.subr.mxu0 0.0
        %7642 = vmatpush2.msra.mxu0 0.0
        %7643 = vmatprep.subr.mxu0 0.0
        %7644 = vmatpush2.msra.mxu0 0.0
        %7645 = vmatprep.subr.mxu0 0.0
        %7646 = vmatpush2.msra.mxu0 0.0
        %7647 = vmatprep.subr.mxu0 0.0
        %7648 = vmatpush2.msra.mxu0 0.0
        %7649 = vmatprep.subr.mxu0 0.0
        %7650 = vmatpush2.msra.mxu0 0.0
        %7651 = vmatprep.subr.mxu0 0.0
        %7652 = vmatpush2.msra.mxu0 0.0
        %7653 = vmatprep.subr.mxu0 0.0
        %7654 = vmatpush2.msra.mxu0 0.0
        %7655 = vmatprep.subr.mxu0 0.0
        %7656 = vmatpush2.msra.mxu0 0.0
        %7657 = vmatprep.subr.mxu0 0.0
        %7658 = vmatpush2.msra.mxu0 0.0
        %7659 = vmatprep.subr.mxu0 0.0
        %7660 = vmatpush2.msra.mxu0 0.0
        %7661 = vmatprep.subr.mxu0 0.0
        %7662 = vmatpush2.msra.mxu0 0.0
        %7663 = vmatprep.subr.mxu0 0.0
        %7664 = vmatpush2.msra.mxu0 0.0
        %7665 = vmatprep.subr.mxu0 0.0
        %7666 = vmatpush2.msra.mxu0 0.0
        %7667 = vmatprep.subr.mxu0 0.0
        %7668 = vmatpush2.msra.mxu0 0.0
        %7669 = vmatprep.subr.mxu0 0.0
        %7670 = vmatpush2.msra.mxu0 0.0
        %7671 = vmatprep.mubr.f32.mxu0 0.0
        %7672 = vmatmul.mubr.f32.gmra.mxu0 %v7560
        %v7673 = vpop.f32.mrf.mxu0
        %v7674 = vadd.f32 0.0, %v7673
        %v7675 = vpop.f32.mrf.mxu0
        %7676 = vmatprep.mubr.f32.mxu0 0.0
        %7677 = vmatmul.mubr.f32.gmra.mxu0 %v7563
        %v7678 = vpop.f32.mrf.mxu0
        %v7679 = vadd.f32 0.0, %v7678
        %v7680 = vpop.f32.mrf.mxu0
        %7681 = vmatprep.mubr.f32.mxu0 0.0
        %7682 = vmatmul.mubr.f32.gmra.mxu0 %v7566
        %v7683 = vpop.f32.mrf.mxu0
        %v7684 = vadd.f32 0.0, %v7683
        %v7685 = vpop.f32.mrf.mxu0
        %7686 = vmatprep.mubr.f32.mxu0 0.0
        %7687 = vmatmul.mubr.f32.gmra.mxu0 %v7569
        %v7688 = vpop.f32.mrf.mxu0
        %v7689 = vadd.f32 0.0, %v7688
        %v7690 = vpop.f32.mrf.mxu0
        %7691 = vmatprep.mubr.f32.mxu0 0.0
        %7692 = vmatmul.mubr.f32.gmra.mxu0 %v7572
        %v7693 = vpop.f32.mrf.mxu0
        %v7694 = vadd.f32 0.0, %v7693
        %v7695 = vpop.f32.mrf.mxu0
        %7696 = vmatprep.mubr.f32.mxu0 0.0
        %7697 = vmatmul.mubr.f32.gmra.mxu0 %v7575
        %v7698 = vpop.f32.mrf.mxu0
        %v7699 = vadd.f32 0.0, %v7698
        %v7700 = vpop.f32.mrf.mxu0
        %7701 = vmatprep.mubr.f32.mxu0 0.0
        %7702 = vmatmul.mubr.f32.gmra.mxu0 %v7578
        %v7703 = vpop.f32.mrf.mxu0
        %v7704 = vadd.f32 0.0, %v7703
        %v7705 = vpop.f32.mrf.mxu0
        %7706 = vmatprep.mubr.f32.mxu0 0.0
        %7707 = vmatmul.mubr.f32.gmra.mxu0 %v7581
        %v7708 = vpop.f32.mrf.mxu0
        %v7709 = vadd.f32 0.0, %v7708
        %v7710 = vpop.f32.mrf.mxu0
        %7711 = vmatprep.mubr.f32.mxu0 0.0
        %7712 = vmatmul.mubr.f32.gmra.mxu0 %v7584
        %v7713 = vpop.f32.mrf.mxu0
        %v7714 = vadd.f32 0.0, %v7713
        %v7715 = vpop.f32.mrf.mxu0
        %7716 = vmatprep.mubr.f32.mxu0 0.0
        %7717 = vmatmul.mubr.f32.gmra.mxu0 %v7587
        %v7718 = vpop.f32.mrf.mxu0
        %v7719 = vadd.f32 0.0, %v7718
        %v7720 = vpop.f32.mrf.mxu0
        %7721 = vmatprep.mubr.f32.mxu0 0.0
        %7722 = vmatmul.mubr.f32.gmra.mxu0 %v7590
        %v7723 = vpop.f32.mrf.mxu0
        %v7724 = vadd.f32 0.0, %v7723
        %v7725 = vpop.f32.mrf.mxu0
        %7726 = vmatprep.mubr.f32.mxu0 0.0
        %7727 = vmatmul.mubr.f32.gmra.mxu0 %v7593
        %v7728 = vpop.f32.mrf.mxu0
        %v7729 = vadd.f32 0.0, %v7728
        %v7730 = vpop.f32.mrf.mxu0
        %7731 = vmatprep.mubr.f32.mxu0 0.0
        %7732 = vmatmul.mubr.f32.gmra.mxu0 %v7596
        %v7733 = vpop.f32.mrf.mxu0
        %v7734 = vadd.f32 0.0, %v7733
        %v7735 = vpop.f32.mrf.mxu0
        %7736 = vmatprep.mubr.f32.mxu0 0.0
        %7737 = vmatmul.mubr.f32.gmra.mxu0 %v7599
        %v7738 = vpop.f32.mrf.mxu0
        %v7739 = vadd.f32 0.0, %v7738
        %v7740 = vpop.f32.mrf.mxu0
        %7741 = vmatprep.mubr.f32.mxu0 0.0
        %7742 = vmatmul.mubr.f32.gmra.mxu0 %v7602
        %v7743 = vpop.f32.mrf.mxu0
        %v7744 = vadd.f32 0.0, %v7743
        %v7745 = vpop.f32.mrf.mxu0
        %7746 = vmatprep.mubr.f32.mxu0 0.0
        %7747 = vmatmul.mubr.f32.gmra.mxu0 %v7605
        %v7748 = vpop.f32.mrf.mxu0
        %v7749 = vadd.f32 0.0, %v7748
        %v7750 = vpop.f32.mrf.mxu0
        %7751 = vdwg.mxu0
        %v7752 = vadd.f32 %v7522, %v7674
        %v7753 = vadd.f32 %v7523, %v7679
        %v7754 = vadd.f32 %v7524, %v7684
        %v7755 = vadd.f32 %v7525, %v7689
        %v7756 = vadd.f32 %v7526, %v7694
        %v7757 = vadd.f32 %v7527, %v7699
        %v7758 = vadd.f32 %v7528, %v7704
        %v7759 = vadd.f32 %v7529, %v7709
        %v7760 = vadd.f32 %v7530, %v7714
        %v7761 = vadd.f32 %v7531, %v7719
        %v7762 = vadd.f32 %v7532, %v7724
        %v7763 = vadd.f32 %v7533, %v7729
        %v7764 = vadd.f32 %v7534, %v7734
        %v7765 = vadd.f32 %v7535, %v7739
        %v7766 = vadd.f32 %v7536, %v7744
        %v7767 = vadd.f32 %v7537, %v7749
        %s7768 = scalar_lea.vmem [#allocation2], 104
        %v7769 = vld [vmem:[%s7768] sm:$0xff]
        %v7770 = vld [vmem:[%s7768 + $0x8] sm:$0xff]
        %v7771 = vld [vmem:[%s7768 + $0x10] sm:$0xff]
        %v7772 = vld [vmem:[%s7768 + $0x18] sm:$0xff]
        %v7773 = vld [vmem:[%s7768 + $0x30] sm:$0xff]
        %v7774 = vld [vmem:[%s7768 + $0x38] sm:$0xff]
        %v7775 = vld [vmem:[%s7768 + $0x40] sm:$0xff]
        %v7776 = vld [vmem:[%s7768 + $0x48] sm:$0xff]
        %v7777 = vld [vmem:[%s7768 + $0x60] sm:$0xff]
        %v7778 = vld [vmem:[%s7768 + $0x68] sm:$0xff]
        %v7779 = vld [vmem:[%s7768 + $0x70] sm:$0xff]
        %v7780 = vld [vmem:[%s7768 + $0x78] sm:$0xff]
        %v7781 = vld [vmem:[%s7768 + $0x90] sm:$0xff]
        %v7782 = vld [vmem:[%s7768 + $0x98] sm:$0xff]
        %v7783 = vld [vmem:[%s7768 + $0xa0] sm:$0xff]
        %v7784 = vld [vmem:[%s7768 + $0xa8] sm:$0xff]
        %v7785 = vld [vmem:[%s3 + $0x2c0] sm:$0xff]
        %v7786 = vld [vmem:[%s3 + $0x2c8] sm:$0xff]
        %v7787 = vld [vmem:[%s3 + $0x2d0] sm:$0xff]
        %v7788 = vld [vmem:[%s3 + $0x2d8] sm:$0xff]
        %v7790 = vsel %vm2573, %v7769, 0
        %v7793 = vsel %vm2573, %v7770, 0
        %v7796 = vsel %vm2573, %v7771, 0
        %v7799 = vsel %vm2573, %v7772, 0
        %v7802 = vsel %vm2573, %v7773, 0
        %v7805 = vsel %vm2573, %v7774, 0
        %v7808 = vsel %vm2573, %v7775, 0
        %v7811 = vsel %vm2573, %v7776, 0
        %v7814 = vsel %vm2573, %v7777, 0
        %v7817 = vsel %vm2573, %v7778, 0
        %v7820 = vsel %vm2573, %v7779, 0
        %v7823 = vsel %vm2573, %v7780, 0
        %v7826 = vsel %vm2573, %v7781, 0
        %v7829 = vsel %vm2573, %v7782, 0
        %v7832 = vsel %vm2573, %v7783, 0
        %v7835 = vsel %vm2573, %v7784, 0
        %7837 = vmatprep.subr.mxu0 0.0
        %7838 = vmatpush1.msra.mxu0 0.0
        %7839 = vmatprep.subr.mxu0 0.0
        %7840 = vmatpush1.msra.mxu0 0.0
        %7841 = vmatprep.subr.mxu0 0.0
        %7842 = vmatpush1.msra.mxu0 0.0
        %7843 = vmatprep.subr.mxu0 0.0
        %7844 = vmatpush1.msra.mxu0 0.0
        %7845 = vmatprep.subr.mxu0 0.0
        %7846 = vmatpush1.msra.mxu0 0.0
        %7847 = vmatprep.subr.mxu0 0.0
        %7848 = vmatpush1.msra.mxu0 0.0
        %7849 = vmatprep.subr.mxu0 0.0
        %7850 = vmatpush1.msra.mxu0 0.0
        %7851 = vmatprep.subr.mxu0 0.0
        %7852 = vmatpush1.msra.mxu0 0.0
        %7853 = vmatprep.subr.mxu0 0.0
        %7854 = vmatpush1.msra.mxu0 0.0
        %7855 = vmatprep.subr.mxu0 0.0
        %7856 = vmatpush1.msra.mxu0 0.0
        %7857 = vmatprep.subr.mxu0 0.0
        %7858 = vmatpush1.msra.mxu0 0.0
        %7859 = vmatprep.subr.mxu0 0.0
        %7860 = vmatpush1.msra.mxu0 0.0
        %7861 = vmatprep.subr.mxu0 0.0
        %7862 = vmatpush1.msra.mxu0 %v7788
        %7863 = vmatprep.subr.mxu0 0.0
        %7864 = vmatpush1.msra.mxu0 %v7787
        %7865 = vmatprep.subr.mxu0 0.0
        %7866 = vmatpush1.msra.mxu0 %v7786
        %7867 = vmatprep.subr.mxu0 0.0
        %7868 = vmatpush1.msra.mxu0 %v7785
        %7869 = vmatprep.subr.mxu0 0.0
        %7870 = vmatpush2.msra.mxu0 0.0
        %7871 = vmatprep.subr.mxu0 0.0
        %7872 = vmatpush2.msra.mxu0 0.0
        %7873 = vmatprep.subr.mxu0 0.0
        %7874 = vmatpush2.msra.mxu0 0.0
        %7875 = vmatprep.subr.mxu0 0.0
        %7876 = vmatpush2.msra.mxu0 0.0
        %7877 = vmatprep.subr.mxu0 0.0
        %7878 = vmatpush2.msra.mxu0 0.0
        %7879 = vmatprep.subr.mxu0 0.0
        %7880 = vmatpush2.msra.mxu0 0.0
        %7881 = vmatprep.subr.mxu0 0.0
        %7882 = vmatpush2.msra.mxu0 0.0
        %7883 = vmatprep.subr.mxu0 0.0
        %7884 = vmatpush2.msra.mxu0 0.0
        %7885 = vmatprep.subr.mxu0 0.0
        %7886 = vmatpush2.msra.mxu0 0.0
        %7887 = vmatprep.subr.mxu0 0.0
        %7888 = vmatpush2.msra.mxu0 0.0
        %7889 = vmatprep.subr.mxu0 0.0
        %7890 = vmatpush2.msra.mxu0 0.0
        %7891 = vmatprep.subr.mxu0 0.0
        %7892 = vmatpush2.msra.mxu0 0.0
        %7893 = vmatprep.subr.mxu0 0.0
        %7894 = vmatpush2.msra.mxu0 0.0
        %7895 = vmatprep.subr.mxu0 0.0
        %7896 = vmatpush2.msra.mxu0 0.0
        %7897 = vmatprep.subr.mxu0 0.0
        %7898 = vmatpush2.msra.mxu0 0.0
        %7899 = vmatprep.subr.mxu0 0.0
        %7900 = vmatpush2.msra.mxu0 0.0
        %7901 = vmatprep.mubr.f32.mxu0 0.0
        %7902 = vmatmul.mubr.f32.gmra.mxu0 %v7790
        %v7903 = vpop.f32.mrf.mxu0
        %v7904 = vadd.f32 0.0, %v7903
        %v7905 = vpop.f32.mrf.mxu0
        %7906 = vmatprep.mubr.f32.mxu0 0.0
        %7907 = vmatmul.mubr.f32.gmra.mxu0 %v7793
        %v7908 = vpop.f32.mrf.mxu0
        %v7909 = vadd.f32 0.0, %v7908
        %v7910 = vpop.f32.mrf.mxu0
        %7911 = vmatprep.mubr.f32.mxu0 0.0
        %7912 = vmatmul.mubr.f32.gmra.mxu0 %v7796
        %v7913 = vpop.f32.mrf.mxu0
        %v7914 = vadd.f32 0.0, %v7913
        %v7915 = vpop.f32.mrf.mxu0
        %7916 = vmatprep.mubr.f32.mxu0 0.0
        %7917 = vmatmul.mubr.f32.gmra.mxu0 %v7799
        %v7918 = vpop.f32.mrf.mxu0
        %v7919 = vadd.f32 0.0, %v7918
        %v7920 = vpop.f32.mrf.mxu0
        %7921 = vmatprep.mubr.f32.mxu0 0.0
        %7922 = vmatmul.mubr.f32.gmra.mxu0 %v7802
        %v7923 = vpop.f32.mrf.mxu0
        %v7924 = vadd.f32 0.0, %v7923
        %v7925 = vpop.f32.mrf.mxu0
        %7926 = vmatprep.mubr.f32.mxu0 0.0
        %7927 = vmatmul.mubr.f32.gmra.mxu0 %v7805
        %v7928 = vpop.f32.mrf.mxu0
        %v7929 = vadd.f32 0.0, %v7928
        %v7930 = vpop.f32.mrf.mxu0
        %7931 = vmatprep.mubr.f32.mxu0 0.0
        %7932 = vmatmul.mubr.f32.gmra.mxu0 %v7808
        %v7933 = vpop.f32.mrf.mxu0
        %v7934 = vadd.f32 0.0, %v7933
        %v7935 = vpop.f32.mrf.mxu0
        %7936 = vmatprep.mubr.f32.mxu0 0.0
        %7937 = vmatmul.mubr.f32.gmra.mxu0 %v7811
        %v7938 = vpop.f32.mrf.mxu0
        %v7939 = vadd.f32 0.0, %v7938
        %v7940 = vpop.f32.mrf.mxu0
        %7941 = vmatprep.mubr.f32.mxu0 0.0
        %7942 = vmatmul.mubr.f32.gmra.mxu0 %v7814
        %v7943 = vpop.f32.mrf.mxu0
        %v7944 = vadd.f32 0.0, %v7943
        %v7945 = vpop.f32.mrf.mxu0
        %7946 = vmatprep.mubr.f32.mxu0 0.0
        %7947 = vmatmul.mubr.f32.gmra.mxu0 %v7817
        %v7948 = vpop.f32.mrf.mxu0
        %v7949 = vadd.f32 0.0, %v7948
        %v7950 = vpop.f32.mrf.mxu0
        %7951 = vmatprep.mubr.f32.mxu0 0.0
        %7952 = vmatmul.mubr.f32.gmra.mxu0 %v7820
        %v7953 = vpop.f32.mrf.mxu0
        %v7954 = vadd.f32 0.0, %v7953
        %v7955 = vpop.f32.mrf.mxu0
        %7956 = vmatprep.mubr.f32.mxu0 0.0
        %7957 = vmatmul.mubr.f32.gmra.mxu0 %v7823
        %v7958 = vpop.f32.mrf.mxu0
        %v7959 = vadd.f32 0.0, %v7958
        %v7960 = vpop.f32.mrf.mxu0
        %7961 = vmatprep.mubr.f32.mxu0 0.0
        %7962 = vmatmul.mubr.f32.gmra.mxu0 %v7826
        %v7963 = vpop.f32.mrf.mxu0
        %v7964 = vadd.f32 0.0, %v7963
        %v7965 = vpop.f32.mrf.mxu0
        %7966 = vmatprep.mubr.f32.mxu0 0.0
        %7967 = vmatmul.mubr.f32.gmra.mxu0 %v7829
        %v7968 = vpop.f32.mrf.mxu0
        %v7969 = vadd.f32 0.0, %v7968
        %v7970 = vpop.f32.mrf.mxu0
        %7971 = vmatprep.mubr.f32.mxu0 0.0
        %7972 = vmatmul.mubr.f32.gmra.mxu0 %v7832
        %v7973 = vpop.f32.mrf.mxu0
        %v7974 = vadd.f32 0.0, %v7973
        %v7975 = vpop.f32.mrf.mxu0
        %7976 = vmatprep.mubr.f32.mxu0 0.0
        %7977 = vmatmul.mubr.f32.gmra.mxu0 %v7835
        %v7978 = vpop.f32.mrf.mxu0
        %v7979 = vadd.f32 0.0, %v7978
        %v7980 = vpop.f32.mrf.mxu0
        %7981 = vdwg.mxu0
        %v7982 = vadd.f32 %v7752, %v7904
        %v7983 = vadd.f32 %v7753, %v7909
        %v7984 = vadd.f32 %v7754, %v7914
        %v7985 = vadd.f32 %v7755, %v7919
        %v7986 = vadd.f32 %v7756, %v7924
        %v7987 = vadd.f32 %v7757, %v7929
        %v7988 = vadd.f32 %v7758, %v7934
        %v7989 = vadd.f32 %v7759, %v7939
        %v7990 = vadd.f32 %v7760, %v7944
        %v7991 = vadd.f32 %v7761, %v7949
        %v7992 = vadd.f32 %v7762, %v7954
        %v7993 = vadd.f32 %v7763, %v7959
        %v7994 = vadd.f32 %v7764, %v7964
        %v7995 = vadd.f32 %v7765, %v7969
        %v7996 = vadd.f32 %v7766, %v7974
        %v7997 = vadd.f32 %v7767, %v7979
        %s7998 = scalar_lea.vmem [#allocation3], 88
        %v7999 = vld [vmem:[%s7998] sm:$0xff]
        %v8000 = vld [vmem:[%s7998 + $0x8] sm:$0xff]
        %v8001 = vld [vmem:[%s7998 + $0x10] sm:$0xff]
        %v8002 = vld [vmem:[%s7998 + $0x18] sm:$0xff]
        %v8003 = vld [vmem:[%s7998 + $0x28] sm:$0xff]
        %v8004 = vld [vmem:[%s7998 + $0x30] sm:$0xff]
        %v8005 = vld [vmem:[%s7998 + $0x38] sm:$0xff]
        %v8006 = vld [vmem:[%s7998 + $0x40] sm:$0xff]
        %v8007 = vld [vmem:[%s7998 + $0x50] sm:$0xff]
        %v8008 = vld [vmem:[%s7998 + $0x58] sm:$0xff]
        %v8009 = vld [vmem:[%s7998 + $0x60] sm:$0xff]
        %v8010 = vld [vmem:[%s7998 + $0x68] sm:$0xff]
        %v8011 = vld [vmem:[%s7998 + $0x78] sm:$0xff]
        %v8012 = vld [vmem:[%s7998 + $0x80] sm:$0xff]
        %v8013 = vld [vmem:[%s7998 + $0x88] sm:$0xff]
        %v8014 = vld [vmem:[%s7998 + $0x90] sm:$0xff]
        %v8015 = vld [vmem:[%s3 + $0x2e0] sm:$0xff]
        %v8016 = vld [vmem:[%s3 + $0x2e8] sm:$0xff]
        %v8017 = vld [vmem:[%s3 + $0x2f0] sm:$0xff]
        %v8018 = vld [vmem:[%s3 + $0x2f8] sm:$0xff]
        %v8020 = vsel %vm2573, %v7999, 0
        %v8023 = vsel %vm2573, %v8000, 0
        %v8026 = vsel %vm2573, %v8001, 0
        %v8029 = vsel %vm2573, %v8002, 0
        %v8032 = vsel %vm2573, %v8003, 0
        %v8035 = vsel %vm2573, %v8004, 0
        %v8038 = vsel %vm2573, %v8005, 0
        %v8041 = vsel %vm2573, %v8006, 0
        %v8044 = vsel %vm2573, %v8007, 0
        %v8047 = vsel %vm2573, %v8008, 0
        %v8050 = vsel %vm2573, %v8009, 0
        %v8053 = vsel %vm2573, %v8010, 0
        %v8056 = vsel %vm2573, %v8011, 0
        %v8059 = vsel %vm2573, %v8012, 0
        %v8062 = vsel %vm2573, %v8013, 0
        %v8065 = vsel %vm2573, %v8014, 0
        %8067 = vmatprep.subr.mxu0 0.0
        %8068 = vmatpush1.msra.mxu0 0.0
        %8069 = vmatprep.subr.mxu0 0.0
        %8070 = vmatpush1.msra.mxu0 0.0
        %8071 = vmatprep.subr.mxu0 0.0
        %8072 = vmatpush1.msra.mxu0 0.0
        %8073 = vmatprep.subr.mxu0 0.0
        %8074 = vmatpush1.msra.mxu0 0.0
        %8075 = vmatprep.subr.mxu0 0.0
        %8076 = vmatpush1.msra.mxu0 0.0
        %8077 = vmatprep.subr.mxu0 0.0
        %8078 = vmatpush1.msra.mxu0 0.0
        %8079 = vmatprep.subr.mxu0 0.0
        %8080 = vmatpush1.msra.mxu0 0.0
        %8081 = vmatprep.subr.mxu0 0.0
        %8082 = vmatpush1.msra.mxu0 0.0
        %8083 = vmatprep.subr.mxu0 0.0
        %8084 = vmatpush1.msra.mxu0 0.0
        %8085 = vmatprep.subr.mxu0 0.0
        %8086 = vmatpush1.msra.mxu0 0.0
        %8087 = vmatprep.subr.mxu0 0.0
        %8088 = vmatpush1.msra.mxu0 0.0
        %8089 = vmatprep.subr.mxu0 0.0
        %8090 = vmatpush1.msra.mxu0 0.0
        %8091 = vmatprep.subr.mxu0 0.0
        %8092 = vmatpush1.msra.mxu0 %v8018
        %8093 = vmatprep.subr.mxu0 0.0
        %8094 = vmatpush1.msra.mxu0 %v8017
        %8095 = vmatprep.subr.mxu0 0.0
        %8096 = vmatpush1.msra.mxu0 %v8016
        %8097 = vmatprep.subr.mxu0 0.0
        %8098 = vmatpush1.msra.mxu0 %v8015
        %8099 = vmatprep.subr.mxu0 0.0
        %8100 = vmatpush2.msra.mxu0 0.0
        %8101 = vmatprep.subr.mxu0 0.0
        %8102 = vmatpush2.msra.mxu0 0.0
        %8103 = vmatprep.subr.mxu0 0.0
        %8104 = vmatpush2.msra.mxu0 0.0
        %8105 = vmatprep.subr.mxu0 0.0
        %8106 = vmatpush2.msra.mxu0 0.0
        %8107 = vmatprep.subr.mxu0 0.0
        %8108 = vmatpush2.msra.mxu0 0.0
        %8109 = vmatprep.subr.mxu0 0.0
        %8110 = vmatpush2.msra.mxu0 0.0
        %8111 = vmatprep.subr.mxu0 0.0
        %8112 = vmatpush2.msra.mxu0 0.0
        %8113 = vmatprep.subr.mxu0 0.0
        %8114 = vmatpush2.msra.mxu0 0.0
        %8115 = vmatprep.subr.mxu0 0.0
        %8116 = vmatpush2.msra.mxu0 0.0
        %8117 = vmatprep.subr.mxu0 0.0
        %8118 = vmatpush2.msra.mxu0 0.0
        %8119 = vmatprep.subr.mxu0 0.0
        %8120 = vmatpush2.msra.mxu0 0.0
        %8121 = vmatprep.subr.mxu0 0.0
        %8122 = vmatpush2.msra.mxu0 0.0
        %8123 = vmatprep.subr.mxu0 0.0
        %8124 = vmatpush2.msra.mxu0 0.0
        %8125 = vmatprep.subr.mxu0 0.0
        %8126 = vmatpush2.msra.mxu0 0.0
        %8127 = vmatprep.subr.mxu0 0.0
        %8128 = vmatpush2.msra.mxu0 0.0
        %8129 = vmatprep.subr.mxu0 0.0
        %8130 = vmatpush2.msra.mxu0 0.0
        %8131 = vmatprep.mubr.f32.mxu0 0.0
        %8132 = vmatmul.mubr.f32.gmra.mxu0 %v8020
        %v8133 = vpop.f32.mrf.mxu0
        %v8134 = vadd.f32 0.0, %v8133
        %v8135 = vpop.f32.mrf.mxu0
        %8136 = vmatprep.mubr.f32.mxu0 0.0
        %8137 = vmatmul.mubr.f32.gmra.mxu0 %v8023
        %v8138 = vpop.f32.mrf.mxu0
        %v8139 = vadd.f32 0.0, %v8138
        %v8140 = vpop.f32.mrf.mxu0
        %8141 = vmatprep.mubr.f32.mxu0 0.0
        %8142 = vmatmul.mubr.f32.gmra.mxu0 %v8026
        %v8143 = vpop.f32.mrf.mxu0
        %v8144 = vadd.f32 0.0, %v8143
        %v8145 = vpop.f32.mrf.mxu0
        %8146 = vmatprep.mubr.f32.mxu0 0.0
        %8147 = vmatmul.mubr.f32.gmra.mxu0 %v8029
        %v8148 = vpop.f32.mrf.mxu0
        %v8149 = vadd.f32 0.0, %v8148
        %v8150 = vpop.f32.mrf.mxu0
        %8151 = vmatprep.mubr.f32.mxu0 0.0
        %8152 = vmatmul.mubr.f32.gmra.mxu0 %v8032
        %v8153 = vpop.f32.mrf.mxu0
        %v8154 = vadd.f32 0.0, %v8153
        %v8155 = vpop.f32.mrf.mxu0
        %8156 = vmatprep.mubr.f32.mxu0 0.0
        %8157 = vmatmul.mubr.f32.gmra.mxu0 %v8035
        %v8158 = vpop.f32.mrf.mxu0
        %v8159 = vadd.f32 0.0, %v8158
        %v8160 = vpop.f32.mrf.mxu0
        %8161 = vmatprep.mubr.f32.mxu0 0.0
        %8162 = vmatmul.mubr.f32.gmra.mxu0 %v8038
        %v8163 = vpop.f32.mrf.mxu0
        %v8164 = vadd.f32 0.0, %v8163
        %v8165 = vpop.f32.mrf.mxu0
        %8166 = vmatprep.mubr.f32.mxu0 0.0
        %8167 = vmatmul.mubr.f32.gmra.mxu0 %v8041
        %v8168 = vpop.f32.mrf.mxu0
        %v8169 = vadd.f32 0.0, %v8168
        %v8170 = vpop.f32.mrf.mxu0
        %8171 = vmatprep.mubr.f32.mxu0 0.0
        %8172 = vmatmul.mubr.f32.gmra.mxu0 %v8044
        %v8173 = vpop.f32.mrf.mxu0
        %v8174 = vadd.f32 0.0, %v8173
        %v8175 = vpop.f32.mrf.mxu0
        %8176 = vmatprep.mubr.f32.mxu0 0.0
        %8177 = vmatmul.mubr.f32.gmra.mxu0 %v8047
        %v8178 = vpop.f32.mrf.mxu0
        %v8179 = vadd.f32 0.0, %v8178
        %v8180 = vpop.f32.mrf.mxu0
        %8181 = vmatprep.mubr.f32.mxu0 0.0
        %8182 = vmatmul.mubr.f32.gmra.mxu0 %v8050
        %v8183 = vpop.f32.mrf.mxu0
        %v8184 = vadd.f32 0.0, %v8183
        %v8185 = vpop.f32.mrf.mxu0
        %8186 = vmatprep.mubr.f32.mxu0 0.0
        %8187 = vmatmul.mubr.f32.gmra.mxu0 %v8053
        %v8188 = vpop.f32.mrf.mxu0
        %v8189 = vadd.f32 0.0, %v8188
        %v8190 = vpop.f32.mrf.mxu0
        %8191 = vmatprep.mubr.f32.mxu0 0.0
        %8192 = vmatmul.mubr.f32.gmra.mxu0 %v8056
        %v8193 = vpop.f32.mrf.mxu0
        %v8194 = vadd.f32 0.0, %v8193
        %v8195 = vpop.f32.mrf.mxu0
        %8196 = vmatprep.mubr.f32.mxu0 0.0
        %8197 = vmatmul.mubr.f32.gmra.mxu0 %v8059
        %v8198 = vpop.f32.mrf.mxu0
        %v8199 = vadd.f32 0.0, %v8198
        %v8200 = vpop.f32.mrf.mxu0
        %8201 = vmatprep.mubr.f32.mxu0 0.0
        %8202 = vmatmul.mubr.f32.gmra.mxu0 %v8062
        %v8203 = vpop.f32.mrf.mxu0
        %v8204 = vadd.f32 0.0, %v8203
        %v8205 = vpop.f32.mrf.mxu0
        %8206 = vmatprep.mubr.f32.mxu0 0.0
        %8207 = vmatmul.mubr.f32.gmra.mxu0 %v8065
        %v8208 = vpop.f32.mrf.mxu0
        %v8209 = vadd.f32 0.0, %v8208
        %v8210 = vpop.f32.mrf.mxu0
        %8211 = vdwg.mxu0
        %v8212 = vadd.f32 %v7982, %v8134
        %v8213 = vadd.f32 %v7983, %v8139
        %v8214 = vadd.f32 %v7984, %v8144
        %v8215 = vadd.f32 %v7985, %v8149
        %v8216 = vadd.f32 %v7986, %v8154
        %v8217 = vadd.f32 %v7987, %v8159
        %v8218 = vadd.f32 %v7988, %v8164
        %v8219 = vadd.f32 %v7989, %v8169
        %v8220 = vadd.f32 %v7990, %v8174
        %v8221 = vadd.f32 %v7991, %v8179
        %v8222 = vadd.f32 %v7992, %v8184
        %v8223 = vadd.f32 %v7993, %v8189
        %v8224 = vadd.f32 %v7994, %v8194
        %v8225 = vadd.f32 %v7995, %v8199
        %v8226 = vadd.f32 %v7996, %v8204
        %v8227 = vadd.f32 %v7997, %v8209
        %s8228 = scalar_lea.vmem [#allocation2], 112
        %v8229 = vld [vmem:[%s8228] sm:$0xff]
        %v8230 = vld [vmem:[%s8228 + $0x8] sm:$0xff]
        %v8231 = vld [vmem:[%s8228 + $0x10] sm:$0xff]
        %v8232 = vld [vmem:[%s8228 + $0x18] sm:$0xff]
        %v8233 = vld [vmem:[%s8228 + $0x30] sm:$0xff]
        %v8234 = vld [vmem:[%s8228 + $0x38] sm:$0xff]
        %v8235 = vld [vmem:[%s8228 + $0x40] sm:$0xff]
        %v8236 = vld [vmem:[%s8228 + $0x48] sm:$0xff]
        %v8237 = vld [vmem:[%s8228 + $0x60] sm:$0xff]
        %v8238 = vld [vmem:[%s8228 + $0x68] sm:$0xff]
        %v8239 = vld [vmem:[%s8228 + $0x70] sm:$0xff]
        %v8240 = vld [vmem:[%s8228 + $0x78] sm:$0xff]
        %v8241 = vld [vmem:[%s8228 + $0x90] sm:$0xff]
        %v8242 = vld [vmem:[%s8228 + $0x98] sm:$0xff]
        %v8243 = vld [vmem:[%s8228 + $0xa0] sm:$0xff]
        %v8244 = vld [vmem:[%s8228 + $0xa8] sm:$0xff]
        %v8245 = vld [vmem:[%s3 + $0x300] sm:$0xff]
        %v8246 = vld [vmem:[%s3 + $0x308] sm:$0xff]
        %v8247 = vld [vmem:[%s3 + $0x310] sm:$0xff]
        %v8248 = vld [vmem:[%s3 + $0x318] sm:$0xff]
        %v8250 = vsel %vm2573, %v8229, 0
        %v8253 = vsel %vm2573, %v8230, 0
        %v8256 = vsel %vm2573, %v8231, 0
        %v8259 = vsel %vm2573, %v8232, 0
        %v8262 = vsel %vm2573, %v8233, 0
        %v8265 = vsel %vm2573, %v8234, 0
        %v8268 = vsel %vm2573, %v8235, 0
        %v8271 = vsel %vm2573, %v8236, 0
        %v8274 = vsel %vm2573, %v8237, 0
        %v8277 = vsel %vm2573, %v8238, 0
        %v8280 = vsel %vm2573, %v8239, 0
        %v8283 = vsel %vm2573, %v8240, 0
        %v8286 = vsel %vm2573, %v8241, 0
        %v8289 = vsel %vm2573, %v8242, 0
        %v8292 = vsel %vm2573, %v8243, 0
        %v8295 = vsel %vm2573, %v8244, 0
        %8297 = vmatprep.subr.mxu0 0.0
        %8298 = vmatpush1.msra.mxu0 0.0
        %8299 = vmatprep.subr.mxu0 0.0
        %8300 = vmatpush1.msra.mxu0 0.0
        %8301 = vmatprep.subr.mxu0 0.0
        %8302 = vmatpush1.msra.mxu0 0.0
        %8303 = vmatprep.subr.mxu0 0.0
        %8304 = vmatpush1.msra.mxu0 0.0
        %8305 = vmatprep.subr.mxu0 0.0
        %8306 = vmatpush1.msra.mxu0 0.0
        %8307 = vmatprep.subr.mxu0 0.0
        %8308 = vmatpush1.msra.mxu0 0.0
        %8309 = vmatprep.subr.mxu0 0.0
        %8310 = vmatpush1.msra.mxu0 0.0
        %8311 = vmatprep.subr.mxu0 0.0
        %8312 = vmatpush1.msra.mxu0 0.0
        %8313 = vmatprep.subr.mxu0 0.0
        %8314 = vmatpush1.msra.mxu0 0.0
        %8315 = vmatprep.subr.mxu0 0.0
        %8316 = vmatpush1.msra.mxu0 0.0
        %8317 = vmatprep.subr.mxu0 0.0
        %8318 = vmatpush1.msra.mxu0 0.0
        %8319 = vmatprep.subr.mxu0 0.0
        %8320 = vmatpush1.msra.mxu0 0.0
        %8321 = vmatprep.subr.mxu0 0.0
        %8322 = vmatpush1.msra.mxu0 %v8248
        %8323 = vmatprep.subr.mxu0 0.0
        %8324 = vmatpush1.msra.mxu0 %v8247
        %8325 = vmatprep.subr.mxu0 0.0
        %8326 = vmatpush1.msra.mxu0 %v8246
        %8327 = vmatprep.subr.mxu0 0.0
        %8328 = vmatpush1.msra.mxu0 %v8245
        %8329 = vmatprep.subr.mxu0 0.0
        %8330 = vmatpush2.msra.mxu0 0.0
        %8331 = vmatprep.subr.mxu0 0.0
        %8332 = vmatpush2.msra.mxu0 0.0
        %8333 = vmatprep.subr.mxu0 0.0
        %8334 = vmatpush2.msra.mxu0 0.0
        %8335 = vmatprep.subr.mxu0 0.0
        %8336 = vmatpush2.msra.mxu0 0.0
        %8337 = vmatprep.subr.mxu0 0.0
        %8338 = vmatpush2.msra.mxu0 0.0
        %8339 = vmatprep.subr.mxu0 0.0
        %8340 = vmatpush2.msra.mxu0 0.0
        %8341 = vmatprep.subr.mxu0 0.0
        %8342 = vmatpush2.msra.mxu0 0.0
        %8343 = vmatprep.subr.mxu0 0.0
        %8344 = vmatpush2.msra.mxu0 0.0
        %8345 = vmatprep.subr.mxu0 0.0
        %8346 = vmatpush2.msra.mxu0 0.0
        %8347 = vmatprep.subr.mxu0 0.0
        %8348 = vmatpush2.msra.mxu0 0.0
        %8349 = vmatprep.subr.mxu0 0.0
        %8350 = vmatpush2.msra.mxu0 0.0
        %8351 = vmatprep.subr.mxu0 0.0
        %8352 = vmatpush2.msra.mxu0 0.0
        %8353 = vmatprep.subr.mxu0 0.0
        %8354 = vmatpush2.msra.mxu0 0.0
        %8355 = vmatprep.subr.mxu0 0.0
        %8356 = vmatpush2.msra.mxu0 0.0
        %8357 = vmatprep.subr.mxu0 0.0
        %8358 = vmatpush2.msra.mxu0 0.0
        %8359 = vmatprep.subr.mxu0 0.0
        %8360 = vmatpush2.msra.mxu0 0.0
        %8361 = vmatprep.mubr.f32.mxu0 0.0
        %8362 = vmatmul.mubr.f32.gmra.mxu0 %v8250
        %v8363 = vpop.f32.mrf.mxu0
        %v8364 = vadd.f32 0.0, %v8363
        %v8365 = vpop.f32.mrf.mxu0
        %8366 = vmatprep.mubr.f32.mxu0 0.0
        %8367 = vmatmul.mubr.f32.gmra.mxu0 %v8253
        %v8368 = vpop.f32.mrf.mxu0
        %v8369 = vadd.f32 0.0, %v8368
        %v8370 = vpop.f32.mrf.mxu0
        %8371 = vmatprep.mubr.f32.mxu0 0.0
        %8372 = vmatmul.mubr.f32.gmra.mxu0 %v8256
        %v8373 = vpop.f32.mrf.mxu0
        %v8374 = vadd.f32 0.0, %v8373
        %v8375 = vpop.f32.mrf.mxu0
        %8376 = vmatprep.mubr.f32.mxu0 0.0
        %8377 = vmatmul.mubr.f32.gmra.mxu0 %v8259
        %v8378 = vpop.f32.mrf.mxu0
        %v8379 = vadd.f32 0.0, %v8378
        %v8380 = vpop.f32.mrf.mxu0
        %8381 = vmatprep.mubr.f32.mxu0 0.0
        %8382 = vmatmul.mubr.f32.gmra.mxu0 %v8262
        %v8383 = vpop.f32.mrf.mxu0
        %v8384 = vadd.f32 0.0, %v8383
        %v8385 = vpop.f32.mrf.mxu0
        %8386 = vmatprep.mubr.f32.mxu0 0.0
        %8387 = vmatmul.mubr.f32.gmra.mxu0 %v8265
        %v8388 = vpop.f32.mrf.mxu0
        %v8389 = vadd.f32 0.0, %v8388
        %v8390 = vpop.f32.mrf.mxu0
        %8391 = vmatprep.mubr.f32.mxu0 0.0
        %8392 = vmatmul.mubr.f32.gmra.mxu0 %v8268
        %v8393 = vpop.f32.mrf.mxu0
        %v8394 = vadd.f32 0.0, %v8393
        %v8395 = vpop.f32.mrf.mxu0
        %8396 = vmatprep.mubr.f32.mxu0 0.0
        %8397 = vmatmul.mubr.f32.gmra.mxu0 %v8271
        %v8398 = vpop.f32.mrf.mxu0
        %v8399 = vadd.f32 0.0, %v8398
        %v8400 = vpop.f32.mrf.mxu0
        %8401 = vmatprep.mubr.f32.mxu0 0.0
        %8402 = vmatmul.mubr.f32.gmra.mxu0 %v8274
        %v8403 = vpop.f32.mrf.mxu0
        %v8404 = vadd.f32 0.0, %v8403
        %v8405 = vpop.f32.mrf.mxu0
        %8406 = vmatprep.mubr.f32.mxu0 0.0
        %8407 = vmatmul.mubr.f32.gmra.mxu0 %v8277
        %v8408 = vpop.f32.mrf.mxu0
        %v8409 = vadd.f32 0.0, %v8408
        %v8410 = vpop.f32.mrf.mxu0
        %8411 = vmatprep.mubr.f32.mxu0 0.0
        %8412 = vmatmul.mubr.f32.gmra.mxu0 %v8280
        %v8413 = vpop.f32.mrf.mxu0
        %v8414 = vadd.f32 0.0, %v8413
        %v8415 = vpop.f32.mrf.mxu0
        %8416 = vmatprep.mubr.f32.mxu0 0.0
        %8417 = vmatmul.mubr.f32.gmra.mxu0 %v8283
        %v8418 = vpop.f32.mrf.mxu0
        %v8419 = vadd.f32 0.0, %v8418
        %v8420 = vpop.f32.mrf.mxu0
        %8421 = vmatprep.mubr.f32.mxu0 0.0
        %8422 = vmatmul.mubr.f32.gmra.mxu0 %v8286
        %v8423 = vpop.f32.mrf.mxu0
        %v8424 = vadd.f32 0.0, %v8423
        %v8425 = vpop.f32.mrf.mxu0
        %8426 = vmatprep.mubr.f32.mxu0 0.0
        %8427 = vmatmul.mubr.f32.gmra.mxu0 %v8289
        %v8428 = vpop.f32.mrf.mxu0
        %v8429 = vadd.f32 0.0, %v8428
        %v8430 = vpop.f32.mrf.mxu0
        %8431 = vmatprep.mubr.f32.mxu0 0.0
        %8432 = vmatmul.mubr.f32.gmra.mxu0 %v8292
        %v8433 = vpop.f32.mrf.mxu0
        %v8434 = vadd.f32 0.0, %v8433
        %v8435 = vpop.f32.mrf.mxu0
        %8436 = vmatprep.mubr.f32.mxu0 0.0
        %8437 = vmatmul.mubr.f32.gmra.mxu0 %v8295
        %v8438 = vpop.f32.mrf.mxu0
        %v8439 = vadd.f32 0.0, %v8438
        %v8440 = vpop.f32.mrf.mxu0
        %8441 = vdwg.mxu0
        %v8442 = vadd.f32 %v8212, %v8364
        %v8443 = vadd.f32 %v8213, %v8369
        %v8444 = vadd.f32 %v8214, %v8374
        %v8445 = vadd.f32 %v8215, %v8379
        %v8446 = vadd.f32 %v8216, %v8384
        %v8447 = vadd.f32 %v8217, %v8389
        %v8448 = vadd.f32 %v8218, %v8394
        %v8449 = vadd.f32 %v8219, %v8399
        %v8450 = vadd.f32 %v8220, %v8404
        %v8451 = vadd.f32 %v8221, %v8409
        %v8452 = vadd.f32 %v8222, %v8414
        %v8453 = vadd.f32 %v8223, %v8419
        %v8454 = vadd.f32 %v8224, %v8424
        %v8455 = vadd.f32 %v8225, %v8429
        %v8456 = vadd.f32 %v8226, %v8434
        %v8457 = vadd.f32 %v8227, %v8439
        %v8458 = vld [vmem:[%s4] sm:$0x1]
        %v8460 = vlaneseq
        %v8461 = vshrl.u32 %v8460, 7
        %v8462 = vsub.s32 0, %v8461
        %v8463 = vrot.slane %v8458, %v8462
        %v8465 = vadd.f32 %v8442, %v8463
        %v8466 = vadd.f32 %v8443, %v8463
        %v8467 = vadd.f32 %v8444, %v8463
        %v8468 = vadd.f32 %v8445, %v8463
        %v8469 = vadd.f32 %v8446, %v8463
        %v8470 = vadd.f32 %v8447, %v8463
        %v8471 = vadd.f32 %v8448, %v8463
        %v8472 = vadd.f32 %v8449, %v8463
        %v8473 = vadd.f32 %v8450, %v8463
        %v8474 = vadd.f32 %v8451, %v8463
        %v8475 = vadd.f32 %v8452, %v8463
        %v8476 = vadd.f32 %v8453, %v8463
        %v8477 = vadd.f32 %v8454, %v8463
        %v8478 = vadd.f32 %v8455, %v8463
        %v8479 = vadd.f32 %v8456, %v8463
        %v8480 = vadd.f32 %v8457, %v8463
        %v8481 = vmax.f32 %v8465, 0.0
        %v8482 = vmax.f32 %v8466, 0.0
        %v8483 = vmax.f32 %v8467, 0.0
        %v8484 = vmax.f32 %v8468, 0.0
        %v8485 = vmax.f32 %v8469, 0.0
        %v8486 = vmax.f32 %v8470, 0.0
        %v8487 = vmax.f32 %v8471, 0.0
        %v8488 = vmax.f32 %v8472, 0.0
        %v8489 = vmax.f32 %v8473, 0.0
        %v8490 = vmax.f32 %v8474, 0.0
        %v8491 = vmax.f32 %v8475, 0.0
        %v8492 = vmax.f32 %v8476, 0.0
        %v8493 = vmax.f32 %v8477, 0.0
        %v8494 = vmax.f32 %v8478, 0.0
        %v8495 = vmax.f32 %v8479, 0.0
        %v8496 = vmax.f32 %v8480, 0.0
        %v8497 = vmax.f32 %v8481, %v8482
        %v8498 = vmax.f32 %v8485, %v8486
        %v8499 = vmax.f32 %v8497, %v8498
        %v8500 = vld [vmem:[%s5] sm:$0xff]
        %v8501 = vld [vmem:[%s5 + $0x8] sm:$0xff]
        %v8502 = vld [vmem:[%s5 + $0x10] sm:$0xff]
        %v8503 = vld [vmem:[%s5 + $0x18] sm:$0xff]
        %v8504 = vld [vmem:[%s5 + $0x20] sm:$0xff]
        %v8505 = vld [vmem:[%s5 + $0x28] sm:$0xff]
        %v8506 = vld [vmem:[%s5 + $0x30] sm:$0xff]
        %v8507 = vld [vmem:[%s5 + $0x38] sm:$0xff]
        %v8508 = vmax.f32 %v8483, %v8484
        %v8509 = vmax.f32 %v8487, %v8488
        %v8510 = vmax.f32 %v8508, %v8509
        %v8511 = vld [vmem:[%s5 + $0x40] sm:$0xff]
        %v8512 = vld [vmem:[%s5 + $0x48] sm:$0xff]
        %v8513 = vld [vmem:[%s5 + $0x50] sm:$0xff]
        %v8514 = vld [vmem:[%s5 + $0x58] sm:$0xff]
        %v8515 = vld [vmem:[%s5 + $0x60] sm:$0xff]
        %v8516 = vld [vmem:[%s5 + $0x68] sm:$0xff]
        %v8517 = vld [vmem:[%s5 + $0x70] sm:$0xff]
        %v8518 = vld [vmem:[%s5 + $0x78] sm:$0xff]
        %vm8519 = vcmask 523264
        %v8521 = vsel %vm8519, %v8510, 0
        %8523 = vmatprep.subr.mxu0 0.0
        %8524 = vmatpush1.msra.mxu0 0.0
        %8525 = vmatprep.subr.mxu0 0.0
        %8526 = vmatpush1.msra.mxu0 0.0
        %8527 = vmatprep.subr.mxu0 0.0
        %8528 = vmatpush1.msra.mxu0 0.0
        %8529 = vmatprep.subr.mxu0 0.0
        %8530 = vmatpush1.msra.mxu0 0.0
        %8531 = vmatprep.subr.mxu0 0.0
        %8532 = vmatpush1.msra.mxu0 0.0
        %8533 = vmatprep.subr.mxu0 0.0
        %8534 = vmatpush1.msra.mxu0 0.0
        %8535 = vmatprep.subr.mxu0 0.0
        %8536 = vmatpush1.msra.mxu0 0.0
        %8537 = vmatprep.subr.mxu0 0.0
        %8538 = vmatpush1.msra.mxu0 0.0
        %8539 = vmatprep.subr.mxu0 0.0
        %8540 = vmatpush1.msra.mxu0 %v8518
        %8541 = vmatprep.subr.mxu0 0.0
        %8542 = vmatpush1.msra.mxu0 %v8517
        %8543 = vmatprep.subr.mxu0 0.0
        %8544 = vmatpush1.msra.mxu0 %v8516
        %8545 = vmatprep.subr.mxu0 0.0
        %8546 = vmatpush1.msra.mxu0 %v8515
        %8547 = vmatprep.subr.mxu0 0.0
        %8548 = vmatpush1.msra.mxu0 %v8514
        %8549 = vmatprep.subr.mxu0 0.0
        %8550 = vmatpush1.msra.mxu0 %v8513
        %8551 = vmatprep.subr.mxu0 0.0
        %8552 = vmatpush1.msra.mxu0 %v8512
        %8553 = vmatprep.subr.mxu0 0.0
        %8554 = vmatpush1.msra.mxu0 %v8511
        %8555 = vmatprep.subr.mxu0 0.0
        %8556 = vmatpush2.msra.mxu0 0.0
        %8557 = vmatprep.subr.mxu0 0.0
        %8558 = vmatpush2.msra.mxu0 0.0
        %8559 = vmatprep.subr.mxu0 0.0
        %8560 = vmatpush2.msra.mxu0 0.0
        %8561 = vmatprep.subr.mxu0 0.0
        %8562 = vmatpush2.msra.mxu0 0.0
        %8563 = vmatprep.subr.mxu0 0.0
        %8564 = vmatpush2.msra.mxu0 0.0
        %8565 = vmatprep.subr.mxu0 0.0
        %8566 = vmatpush2.msra.mxu0 0.0
        %8567 = vmatprep.subr.mxu0 0.0
        %8568 = vmatpush2.msra.mxu0 0.0
        %8569 = vmatprep.subr.mxu0 0.0
        %8570 = vmatpush2.msra.mxu0 0.0
        %8571 = vmatprep.subr.mxu0 0.0
        %8572 = vmatpush2.msra.mxu0 0.0
        %8573 = vmatprep.subr.mxu0 0.0
        %8574 = vmatpush2.msra.mxu0 0.0
        %8575 = vmatprep.subr.mxu0 0.0
        %8576 = vmatpush2.msra.mxu0 0.0
        %8577 = vmatprep.subr.mxu0 0.0
        %8578 = vmatpush2.msra.mxu0 0.0
        %8579 = vmatprep.subr.mxu0 0.0
        %8580 = vmatpush2.msra.mxu0 0.0
        %8581 = vmatprep.subr.mxu0 0.0
        %8582 = vmatpush2.msra.mxu0 0.0
        %8583 = vmatprep.subr.mxu0 0.0
        %8584 = vmatpush2.msra.mxu0 0.0
        %8585 = vmatprep.subr.mxu0 0.0
        %8586 = vmatpush2.msra.mxu0 0.0
        %8587 = vmatprep.mubr.f32.mxu0 0.0
        %8588 = vmatmul.mubr.f32.gmra.mxu0 %v8521
        %v8589 = vpop.f32.mrf.mxu0
        %v8590 = vadd.f32 0.0, %v8589
        %v8591 = vpop.f32.mrf.mxu0
        %8592 = vdwg.mxu0
        %v8594 = vsel %vm8519, %v8499, 0
        %8596 = vmatprep.subr.mxu0 0.0
        %8597 = vmatpush1.msra.mxu0 0.0
        %8598 = vmatprep.subr.mxu0 0.0
        %8599 = vmatpush1.msra.mxu0 0.0
        %8600 = vmatprep.subr.mxu0 0.0
        %8601 = vmatpush1.msra.mxu0 0.0
        %8602 = vmatprep.subr.mxu0 0.0
        %8603 = vmatpush1.msra.mxu0 0.0
        %8604 = vmatprep.subr.mxu0 0.0
        %8605 = vmatpush1.msra.mxu0 0.0
        %8606 = vmatprep.subr.mxu0 0.0
        %8607 = vmatpush1.msra.mxu0 0.0
        %8608 = vmatprep.subr.mxu0 0.0
        %8609 = vmatpush1.msra.mxu0 0.0
        %8610 = vmatprep.subr.mxu0 0.0
        %8611 = vmatpush1.msra.mxu0 0.0
        %8612 = vmatprep.subr.mxu0 0.0
        %8613 = vmatpush1.msra.mxu0 %v8507
        %8614 = vmatprep.subr.mxu0 0.0
        %8615 = vmatpush1.msra.mxu0 %v8506
        %8616 = vmatprep.subr.mxu0 0.0
        %8617 = vmatpush1.msra.mxu0 %v8505
        %8618 = vmatprep.subr.mxu0 0.0
        %8619 = vmatpush1.msra.mxu0 %v8504
        %8620 = vmatprep.subr.mxu0 0.0
        %8621 = vmatpush1.msra.mxu0 %v8503
        %8622 = vmatprep.subr.mxu0 0.0
        %8623 = vmatpush1.msra.mxu0 %v8502
        %8624 = vmatprep.subr.mxu0 0.0
        %8625 = vmatpush1.msra.mxu0 %v8501
        %8626 = vmatprep.subr.mxu0 0.0
        %8627 = vmatpush1.msra.mxu0 %v8500
        %8628 = vmatprep.subr.mxu0 0.0
        %8629 = vmatpush2.msra.mxu0 0.0
        %8630 = vmatprep.subr.mxu0 0.0
        %8631 = vmatpush2.msra.mxu0 0.0
        %8632 = vmatprep.subr.mxu0 0.0
        %8633 = vmatpush2.msra.mxu0 0.0
        %8634 = vmatprep.subr.mxu0 0.0
        %8635 = vmatpush2.msra.mxu0 0.0
        %8636 = vmatprep.subr.mxu0 0.0
        %8637 = vmatpush2.msra.mxu0 0.0
        %8638 = vmatprep.subr.mxu0 0.0
        %8639 = vmatpush2.msra.mxu0 0.0
        %8640 = vmatprep.subr.mxu0 0.0
        %8641 = vmatpush2.msra.mxu0 0.0
        %8642 = vmatprep.subr.mxu0 0.0
        %8643 = vmatpush2.msra.mxu0 0.0
        %8644 = vmatprep.subr.mxu0 0.0
        %8645 = vmatpush2.msra.mxu0 0.0
        %8646 = vmatprep.subr.mxu0 0.0
        %8647 = vmatpush2.msra.mxu0 0.0
        %8648 = vmatprep.subr.mxu0 0.0
        %8649 = vmatpush2.msra.mxu0 0.0
        %8650 = vmatprep.subr.mxu0 0.0
        %8651 = vmatpush2.msra.mxu0 0.0
        %8652 = vmatprep.subr.mxu0 0.0
        %8653 = vmatpush2.msra.mxu0 0.0
        %8654 = vmatprep.subr.mxu0 0.0
        %8655 = vmatpush2.msra.mxu0 0.0
        %8656 = vmatprep.subr.mxu0 0.0
        %8657 = vmatpush2.msra.mxu0 0.0
        %8658 = vmatprep.subr.mxu0 0.0
        %8659 = vmatpush2.msra.mxu0 0.0
        %8660 = vmatprep.mubr.f32.mxu0 0.0
        %8661 = vmatmul.mubr.f32.gmra.mxu0 %v8594
        %v8662 = vpop.f32.mrf.mxu0
        %v8663 = vadd.f32 %v8590, %v8662
        %v8664 = vpop.f32.mrf.mxu0
        %8665 = vdwg.mxu0
        %v8666 = vmax.f32 %v8489, %v8490
        %v8667 = vmax.f32 %v8493, %v8494
        %v8668 = vmax.f32 %v8666, %v8667
        %v8669 = vld [vmem:[%s5 + $0x80] sm:$0xff]
        %v8670 = vld [vmem:[%s5 + $0x88] sm:$0xff]
        %v8671 = vld [vmem:[%s5 + $0x90] sm:$0xff]
        %v8672 = vld [vmem:[%s5 + $0x98] sm:$0xff]
        %v8673 = vld [vmem:[%s5 + $0xa0] sm:$0xff]
        %v8674 = vld [vmem:[%s5 + $0xa8] sm:$0xff]
        %v8675 = vld [vmem:[%s5 + $0xb0] sm:$0xff]
        %v8676 = vld [vmem:[%s5 + $0xb8] sm:$0xff]
        %v8678 = vsel %vm8519, %v8668, 0
        %8680 = vmatprep.subr.mxu0 0.0
        %8681 = vmatpush1.msra.mxu0 0.0
        %8682 = vmatprep.subr.mxu0 0.0
        %8683 = vmatpush1.msra.mxu0 0.0
        %8684 = vmatprep.subr.mxu0 0.0
        %8685 = vmatpush1.msra.mxu0 0.0
        %8686 = vmatprep.subr.mxu0 0.0
        %8687 = vmatpush1.msra.mxu0 0.0
        %8688 = vmatprep.subr.mxu0 0.0
        %8689 = vmatpush1.msra.mxu0 0.0
        %8690 = vmatprep.subr.mxu0 0.0
        %8691 = vmatpush1.msra.mxu0 0.0
        %8692 = vmatprep.subr.mxu0 0.0
        %8693 = vmatpush1.msra.mxu0 0.0
        %8694 = vmatprep.subr.mxu0 0.0
        %8695 = vmatpush1.msra.mxu0 0.0
        %8696 = vmatprep.subr.mxu0 0.0
        %8697 = vmatpush1.msra.mxu0 %v8676
        %8698 = vmatprep.subr.mxu0 0.0
        %8699 = vmatpush1.msra.mxu0 %v8675
        %8700 = vmatprep.subr.mxu0 0.0
        %8701 = vmatpush1.msra.mxu0 %v8674
        %8702 = vmatprep.subr.mxu0 0.0
        %8703 = vmatpush1.msra.mxu0 %v8673
        %8704 = vmatprep.subr.mxu0 0.0
        %8705 = vmatpush1.msra.mxu0 %v8672
        %8706 = vmatprep.subr.mxu0 0.0
        %8707 = vmatpush1.msra.mxu0 %v8671
        %8708 = vmatprep.subr.mxu0 0.0
        %8709 = vmatpush1.msra.mxu0 %v8670
        %8710 = vmatprep.subr.mxu0 0.0
        %8711 = vmatpush1.msra.mxu0 %v8669
        %8712 = vmatprep.subr.mxu0 0.0
        %8713 = vmatpush2.msra.mxu0 0.0
        %8714 = vmatprep.subr.mxu0 0.0
        %8715 = vmatpush2.msra.mxu0 0.0
        %8716 = vmatprep.subr.mxu0 0.0
        %8717 = vmatpush2.msra.mxu0 0.0
        %8718 = vmatprep.subr.mxu0 0.0
        %8719 = vmatpush2.msra.mxu0 0.0
        %8720 = vmatprep.subr.mxu0 0.0
        %8721 = vmatpush2.msra.mxu0 0.0
        %8722 = vmatprep.subr.mxu0 0.0
        %8723 = vmatpush2.msra.mxu0 0.0
        %8724 = vmatprep.subr.mxu0 0.0
        %8725 = vmatpush2.msra.mxu0 0.0
        %8726 = vmatprep.subr.mxu0 0.0
        %8727 = vmatpush2.msra.mxu0 0.0
        %8728 = vmatprep.subr.mxu0 0.0
        %8729 = vmatpush2.msra.mxu0 0.0
        %8730 = vmatprep.subr.mxu0 0.0
        %8731 = vmatpush2.msra.mxu0 0.0
        %8732 = vmatprep.subr.mxu0 0.0
        %8733 = vmatpush2.msra.mxu0 0.0
        %8734 = vmatprep.subr.mxu0 0.0
        %8735 = vmatpush2.msra.mxu0 0.0
        %8736 = vmatprep.subr.mxu0 0.0
        %8737 = vmatpush2.msra.mxu0 0.0
        %8738 = vmatprep.subr.mxu0 0.0
        %8739 = vmatpush2.msra.mxu0 0.0
        %8740 = vmatprep.subr.mxu0 0.0
        %8741 = vmatpush2.msra.mxu0 0.0
        %8742 = vmatprep.subr.mxu0 0.0
        %8743 = vmatpush2.msra.mxu0 0.0
        %8744 = vmatprep.mubr.f32.mxu0 0.0
        %8745 = vmatmul.mubr.f32.gmra.mxu0 %v8678
        %v8746 = vpop.f32.mrf.mxu0
        %v8747 = vadd.f32 0.0, %v8746
        %v8748 = vpop.f32.mrf.mxu0
        %8749 = vdwg.mxu0
        %v8750 = vadd.f32 %v8663, %v8747
        %v8751 = vmax.f32 %v8491, %v8492
        %v8752 = vmax.f32 %v8495, %v8496
        %v8753 = vmax.f32 %v8751, %v8752
        %v8754 = vld [vmem:[%s5 + $0xc0] sm:$0xff]
        %v8755 = vld [vmem:[%s5 + $0xc8] sm:$0xff]
        %v8756 = vld [vmem:[%s5 + $0xd0] sm:$0xff]
        %v8757 = vld [vmem:[%s5 + $0xd8] sm:$0xff]
        %v8758 = vld [vmem:[%s5 + $0xe0] sm:$0xff]
        %v8759 = vld [vmem:[%s5 + $0xe8] sm:$0xff]
        %v8760 = vld [vmem:[%s5 + $0xf0] sm:$0xff]
        %v8761 = vld [vmem:[%s5 + $0xf8] sm:$0xff]
        %v8763 = vsel %vm8519, %v8753, 0
        %8765 = vmatprep.subr.mxu0 0.0
        %8766 = vmatpush1.msra.mxu0 0.0
        %8767 = vmatprep.subr.mxu0 0.0
        %8768 = vmatpush1.msra.mxu0 0.0
        %8769 = vmatprep.subr.mxu0 0.0
        %8770 = vmatpush1.msra.mxu0 0.0
        %8771 = vmatprep.subr.mxu0 0.0
        %8772 = vmatpush1.msra.mxu0 0.0
        %8773 = vmatprep.subr.mxu0 0.0
        %8774 = vmatpush1.msra.mxu0 0.0
        %8775 = vmatprep.subr.mxu0 0.0
        %8776 = vmatpush1.msra.mxu0 0.0
        %8777 = vmatprep.subr.mxu0 0.0
        %8778 = vmatpush1.msra.mxu0 0.0
        %8779 = vmatprep.subr.mxu0 0.0
        %8780 = vmatpush1.msra.mxu0 0.0
        %8781 = vmatprep.subr.mxu0 0.0
        %8782 = vmatpush1.msra.mxu0 %v8761
        %8783 = vmatprep.subr.mxu0 0.0
        %8784 = vmatpush1.msra.mxu0 %v8760
        %8785 = vmatprep.subr.mxu0 0.0
        %8786 = vmatpush1.msra.mxu0 %v8759
        %8787 = vmatprep.subr.mxu0 0.0
        %8788 = vmatpush1.msra.mxu0 %v8758
        %8789 = vmatprep.subr.mxu0 0.0
        %8790 = vmatpush1.msra.mxu0 %v8757
        %8791 = vmatprep.subr.mxu0 0.0
        %8792 = vmatpush1.msra.mxu0 %v8756
        %8793 = vmatprep.subr.mxu0 0.0
        %8794 = vmatpush1.msra.mxu0 %v8755
        %8795 = vmatprep.subr.mxu0 0.0
        %8796 = vmatpush1.msra.mxu0 %v8754
        %8797 = vmatprep.subr.mxu0 0.0
        %8798 = vmatpush2.msra.mxu0 0.0
        %8799 = vmatprep.subr.mxu0 0.0
        %8800 = vmatpush2.msra.mxu0 0.0
        %8801 = vmatprep.subr.mxu0 0.0
        %8802 = vmatpush2.msra.mxu0 0.0
        %8803 = vmatprep.subr.mxu0 0.0
        %8804 = vmatpush2.msra.mxu0 0.0
        %8805 = vmatprep.subr.mxu0 0.0
        %8806 = vmatpush2.msra.mxu0 0.0
        %8807 = vmatprep.subr.mxu0 0.0
        %8808 = vmatpush2.msra.mxu0 0.0
        %8809 = vmatprep.subr.mxu0 0.0
        %8810 = vmatpush2.msra.mxu0 0.0
        %8811 = vmatprep.subr.mxu0 0.0
        %8812 = vmatpush2.msra.mxu0 0.0
        %8813 = vmatprep.subr.mxu0 0.0
        %8814 = vmatpush2.msra.mxu0 0.0
        %8815 = vmatprep.subr.mxu0 0.0
        %8816 = vmatpush2.msra.mxu0 0.0
        %8817 = vmatprep.subr.mxu0 0.0
        %8818 = vmatpush2.msra.mxu0 0.0
        %8819 = vmatprep.subr.mxu0 0.0
        %8820 = vmatpush2.msra.mxu0 0.0
        %8821 = vmatprep.subr.mxu0 0.0
        %8822 = vmatpush2.msra.mxu0 0.0
        %8823 = vmatprep.subr.mxu0 0.0
        %8824 = vmatpush2.msra.mxu0 0.0
        %8825 = vmatprep.subr.mxu0 0.0
        %8826 = vmatpush2.msra.mxu0 0.0
        %8827 = vmatprep.subr.mxu0 0.0
        %8828 = vmatpush2.msra.mxu0 0.0
        %8829 = vmatprep.mubr.f32.mxu0 0.0
        %8830 = vmatmul.mubr.f32.gmra.mxu0 %v8763
        %v8831 = vpop.f32.mrf.mxu0
        %v8832 = vadd.f32 0.0, %v8831
        %v8833 = vpop.f32.mrf.mxu0
        %8834 = vdwg.mxu0
        %v8835 = vadd.f32 %v8750, %v8832
        %v8836 = vld [vmem:[%s6] sm:$0x1]
        %v8838 = vlaneseq
        %v8839 = vshrl.u32 %v8838, 7
        %v8840 = vsub.s32 0, %v8839
        %v8841 = vrot.slane %v8836, %v8840
        %v8843 = vadd.f32 %v8835, %v8841
        %v8844 = vmax.f32 %v8843, 0.0
        %v8845 = vld [vmem:[%s7] sm:$0xff]
        %v8846 = vld [vmem:[%s7 + $0x8] sm:$0xff]
        %v8847 = vld [vmem:[%s7 + $0x10] sm:$0xff]
        %v8848 = vld [vmem:[%s7 + $0x18] sm:$0xff]
        %v8849 = vld [vmem:[%s8] sm:$0x1]
        %v8851 = vlaneseq
        %v8852 = vshrl.u32 %v8851, 7
        %v8853 = vsub.s32 0, %v8852
        %v8854 = vrot.slane %v8849, %v8853
        %v8857 = vsel %vm2573, %v8844, 0
        %8859 = vmatprep.subr.mxu0 0.0
        %8860 = vmatpush1.msra.mxu0 0.0
        %8861 = vmatprep.subr.mxu0 0.0
        %8862 = vmatpush1.msra.mxu0 0.0
        %8863 = vmatprep.subr.mxu0 0.0
        %8864 = vmatpush1.msra.mxu0 0.0
        %8865 = vmatprep.subr.mxu0 0.0
        %8866 = vmatpush1.msra.mxu0 0.0
        %8867 = vmatprep.subr.mxu0 0.0
        %8868 = vmatpush1.msra.mxu0 0.0
        %8869 = vmatprep.subr.mxu0 0.0
        %8870 = vmatpush1.msra.mxu0 0.0
        %8871 = vmatprep.subr.mxu0 0.0
        %8872 = vmatpush1.msra.mxu0 0.0
        %8873 = vmatprep.subr.mxu0 0.0
        %8874 = vmatpush1.msra.mxu0 0.0
        %8875 = vmatprep.subr.mxu0 0.0
        %8876 = vmatpush1.msra.mxu0 0.0
        %8877 = vmatprep.subr.mxu0 0.0
        %8878 = vmatpush1.msra.mxu0 0.0
        %8879 = vmatprep.subr.mxu0 0.0
        %8880 = vmatpush1.msra.mxu0 0.0
        %8881 = vmatprep.subr.mxu0 0.0
        %8882 = vmatpush1.msra.mxu0 0.0
        %8883 = vmatprep.subr.mxu0 0.0
        %8884 = vmatpush1.msra.mxu0 %v8848
        %8885 = vmatprep.subr.mxu0 0.0
        %8886 = vmatpush1.msra.mxu0 %v8847
        %8887 = vmatprep.subr.mxu0 0.0
        %8888 = vmatpush1.msra.mxu0 %v8846
        %8889 = vmatprep.subr.mxu0 0.0
        %8890 = vmatpush1.msra.mxu0 %v8845
        %8891 = vmatprep.subr.mxu0 0.0
        %8892 = vmatpush2.msra.mxu0 0.0
        %8893 = vmatprep.subr.mxu0 0.0
        %8894 = vmatpush2.msra.mxu0 0.0
        %8895 = vmatprep.subr.mxu0 0.0
        %8896 = vmatpush2.msra.mxu0 0.0
        %8897 = vmatprep.subr.mxu0 0.0
        %8898 = vmatpush2.msra.mxu0 0.0
        %8899 = vmatprep.subr.mxu0 0.0
        %8900 = vmatpush2.msra.mxu0 0.0
        %8901 = vmatprep.subr.mxu0 0.0
        %8902 = vmatpush2.msra.mxu0 0.0
        %8903 = vmatprep.subr.mxu0 0.0
        %8904 = vmatpush2.msra.mxu0 0.0
        %8905 = vmatprep.subr.mxu0 0.0
        %8906 = vmatpush2.msra.mxu0 0.0
        %8907 = vmatprep.subr.mxu0 0.0
        %8908 = vmatpush2.msra.mxu0 0.0
        %8909 = vmatprep.subr.mxu0 0.0
        %8910 = vmatpush2.msra.mxu0 0.0
        %8911 = vmatprep.subr.mxu0 0.0
        %8912 = vmatpush2.msra.mxu0 0.0
        %8913 = vmatprep.subr.mxu0 0.0
        %8914 = vmatpush2.msra.mxu0 0.0
        %8915 = vmatprep.subr.mxu0 0.0
        %8916 = vmatpush2.msra.mxu0 0.0
        %8917 = vmatprep.subr.mxu0 0.0
        %8918 = vmatpush2.msra.mxu0 0.0
        %8919 = vmatprep.subr.mxu0 0.0
        %8920 = vmatpush2.msra.mxu0 0.0
        %8921 = vmatprep.subr.mxu0 0.0
        %8922 = vmatpush2.msra.mxu0 0.0
        %8923 = vmatprep.mubr.f32.mxu0 0.0
        %8924 = vmatmul.mubr.f32.gmra.mxu0 %v8857
        %v8925 = vpop.f32.mrf.mxu0
        %v8926 = vadd.f32 %v8854, %v8925
        %v8927 = vpop.f32.mrf.mxu0
        %8928 = vdwg.mxu0
        %v8929 = vmax.f32 %v8926, 0.0
        %v8930 = vld [vmem:[%s9] sm:$0xff]
        %v8931 = vld [vmem:[%s9 + $0x8] sm:$0xff]
        %v8932 = vld [vmem:[%s10] sm:$0x1]
        %v8934 = vlaneseq
        %v8935 = vshrl.u32 %v8934, 7
        %v8936 = vsub.s32 0, %v8935
        %v8937 = vrot.slane %v8932, %v8936
        %vm8939 = vcmask 130048
        %v8941 = vsel %vm8939, %v8929, 0
        %8943 = vmatprep.subr.mxu0 0.0
        %8944 = vmatpush1.msra.mxu0 0.0
        %8945 = vmatprep.subr.mxu0 0.0
        %8946 = vmatpush1.msra.mxu0 0.0
        %8947 = vmatprep.subr.mxu0 0.0
        %8948 = vmatpush1.msra.mxu0 0.0
        %8949 = vmatprep.subr.mxu0 0.0
        %8950 = vmatpush1.msra.mxu0 0.0
        %8951 = vmatprep.subr.mxu0 0.0
        %8952 = vmatpush1.msra.mxu0 0.0
        %8953 = vmatprep.subr.mxu0 0.0
        %8954 = vmatpush1.msra.mxu0 0.0
        %8955 = vmatprep.subr.mxu0 0.0
        %8956 = vmatpush1.msra.mxu0 0.0
        %8957 = vmatprep.subr.mxu0 0.0
        %8958 = vmatpush1.msra.mxu0 0.0
        %8959 = vmatprep.subr.mxu0 0.0
        %8960 = vmatpush1.msra.mxu0 0.0
        %8961 = vmatprep.subr.mxu0 0.0
        %8962 = vmatpush1.msra.mxu0 0.0
        %8963 = vmatprep.subr.mxu0 0.0
        %8964 = vmatpush1.msra.mxu0 0.0
        %8965 = vmatprep.subr.mxu0 0.0
        %8966 = vmatpush1.msra.mxu0 0.0
        %8967 = vmatprep.subr.mxu0 0.0
        %8968 = vmatpush1.msra.mxu0 0.0
        %8969 = vmatprep.subr.mxu0 0.0
        %8970 = vmatpush1.msra.mxu0 0.0
        %8971 = vmatprep.subr.mxu0 0.0
        %8972 = vmatpush1.msra.mxu0 %v8931
        %8973 = vmatprep.subr.mxu0 0.0
        %8974 = vmatpush1.msra.mxu0 %v8930
        %8975 = vmatprep.subr.mxu0 0.0
        %8976 = vmatpush2.msra.mxu0 0.0
        %8977 = vmatprep.subr.mxu0 0.0
        %8978 = vmatpush2.msra.mxu0 0.0
        %8979 = vmatprep.subr.mxu0 0.0
        %8980 = vmatpush2.msra.mxu0 0.0
        %8981 = vmatprep.subr.mxu0 0.0
        %8982 = vmatpush2.msra.mxu0 0.0
        %8983 = vmatprep.subr.mxu0 0.0
        %8984 = vmatpush2.msra.mxu0 0.0
        %8985 = vmatprep.subr.mxu0 0.0
        %8986 = vmatpush2.msra.mxu0 0.0
        %8987 = vmatprep.subr.mxu0 0.0
        %8988 = vmatpush2.msra.mxu0 0.0
        %8989 = vmatprep.subr.mxu0 0.0
        %8990 = vmatpush2.msra.mxu0 0.0
        %8991 = vmatprep.subr.mxu0 0.0
        %8992 = vmatpush2.msra.mxu0 0.0
        %8993 = vmatprep.subr.mxu0 0.0
        %8994 = vmatpush2.msra.mxu0 0.0
        %8995 = vmatprep.subr.mxu0 0.0
        %8996 = vmatpush2.msra.mxu0 0.0
        %8997 = vmatprep.subr.mxu0 0.0
        %8998 = vmatpush2.msra.mxu0 0.0
        %8999 = vmatprep.subr.mxu0 0.0
        %9000 = vmatpush2.msra.mxu0 0.0
        %9001 = vmatprep.subr.mxu0 0.0
        %9002 = vmatpush2.msra.mxu0 0.0
        %9003 = vmatprep.subr.mxu0 0.0
        %9004 = vmatpush2.msra.mxu0 0.0
        %9005 = vmatprep.subr.mxu0 0.0
        %9006 = vmatpush2.msra.mxu0 0.0
        %9007 = vmatprep.mubr.f32.mxu0 0.0
        %9008 = vmatmul.mubr.f32.gmra.mxu0 %v8941
        %v9009 = vpop.f32.mrf.mxu0
        %v9010 = vadd.f32 %v8937, %v9009
        %v9011 = vpop.f32.mrf.mxu0
        %9012 = vdwg.mxu0
        %vm9013 = vcmask 80896
        %9014 = vst.msk [vmem:[%s380] sm:$0xff] %vm9013, %v9010
        %s9015 = sand.u32 %s269, 1
        %s9016 = scalar_lea.sflag [#allocation7], %s9015
        %s9017 = sand.u32 %s269, 1
        %s9018 = smul.addr %s9017, 8
        %s9019 = scalar_lea.vmem [#allocation6], %s9018
        // Predicated region
        $region65: #{convnet_forward.1} parent=63 // pred_check
          %p9020 = pneg %p279
        $region66: #{convnet_forward.1} parent=63 // pred_check_branch
          %9022 = sbr.rel (%p9020) target = $region68
        $region67: #{convnet_forward.1} parent=63 // pred_region
          %s9024 = ssub.s32 128, 128
          %9025 = vsyncadd %s9016, %s9024
          %s9026 = smul.addr %s25, 128
          %s9027 = scalar_lea.hbm %s11, %s9026
          %s9029 = sshll.u32 %s9019, 4
          %s9030 = int_to_ptr.vmem [resolvable:$true] %s9029
          %9032 = dma.vmem_to_hbm [thread:$0]  %s9030, 128, %s9027, %s9016
        $region68: #{convnet_forward.1} parent=63 // pred_fallthru
          _
      $region64: #{convnet_forward.1} parent=5 // pred_fallthru
        _
      %p9033 = scmp.le.s32.totalorder 2, %s20
      // Predicated region
      $region69: #{convnet_forward.1} parent=5 // pred_check
        %p9034 = pneg %p9033
      $region70: #{convnet_forward.1} parent=5 // pred_check_branch
        %9036 = sbr.rel (%p9034) target = $region72
      $region71: #{convnet_forward.1} parent=5 // pred_region
        %s9037 = ssub.s32 %s20, 2
        // Predicated region
        $region73: #{convnet_forward.1} parent=71 // pred_check
          %p9038 = pneg %p285
        $region74: #{convnet_forward.1} parent=71 // pred_check_branch
          %9040 = sbr.rel (%p9038) target = $region76
        $region75: #{convnet_forward.1} parent=71 // pred_region
          %s9041 = sand.u32 %s270, 1
          %s9042 = scalar_lea.sflag [#allocation7], %s9041
          %s9043 = sand.u32 %s270, 1
          %s9044 = smul.addr %s9043, 8
          %s9045 = scalar_lea.vmem [#allocation6], %s9044
          %9046 = dma.done %s9042, 128
        $region76: #{convnet_forward.1} parent=71 // pred_fallthru
          _
      $region72: #{convnet_forward.1} parent=5 // pred_fallthru
        _
    $region6: #{convnet_forward.1} parent=1 // loop_footer
      %s24 = sadd.s32 1, %s20
    $region7: #{convnet_forward.1} parent=1 // loop_footer_branch
      %19 = sbr.rel target = $region3
    $region8: #{convnet_forward.1} parent=1 // loop_exit
      _
    %9047 = vsyncpa [#allocation7], 1
    %s9048 = scalar_lea.sflag [#allocation7], 1
    %9049 = vsyncpa %s9048, 1

</llo_original>
